<compile_context>
chip_gen: v7x
topology: tpu7x:2x2x1
jax: 0.10.0
libtpu: 0.0.40
codegen_flags: <defaults>
</compile_context>

<pallas_src>
import functools

import jax
import jax.numpy as jnp
from jax.experimental import pallas as pl
from jax.experimental.pallas import tpu as pltpu

NEG_INF = -1e9                  # finite stand-in for -inf masks (avoids NaN rows)
_MXU_DTYPE = jnp.bfloat16       # matmul-operand dtype (f32 accumulate)
_VMEM_LIMIT = 32 * 1024 * 1024  # scoped-VMEM budget (fits v7x's 64 MiB physical)


# ----------------------------------------------------------------------------
# In-kernel helpers (traced inside the fused kernel)
# ----------------------------------------------------------------------------
def _mxdot(a, b):
    """MXU matmul with bf16 operands and f32 accumulation (no-op cast for bf16 weights)."""
    return jnp.dot(a.astype(_MXU_DTYPE), b.astype(_MXU_DTYPE),
                   preferred_element_type=jnp.float32)


def _layernorm(x, g, b):
    """LayerNorm over last axis, eps=1e-5 (PyTorch default). f32 math."""
    mean = jnp.mean(x, axis=-1, keepdims=True)
    var = jnp.mean(jnp.square(x - mean), axis=-1, keepdims=True)
    return (x - mean) * jax.lax.rsqrt(var + 1e-5) * g + b


def _mha(q, k, v, wo, bo, add_mask, num_heads):
    """All-heads attention + output projection for ONE batch element.

    q: (Sq, D) f32, k/v: (Sk, D) f32, wo: (D, D) bf16, bo: (1, D) f32,
    add_mask: additive f32 broadcastable to (Sq, Sk) or None.
    Output projection uses linearity: concat_h(o_h) @ Wo = sum_h o_h @ Wo[h*Dh:(h+1)*Dh, :].
    """
    Sq, D = q.shape
    Dh = D // num_heads
    scale = 1.0 / (Dh ** 0.5)
    qb = q.astype(_MXU_DTYPE)         # cast once per attention call (not per head)
    kb = k.astype(_MXU_DTYPE)
    vb = v.astype(_MXU_DTYPE)
    out = jnp.zeros((Sq, D), jnp.float32) + bo
    for h in range(num_heads):        # statically unrolled, H is small
        lo = h * Dh
        hi = lo + Dh
        # q . k^T via dot_general (contract last dims; no explicit transpose)
        s = jax.lax.dot_general(qb[:, lo:hi], kb[:, lo:hi], (((1,), (1,)), ((), ())),
                                preferred_element_type=jnp.float32) * scale
        if add_mask is not None:
            s = s + add_mask
        s = s - jnp.max(s, axis=-1, keepdims=True)
        p = jnp.exp(s)                                        # f32 softmax math
        p = p * (1.0 / jnp.sum(p, axis=-1, keepdims=True))    # exact normalization
        oh = jnp.dot(p.astype(_MXU_DTYPE), vb[:, lo:hi],
                     preferred_element_type=jnp.float32)
        out = out + _mxdot(oh, wo[lo:hi, :])
    return out


# ----------------------------------------------------------------------------
# The single fused forward kernel (one grid step = one batch block of Bh elements)
# ----------------------------------------------------------------------------
def _fused_forward_kernel(src_ref, tgt_ref, spad_ref, tpad_ref,
                          inw_ref, inb_ref,
                          e_wqkv, e_bqkv, e_wo, e_bo, e_ln1g, e_ln1b,
                          e_w1, e_b1, e_w2, e_b2, e_ln2g, e_ln2b,
                          e_fng, e_fnb,
                          d_sawqkv, d_sabqkv, d_sawo, d_sabo, d_ln1g, d_ln1b,
                          d_cawq, d_cabq, d_cawkv, d_cabkv, d_cawo, d_cabo,
                          d_ln2g, d_ln2b,
                          d_w1, d_b1, d_w2, d_b2, d_ln3g, d_ln3b,
                          d_fng, d_fnb,
                          outw_ref, outb_ref,
                          o_ref, *, num_heads, num_enc, num_dec, bh):
    Ss = src_ref.shape[1]
    St = tgt_ref.shape[1]
    D = inw_ref.shape[1]

    def load_flat(ref):
        if bh == 1:
            return ref[0].astype(jnp.float32)
        s = ref.shape
        return ref[...].reshape(bh * s[1], s[2]).astype(jnp.float32)

    # ---- shared input projection; batch folded into the matmul M dimension ----
    x = _mxdot(load_flat(src_ref), inw_ref[...]) + inb_ref[...]   # (bh*Ss, D)
    y = _mxdot(load_flat(tgt_ref), inw_ref[...]) + inb_ref[...]   # (bh*St, D)

    # Per-batch additive key-padding rows (from (1,S) int32 flags; no (Sq,Sk) HBM masks).
    spad = spad_ref[...]                                          # (bh, 1, Ss)
    tpad = tpad_ref[...]                                          # (bh, 1, St)
    src_addm = [jnp.where(spad[b] > 0, NEG_INF, 0.0).astype(jnp.float32)
                for b in range(bh)]
    # Causal mask built in-kernel (== nn.Transformer.generate_square_subsequent_mask).
    row = jax.lax.broadcasted_iota(jnp.int32, (St, St), 0)
    col = jax.lax.broadcasted_iota(jnp.int32, (St, St), 1)
    causal = jnp.where(row < col, NEG_INF, 0.0).astype(jnp.float32)
    tgt_addm = [causal + jnp.where(tpad[b] > 0, NEG_INF, 0.0).astype(jnp.float32)
                for b in range(bh)]

    def batched_attn(q, k, v, wo, bo, masks, sq, sk):
        """Attention per batch element (statically unrolled over bh); dense ops stay flat."""
        outs = []
        for b in range(bh):
            qb = q[b * sq:(b + 1) * sq, :]
            kb = k[b * sk:(b + 1) * sk, :]
            vb = v[b * sk:(b + 1) * sk, :]
            m = None if masks is None else masks[b]
            outs.append(_mha(qb, kb, vb, wo, bo, m, num_heads))
        return outs[0] if bh == 1 else jnp.concatenate(outs, axis=0)

    # ---- encoder stack (post-norm), statically unrolled over layers ----
    for li in range(num_enc):
        qkv = _mxdot(x, e_wqkv[li]) + e_bqkv[li]                  # fused QKV: (bh*Ss, 3D)
        q, k, v = qkv[:, :D], qkv[:, D:2 * D], qkv[:, 2 * D:]
        attn = batched_attn(q, k, v, e_wo[li], e_bo[li], src_addm, Ss, Ss)
        x = _layernorm(x + attn, e_ln1g[li], e_ln1b[li])
        h = jnp.maximum(_mxdot(x, e_w1[li]) + e_b1[li], 0.0)      # ReLU FFN
        f = _mxdot(h, e_w2[li]) + e_b2[li]
        x = _layernorm(x + f, e_ln2g[li], e_ln2b[li])
    mem = _layernorm(x, e_fng[...], e_fnb[...])                   # final encoder LayerNorm

    # ---- decoder stack (post-norm) ----
    for li in range(num_dec):
        # masked self-attention (causal + tgt key-padding)
        qkv = _mxdot(y, d_sawqkv[li]) + d_sabqkv[li]
        q, k, v = qkv[:, :D], qkv[:, D:2 * D], qkv[:, 2 * D:]
        sa = batched_attn(q, k, v, d_sawo[li], d_sabo[li], tgt_addm, St, St)
        y = _layernorm(y + sa, d_ln1g[li], d_ln1b[li])

        # cross-attention on encoder memory (no mask: memory masks are None in the module)
        q = _mxdot(y, d_cawq[li]) + d_cabq[li]
        kv = _mxdot(mem, d_cawkv[li]) + d_cabkv[li]               # fused K|V projection
        k, v = kv[:, :D], kv[:, D:]
        ca = batched_attn(q, k, v, d_cawo[li], d_cabo[li], None, St, Ss)
        y = _layernorm(y + ca, d_ln2g[li], d_ln2b[li])

        # feed-forward (ReLU)
        h = jnp.maximum(_mxdot(y, d_w1[li]) + d_b1[li], 0.0)
        f = _mxdot(h, d_w2[li]) + d_b2[li]
        y = _layernorm(y + f, d_ln3g[li], d_ln3b[li])

    # ---- final decoder LayerNorm + output projection ----
    y = _layernorm(y, d_fng[...], d_fnb[...])
    out = _mxdot(y, outw_ref[...]) + outb_ref[...]                # (bh*St, F_out)
    if bh == 1:
        o_ref[0] = out.astype(o_ref.dtype)
    else:
        o_ref[...] = out.reshape(bh, St, -1).astype(o_ref.dtype)


# ----------------------------------------------------------------------------
# Host-side parameter packing: stack per-layer weights, pre-cast matmul weights to bf16
# ----------------------------------------------------------------------------
def _stack_layers(layers, name, to_mxu=False):
    arrs = []
    for lp in layers:
        a = lp[name]
        if a.ndim == 1:
            a = a.reshape(1, -1)
        arrs.append(a)
    s = jnp.stack(arrs, axis=0)
    return s.astype(_MXU_DTYPE) if to_mxu else s


def pack_params(params):
    """One-time host-side prep: stacked (L, ...) layer weights, bf16 matmul weights."""
    enc = params["encoder_layers"]
    dec = params["decoder_layers"]
    D = params["in_proj"]["w"].shape[1]
    Fo = params["out_proj"]["w"].shape[1]
    packed = {
        "in_w": params["in_proj"]["w"].astype(_MXU_DTYPE),
        "in_b": params["in_proj"]["b"].reshape(1, D),
        "out_w": params["out_proj"]["w"].astype(_MXU_DTYPE),
        "out_b": params["out_proj"]["b"].reshape(1, Fo),
        "enc_fn_g": params["encoder_norm"]["g"].reshape(1, D),
        "enc_fn_b": params["encoder_norm"]["b"].reshape(1, D),
        "dec_fn_g": params["decoder_norm"]["g"].reshape(1, D),
        "dec_fn_b": params["decoder_norm"]["b"].reshape(1, D),
    }
    for name in ("wqkv", "wo", "w1", "w2"):
        packed["e_" + name] = _stack_layers(enc, name, True)
    for name in ("bqkv", "bo", "ln1_g", "ln1_b", "b1", "b2", "ln2_g", "ln2_b"):
        packed["e_" + name] = _stack_layers(enc, name)
    for name in ("sa_wqkv", "sa_wo", "ca_wq", "ca_wkv", "ca_wo", "w1", "w2"):
        packed["d_" + name] = _stack_layers(dec, name, True)
    for name in ("sa_bqkv", "sa_bo", "ln1_g", "ln1_b", "ca_bq", "ca_bkv", "ca_bo",
                 "ln2_g", "ln2_b", "b1", "b2", "ln3_g", "ln3_b"):
        packed["d_" + name] = _stack_layers(dec, name)
    return packed


# ----------------------------------------------------------------------------
# Forward pass: ONE pallas_call for the whole model
# ----------------------------------------------------------------------------
def particle_transformer_forward(packed, src, tgt, src_pad_mask, tgt_pad_mask, num_heads):
    """src/tgt: (B, S, dim_features) f32; pad masks: bool (B, S), True = padded key."""
    B, Ss, F = src.shape
    St = tgt.shape[1]
    D = packed["in_w"].shape[1]
    Fo = packed["out_w"].shape[1]
    Le = packed["e_wqkv"].shape[0]
    Ld = packed["d_sa_wqkv"].shape[0]

    # 2-way "parallel" batch split: feeds v7x's two TensorCores; negligible cost on v5e/v6e.
    G = 2 if (B % 2 == 0 and B >= 2) else 1
    Bh = B // G

    spad = src_pad_mask.astype(jnp.int32).reshape(B, 1, Ss)
    tpad = tgt_pad_mask.astype(jnp.int32).reshape(B, 1, St)

    args, specs = [], []

    def add(a, spec):
        args.append(a)
        specs.append(spec)

    def const(a):
        # full-array block, same block index for every grid step (resident in VMEM)
        add(a, pl.BlockSpec(a.shape, lambda g, _n=a.ndim: (0,) * _n))

    # batch-blocked activations / masks
    add(src, pl.BlockSpec((Bh, Ss, F), lambda g: (g, 0, 0)))
    add(tgt, pl.BlockSpec((Bh, St, F), lambda g: (g, 0, 0)))
    add(spad, pl.BlockSpec((Bh, 1, Ss), lambda g: (g, 0, 0)))
    add(tpad, pl.BlockSpec((Bh, 1, St), lambda g: (g, 0, 0)))

    # weights (order must match the kernel signature)
    const(packed["in_w"])
    const(packed["in_b"])
    for n in ("wqkv", "bqkv", "wo", "bo", "ln1_g", "ln1_b",
              "w1", "b1", "w2", "b2", "ln2_g", "ln2_b"):
        const(packed["e_" + n])
    const(packed["enc_fn_g"])
    const(packed["enc_fn_b"])
    for n in ("sa_wqkv", "sa_bqkv", "sa_wo", "sa_bo", "ln1_g", "ln1_b",
              "ca_wq", "ca_bq", "ca_wkv", "ca_bkv", "ca_wo", "ca_bo",
              "ln2_g", "ln2_b", "w1", "b1", "w2", "b2", "ln3_g", "ln3_b"):
        const(packed["d_" + n])
    const(packed["dec_fn_g"])
    const(packed["dec_fn_b"])
    const(packed["out_w"])
    const(packed["out_b"])

    return pl.pallas_call(
        functools.partial(_fused_forward_kernel, num_heads=num_heads,
                          num_enc=Le, num_dec=Ld, bh=Bh),
        out_shape=jax.ShapeDtypeStruct((B, St, Fo), src.dtype),
        grid=(G,),
        in_specs=specs,
        out_specs=pl.BlockSpec((Bh, St, Fo), lambda g: (g, 0, 0)),
        compiler_params=pltpu.CompilerParams(
            dimension_semantics=("parallel",), vmem_limit_bytes=_VMEM_LIMIT),
    )(*args)


# ----------------------------------------------------------------------------
# Deterministic parameter construction (fused QKV / KV weight layouts)
# ----------------------------------------------------------------------------
def _rand(key, shape):
    return jax.random.normal(key, shape, jnp.float32) * 0.02


def _init_linear(key, fan_in, fan_out):
    return {"w": _rand(key, (fan_in, fan_out)), "b": jnp.zeros((fan_out,), jnp.float32)}


def _init_ln(d):
    return {"g": jnp.ones((d,), jnp.float32), "b": jnp.zeros((d,), jnp.float32)}


def _init_self_attn(key, d):
    kq, kk, kv, ko = jax.random.split(key, 4)
    return {
        "wqkv": jnp.concatenate([_rand(kq, (d, d)), _rand(kk, (d, d)), _rand(kv, (d, d))], axis=1),
        "bqkv": jnp.zeros((3 * d,), jnp.float32),
        "wo": _rand(ko, (d, d)), "bo": jnp.zeros((d,), jnp.float32),
    }


def _init_cross_attn(key, d):
    kq, kk, kv, ko = jax.random.split(key, 4)
    return {
        "wq": _rand(kq, (d, d)), "bq": jnp.zeros((d,), jnp.float32),
        "wkv": jnp.concatenate([_rand(kk, (d, d)), _rand(kv, (d, d))], axis=1),
        "bkv": jnp.zeros((2 * d,), jnp.float32),
        "wo": _rand(ko, (d, d)), "bo": jnp.zeros((d,), jnp.float32),
    }


def _init_ffn(key, d, dff):
    k1, k2 = jax.random.split(key)
    return {"w1": _rand(k1, (d, dff)), "b1": jnp.zeros((dff,), jnp.float32),
            "w2": _rand(k2, (dff, d)), "b2": jnp.zeros((d,), jnp.float32)}


def init_params(key, dim_features, num_units, num_encoder_layers, num_decoder_layers):
    d = num_units
    dff = 4 * d
    keys = jax.random.split(key, 2 + num_encoder_layers + num_decoder_layers)
    params = {
        "in_proj": _init_linear(keys[0], dim_features, d),
        "out_proj": _init_linear(keys[1], d, dim_features),
        "encoder_norm": _init_ln(d),
        "decoder_norm": _init_ln(d),
        "encoder_layers": [],
        "decoder_layers": [],
    }
    for i in range(num_encoder_layers):
        ka, kf = jax.random.split(keys[2 + i])
        lp = {}
        lp.update(_init_self_attn(ka, d))
        ln1 = _init_ln(d); lp["ln1_g"], lp["ln1_b"] = ln1["g"], ln1["b"]
        lp.update(_init_ffn(kf, d, dff))
        ln2 = _init_ln(d); lp["ln2_g"], lp["ln2_b"] = ln2["g"], ln2["b"]
        params["encoder_layers"].append(lp)
    for i in range(num_decoder_layers):
        ka, kc, kf = jax.random.split(keys[2 + num_encoder_layers + i], 3)
        sa = _init_self_attn(ka, d)
        ca = _init_cross_attn(kc, d)
        ff = _init_ffn(kf, d, dff)
        lp = {
            "sa_wqkv": sa["wqkv"], "sa_bqkv": sa["bqkv"], "sa_wo": sa["wo"], "sa_bo": sa["bo"],
            "ca_wq": ca["wq"], "ca_bq": ca["bq"], "ca_wkv": ca["wkv"], "ca_bkv": ca["bkv"],
            "ca_wo": ca["wo"], "ca_bo": ca["bo"],
            "w1": ff["w1"], "b1": ff["b1"], "w2": ff["w2"], "b2": ff["b2"],
        }
        ln1, ln2, ln3 = _init_ln(d), _init_ln(d), _init_ln(d)
        lp["ln1_g"], lp["ln1_b"] = ln1["g"], ln1["b"]
        lp["ln2_g"], lp["ln2_b"] = ln2["g"], ln2["b"]
        lp["ln3_g"], lp["ln3_b"] = ln3["g"], ln3["b"]
        params["decoder_layers"].append(lp)
    return params


# ----------------------------------------------------------------------------
# Main
# ----------------------------------------------------------------------------
if __name__ == "__main__":
    # Shapes consistent with the module: 6 features (px,py,pz,E,M,ID),
    # num_units=32, num_heads=4, 2 encoder + 2 decoder layers.
    B, S_SRC, S_TGT = 2, 8, 8
    DIM_FEATURES, NUM_UNITS, NUM_HEADS = 6, 32, 4
    NUM_ENC, NUM_DEC = 2, 2

    root = jax.random.PRNGKey(0)
    k_par, k_src, k_tgt = jax.random.split(root, 3)

    params = init_params(k_par, DIM_FEATURES, NUM_UNITS, NUM_ENC, NUM_DEC)
    packed = pack_params(params)          # one-time host-side stacking + bf16 pre-cast

    src = jax.random.normal(k_src, (B, S_SRC, DIM_FEATURES), jnp.float32)
    tgt = jax.random.normal(k_tgt, (B, S_TGT, DIM_FEATURES), jnp.float32)

    # Key-padding masks (True = padded), matching the PyTorch convention.
    src_lens = jnp.array([8, 6])
    tgt_lens = jnp.array([7, 5])
    src_pad_mask = jnp.arange(S_SRC)[None, :] >= src_lens[:, None]
    tgt_pad_mask = jnp.arange(S_TGT)[None, :] >= tgt_lens[:, None]

    fwd = jax.jit(functools.partial(particle_transformer_forward, num_heads=NUM_HEADS))
    out = fwd(packed, src, tgt, src_pad_mask, tgt_pad_mask)
    out = jax.block_until_ready(out)

    assert out.shape == (B, S_TGT, DIM_FEATURES), out.shape
    assert bool(jnp.all(jnp.isfinite(out)))
    print("KERNEL_OK")
</pallas_src>

<mosaic_0001>
module attributes {stable_mosaic.version = 11 : i64} {
  func.func @_fused_forward_kernel(%arg0: i32, %arg1: memref<1x8x6xf32, #tpu.memory_space<vmem>>, %arg2: memref<1x8x6xf32, #tpu.memory_space<vmem>>, %arg3: memref<1x1x8xi32, #tpu.memory_space<vmem>>, %arg4: memref<1x1x8xi32, #tpu.memory_space<vmem>>, %arg5: memref<6x32xbf16, #tpu.memory_space<vmem>>, %arg6: memref<1x32xf32, #tpu.memory_space<vmem>>, %arg7: memref<2x32x96xbf16, #tpu.memory_space<vmem>>, %arg8: memref<2x1x96xf32, #tpu.memory_space<vmem>>, %arg9: memref<2x32x32xbf16, #tpu.memory_space<vmem>>, %arg10: memref<2x1x32xf32, #tpu.memory_space<vmem>>, %arg11: memref<2x1x32xf32, #tpu.memory_space<vmem>>, %arg12: memref<2x1x32xf32, #tpu.memory_space<vmem>>, %arg13: memref<2x32x128xbf16, #tpu.memory_space<vmem>>, %arg14: memref<2x1x128xf32, #tpu.memory_space<vmem>>, %arg15: memref<2x128x32xbf16, #tpu.memory_space<vmem>>, %arg16: memref<2x1x32xf32, #tpu.memory_space<vmem>>, %arg17: memref<2x1x32xf32, #tpu.memory_space<vmem>>, %arg18: memref<2x1x32xf32, #tpu.memory_space<vmem>>, %arg19: memref<1x32xf32, #tpu.memory_space<vmem>>, %arg20: memref<1x32xf32, #tpu.memory_space<vmem>>, %arg21: memref<2x32x96xbf16, #tpu.memory_space<vmem>>, %arg22: memref<2x1x96xf32, #tpu.memory_space<vmem>>, %arg23: memref<2x32x32xbf16, #tpu.memory_space<vmem>>, %arg24: memref<2x1x32xf32, #tpu.memory_space<vmem>>, %arg25: memref<2x1x32xf32, #tpu.memory_space<vmem>>, %arg26: memref<2x1x32xf32, #tpu.memory_space<vmem>>, %arg27: memref<2x32x32xbf16, #tpu.memory_space<vmem>>, %arg28: memref<2x1x32xf32, #tpu.memory_space<vmem>>, %arg29: memref<2x32x64xbf16, #tpu.memory_space<vmem>>, %arg30: memref<2x1x64xf32, #tpu.memory_space<vmem>>, %arg31: memref<2x32x32xbf16, #tpu.memory_space<vmem>>, %arg32: memref<2x1x32xf32, #tpu.memory_space<vmem>>, %arg33: memref<2x1x32xf32, #tpu.memory_space<vmem>>, %arg34: memref<2x1x32xf32, #tpu.memory_space<vmem>>, %arg35: memref<2x32x128xbf16, #tpu.memory_space<vmem>>, %arg36: memref<2x1x128xf32, #tpu.memory_space<vmem>>, %arg37: memref<2x128x32xbf16, #tpu.memory_space<vmem>>, %arg38: memref<2x1x32xf32, #tpu.memory_space<vmem>>, %arg39: memref<2x1x32xf32, #tpu.memory_space<vmem>>, %arg40: memref<2x1x32xf32, #tpu.memory_space<vmem>>, %arg41: memref<1x32xf32, #tpu.memory_space<vmem>>, %arg42: memref<1x32xf32, #tpu.memory_space<vmem>>, %arg43: memref<32x6xbf16, #tpu.memory_space<vmem>>, %arg44: memref<1x6xf32, #tpu.memory_space<vmem>>, %arg45: memref<1x8x6xf32, #tpu.memory_space<vmem>>) attributes {dimension_semantics = [#tpu.dimension_semantics<parallel>], iteration_bounds = array<i64: 2>, scalar_prefetch = 0 : i64, scratch_operands = 0 : i64, tpu.core_type = #tpu.core_type<tc>, window_params = [{transform_indices = @transform_0, window_bounds = array<i64: 1, 8, 6>}, {transform_indices = @transform_1, window_bounds = array<i64: 1, 8, 6>}, {transform_indices = @transform_2, window_bounds = array<i64: 1, 1, 8>}, {transform_indices = @transform_3, window_bounds = array<i64: 1, 1, 8>}, {pipeline_mode = #tpu.pipeline_mode<synchronous>, transform_indices = @transform_4, window_bounds = array<i64: 6, 32>}, {pipeline_mode = #tpu.pipeline_mode<synchronous>, transform_indices = @transform_5, window_bounds = array<i64: 1, 32>}, {pipeline_mode = #tpu.pipeline_mode<synchronous>, transform_indices = @transform_6, window_bounds = array<i64: 2, 32, 96>}, {pipeline_mode = #tpu.pipeline_mode<synchronous>, transform_indices = @transform_7, window_bounds = array<i64: 2, 1, 96>}, {pipeline_mode = #tpu.pipeline_mode<synchronous>, transform_indices = @transform_8, window_bounds = array<i64: 2, 32, 32>}, {pipeline_mode = #tpu.pipeline_mode<synchronous>, transform_indices = @transform_9, window_bounds = array<i64: 2, 1, 32>}, {pipeline_mode = #tpu.pipeline_mode<synchronous>, transform_indices = @transform_10, window_bounds = array<i64: 2, 1, 32>}, {pipeline_mode = #tpu.pipeline_mode<synchronous>, transform_indices = @transform_11, window_bounds = array<i64: 2, 1, 32>}, {pipeline_mode = #tpu.pipeline_mode<synchronous>, transform_indices = @transform_12, window_bounds = array<i64: 2, 32, 128>}, {pipeline_mode = #tpu.pipeline_mode<synchronous>, transform_indices = @transform_13, window_bounds = array<i64: 2, 1, 128>}, {pipeline_mode = #tpu.pipeline_mode<synchronous>, transform_indices = @transform_14, window_bounds = array<i64: 2, 128, 32>}, {pipeline_mode = #tpu.pipeline_mode<synchronous>, transform_indices = @transform_15, window_bounds = array<i64: 2, 1, 32>}, {pipeline_mode = #tpu.pipeline_mode<synchronous>, transform_indices = @transform_16, window_bounds = array<i64: 2, 1, 32>}, {pipeline_mode = #tpu.pipeline_mode<synchronous>, transform_indices = @transform_17, window_bounds = array<i64: 2, 1, 32>}, {pipeline_mode = #tpu.pipeline_mode<synchronous>, transform_indices = @transform_18, window_bounds = array<i64: 1, 32>}, {pipeline_mode = #tpu.pipeline_mode<synchronous>, transform_indices = @transform_19, window_bounds = array<i64: 1, 32>}, {pipeline_mode = #tpu.pipeline_mode<synchronous>, transform_indices = @transform_20, window_bounds = array<i64: 2, 32, 96>}, {pipeline_mode = #tpu.pipeline_mode<synchronous>, transform_indices = @transform_21, window_bounds = array<i64: 2, 1, 96>}, {pipeline_mode = #tpu.pipeline_mode<synchronous>, transform_indices = @transform_22, window_bounds = array<i64: 2, 32, 32>}, {pipeline_mode = #tpu.pipeline_mode<synchronous>, transform_indices = @transform_23, window_bounds = array<i64: 2, 1, 32>}, {pipeline_mode = #tpu.pipeline_mode<synchronous>, transform_indices = @transform_24, window_bounds = array<i64: 2, 1, 32>}, {pipeline_mode = #tpu.pipeline_mode<synchronous>, transform_indices = @transform_25, window_bounds = array<i64: 2, 1, 32>}, {pipeline_mode = #tpu.pipeline_mode<synchronous>, transform_indices = @transform_26, window_bounds = array<i64: 2, 32, 32>}, {pipeline_mode = #tpu.pipeline_mode<synchronous>, transform_indices = @transform_27, window_bounds = array<i64: 2, 1, 32>}, {pipeline_mode = #tpu.pipeline_mode<synchronous>, transform_indices = @transform_28, window_bounds = array<i64: 2, 32, 64>}, {pipeline_mode = #tpu.pipeline_mode<synchronous>, transform_indices = @transform_29, window_bounds = array<i64: 2, 1, 64>}, {pipeline_mode = #tpu.pipeline_mode<synchronous>, transform_indices = @transform_30, window_bounds = array<i64: 2, 32, 32>}, {pipeline_mode = #tpu.pipeline_mode<synchronous>, transform_indices = @transform_31, window_bounds = array<i64: 2, 1, 32>}, {pipeline_mode = #tpu.pipeline_mode<synchronous>, transform_indices = @transform_32, window_bounds = array<i64: 2, 1, 32>}, {pipeline_mode = #tpu.pipeline_mode<synchronous>, transform_indices = @transform_33, window_bounds = array<i64: 2, 1, 32>}, {pipeline_mode = #tpu.pipeline_mode<synchronous>, transform_indices = @transform_34, window_bounds = array<i64: 2, 32, 128>}, {pipeline_mode = #tpu.pipeline_mode<synchronous>, transform_indices = @transform_35, window_bounds = array<i64: 2, 1, 128>}, {pipeline_mode = #tpu.pipeline_mode<synchronous>, transform_indices = @transform_36, window_bounds = array<i64: 2, 128, 32>}, {pipeline_mode = #tpu.pipeline_mode<synchronous>, transform_indices = @transform_37, window_bounds = array<i64: 2, 1, 32>}, {pipeline_mode = #tpu.pipeline_mode<synchronous>, transform_indices = @transform_38, window_bounds = array<i64: 2, 1, 32>}, {pipeline_mode = #tpu.pipeline_mode<synchronous>, transform_indices = @transform_39, window_bounds = array<i64: 2, 1, 32>}, {pipeline_mode = #tpu.pipeline_mode<synchronous>, transform_indices = @transform_40, window_bounds = array<i64: 1, 32>}, {pipeline_mode = #tpu.pipeline_mode<synchronous>, transform_indices = @transform_41, window_bounds = array<i64: 1, 32>}, {pipeline_mode = #tpu.pipeline_mode<synchronous>, transform_indices = @transform_42, window_bounds = array<i64: 32, 6>}, {pipeline_mode = #tpu.pipeline_mode<synchronous>, transform_indices = @transform_43, window_bounds = array<i64: 1, 6>}, {transform_indices = @transform_44, window_bounds = array<i64: 1, 8, 6>}]} {
    %c0 = arith.constant 0 : index
    %c0_0 = arith.constant 0 : index
    %c0_1 = arith.constant 0 : index
    %0 = vector.load %arg1[%c0, %c0_0, %c0_1] : memref<1x8x6xf32, #tpu.memory_space<vmem>>, vector<1x8x6xf32>
    %1 = vector.shape_cast %0 : vector<1x8x6xf32> to vector<8x6xf32>
    %c0_2 = arith.constant 0 : index
    %c0_3 = arith.constant 0 : index
    %2 = vector.load %arg5[%c0_2, %c0_3] : memref<6x32xbf16, #tpu.memory_space<vmem>>, vector<6x32xbf16>
    %3 = arith.truncf %1 : vector<8x6xf32> to vector<8x6xbf16>
    %cst = arith.constant dense<0.000000e+00> : vector<8x32xf32>
    %4 = tpu.matmul %3, %2, %cst {dimension_numbers = #tpu.dot_dimension_numbers<[1], [0], [0], [1], [0, 0, 1, 1], [], []>} : vector<8x6xbf16>, vector<6x32xbf16>, vector<8x32xf32> -> vector<8x32xf32>
    %c0_4 = arith.constant 0 : index
    %c0_5 = arith.constant 0 : index
    %5 = vector.load %arg6[%c0_4, %c0_5] : memref<1x32xf32, #tpu.memory_space<vmem>>, vector<1x32xf32>
    %6 = vector.broadcast %5 : vector<1x32xf32> to vector<8x32xf32>
    %7 = arith.addf %4, %6 : vector<8x32xf32>
    %c0_6 = arith.constant 0 : index
    %c0_7 = arith.constant 0 : index
    %c0_8 = arith.constant 0 : index
    %8 = vector.load %arg2[%c0_6, %c0_7, %c0_8] : memref<1x8x6xf32, #tpu.memory_space<vmem>>, vector<1x8x6xf32>
    %9 = vector.shape_cast %8 : vector<1x8x6xf32> to vector<8x6xf32>
    %c0_9 = arith.constant 0 : index
    %c0_10 = arith.constant 0 : index
    %10 = vector.load %arg5[%c0_9, %c0_10] : memref<6x32xbf16, #tpu.memory_space<vmem>>, vector<6x32xbf16>
    %11 = arith.truncf %9 : vector<8x6xf32> to vector<8x6xbf16>
    %cst_11 = arith.constant dense<0.000000e+00> : vector<8x32xf32>
    %12 = tpu.matmul %11, %10, %cst_11 {dimension_numbers = #tpu.dot_dimension_numbers<[1], [0], [0], [1], [0, 0, 1, 1], [], []>} : vector<8x6xbf16>, vector<6x32xbf16>, vector<8x32xf32> -> vector<8x32xf32>
    %c0_12 = arith.constant 0 : index
    %c0_13 = arith.constant 0 : index
    %13 = vector.load %arg6[%c0_12, %c0_13] : memref<1x32xf32, #tpu.memory_space<vmem>>, vector<1x32xf32>
    %14 = vector.broadcast %13 : vector<1x32xf32> to vector<8x32xf32>
    %15 = arith.addf %12, %14 : vector<8x32xf32>
    %c0_14 = arith.constant 0 : index
    %c0_15 = arith.constant 0 : index
    %c0_16 = arith.constant 0 : index
    %16 = vector.load %arg3[%c0_14, %c0_15, %c0_16] : memref<1x1x8xi32, #tpu.memory_space<vmem>>, vector<1x1x8xi32>
    %c0_17 = arith.constant 0 : index
    %c0_18 = arith.constant 0 : index
    %c0_19 = arith.constant 0 : index
    %17 = vector.load %arg4[%c0_17, %c0_18, %c0_19] : memref<1x1x8xi32, #tpu.memory_space<vmem>>, vector<1x1x8xi32>
    %18 = vector.shape_cast %16 : vector<1x1x8xi32> to vector<1x8xi32>
    %c0_i32 = arith.constant 0 : i32
    %19 = vector.broadcast %c0_i32 : i32 to vector<1x8xi32>
    %20 = arith.cmpi sgt, %18, %19 : vector<1x8xi32>
    %cst_20 = arith.constant -1.000000e+09 : f32
    %cst_21 = arith.constant 0.000000e+00 : f32
    %21 = vector.broadcast %cst_20 : f32 to vector<1x8xf32>
    %22 = vector.broadcast %cst_21 : f32 to vector<1x8xf32>
    %23 = arith.select %20, %21, %22 : vector<1x8xi1>, vector<1x8xf32>
    %24 = tpu.iota {dimensions = array<i32: 0>} : vector<8x8xi32>
    %25 = tpu.iota {dimensions = array<i32: 1>} : vector<8x8xi32>
    %26 = arith.cmpi slt, %24, %25 : vector<8x8xi32>
    %cst_22 = arith.constant -1.000000e+09 : f32
    %cst_23 = arith.constant 0.000000e+00 : f32
    %27 = vector.broadcast %cst_22 : f32 to vector<8x8xf32>
    %28 = vector.broadcast %cst_23 : f32 to vector<8x8xf32>
    %29 = arith.select %26, %27, %28 : vector<8x8xi1>, vector<8x8xf32>
    %30 = vector.shape_cast %17 : vector<1x1x8xi32> to vector<1x8xi32>
    %c0_i32_24 = arith.constant 0 : i32
    %31 = vector.broadcast %c0_i32_24 : i32 to vector<1x8xi32>
    %32 = arith.cmpi sgt, %30, %31 : vector<1x8xi32>
    %cst_25 = arith.constant -1.000000e+09 : f32
    %cst_26 = arith.constant 0.000000e+00 : f32
    %33 = vector.broadcast %cst_25 : f32 to vector<1x8xf32>
    %34 = vector.broadcast %cst_26 : f32 to vector<1x8xf32>
    %35 = arith.select %32, %33, %34 : vector<1x8xi1>, vector<1x8xf32>
    %36 = vector.broadcast %35 : vector<1x8xf32> to vector<8x8xf32>
    %37 = arith.addf %29, %36 : vector<8x8xf32>
    %c0_27 = arith.constant 0 : index
    %c0_28 = arith.constant 0 : index
    %c0_29 = arith.constant 0 : index
    %38 = vector.load %arg7[%c0_27, %c0_28, %c0_29] : memref<2x32x96xbf16, #tpu.memory_space<vmem>>, vector<1x32x96xbf16>
    %39 = vector.shape_cast %38 : vector<1x32x96xbf16> to vector<32x96xbf16>
    %40 = arith.truncf %7 : vector<8x32xf32> to vector<8x32xbf16>
    %cst_30 = arith.constant dense<0.000000e+00> : vector<8x96xf32>
    %41 = tpu.matmul %40, %39, %cst_30 {dimension_numbers = #tpu.dot_dimension_numbers<[1], [0], [0], [1], [0, 0, 1, 1], [], []>} : vector<8x32xbf16>, vector<32x96xbf16>, vector<8x96xf32> -> vector<8x96xf32>
    %c0_31 = arith.constant 0 : index
    %c0_32 = arith.constant 0 : index
    %c0_33 = arith.constant 0 : index
    %42 = vector.load %arg8[%c0_31, %c0_32, %c0_33] : memref<2x1x96xf32, #tpu.memory_space<vmem>>, vector<1x1x96xf32>
    %43 = vector.shape_cast %42 : vector<1x1x96xf32> to vector<1x96xf32>
    %44 = vector.broadcast %43 : vector<1x96xf32> to vector<8x96xf32>
    %45 = arith.addf %41, %44 : vector<8x96xf32>
    %46 = vector.extract_strided_slice %45 {offsets = [0, 0], sizes = [8, 32], strides = [1, 1]} : vector<8x96xf32> to vector<8x32xf32>
    %47 = vector.extract_strided_slice %45 {offsets = [0, 32], sizes = [8, 32], strides = [1, 1]} : vector<8x96xf32> to vector<8x32xf32>
    %48 = vector.extract_strided_slice %45 {offsets = [0, 64], sizes = [8, 32], strides = [1, 1]} : vector<8x96xf32> to vector<8x32xf32>
    %c0_34 = arith.constant 0 : index
    %c0_35 = arith.constant 0 : index
    %c0_36 = arith.constant 0 : index
    %49 = vector.load %arg9[%c0_34, %c0_35, %c0_36] : memref<2x32x32xbf16, #tpu.memory_space<vmem>>, vector<1x32x32xbf16>
    %50 = vector.shape_cast %49 : vector<1x32x32xbf16> to vector<32x32xbf16>
    %c0_37 = arith.constant 0 : index
    %c0_38 = arith.constant 0 : index
    %c0_39 = arith.constant 0 : index
    %51 = vector.load %arg10[%c0_37, %c0_38, %c0_39] : memref<2x1x32xf32, #tpu.memory_space<vmem>>, vector<1x1x32xf32>
    %52 = vector.shape_cast %51 : vector<1x1x32xf32> to vector<1x32xf32>
    %53 = arith.truncf %46 : vector<8x32xf32> to vector<8x32xbf16>
    %54 = arith.truncf %47 : vector<8x32xf32> to vector<8x32xbf16>
    %55 = arith.truncf %48 : vector<8x32xf32> to vector<8x32xbf16>
    %cst_40 = arith.constant 0.000000e+00 : f32
    %56 = vector.broadcast %cst_40 : f32 to vector<8x32xf32>
    %57 = vector.broadcast %52 : vector<1x32xf32> to vector<8x32xf32>
    %58 = arith.addf %56, %57 : vector<8x32xf32>
    %59 = vector.extract_strided_slice %53 {offsets = [0, 0], sizes = [8, 8], strides = [1, 1]} : vector<8x32xbf16> to vector<8x8xbf16>
    %60 = vector.extract_strided_slice %54 {offsets = [0, 0], sizes = [8, 8], strides = [1, 1]} : vector<8x32xbf16> to vector<8x8xbf16>
    %cst_41 = arith.constant dense<0.000000e+00> : vector<8x8xf32>
    %61 = tpu.matmul %59, %60, %cst_41 {dimension_numbers = #tpu.dot_dimension_numbers<[1], [1], [0], [0], [0, 0, 1, 0], [], []>} : vector<8x8xbf16>, vector<8x8xbf16>, vector<8x8xf32> -> vector<8x8xf32>
    %cst_42 = arith.constant 0.353553385 : f32
    %62 = vector.broadcast %cst_42 : f32 to vector<8x8xf32>
    %63 = arith.mulf %61, %62 : vector<8x8xf32>
    %64 = vector.broadcast %23 : vector<1x8xf32> to vector<8x8xf32>
    %65 = arith.addf %63, %64 : vector<8x8xf32>
    %cst_43 = arith.constant dense<0xFF800000> : vector<8xf32>
    %66 = vector.multi_reduction <maximumf>, %65, %cst_43 [1] : vector<8x8xf32> to vector<8xf32>
    %67 = vector.shape_cast %66 : vector<8xf32> to vector<8x1xf32>
    %68 = vector.broadcast %67 : vector<8x1xf32> to vector<8x8xf32>
    %69 = arith.subf %65, %68 : vector<8x8xf32>
    %70 = math.exp %69 : vector<8x8xf32>
    %cst_44 = arith.constant dense<0.000000e+00> : vector<8xf32>
    %71 = vector.multi_reduction <add>, %70, %cst_44 [1] : vector<8x8xf32> to vector<8xf32>
    %72 = vector.shape_cast %71 : vector<8xf32> to vector<8x1xf32>
    %cst_45 = arith.constant 1.000000e+00 : f32
    %73 = vector.broadcast %cst_45 : f32 to vector<8x1xf32>
    %74 = arith.divf %73, %72 : vector<8x1xf32>
    %75 = vector.broadcast %74 : vector<8x1xf32> to vector<8x8xf32>
    %76 = arith.mulf %70, %75 : vector<8x8xf32>
    %77 = arith.truncf %76 : vector<8x8xf32> to vector<8x8xbf16>
    %78 = vector.extract_strided_slice %55 {offsets = [0, 0], sizes = [8, 8], strides = [1, 1]} : vector<8x32xbf16> to vector<8x8xbf16>
    %cst_46 = arith.constant dense<0.000000e+00> : vector<8x8xf32>
    %79 = tpu.matmul %77, %78, %cst_46 {dimension_numbers = #tpu.dot_dimension_numbers<[1], [0], [0], [1], [0, 0, 1, 1], [], []>} : vector<8x8xbf16>, vector<8x8xbf16>, vector<8x8xf32> -> vector<8x8xf32>
    %80 = vector.extract_strided_slice %50 {offsets = [0, 0], sizes = [8, 32], strides = [1, 1]} : vector<32x32xbf16> to vector<8x32xbf16>
    %81 = arith.truncf %79 : vector<8x8xf32> to vector<8x8xbf16>
    %cst_47 = arith.constant dense<0.000000e+00> : vector<8x32xf32>
    %82 = tpu.matmul %81, %80, %cst_47 {dimension_numbers = #tpu.dot_dimension_numbers<[1], [0], [0], [1], [0, 0, 1, 1], [], []>} : vector<8x8xbf16>, vector<8x32xbf16>, vector<8x32xf32> -> vector<8x32xf32>
    %83 = arith.addf %58, %82 : vector<8x32xf32>
    %84 = vector.extract_strided_slice %53 {offsets = [0, 8], sizes = [8, 8], strides = [1, 1]} : vector<8x32xbf16> to vector<8x8xbf16>
    %85 = vector.extract_strided_slice %54 {offsets = [0, 8], sizes = [8, 8], strides = [1, 1]} : vector<8x32xbf16> to vector<8x8xbf16>
    %cst_48 = arith.constant dense<0.000000e+00> : vector<8x8xf32>
    %86 = tpu.matmul %84, %85, %cst_48 {dimension_numbers = #tpu.dot_dimension_numbers<[1], [1], [0], [0], [0, 0, 1, 0], [], []>} : vector<8x8xbf16>, vector<8x8xbf16>, vector<8x8xf32> -> vector<8x8xf32>
    %cst_49 = arith.constant 0.353553385 : f32
    %87 = vector.broadcast %cst_49 : f32 to vector<8x8xf32>
    %88 = arith.mulf %86, %87 : vector<8x8xf32>
    %89 = vector.broadcast %23 : vector<1x8xf32> to vector<8x8xf32>
    %90 = arith.addf %88, %89 : vector<8x8xf32>
    %cst_50 = arith.constant dense<0xFF800000> : vector<8xf32>
    %91 = vector.multi_reduction <maximumf>, %90, %cst_50 [1] : vector<8x8xf32> to vector<8xf32>
    %92 = vector.shape_cast %91 : vector<8xf32> to vector<8x1xf32>
    %93 = vector.broadcast %92 : vector<8x1xf32> to vector<8x8xf32>
    %94 = arith.subf %90, %93 : vector<8x8xf32>
    %95 = math.exp %94 : vector<8x8xf32>
    %cst_51 = arith.constant dense<0.000000e+00> : vector<8xf32>
    %96 = vector.multi_reduction <add>, %95, %cst_51 [1] : vector<8x8xf32> to vector<8xf32>
    %97 = vector.shape_cast %96 : vector<8xf32> to vector<8x1xf32>
    %cst_52 = arith.constant 1.000000e+00 : f32
    %98 = vector.broadcast %cst_52 : f32 to vector<8x1xf32>
    %99 = arith.divf %98, %97 : vector<8x1xf32>
    %100 = vector.broadcast %99 : vector<8x1xf32> to vector<8x8xf32>
    %101 = arith.mulf %95, %100 : vector<8x8xf32>
    %102 = arith.truncf %101 : vector<8x8xf32> to vector<8x8xbf16>
    %103 = vector.extract_strided_slice %55 {offsets = [0, 8], sizes = [8, 8], strides = [1, 1]} : vector<8x32xbf16> to vector<8x8xbf16>
    %cst_53 = arith.constant dense<0.000000e+00> : vector<8x8xf32>
    %104 = tpu.matmul %102, %103, %cst_53 {dimension_numbers = #tpu.dot_dimension_numbers<[1], [0], [0], [1], [0, 0, 1, 1], [], []>} : vector<8x8xbf16>, vector<8x8xbf16>, vector<8x8xf32> -> vector<8x8xf32>
    %105 = vector.extract_strided_slice %50 {offsets = [8, 0], sizes = [8, 32], strides = [1, 1]} : vector<32x32xbf16> to vector<8x32xbf16>
    %106 = arith.truncf %104 : vector<8x8xf32> to vector<8x8xbf16>
    %cst_54 = arith.constant dense<0.000000e+00> : vector<8x32xf32>
    %107 = tpu.matmul %106, %105, %cst_54 {dimension_numbers = #tpu.dot_dimension_numbers<[1], [0], [0], [1], [0, 0, 1, 1], [], []>} : vector<8x8xbf16>, vector<8x32xbf16>, vector<8x32xf32> -> vector<8x32xf32>
    %108 = arith.addf %83, %107 : vector<8x32xf32>
    %109 = vector.extract_strided_slice %53 {offsets = [0, 16], sizes = [8, 8], strides = [1, 1]} : vector<8x32xbf16> to vector<8x8xbf16>
    %110 = vector.extract_strided_slice %54 {offsets = [0, 16], sizes = [8, 8], strides = [1, 1]} : vector<8x32xbf16> to vector<8x8xbf16>
    %cst_55 = arith.constant dense<0.000000e+00> : vector<8x8xf32>
    %111 = tpu.matmul %109, %110, %cst_55 {dimension_numbers = #tpu.dot_dimension_numbers<[1], [1], [0], [0], [0, 0, 1, 0], [], []>} : vector<8x8xbf16>, vector<8x8xbf16>, vector<8x8xf32> -> vector<8x8xf32>
    %cst_56 = arith.constant 0.353553385 : f32
    %112 = vector.broadcast %cst_56 : f32 to vector<8x8xf32>
    %113 = arith.mulf %111, %112 : vector<8x8xf32>
    %114 = vector.broadcast %23 : vector<1x8xf32> to vector<8x8xf32>
    %115 = arith.addf %113, %114 : vector<8x8xf32>
    %cst_57 = arith.constant dense<0xFF800000> : vector<8xf32>
    %116 = vector.multi_reduction <maximumf>, %115, %cst_57 [1] : vector<8x8xf32> to vector<8xf32>
    %117 = vector.shape_cast %116 : vector<8xf32> to vector<8x1xf32>
    %118 = vector.broadcast %117 : vector<8x1xf32> to vector<8x8xf32>
    %119 = arith.subf %115, %118 : vector<8x8xf32>
    %120 = math.exp %119 : vector<8x8xf32>
    %cst_58 = arith.constant dense<0.000000e+00> : vector<8xf32>
    %121 = vector.multi_reduction <add>, %120, %cst_58 [1] : vector<8x8xf32> to vector<8xf32>
    %122 = vector.shape_cast %121 : vector<8xf32> to vector<8x1xf32>
    %cst_59 = arith.constant 1.000000e+00 : f32
    %123 = vector.broadcast %cst_59 : f32 to vector<8x1xf32>
    %124 = arith.divf %123, %122 : vector<8x1xf32>
    %125 = vector.broadcast %124 : vector<8x1xf32> to vector<8x8xf32>
    %126 = arith.mulf %120, %125 : vector<8x8xf32>
    %127 = arith.truncf %126 : vector<8x8xf32> to vector<8x8xbf16>
    %128 = vector.extract_strided_slice %55 {offsets = [0, 16], sizes = [8, 8], strides = [1, 1]} : vector<8x32xbf16> to vector<8x8xbf16>
    %cst_60 = arith.constant dense<0.000000e+00> : vector<8x8xf32>
    %129 = tpu.matmul %127, %128, %cst_60 {dimension_numbers = #tpu.dot_dimension_numbers<[1], [0], [0], [1], [0, 0, 1, 1], [], []>} : vector<8x8xbf16>, vector<8x8xbf16>, vector<8x8xf32> -> vector<8x8xf32>
    %130 = vector.extract_strided_slice %50 {offsets = [16, 0], sizes = [8, 32], strides = [1, 1]} : vector<32x32xbf16> to vector<8x32xbf16>
    %131 = arith.truncf %129 : vector<8x8xf32> to vector<8x8xbf16>
    %cst_61 = arith.constant dense<0.000000e+00> : vector<8x32xf32>
    %132 = tpu.matmul %131, %130, %cst_61 {dimension_numbers = #tpu.dot_dimension_numbers<[1], [0], [0], [1], [0, 0, 1, 1], [], []>} : vector<8x8xbf16>, vector<8x32xbf16>, vector<8x32xf32> -> vector<8x32xf32>
    %133 = arith.addf %108, %132 : vector<8x32xf32>
    %134 = vector.extract_strided_slice %53 {offsets = [0, 24], sizes = [8, 8], strides = [1, 1]} : vector<8x32xbf16> to vector<8x8xbf16>
    %135 = vector.extract_strided_slice %54 {offsets = [0, 24], sizes = [8, 8], strides = [1, 1]} : vector<8x32xbf16> to vector<8x8xbf16>
    %cst_62 = arith.constant dense<0.000000e+00> : vector<8x8xf32>
    %136 = tpu.matmul %134, %135, %cst_62 {dimension_numbers = #tpu.dot_dimension_numbers<[1], [1], [0], [0], [0, 0, 1, 0], [], []>} : vector<8x8xbf16>, vector<8x8xbf16>, vector<8x8xf32> -> vector<8x8xf32>
    %cst_63 = arith.constant 0.353553385 : f32
    %137 = vector.broadcast %cst_63 : f32 to vector<8x8xf32>
    %138 = arith.mulf %136, %137 : vector<8x8xf32>
    %139 = vector.broadcast %23 : vector<1x8xf32> to vector<8x8xf32>
    %140 = arith.addf %138, %139 : vector<8x8xf32>
    %cst_64 = arith.constant dense<0xFF800000> : vector<8xf32>
    %141 = vector.multi_reduction <maximumf>, %140, %cst_64 [1] : vector<8x8xf32> to vector<8xf32>
    %142 = vector.shape_cast %141 : vector<8xf32> to vector<8x1xf32>
    %143 = vector.broadcast %142 : vector<8x1xf32> to vector<8x8xf32>
    %144 = arith.subf %140, %143 : vector<8x8xf32>
    %145 = math.exp %144 : vector<8x8xf32>
    %cst_65 = arith.constant dense<0.000000e+00> : vector<8xf32>
    %146 = vector.multi_reduction <add>, %145, %cst_65 [1] : vector<8x8xf32> to vector<8xf32>
    %147 = vector.shape_cast %146 : vector<8xf32> to vector<8x1xf32>
    %cst_66 = arith.constant 1.000000e+00 : f32
    %148 = vector.broadcast %cst_66 : f32 to vector<8x1xf32>
    %149 = arith.divf %148, %147 : vector<8x1xf32>
    %150 = vector.broadcast %149 : vector<8x1xf32> to vector<8x8xf32>
    %151 = arith.mulf %145, %150 : vector<8x8xf32>
    %152 = arith.truncf %151 : vector<8x8xf32> to vector<8x8xbf16>
    %153 = vector.extract_strided_slice %55 {offsets = [0, 24], sizes = [8, 8], strides = [1, 1]} : vector<8x32xbf16> to vector<8x8xbf16>
    %cst_67 = arith.constant dense<0.000000e+00> : vector<8x8xf32>
    %154 = tpu.matmul %152, %153, %cst_67 {dimension_numbers = #tpu.dot_dimension_numbers<[1], [0], [0], [1], [0, 0, 1, 1], [], []>} : vector<8x8xbf16>, vector<8x8xbf16>, vector<8x8xf32> -> vector<8x8xf32>
    %155 = vector.extract_strided_slice %50 {offsets = [24, 0], sizes = [8, 32], strides = [1, 1]} : vector<32x32xbf16> to vector<8x32xbf16>
    %156 = arith.truncf %154 : vector<8x8xf32> to vector<8x8xbf16>
    %cst_68 = arith.constant dense<0.000000e+00> : vector<8x32xf32>
    %157 = tpu.matmul %156, %155, %cst_68 {dimension_numbers = #tpu.dot_dimension_numbers<[1], [0], [0], [1], [0, 0, 1, 1], [], []>} : vector<8x8xbf16>, vector<8x32xbf16>, vector<8x32xf32> -> vector<8x32xf32>
    %158 = arith.addf %133, %157 : vector<8x32xf32>
    %159 = arith.addf %7, %158 : vector<8x32xf32>
    %c0_69 = arith.constant 0 : index
    %c0_70 = arith.constant 0 : index
    %c0_71 = arith.constant 0 : index
    %160 = vector.load %arg11[%c0_69, %c0_70, %c0_71] : memref<2x1x32xf32, #tpu.memory_space<vmem>>, vector<1x1x32xf32>
    %161 = vector.shape_cast %160 : vector<1x1x32xf32> to vector<1x32xf32>
    %c0_72 = arith.constant 0 : index
    %c0_73 = arith.constant 0 : index
    %c0_74 = arith.constant 0 : index
    %162 = vector.load %arg12[%c0_72, %c0_73, %c0_74] : memref<2x1x32xf32, #tpu.memory_space<vmem>>, vector<1x1x32xf32>
    %163 = vector.shape_cast %162 : vector<1x1x32xf32> to vector<1x32xf32>
    %cst_75 = arith.constant dense<0.000000e+00> : vector<8xf32>
    %164 = vector.multi_reduction <add>, %159, %cst_75 [1] : vector<8x32xf32> to vector<8xf32>
    %165 = vector.shape_cast %164 : vector<8xf32> to vector<8x1xf32>
    %cst_76 = arith.constant 3.200000e+01 : f32
    %166 = vector.broadcast %cst_76 : f32 to vector<8x1xf32>
    %167 = arith.divf %165, %166 : vector<8x1xf32>
    %168 = vector.broadcast %167 : vector<8x1xf32> to vector<8x32xf32>
    %169 = arith.subf %159, %168 : vector<8x32xf32>
    %170 = arith.mulf %169, %169 : vector<8x32xf32>
    %cst_77 = arith.constant dense<0.000000e+00> : vector<8xf32>
    %171 = vector.multi_reduction <add>, %170, %cst_77 [1] : vector<8x32xf32> to vector<8xf32>
    %172 = vector.shape_cast %171 : vector<8xf32> to vector<8x1xf32>
    %cst_78 = arith.constant 3.200000e+01 : f32
    %173 = vector.broadcast %cst_78 : f32 to vector<8x1xf32>
    %174 = arith.divf %172, %173 : vector<8x1xf32>
    %175 = vector.broadcast %167 : vector<8x1xf32> to vector<8x32xf32>
    %176 = arith.subf %159, %175 : vector<8x32xf32>
    %cst_79 = arith.constant 9.99999974E-6 : f32
    %177 = vector.broadcast %cst_79 : f32 to vector<8x1xf32>
    %178 = arith.addf %174, %177 : vector<8x1xf32>
    %179 = math.rsqrt %178 : vector<8x1xf32>
    %180 = vector.broadcast %179 : vector<8x1xf32> to vector<8x32xf32>
    %181 = arith.mulf %176, %180 : vector<8x32xf32>
    %182 = vector.broadcast %161 : vector<1x32xf32> to vector<8x32xf32>
    %183 = arith.mulf %181, %182 : vector<8x32xf32>
    %184 = vector.broadcast %163 : vector<1x32xf32> to vector<8x32xf32>
    %185 = arith.addf %183, %184 : vector<8x32xf32>
    %c0_80 = arith.constant 0 : index
    %c0_81 = arith.constant 0 : index
    %c0_82 = arith.constant 0 : index
    %186 = vector.load %arg13[%c0_80, %c0_81, %c0_82] : memref<2x32x128xbf16, #tpu.memory_space<vmem>>, vector<1x32x128xbf16>
    %187 = vector.shape_cast %186 : vector<1x32x128xbf16> to vector<32x128xbf16>
    %188 = arith.truncf %185 : vector<8x32xf32> to vector<8x32xbf16>
    %cst_83 = arith.constant dense<0.000000e+00> : vector<8x128xf32>
    %189 = tpu.matmul %188, %187, %cst_83 {dimension_numbers = #tpu.dot_dimension_numbers<[1], [0], [0], [1], [0, 0, 1, 1], [], []>} : vector<8x32xbf16>, vector<32x128xbf16>, vector<8x128xf32> -> vector<8x128xf32>
    %c0_84 = arith.constant 0 : index
    %c0_85 = arith.constant 0 : index
    %c0_86 = arith.constant 0 : index
    %190 = vector.load %arg14[%c0_84, %c0_85, %c0_86] : memref<2x1x128xf32, #tpu.memory_space<vmem>>, vector<1x1x128xf32>
    %191 = vector.shape_cast %190 : vector<1x1x128xf32> to vector<1x128xf32>
    %192 = vector.broadcast %191 : vector<1x128xf32> to vector<8x128xf32>
    %193 = arith.addf %189, %192 : vector<8x128xf32>
    %cst_87 = arith.constant 0.000000e+00 : f32
    %194 = vector.broadcast %cst_87 : f32 to vector<8x128xf32>
    %195 = arith.maximumf %193, %194 : vector<8x128xf32>
    %c0_88 = arith.constant 0 : index
    %c0_89 = arith.constant 0 : index
    %c0_90 = arith.constant 0 : index
    %196 = vector.load %arg15[%c0_88, %c0_89, %c0_90] : memref<2x128x32xbf16, #tpu.memory_space<vmem>>, vector<1x128x32xbf16>
    %197 = vector.shape_cast %196 : vector<1x128x32xbf16> to vector<128x32xbf16>
    %198 = arith.truncf %195 : vector<8x128xf32> to vector<8x128xbf16>
    %cst_91 = arith.constant dense<0.000000e+00> : vector<8x32xf32>
    %199 = tpu.matmul %198, %197, %cst_91 {dimension_numbers = #tpu.dot_dimension_numbers<[1], [0], [0], [1], [0, 0, 1, 1], [], []>} : vector<8x128xbf16>, vector<128x32xbf16>, vector<8x32xf32> -> vector<8x32xf32>
    %c0_92 = arith.constant 0 : index
    %c0_93 = arith.constant 0 : index
    %c0_94 = arith.constant 0 : index
    %200 = vector.load %arg16[%c0_92, %c0_93, %c0_94] : memref<2x1x32xf32, #tpu.memory_space<vmem>>, vector<1x1x32xf32>
    %201 = vector.shape_cast %200 : vector<1x1x32xf32> to vector<1x32xf32>
    %202 = vector.broadcast %201 : vector<1x32xf32> to vector<8x32xf32>
    %203 = arith.addf %199, %202 : vector<8x32xf32>
    %204 = arith.addf %185, %203 : vector<8x32xf32>
    %c0_95 = arith.constant 0 : index
    %c0_96 = arith.constant 0 : index
    %c0_97 = arith.constant 0 : index
    %205 = vector.load %arg17[%c0_95, %c0_96, %c0_97] : memref<2x1x32xf32, #tpu.memory_space<vmem>>, vector<1x1x32xf32>
    %206 = vector.shape_cast %205 : vector<1x1x32xf32> to vector<1x32xf32>
    %c0_98 = arith.constant 0 : index
    %c0_99 = arith.constant 0 : index
    %c0_100 = arith.constant 0 : index
    %207 = vector.load %arg18[%c0_98, %c0_99, %c0_100] : memref<2x1x32xf32, #tpu.memory_space<vmem>>, vector<1x1x32xf32>
    %208 = vector.shape_cast %207 : vector<1x1x32xf32> to vector<1x32xf32>
    %cst_101 = arith.constant dense<0.000000e+00> : vector<8xf32>
    %209 = vector.multi_reduction <add>, %204, %cst_101 [1] : vector<8x32xf32> to vector<8xf32>
    %210 = vector.shape_cast %209 : vector<8xf32> to vector<8x1xf32>
    %cst_102 = arith.constant 3.200000e+01 : f32
    %211 = vector.broadcast %cst_102 : f32 to vector<8x1xf32>
    %212 = arith.divf %210, %211 : vector<8x1xf32>
    %213 = vector.broadcast %212 : vector<8x1xf32> to vector<8x32xf32>
    %214 = arith.subf %204, %213 : vector<8x32xf32>
    %215 = arith.mulf %214, %214 : vector<8x32xf32>
    %cst_103 = arith.constant dense<0.000000e+00> : vector<8xf32>
    %216 = vector.multi_reduction <add>, %215, %cst_103 [1] : vector<8x32xf32> to vector<8xf32>
    %217 = vector.shape_cast %216 : vector<8xf32> to vector<8x1xf32>
    %cst_104 = arith.constant 3.200000e+01 : f32
    %218 = vector.broadcast %cst_104 : f32 to vector<8x1xf32>
    %219 = arith.divf %217, %218 : vector<8x1xf32>
    %220 = vector.broadcast %212 : vector<8x1xf32> to vector<8x32xf32>
    %221 = arith.subf %204, %220 : vector<8x32xf32>
    %cst_105 = arith.constant 9.99999974E-6 : f32
    %222 = vector.broadcast %cst_105 : f32 to vector<8x1xf32>
    %223 = arith.addf %219, %222 : vector<8x1xf32>
    %224 = math.rsqrt %223 : vector<8x1xf32>
    %225 = vector.broadcast %224 : vector<8x1xf32> to vector<8x32xf32>
    %226 = arith.mulf %221, %225 : vector<8x32xf32>
    %227 = vector.broadcast %206 : vector<1x32xf32> to vector<8x32xf32>
    %228 = arith.mulf %226, %227 : vector<8x32xf32>
    %229 = vector.broadcast %208 : vector<1x32xf32> to vector<8x32xf32>
    %230 = arith.addf %228, %229 : vector<8x32xf32>
    %c1 = arith.constant 1 : index
    %c0_106 = arith.constant 0 : index
    %c0_107 = arith.constant 0 : index
    %231 = vector.load %arg7[%c1, %c0_106, %c0_107] : memref<2x32x96xbf16, #tpu.memory_space<vmem>>, vector<1x32x96xbf16>
    %232 = vector.shape_cast %231 : vector<1x32x96xbf16> to vector<32x96xbf16>
    %233 = arith.truncf %230 : vector<8x32xf32> to vector<8x32xbf16>
    %cst_108 = arith.constant dense<0.000000e+00> : vector<8x96xf32>
    %234 = tpu.matmul %233, %232, %cst_108 {dimension_numbers = #tpu.dot_dimension_numbers<[1], [0], [0], [1], [0, 0, 1, 1], [], []>} : vector<8x32xbf16>, vector<32x96xbf16>, vector<8x96xf32> -> vector<8x96xf32>
    %c1_109 = arith.constant 1 : index
    %c0_110 = arith.constant 0 : index
    %c0_111 = arith.constant 0 : index
    %235 = vector.load %arg8[%c1_109, %c0_110, %c0_111] : memref<2x1x96xf32, #tpu.memory_space<vmem>>, vector<1x1x96xf32>
    %236 = vector.shape_cast %235 : vector<1x1x96xf32> to vector<1x96xf32>
    %237 = vector.broadcast %236 : vector<1x96xf32> to vector<8x96xf32>
    %238 = arith.addf %234, %237 : vector<8x96xf32>
    %239 = vector.extract_strided_slice %238 {offsets = [0, 0], sizes = [8, 32], strides = [1, 1]} : vector<8x96xf32> to vector<8x32xf32>
    %240 = vector.extract_strided_slice %238 {offsets = [0, 32], sizes = [8, 32], strides = [1, 1]} : vector<8x96xf32> to vector<8x32xf32>
    %241 = vector.extract_strided_slice %238 {offsets = [0, 64], sizes = [8, 32], strides = [1, 1]} : vector<8x96xf32> to vector<8x32xf32>
    %c1_112 = arith.constant 1 : index
    %c0_113 = arith.constant 0 : index
    %c0_114 = arith.constant 0 : index
    %242 = vector.load %arg9[%c1_112, %c0_113, %c0_114] : memref<2x32x32xbf16, #tpu.memory_space<vmem>>, vector<1x32x32xbf16>
    %243 = vector.shape_cast %242 : vector<1x32x32xbf16> to vector<32x32xbf16>
    %c1_115 = arith.constant 1 : index
    %c0_116 = arith.constant 0 : index
    %c0_117 = arith.constant 0 : index
    %244 = vector.load %arg10[%c1_115, %c0_116, %c0_117] : memref<2x1x32xf32, #tpu.memory_space<vmem>>, vector<1x1x32xf32>
    %245 = vector.shape_cast %244 : vector<1x1x32xf32> to vector<1x32xf32>
    %246 = arith.truncf %239 : vector<8x32xf32> to vector<8x32xbf16>
    %247 = arith.truncf %240 : vector<8x32xf32> to vector<8x32xbf16>
    %248 = arith.truncf %241 : vector<8x32xf32> to vector<8x32xbf16>
    %cst_118 = arith.constant 0.000000e+00 : f32
    %249 = vector.broadcast %cst_118 : f32 to vector<8x32xf32>
    %250 = vector.broadcast %245 : vector<1x32xf32> to vector<8x32xf32>
    %251 = arith.addf %249, %250 : vector<8x32xf32>
    %252 = vector.extract_strided_slice %246 {offsets = [0, 0], sizes = [8, 8], strides = [1, 1]} : vector<8x32xbf16> to vector<8x8xbf16>
    %253 = vector.extract_strided_slice %247 {offsets = [0, 0], sizes = [8, 8], strides = [1, 1]} : vector<8x32xbf16> to vector<8x8xbf16>
    %cst_119 = arith.constant dense<0.000000e+00> : vector<8x8xf32>
    %254 = tpu.matmul %252, %253, %cst_119 {dimension_numbers = #tpu.dot_dimension_numbers<[1], [1], [0], [0], [0, 0, 1, 0], [], []>} : vector<8x8xbf16>, vector<8x8xbf16>, vector<8x8xf32> -> vector<8x8xf32>
    %cst_120 = arith.constant 0.353553385 : f32
    %255 = vector.broadcast %cst_120 : f32 to vector<8x8xf32>
    %256 = arith.mulf %254, %255 : vector<8x8xf32>
    %257 = vector.broadcast %23 : vector<1x8xf32> to vector<8x8xf32>
    %258 = arith.addf %256, %257 : vector<8x8xf32>
    %cst_121 = arith.constant dense<0xFF800000> : vector<8xf32>
    %259 = vector.multi_reduction <maximumf>, %258, %cst_121 [1] : vector<8x8xf32> to vector<8xf32>
    %260 = vector.shape_cast %259 : vector<8xf32> to vector<8x1xf32>
    %261 = vector.broadcast %260 : vector<8x1xf32> to vector<8x8xf32>
    %262 = arith.subf %258, %261 : vector<8x8xf32>
    %263 = math.exp %262 : vector<8x8xf32>
    %cst_122 = arith.constant dense<0.000000e+00> : vector<8xf32>
    %264 = vector.multi_reduction <add>, %263, %cst_122 [1] : vector<8x8xf32> to vector<8xf32>
    %265 = vector.shape_cast %264 : vector<8xf32> to vector<8x1xf32>
    %cst_123 = arith.constant 1.000000e+00 : f32
    %266 = vector.broadcast %cst_123 : f32 to vector<8x1xf32>
    %267 = arith.divf %266, %265 : vector<8x1xf32>
    %268 = vector.broadcast %267 : vector<8x1xf32> to vector<8x8xf32>
    %269 = arith.mulf %263, %268 : vector<8x8xf32>
    %270 = arith.truncf %269 : vector<8x8xf32> to vector<8x8xbf16>
    %271 = vector.extract_strided_slice %248 {offsets = [0, 0], sizes = [8, 8], strides = [1, 1]} : vector<8x32xbf16> to vector<8x8xbf16>
    %cst_124 = arith.constant dense<0.000000e+00> : vector<8x8xf32>
    %272 = tpu.matmul %270, %271, %cst_124 {dimension_numbers = #tpu.dot_dimension_numbers<[1], [0], [0], [1], [0, 0, 1, 1], [], []>} : vector<8x8xbf16>, vector<8x8xbf16>, vector<8x8xf32> -> vector<8x8xf32>
    %273 = vector.extract_strided_slice %243 {offsets = [0, 0], sizes = [8, 32], strides = [1, 1]} : vector<32x32xbf16> to vector<8x32xbf16>
    %274 = arith.truncf %272 : vector<8x8xf32> to vector<8x8xbf16>
    %cst_125 = arith.constant dense<0.000000e+00> : vector<8x32xf32>
    %275 = tpu.matmul %274, %273, %cst_125 {dimension_numbers = #tpu.dot_dimension_numbers<[1], [0], [0], [1], [0, 0, 1, 1], [], []>} : vector<8x8xbf16>, vector<8x32xbf16>, vector<8x32xf32> -> vector<8x32xf32>
    %276 = arith.addf %251, %275 : vector<8x32xf32>
    %277 = vector.extract_strided_slice %246 {offsets = [0, 8], sizes = [8, 8], strides = [1, 1]} : vector<8x32xbf16> to vector<8x8xbf16>
    %278 = vector.extract_strided_slice %247 {offsets = [0, 8], sizes = [8, 8], strides = [1, 1]} : vector<8x32xbf16> to vector<8x8xbf16>
    %cst_126 = arith.constant dense<0.000000e+00> : vector<8x8xf32>
    %279 = tpu.matmul %277, %278, %cst_126 {dimension_numbers = #tpu.dot_dimension_numbers<[1], [1], [0], [0], [0, 0, 1, 0], [], []>} : vector<8x8xbf16>, vector<8x8xbf16>, vector<8x8xf32> -> vector<8x8xf32>
    %cst_127 = arith.constant 0.353553385 : f32
    %280 = vector.broadcast %cst_127 : f32 to vector<8x8xf32>
    %281 = arith.mulf %279, %280 : vector<8x8xf32>
    %282 = vector.broadcast %23 : vector<1x8xf32> to vector<8x8xf32>
    %283 = arith.addf %281, %282 : vector<8x8xf32>
    %cst_128 = arith.constant dense<0xFF800000> : vector<8xf32>
    %284 = vector.multi_reduction <maximumf>, %283, %cst_128 [1] : vector<8x8xf32> to vector<8xf32>
    %285 = vector.shape_cast %284 : vector<8xf32> to vector<8x1xf32>
    %286 = vector.broadcast %285 : vector<8x1xf32> to vector<8x8xf32>
    %287 = arith.subf %283, %286 : vector<8x8xf32>
    %288 = math.exp %287 : vector<8x8xf32>
    %cst_129 = arith.constant dense<0.000000e+00> : vector<8xf32>
    %289 = vector.multi_reduction <add>, %288, %cst_129 [1] : vector<8x8xf32> to vector<8xf32>
    %290 = vector.shape_cast %289 : vector<8xf32> to vector<8x1xf32>
    %cst_130 = arith.constant 1.000000e+00 : f32
    %291 = vector.broadcast %cst_130 : f32 to vector<8x1xf32>
    %292 = arith.divf %291, %290 : vector<8x1xf32>
    %293 = vector.broadcast %292 : vector<8x1xf32> to vector<8x8xf32>
    %294 = arith.mulf %288, %293 : vector<8x8xf32>
    %295 = arith.truncf %294 : vector<8x8xf32> to vector<8x8xbf16>
    %296 = vector.extract_strided_slice %248 {offsets = [0, 8], sizes = [8, 8], strides = [1, 1]} : vector<8x32xbf16> to vector<8x8xbf16>
    %cst_131 = arith.constant dense<0.000000e+00> : vector<8x8xf32>
    %297 = tpu.matmul %295, %296, %cst_131 {dimension_numbers = #tpu.dot_dimension_numbers<[1], [0], [0], [1], [0, 0, 1, 1], [], []>} : vector<8x8xbf16>, vector<8x8xbf16>, vector<8x8xf32> -> vector<8x8xf32>
    %298 = vector.extract_strided_slice %243 {offsets = [8, 0], sizes = [8, 32], strides = [1, 1]} : vector<32x32xbf16> to vector<8x32xbf16>
    %299 = arith.truncf %297 : vector<8x8xf32> to vector<8x8xbf16>
    %cst_132 = arith.constant dense<0.000000e+00> : vector<8x32xf32>
    %300 = tpu.matmul %299, %298, %cst_132 {dimension_numbers = #tpu.dot_dimension_numbers<[1], [0], [0], [1], [0, 0, 1, 1], [], []>} : vector<8x8xbf16>, vector<8x32xbf16>, vector<8x32xf32> -> vector<8x32xf32>
    %301 = arith.addf %276, %300 : vector<8x32xf32>
    %302 = vector.extract_strided_slice %246 {offsets = [0, 16], sizes = [8, 8], strides = [1, 1]} : vector<8x32xbf16> to vector<8x8xbf16>
    %303 = vector.extract_strided_slice %247 {offsets = [0, 16], sizes = [8, 8], strides = [1, 1]} : vector<8x32xbf16> to vector<8x8xbf16>
    %cst_133 = arith.constant dense<0.000000e+00> : vector<8x8xf32>
    %304 = tpu.matmul %302, %303, %cst_133 {dimension_numbers = #tpu.dot_dimension_numbers<[1], [1], [0], [0], [0, 0, 1, 0], [], []>} : vector<8x8xbf16>, vector<8x8xbf16>, vector<8x8xf32> -> vector<8x8xf32>
    %cst_134 = arith.constant 0.353553385 : f32
    %305 = vector.broadcast %cst_134 : f32 to vector<8x8xf32>
    %306 = arith.mulf %304, %305 : vector<8x8xf32>
    %307 = vector.broadcast %23 : vector<1x8xf32> to vector<8x8xf32>
    %308 = arith.addf %306, %307 : vector<8x8xf32>
    %cst_135 = arith.constant dense<0xFF800000> : vector<8xf32>
    %309 = vector.multi_reduction <maximumf>, %308, %cst_135 [1] : vector<8x8xf32> to vector<8xf32>
    %310 = vector.shape_cast %309 : vector<8xf32> to vector<8x1xf32>
    %311 = vector.broadcast %310 : vector<8x1xf32> to vector<8x8xf32>
    %312 = arith.subf %308, %311 : vector<8x8xf32>
    %313 = math.exp %312 : vector<8x8xf32>
    %cst_136 = arith.constant dense<0.000000e+00> : vector<8xf32>
    %314 = vector.multi_reduction <add>, %313, %cst_136 [1] : vector<8x8xf32> to vector<8xf32>
    %315 = vector.shape_cast %314 : vector<8xf32> to vector<8x1xf32>
    %cst_137 = arith.constant 1.000000e+00 : f32
    %316 = vector.broadcast %cst_137 : f32 to vector<8x1xf32>
    %317 = arith.divf %316, %315 : vector<8x1xf32>
    %318 = vector.broadcast %317 : vector<8x1xf32> to vector<8x8xf32>
    %319 = arith.mulf %313, %318 : vector<8x8xf32>
    %320 = arith.truncf %319 : vector<8x8xf32> to vector<8x8xbf16>
    %321 = vector.extract_strided_slice %248 {offsets = [0, 16], sizes = [8, 8], strides = [1, 1]} : vector<8x32xbf16> to vector<8x8xbf16>
    %cst_138 = arith.constant dense<0.000000e+00> : vector<8x8xf32>
    %322 = tpu.matmul %320, %321, %cst_138 {dimension_numbers = #tpu.dot_dimension_numbers<[1], [0], [0], [1], [0, 0, 1, 1], [], []>} : vector<8x8xbf16>, vector<8x8xbf16>, vector<8x8xf32> -> vector<8x8xf32>
    %323 = vector.extract_strided_slice %243 {offsets = [16, 0], sizes = [8, 32], strides = [1, 1]} : vector<32x32xbf16> to vector<8x32xbf16>
    %324 = arith.truncf %322 : vector<8x8xf32> to vector<8x8xbf16>
    %cst_139 = arith.constant dense<0.000000e+00> : vector<8x32xf32>
    %325 = tpu.matmul %324, %323, %cst_139 {dimension_numbers = #tpu.dot_dimension_numbers<[1], [0], [0], [1], [0, 0, 1, 1], [], []>} : vector<8x8xbf16>, vector<8x32xbf16>, vector<8x32xf32> -> vector<8x32xf32>
    %326 = arith.addf %301, %325 : vector<8x32xf32>
    %327 = vector.extract_strided_slice %246 {offsets = [0, 24], sizes = [8, 8], strides = [1, 1]} : vector<8x32xbf16> to vector<8x8xbf16>
    %328 = vector.extract_strided_slice %247 {offsets = [0, 24], sizes = [8, 8], strides = [1, 1]} : vector<8x32xbf16> to vector<8x8xbf16>
    %cst_140 = arith.constant dense<0.000000e+00> : vector<8x8xf32>
    %329 = tpu.matmul %327, %328, %cst_140 {dimension_numbers = #tpu.dot_dimension_numbers<[1], [1], [0], [0], [0, 0, 1, 0], [], []>} : vector<8x8xbf16>, vector<8x8xbf16>, vector<8x8xf32> -> vector<8x8xf32>
    %cst_141 = arith.constant 0.353553385 : f32
    %330 = vector.broadcast %cst_141 : f32 to vector<8x8xf32>
    %331 = arith.mulf %329, %330 : vector<8x8xf32>
    %332 = vector.broadcast %23 : vector<1x8xf32> to vector<8x8xf32>
    %333 = arith.addf %331, %332 : vector<8x8xf32>
    %cst_142 = arith.constant dense<0xFF800000> : vector<8xf32>
    %334 = vector.multi_reduction <maximumf>, %333, %cst_142 [1] : vector<8x8xf32> to vector<8xf32>
    %335 = vector.shape_cast %334 : vector<8xf32> to vector<8x1xf32>
    %336 = vector.broadcast %335 : vector<8x1xf32> to vector<8x8xf32>
    %337 = arith.subf %333, %336 : vector<8x8xf32>
    %338 = math.exp %337 : vector<8x8xf32>
    %cst_143 = arith.constant dense<0.000000e+00> : vector<8xf32>
    %339 = vector.multi_reduction <add>, %338, %cst_143 [1] : vector<8x8xf32> to vector<8xf32>
    %340 = vector.shape_cast %339 : vector<8xf32> to vector<8x1xf32>
    %cst_144 = arith.constant 1.000000e+00 : f32
    %341 = vector.broadcast %cst_144 : f32 to vector<8x1xf32>
    %342 = arith.divf %341, %340 : vector<8x1xf32>
    %343 = vector.broadcast %342 : vector<8x1xf32> to vector<8x8xf32>
    %344 = arith.mulf %338, %343 : vector<8x8xf32>
    %345 = arith.truncf %344 : vector<8x8xf32> to vector<8x8xbf16>
    %346 = vector.extract_strided_slice %248 {offsets = [0, 24], sizes = [8, 8], strides = [1, 1]} : vector<8x32xbf16> to vector<8x8xbf16>
    %cst_145 = arith.constant dense<0.000000e+00> : vector<8x8xf32>
    %347 = tpu.matmul %345, %346, %cst_145 {dimension_numbers = #tpu.dot_dimension_numbers<[1], [0], [0], [1], [0, 0, 1, 1], [], []>} : vector<8x8xbf16>, vector<8x8xbf16>, vector<8x8xf32> -> vector<8x8xf32>
    %348 = vector.extract_strided_slice %243 {offsets = [24, 0], sizes = [8, 32], strides = [1, 1]} : vector<32x32xbf16> to vector<8x32xbf16>
    %349 = arith.truncf %347 : vector<8x8xf32> to vector<8x8xbf16>
    %cst_146 = arith.constant dense<0.000000e+00> : vector<8x32xf32>
    %350 = tpu.matmul %349, %348, %cst_146 {dimension_numbers = #tpu.dot_dimension_numbers<[1], [0], [0], [1], [0, 0, 1, 1], [], []>} : vector<8x8xbf16>, vector<8x32xbf16>, vector<8x32xf32> -> vector<8x32xf32>
    %351 = arith.addf %326, %350 : vector<8x32xf32>
    %352 = arith.addf %230, %351 : vector<8x32xf32>
    %c1_147 = arith.constant 1 : index
    %c0_148 = arith.constant 0 : index
    %c0_149 = arith.constant 0 : index
    %353 = vector.load %arg11[%c1_147, %c0_148, %c0_149] : memref<2x1x32xf32, #tpu.memory_space<vmem>>, vector<1x1x32xf32>
    %354 = vector.shape_cast %353 : vector<1x1x32xf32> to vector<1x32xf32>
    %c1_150 = arith.constant 1 : index
    %c0_151 = arith.constant 0 : index
    %c0_152 = arith.constant 0 : index
    %355 = vector.load %arg12[%c1_150, %c0_151, %c0_152] : memref<2x1x32xf32, #tpu.memory_space<vmem>>, vector<1x1x32xf32>
    %356 = vector.shape_cast %355 : vector<1x1x32xf32> to vector<1x32xf32>
    %cst_153 = arith.constant dense<0.000000e+00> : vector<8xf32>
    %357 = vector.multi_reduction <add>, %352, %cst_153 [1] : vector<8x32xf32> to vector<8xf32>
    %358 = vector.shape_cast %357 : vector<8xf32> to vector<8x1xf32>
    %cst_154 = arith.constant 3.200000e+01 : f32
    %359 = vector.broadcast %cst_154 : f32 to vector<8x1xf32>
    %360 = arith.divf %358, %359 : vector<8x1xf32>
    %361 = vector.broadcast %360 : vector<8x1xf32> to vector<8x32xf32>
    %362 = arith.subf %352, %361 : vector<8x32xf32>
    %363 = arith.mulf %362, %362 : vector<8x32xf32>
    %cst_155 = arith.constant dense<0.000000e+00> : vector<8xf32>
    %364 = vector.multi_reduction <add>, %363, %cst_155 [1] : vector<8x32xf32> to vector<8xf32>
    %365 = vector.shape_cast %364 : vector<8xf32> to vector<8x1xf32>
    %cst_156 = arith.constant 3.200000e+01 : f32
    %366 = vector.broadcast %cst_156 : f32 to vector<8x1xf32>
    %367 = arith.divf %365, %366 : vector<8x1xf32>
    %368 = vector.broadcast %360 : vector<8x1xf32> to vector<8x32xf32>
    %369 = arith.subf %352, %368 : vector<8x32xf32>
    %cst_157 = arith.constant 9.99999974E-6 : f32
    %370 = vector.broadcast %cst_157 : f32 to vector<8x1xf32>
    %371 = arith.addf %367, %370 : vector<8x1xf32>
    %372 = math.rsqrt %371 : vector<8x1xf32>
    %373 = vector.broadcast %372 : vector<8x1xf32> to vector<8x32xf32>
    %374 = arith.mulf %369, %373 : vector<8x32xf32>
    %375 = vector.broadcast %354 : vector<1x32xf32> to vector<8x32xf32>
    %376 = arith.mulf %374, %375 : vector<8x32xf32>
    %377 = vector.broadcast %356 : vector<1x32xf32> to vector<8x32xf32>
    %378 = arith.addf %376, %377 : vector<8x32xf32>
    %c1_158 = arith.constant 1 : index
    %c0_159 = arith.constant 0 : index
    %c0_160 = arith.constant 0 : index
    %379 = vector.load %arg13[%c1_158, %c0_159, %c0_160] : memref<2x32x128xbf16, #tpu.memory_space<vmem>>, vector<1x32x128xbf16>
    %380 = vector.shape_cast %379 : vector<1x32x128xbf16> to vector<32x128xbf16>
    %381 = arith.truncf %378 : vector<8x32xf32> to vector<8x32xbf16>
    %cst_161 = arith.constant dense<0.000000e+00> : vector<8x128xf32>
    %382 = tpu.matmul %381, %380, %cst_161 {dimension_numbers = #tpu.dot_dimension_numbers<[1], [0], [0], [1], [0, 0, 1, 1], [], []>} : vector<8x32xbf16>, vector<32x128xbf16>, vector<8x128xf32> -> vector<8x128xf32>
    %c1_162 = arith.constant 1 : index
    %c0_163 = arith.constant 0 : index
    %c0_164 = arith.constant 0 : index
    %383 = vector.load %arg14[%c1_162, %c0_163, %c0_164] : memref<2x1x128xf32, #tpu.memory_space<vmem>>, vector<1x1x128xf32>
    %384 = vector.shape_cast %383 : vector<1x1x128xf32> to vector<1x128xf32>
    %385 = vector.broadcast %384 : vector<1x128xf32> to vector<8x128xf32>
    %386 = arith.addf %382, %385 : vector<8x128xf32>
    %cst_165 = arith.constant 0.000000e+00 : f32
    %387 = vector.broadcast %cst_165 : f32 to vector<8x128xf32>
    %388 = arith.maximumf %386, %387 : vector<8x128xf32>
    %c1_166 = arith.constant 1 : index
    %c0_167 = arith.constant 0 : index
    %c0_168 = arith.constant 0 : index
    %389 = vector.load %arg15[%c1_166, %c0_167, %c0_168] : memref<2x128x32xbf16, #tpu.memory_space<vmem>>, vector<1x128x32xbf16>
    %390 = vector.shape_cast %389 : vector<1x128x32xbf16> to vector<128x32xbf16>
    %391 = arith.truncf %388 : vector<8x128xf32> to vector<8x128xbf16>
    %cst_169 = arith.constant dense<0.000000e+00> : vector<8x32xf32>
    %392 = tpu.matmul %391, %390, %cst_169 {dimension_numbers = #tpu.dot_dimension_numbers<[1], [0], [0], [1], [0, 0, 1, 1], [], []>} : vector<8x128xbf16>, vector<128x32xbf16>, vector<8x32xf32> -> vector<8x32xf32>
    %c1_170 = arith.constant 1 : index
    %c0_171 = arith.constant 0 : index
    %c0_172 = arith.constant 0 : index
    %393 = vector.load %arg16[%c1_170, %c0_171, %c0_172] : memref<2x1x32xf32, #tpu.memory_space<vmem>>, vector<1x1x32xf32>
    %394 = vector.shape_cast %393 : vector<1x1x32xf32> to vector<1x32xf32>
    %395 = vector.broadcast %394 : vector<1x32xf32> to vector<8x32xf32>
    %396 = arith.addf %392, %395 : vector<8x32xf32>
    %397 = arith.addf %378, %396 : vector<8x32xf32>
    %c1_173 = arith.constant 1 : index
    %c0_174 = arith.constant 0 : index
    %c0_175 = arith.constant 0 : index
    %398 = vector.load %arg17[%c1_173, %c0_174, %c0_175] : memref<2x1x32xf32, #tpu.memory_space<vmem>>, vector<1x1x32xf32>
    %399 = vector.shape_cast %398 : vector<1x1x32xf32> to vector<1x32xf32>
    %c1_176 = arith.constant 1 : index
    %c0_177 = arith.constant 0 : index
    %c0_178 = arith.constant 0 : index
    %400 = vector.load %arg18[%c1_176, %c0_177, %c0_178] : memref<2x1x32xf32, #tpu.memory_space<vmem>>, vector<1x1x32xf32>
    %401 = vector.shape_cast %400 : vector<1x1x32xf32> to vector<1x32xf32>
    %cst_179 = arith.constant dense<0.000000e+00> : vector<8xf32>
    %402 = vector.multi_reduction <add>, %397, %cst_179 [1] : vector<8x32xf32> to vector<8xf32>
    %403 = vector.shape_cast %402 : vector<8xf32> to vector<8x1xf32>
    %cst_180 = arith.constant 3.200000e+01 : f32
    %404 = vector.broadcast %cst_180 : f32 to vector<8x1xf32>
    %405 = arith.divf %403, %404 : vector<8x1xf32>
    %406 = vector.broadcast %405 : vector<8x1xf32> to vector<8x32xf32>
    %407 = arith.subf %397, %406 : vector<8x32xf32>
    %408 = arith.mulf %407, %407 : vector<8x32xf32>
    %cst_181 = arith.constant dense<0.000000e+00> : vector<8xf32>
    %409 = vector.multi_reduction <add>, %408, %cst_181 [1] : vector<8x32xf32> to vector<8xf32>
    %410 = vector.shape_cast %409 : vector<8xf32> to vector<8x1xf32>
    %cst_182 = arith.constant 3.200000e+01 : f32
    %411 = vector.broadcast %cst_182 : f32 to vector<8x1xf32>
    %412 = arith.divf %410, %411 : vector<8x1xf32>
    %413 = vector.broadcast %405 : vector<8x1xf32> to vector<8x32xf32>
    %414 = arith.subf %397, %413 : vector<8x32xf32>
    %cst_183 = arith.constant 9.99999974E-6 : f32
    %415 = vector.broadcast %cst_183 : f32 to vector<8x1xf32>
    %416 = arith.addf %412, %415 : vector<8x1xf32>
    %417 = math.rsqrt %416 : vector<8x1xf32>
    %418 = vector.broadcast %417 : vector<8x1xf32> to vector<8x32xf32>
    %419 = arith.mulf %414, %418 : vector<8x32xf32>
    %420 = vector.broadcast %399 : vector<1x32xf32> to vector<8x32xf32>
    %421 = arith.mulf %419, %420 : vector<8x32xf32>
    %422 = vector.broadcast %401 : vector<1x32xf32> to vector<8x32xf32>
    %423 = arith.addf %421, %422 : vector<8x32xf32>
    %c0_184 = arith.constant 0 : index
    %c0_185 = arith.constant 0 : index
    %424 = vector.load %arg19[%c0_184, %c0_185] : memref<1x32xf32, #tpu.memory_space<vmem>>, vector<1x32xf32>
    %c0_186 = arith.constant 0 : index
    %c0_187 = arith.constant 0 : index
    %425 = vector.load %arg20[%c0_186, %c0_187] : memref<1x32xf32, #tpu.memory_space<vmem>>, vector<1x32xf32>
    %cst_188 = arith.constant dense<0.000000e+00> : vector<8xf32>
    %426 = vector.multi_reduction <add>, %423, %cst_188 [1] : vector<8x32xf32> to vector<8xf32>
    %427 = vector.shape_cast %426 : vector<8xf32> to vector<8x1xf32>
    %cst_189 = arith.constant 3.200000e+01 : f32
    %428 = vector.broadcast %cst_189 : f32 to vector<8x1xf32>
    %429 = arith.divf %427, %428 : vector<8x1xf32>
    %430 = vector.broadcast %429 : vector<8x1xf32> to vector<8x32xf32>
    %431 = arith.subf %423, %430 : vector<8x32xf32>
    %432 = arith.mulf %431, %431 : vector<8x32xf32>
    %cst_190 = arith.constant dense<0.000000e+00> : vector<8xf32>
    %433 = vector.multi_reduction <add>, %432, %cst_190 [1] : vector<8x32xf32> to vector<8xf32>
    %434 = vector.shape_cast %433 : vector<8xf32> to vector<8x1xf32>
    %cst_191 = arith.constant 3.200000e+01 : f32
    %435 = vector.broadcast %cst_191 : f32 to vector<8x1xf32>
    %436 = arith.divf %434, %435 : vector<8x1xf32>
    %437 = vector.broadcast %429 : vector<8x1xf32> to vector<8x32xf32>
    %438 = arith.subf %423, %437 : vector<8x32xf32>
    %cst_192 = arith.constant 9.99999974E-6 : f32
    %439 = vector.broadcast %cst_192 : f32 to vector<8x1xf32>
    %440 = arith.addf %436, %439 : vector<8x1xf32>
    %441 = math.rsqrt %440 : vector<8x1xf32>
    %442 = vector.broadcast %441 : vector<8x1xf32> to vector<8x32xf32>
    %443 = arith.mulf %438, %442 : vector<8x32xf32>
    %444 = vector.broadcast %424 : vector<1x32xf32> to vector<8x32xf32>
    %445 = arith.mulf %443, %444 : vector<8x32xf32>
    %446 = vector.broadcast %425 : vector<1x32xf32> to vector<8x32xf32>
    %447 = arith.addf %445, %446 : vector<8x32xf32>
    %c0_193 = arith.constant 0 : index
    %c0_194 = arith.constant 0 : index
    %c0_195 = arith.constant 0 : index
    %448 = vector.load %arg21[%c0_193, %c0_194, %c0_195] : memref<2x32x96xbf16, #tpu.memory_space<vmem>>, vector<1x32x96xbf16>
    %449 = vector.shape_cast %448 : vector<1x32x96xbf16> to vector<32x96xbf16>
    %450 = arith.truncf %15 : vector<8x32xf32> to vector<8x32xbf16>
    %cst_196 = arith.constant dense<0.000000e+00> : vector<8x96xf32>
    %451 = tpu.matmul %450, %449, %cst_196 {dimension_numbers = #tpu.dot_dimension_numbers<[1], [0], [0], [1], [0, 0, 1, 1], [], []>} : vector<8x32xbf16>, vector<32x96xbf16>, vector<8x96xf32> -> vector<8x96xf32>
    %c0_197 = arith.constant 0 : index
    %c0_198 = arith.constant 0 : index
    %c0_199 = arith.constant 0 : index
    %452 = vector.load %arg22[%c0_197, %c0_198, %c0_199] : memref<2x1x96xf32, #tpu.memory_space<vmem>>, vector<1x1x96xf32>
    %453 = vector.shape_cast %452 : vector<1x1x96xf32> to vector<1x96xf32>
    %454 = vector.broadcast %453 : vector<1x96xf32> to vector<8x96xf32>
    %455 = arith.addf %451, %454 : vector<8x96xf32>
    %456 = vector.extract_strided_slice %455 {offsets = [0, 0], sizes = [8, 32], strides = [1, 1]} : vector<8x96xf32> to vector<8x32xf32>
    %457 = vector.extract_strided_slice %455 {offsets = [0, 32], sizes = [8, 32], strides = [1, 1]} : vector<8x96xf32> to vector<8x32xf32>
    %458 = vector.extract_strided_slice %455 {offsets = [0, 64], sizes = [8, 32], strides = [1, 1]} : vector<8x96xf32> to vector<8x32xf32>
    %c0_200 = arith.constant 0 : index
    %c0_201 = arith.constant 0 : index
    %c0_202 = arith.constant 0 : index
    %459 = vector.load %arg23[%c0_200, %c0_201, %c0_202] : memref<2x32x32xbf16, #tpu.memory_space<vmem>>, vector<1x32x32xbf16>
    %460 = vector.shape_cast %459 : vector<1x32x32xbf16> to vector<32x32xbf16>
    %c0_203 = arith.constant 0 : index
    %c0_204 = arith.constant 0 : index
    %c0_205 = arith.constant 0 : index
    %461 = vector.load %arg24[%c0_203, %c0_204, %c0_205] : memref<2x1x32xf32, #tpu.memory_space<vmem>>, vector<1x1x32xf32>
    %462 = vector.shape_cast %461 : vector<1x1x32xf32> to vector<1x32xf32>
    %463 = arith.truncf %456 : vector<8x32xf32> to vector<8x32xbf16>
    %464 = arith.truncf %457 : vector<8x32xf32> to vector<8x32xbf16>
    %465 = arith.truncf %458 : vector<8x32xf32> to vector<8x32xbf16>
    %cst_206 = arith.constant 0.000000e+00 : f32
    %466 = vector.broadcast %cst_206 : f32 to vector<8x32xf32>
    %467 = vector.broadcast %462 : vector<1x32xf32> to vector<8x32xf32>
    %468 = arith.addf %466, %467 : vector<8x32xf32>
    %469 = vector.extract_strided_slice %463 {offsets = [0, 0], sizes = [8, 8], strides = [1, 1]} : vector<8x32xbf16> to vector<8x8xbf16>
    %470 = vector.extract_strided_slice %464 {offsets = [0, 0], sizes = [8, 8], strides = [1, 1]} : vector<8x32xbf16> to vector<8x8xbf16>
    %cst_207 = arith.constant dense<0.000000e+00> : vector<8x8xf32>
    %471 = tpu.matmul %469, %470, %cst_207 {dimension_numbers = #tpu.dot_dimension_numbers<[1], [1], [0], [0], [0, 0, 1, 0], [], []>} : vector<8x8xbf16>, vector<8x8xbf16>, vector<8x8xf32> -> vector<8x8xf32>
    %cst_208 = arith.constant 0.353553385 : f32
    %472 = vector.broadcast %cst_208 : f32 to vector<8x8xf32>
    %473 = arith.mulf %471, %472 : vector<8x8xf32>
    %474 = arith.addf %473, %37 : vector<8x8xf32>
    %cst_209 = arith.constant dense<0xFF800000> : vector<8xf32>
    %475 = vector.multi_reduction <maximumf>, %474, %cst_209 [1] : vector<8x8xf32> to vector<8xf32>
    %476 = vector.shape_cast %475 : vector<8xf32> to vector<8x1xf32>
    %477 = vector.broadcast %476 : vector<8x1xf32> to vector<8x8xf32>
    %478 = arith.subf %474, %477 : vector<8x8xf32>
    %479 = math.exp %478 : vector<8x8xf32>
    %cst_210 = arith.constant dense<0.000000e+00> : vector<8xf32>
    %480 = vector.multi_reduction <add>, %479, %cst_210 [1] : vector<8x8xf32> to vector<8xf32>
    %481 = vector.shape_cast %480 : vector<8xf32> to vector<8x1xf32>
    %cst_211 = arith.constant 1.000000e+00 : f32
    %482 = vector.broadcast %cst_211 : f32 to vector<8x1xf32>
    %483 = arith.divf %482, %481 : vector<8x1xf32>
    %484 = vector.broadcast %483 : vector<8x1xf32> to vector<8x8xf32>
    %485 = arith.mulf %479, %484 : vector<8x8xf32>
    %486 = arith.truncf %485 : vector<8x8xf32> to vector<8x8xbf16>
    %487 = vector.extract_strided_slice %465 {offsets = [0, 0], sizes = [8, 8], strides = [1, 1]} : vector<8x32xbf16> to vector<8x8xbf16>
    %cst_212 = arith.constant dense<0.000000e+00> : vector<8x8xf32>
    %488 = tpu.matmul %486, %487, %cst_212 {dimension_numbers = #tpu.dot_dimension_numbers<[1], [0], [0], [1], [0, 0, 1, 1], [], []>} : vector<8x8xbf16>, vector<8x8xbf16>, vector<8x8xf32> -> vector<8x8xf32>
    %489 = vector.extract_strided_slice %460 {offsets = [0, 0], sizes = [8, 32], strides = [1, 1]} : vector<32x32xbf16> to vector<8x32xbf16>
    %490 = arith.truncf %488 : vector<8x8xf32> to vector<8x8xbf16>
    %cst_213 = arith.constant dense<0.000000e+00> : vector<8x32xf32>
    %491 = tpu.matmul %490, %489, %cst_213 {dimension_numbers = #tpu.dot_dimension_numbers<[1], [0], [0], [1], [0, 0, 1, 1], [], []>} : vector<8x8xbf16>, vector<8x32xbf16>, vector<8x32xf32> -> vector<8x32xf32>
    %492 = arith.addf %468, %491 : vector<8x32xf32>
    %493 = vector.extract_strided_slice %463 {offsets = [0, 8], sizes = [8, 8], strides = [1, 1]} : vector<8x32xbf16> to vector<8x8xbf16>
    %494 = vector.extract_strided_slice %464 {offsets = [0, 8], sizes = [8, 8], strides = [1, 1]} : vector<8x32xbf16> to vector<8x8xbf16>
    %cst_214 = arith.constant dense<0.000000e+00> : vector<8x8xf32>
    %495 = tpu.matmul %493, %494, %cst_214 {dimension_numbers = #tpu.dot_dimension_numbers<[1], [1], [0], [0], [0, 0, 1, 0], [], []>} : vector<8x8xbf16>, vector<8x8xbf16>, vector<8x8xf32> -> vector<8x8xf32>
    %cst_215 = arith.constant 0.353553385 : f32
    %496 = vector.broadcast %cst_215 : f32 to vector<8x8xf32>
    %497 = arith.mulf %495, %496 : vector<8x8xf32>
    %498 = arith.addf %497, %37 : vector<8x8xf32>
    %cst_216 = arith.constant dense<0xFF800000> : vector<8xf32>
    %499 = vector.multi_reduction <maximumf>, %498, %cst_216 [1] : vector<8x8xf32> to vector<8xf32>
    %500 = vector.shape_cast %499 : vector<8xf32> to vector<8x1xf32>
    %501 = vector.broadcast %500 : vector<8x1xf32> to vector<8x8xf32>
    %502 = arith.subf %498, %501 : vector<8x8xf32>
    %503 = math.exp %502 : vector<8x8xf32>
    %cst_217 = arith.constant dense<0.000000e+00> : vector<8xf32>
    %504 = vector.multi_reduction <add>, %503, %cst_217 [1] : vector<8x8xf32> to vector<8xf32>
    %505 = vector.shape_cast %504 : vector<8xf32> to vector<8x1xf32>
    %cst_218 = arith.constant 1.000000e+00 : f32
    %506 = vector.broadcast %cst_218 : f32 to vector<8x1xf32>
    %507 = arith.divf %506, %505 : vector<8x1xf32>
    %508 = vector.broadcast %507 : vector<8x1xf32> to vector<8x8xf32>
    %509 = arith.mulf %503, %508 : vector<8x8xf32>
    %510 = arith.truncf %509 : vector<8x8xf32> to vector<8x8xbf16>
    %511 = vector.extract_strided_slice %465 {offsets = [0, 8], sizes = [8, 8], strides = [1, 1]} : vector<8x32xbf16> to vector<8x8xbf16>
    %cst_219 = arith.constant dense<0.000000e+00> : vector<8x8xf32>
    %512 = tpu.matmul %510, %511, %cst_219 {dimension_numbers = #tpu.dot_dimension_numbers<[1], [0], [0], [1], [0, 0, 1, 1], [], []>} : vector<8x8xbf16>, vector<8x8xbf16>, vector<8x8xf32> -> vector<8x8xf32>
    %513 = vector.extract_strided_slice %460 {offsets = [8, 0], sizes = [8, 32], strides = [1, 1]} : vector<32x32xbf16> to vector<8x32xbf16>
    %514 = arith.truncf %512 : vector<8x8xf32> to vector<8x8xbf16>
    %cst_220 = arith.constant dense<0.000000e+00> : vector<8x32xf32>
    %515 = tpu.matmul %514, %513, %cst_220 {dimension_numbers = #tpu.dot_dimension_numbers<[1], [0], [0], [1], [0, 0, 1, 1], [], []>} : vector<8x8xbf16>, vector<8x32xbf16>, vector<8x32xf32> -> vector<8x32xf32>
    %516 = arith.addf %492, %515 : vector<8x32xf32>
    %517 = vector.extract_strided_slice %463 {offsets = [0, 16], sizes = [8, 8], strides = [1, 1]} : vector<8x32xbf16> to vector<8x8xbf16>
    %518 = vector.extract_strided_slice %464 {offsets = [0, 16], sizes = [8, 8], strides = [1, 1]} : vector<8x32xbf16> to vector<8x8xbf16>
    %cst_221 = arith.constant dense<0.000000e+00> : vector<8x8xf32>
    %519 = tpu.matmul %517, %518, %cst_221 {dimension_numbers = #tpu.dot_dimension_numbers<[1], [1], [0], [0], [0, 0, 1, 0], [], []>} : vector<8x8xbf16>, vector<8x8xbf16>, vector<8x8xf32> -> vector<8x8xf32>
    %cst_222 = arith.constant 0.353553385 : f32
    %520 = vector.broadcast %cst_222 : f32 to vector<8x8xf32>
    %521 = arith.mulf %519, %520 : vector<8x8xf32>
    %522 = arith.addf %521, %37 : vector<8x8xf32>
    %cst_223 = arith.constant dense<0xFF800000> : vector<8xf32>
    %523 = vector.multi_reduction <maximumf>, %522, %cst_223 [1] : vector<8x8xf32> to vector<8xf32>
    %524 = vector.shape_cast %523 : vector<8xf32> to vector<8x1xf32>
    %525 = vector.broadcast %524 : vector<8x1xf32> to vector<8x8xf32>
    %526 = arith.subf %522, %525 : vector<8x8xf32>
    %527 = math.exp %526 : vector<8x8xf32>
    %cst_224 = arith.constant dense<0.000000e+00> : vector<8xf32>
    %528 = vector.multi_reduction <add>, %527, %cst_224 [1] : vector<8x8xf32> to vector<8xf32>
    %529 = vector.shape_cast %528 : vector<8xf32> to vector<8x1xf32>
    %cst_225 = arith.constant 1.000000e+00 : f32
    %530 = vector.broadcast %cst_225 : f32 to vector<8x1xf32>
    %531 = arith.divf %530, %529 : vector<8x1xf32>
    %532 = vector.broadcast %531 : vector<8x1xf32> to vector<8x8xf32>
    %533 = arith.mulf %527, %532 : vector<8x8xf32>
    %534 = arith.truncf %533 : vector<8x8xf32> to vector<8x8xbf16>
    %535 = vector.extract_strided_slice %465 {offsets = [0, 16], sizes = [8, 8], strides = [1, 1]} : vector<8x32xbf16> to vector<8x8xbf16>
    %cst_226 = arith.constant dense<0.000000e+00> : vector<8x8xf32>
    %536 = tpu.matmul %534, %535, %cst_226 {dimension_numbers = #tpu.dot_dimension_numbers<[1], [0], [0], [1], [0, 0, 1, 1], [], []>} : vector<8x8xbf16>, vector<8x8xbf16>, vector<8x8xf32> -> vector<8x8xf32>
    %537 = vector.extract_strided_slice %460 {offsets = [16, 0], sizes = [8, 32], strides = [1, 1]} : vector<32x32xbf16> to vector<8x32xbf16>
    %538 = arith.truncf %536 : vector<8x8xf32> to vector<8x8xbf16>
    %cst_227 = arith.constant dense<0.000000e+00> : vector<8x32xf32>
    %539 = tpu.matmul %538, %537, %cst_227 {dimension_numbers = #tpu.dot_dimension_numbers<[1], [0], [0], [1], [0, 0, 1, 1], [], []>} : vector<8x8xbf16>, vector<8x32xbf16>, vector<8x32xf32> -> vector<8x32xf32>
    %540 = arith.addf %516, %539 : vector<8x32xf32>
    %541 = vector.extract_strided_slice %463 {offsets = [0, 24], sizes = [8, 8], strides = [1, 1]} : vector<8x32xbf16> to vector<8x8xbf16>
    %542 = vector.extract_strided_slice %464 {offsets = [0, 24], sizes = [8, 8], strides = [1, 1]} : vector<8x32xbf16> to vector<8x8xbf16>
    %cst_228 = arith.constant dense<0.000000e+00> : vector<8x8xf32>
    %543 = tpu.matmul %541, %542, %cst_228 {dimension_numbers = #tpu.dot_dimension_numbers<[1], [1], [0], [0], [0, 0, 1, 0], [], []>} : vector<8x8xbf16>, vector<8x8xbf16>, vector<8x8xf32> -> vector<8x8xf32>
    %cst_229 = arith.constant 0.353553385 : f32
    %544 = vector.broadcast %cst_229 : f32 to vector<8x8xf32>
    %545 = arith.mulf %543, %544 : vector<8x8xf32>
    %546 = arith.addf %545, %37 : vector<8x8xf32>
    %cst_230 = arith.constant dense<0xFF800000> : vector<8xf32>
    %547 = vector.multi_reduction <maximumf>, %546, %cst_230 [1] : vector<8x8xf32> to vector<8xf32>
    %548 = vector.shape_cast %547 : vector<8xf32> to vector<8x1xf32>
    %549 = vector.broadcast %548 : vector<8x1xf32> to vector<8x8xf32>
    %550 = arith.subf %546, %549 : vector<8x8xf32>
    %551 = math.exp %550 : vector<8x8xf32>
    %cst_231 = arith.constant dense<0.000000e+00> : vector<8xf32>
    %552 = vector.multi_reduction <add>, %551, %cst_231 [1] : vector<8x8xf32> to vector<8xf32>
    %553 = vector.shape_cast %552 : vector<8xf32> to vector<8x1xf32>
    %cst_232 = arith.constant 1.000000e+00 : f32
    %554 = vector.broadcast %cst_232 : f32 to vector<8x1xf32>
    %555 = arith.divf %554, %553 : vector<8x1xf32>
    %556 = vector.broadcast %555 : vector<8x1xf32> to vector<8x8xf32>
    %557 = arith.mulf %551, %556 : vector<8x8xf32>
    %558 = arith.truncf %557 : vector<8x8xf32> to vector<8x8xbf16>
    %559 = vector.extract_strided_slice %465 {offsets = [0, 24], sizes = [8, 8], strides = [1, 1]} : vector<8x32xbf16> to vector<8x8xbf16>
    %cst_233 = arith.constant dense<0.000000e+00> : vector<8x8xf32>
    %560 = tpu.matmul %558, %559, %cst_233 {dimension_numbers = #tpu.dot_dimension_numbers<[1], [0], [0], [1], [0, 0, 1, 1], [], []>} : vector<8x8xbf16>, vector<8x8xbf16>, vector<8x8xf32> -> vector<8x8xf32>
    %561 = vector.extract_strided_slice %460 {offsets = [24, 0], sizes = [8, 32], strides = [1, 1]} : vector<32x32xbf16> to vector<8x32xbf16>
    %562 = arith.truncf %560 : vector<8x8xf32> to vector<8x8xbf16>
    %cst_234 = arith.constant dense<0.000000e+00> : vector<8x32xf32>
    %563 = tpu.matmul %562, %561, %cst_234 {dimension_numbers = #tpu.dot_dimension_numbers<[1], [0], [0], [1], [0, 0, 1, 1], [], []>} : vector<8x8xbf16>, vector<8x32xbf16>, vector<8x32xf32> -> vector<8x32xf32>
    %564 = arith.addf %540, %563 : vector<8x32xf32>
    %565 = arith.addf %15, %564 : vector<8x32xf32>
    %c0_235 = arith.constant 0 : index
    %c0_236 = arith.constant 0 : index
    %c0_237 = arith.constant 0 : index
    %566 = vector.load %arg25[%c0_235, %c0_236, %c0_237] : memref<2x1x32xf32, #tpu.memory_space<vmem>>, vector<1x1x32xf32>
    %567 = vector.shape_cast %566 : vector<1x1x32xf32> to vector<1x32xf32>
    %c0_238 = arith.constant 0 : index
    %c0_239 = arith.constant 0 : index
    %c0_240 = arith.constant 0 : index
    %568 = vector.load %arg26[%c0_238, %c0_239, %c0_240] : memref<2x1x32xf32, #tpu.memory_space<vmem>>, vector<1x1x32xf32>
    %569 = vector.shape_cast %568 : vector<1x1x32xf32> to vector<1x32xf32>
    %cst_241 = arith.constant dense<0.000000e+00> : vector<8xf32>
    %570 = vector.multi_reduction <add>, %565, %cst_241 [1] : vector<8x32xf32> to vector<8xf32>
    %571 = vector.shape_cast %570 : vector<8xf32> to vector<8x1xf32>
    %cst_242 = arith.constant 3.200000e+01 : f32
    %572 = vector.broadcast %cst_242 : f32 to vector<8x1xf32>
    %573 = arith.divf %571, %572 : vector<8x1xf32>
    %574 = vector.broadcast %573 : vector<8x1xf32> to vector<8x32xf32>
    %575 = arith.subf %565, %574 : vector<8x32xf32>
    %576 = arith.mulf %575, %575 : vector<8x32xf32>
    %cst_243 = arith.constant dense<0.000000e+00> : vector<8xf32>
    %577 = vector.multi_reduction <add>, %576, %cst_243 [1] : vector<8x32xf32> to vector<8xf32>
    %578 = vector.shape_cast %577 : vector<8xf32> to vector<8x1xf32>
    %cst_244 = arith.constant 3.200000e+01 : f32
    %579 = vector.broadcast %cst_244 : f32 to vector<8x1xf32>
    %580 = arith.divf %578, %579 : vector<8x1xf32>
    %581 = vector.broadcast %573 : vector<8x1xf32> to vector<8x32xf32>
    %582 = arith.subf %565, %581 : vector<8x32xf32>
    %cst_245 = arith.constant 9.99999974E-6 : f32
    %583 = vector.broadcast %cst_245 : f32 to vector<8x1xf32>
    %584 = arith.addf %580, %583 : vector<8x1xf32>
    %585 = math.rsqrt %584 : vector<8x1xf32>
    %586 = vector.broadcast %585 : vector<8x1xf32> to vector<8x32xf32>
    %587 = arith.mulf %582, %586 : vector<8x32xf32>
    %588 = vector.broadcast %567 : vector<1x32xf32> to vector<8x32xf32>
    %589 = arith.mulf %587, %588 : vector<8x32xf32>
    %590 = vector.broadcast %569 : vector<1x32xf32> to vector<8x32xf32>
    %591 = arith.addf %589, %590 : vector<8x32xf32>
    %c0_246 = arith.constant 0 : index
    %c0_247 = arith.constant 0 : index
    %c0_248 = arith.constant 0 : index
    %592 = vector.load %arg27[%c0_246, %c0_247, %c0_248] : memref<2x32x32xbf16, #tpu.memory_space<vmem>>, vector<1x32x32xbf16>
    %593 = vector.shape_cast %592 : vector<1x32x32xbf16> to vector<32x32xbf16>
    %594 = arith.truncf %591 : vector<8x32xf32> to vector<8x32xbf16>
    %cst_249 = arith.constant dense<0.000000e+00> : vector<8x32xf32>
    %595 = tpu.matmul %594, %593, %cst_249 {dimension_numbers = #tpu.dot_dimension_numbers<[1], [0], [0], [1], [0, 0, 1, 1], [], []>} : vector<8x32xbf16>, vector<32x32xbf16>, vector<8x32xf32> -> vector<8x32xf32>
    %c0_250 = arith.constant 0 : index
    %c0_251 = arith.constant 0 : index
    %c0_252 = arith.constant 0 : index
    %596 = vector.load %arg28[%c0_250, %c0_251, %c0_252] : memref<2x1x32xf32, #tpu.memory_space<vmem>>, vector<1x1x32xf32>
    %597 = vector.shape_cast %596 : vector<1x1x32xf32> to vector<1x32xf32>
    %598 = vector.broadcast %597 : vector<1x32xf32> to vector<8x32xf32>
    %599 = arith.addf %595, %598 : vector<8x32xf32>
    %c0_253 = arith.constant 0 : index
    %c0_254 = arith.constant 0 : index
    %c0_255 = arith.constant 0 : index
    %600 = vector.load %arg29[%c0_253, %c0_254, %c0_255] : memref<2x32x64xbf16, #tpu.memory_space<vmem>>, vector<1x32x64xbf16>
    %601 = vector.shape_cast %600 : vector<1x32x64xbf16> to vector<32x64xbf16>
    %602 = arith.truncf %447 : vector<8x32xf32> to vector<8x32xbf16>
    %cst_256 = arith.constant dense<0.000000e+00> : vector<8x64xf32>
    %603 = tpu.matmul %602, %601, %cst_256 {dimension_numbers = #tpu.dot_dimension_numbers<[1], [0], [0], [1], [0, 0, 1, 1], [], []>} : vector<8x32xbf16>, vector<32x64xbf16>, vector<8x64xf32> -> vector<8x64xf32>
    %c0_257 = arith.constant 0 : index
    %c0_258 = arith.constant 0 : index
    %c0_259 = arith.constant 0 : index
    %604 = vector.load %arg30[%c0_257, %c0_258, %c0_259] : memref<2x1x64xf32, #tpu.memory_space<vmem>>, vector<1x1x64xf32>
    %605 = vector.shape_cast %604 : vector<1x1x64xf32> to vector<1x64xf32>
    %606 = vector.broadcast %605 : vector<1x64xf32> to vector<8x64xf32>
    %607 = arith.addf %603, %606 : vector<8x64xf32>
    %608 = vector.extract_strided_slice %607 {offsets = [0, 0], sizes = [8, 32], strides = [1, 1]} : vector<8x64xf32> to vector<8x32xf32>
    %609 = vector.extract_strided_slice %607 {offsets = [0, 32], sizes = [8, 32], strides = [1, 1]} : vector<8x64xf32> to vector<8x32xf32>
    %c0_260 = arith.constant 0 : index
    %c0_261 = arith.constant 0 : index
    %c0_262 = arith.constant 0 : index
    %610 = vector.load %arg31[%c0_260, %c0_261, %c0_262] : memref<2x32x32xbf16, #tpu.memory_space<vmem>>, vector<1x32x32xbf16>
    %611 = vector.shape_cast %610 : vector<1x32x32xbf16> to vector<32x32xbf16>
    %c0_263 = arith.constant 0 : index
    %c0_264 = arith.constant 0 : index
    %c0_265 = arith.constant 0 : index
    %612 = vector.load %arg32[%c0_263, %c0_264, %c0_265] : memref<2x1x32xf32, #tpu.memory_space<vmem>>, vector<1x1x32xf32>
    %613 = vector.shape_cast %612 : vector<1x1x32xf32> to vector<1x32xf32>
    %614 = arith.truncf %599 : vector<8x32xf32> to vector<8x32xbf16>
    %615 = arith.truncf %608 : vector<8x32xf32> to vector<8x32xbf16>
    %616 = arith.truncf %609 : vector<8x32xf32> to vector<8x32xbf16>
    %cst_266 = arith.constant 0.000000e+00 : f32
    %617 = vector.broadcast %cst_266 : f32 to vector<8x32xf32>
    %618 = vector.broadcast %613 : vector<1x32xf32> to vector<8x32xf32>
    %619 = arith.addf %617, %618 : vector<8x32xf32>
    %620 = vector.extract_strided_slice %614 {offsets = [0, 0], sizes = [8, 8], strides = [1, 1]} : vector<8x32xbf16> to vector<8x8xbf16>
    %621 = vector.extract_strided_slice %615 {offsets = [0, 0], sizes = [8, 8], strides = [1, 1]} : vector<8x32xbf16> to vector<8x8xbf16>
    %cst_267 = arith.constant dense<0.000000e+00> : vector<8x8xf32>
    %622 = tpu.matmul %620, %621, %cst_267 {dimension_numbers = #tpu.dot_dimension_numbers<[1], [1], [0], [0], [0, 0, 1, 0], [], []>} : vector<8x8xbf16>, vector<8x8xbf16>, vector<8x8xf32> -> vector<8x8xf32>
    %cst_268 = arith.constant 0.353553385 : f32
    %623 = vector.broadcast %cst_268 : f32 to vector<8x8xf32>
    %624 = arith.mulf %622, %623 : vector<8x8xf32>
    %cst_269 = arith.constant dense<0xFF800000> : vector<8xf32>
    %625 = vector.multi_reduction <maximumf>, %624, %cst_269 [1] : vector<8x8xf32> to vector<8xf32>
    %626 = vector.shape_cast %625 : vector<8xf32> to vector<8x1xf32>
    %627 = vector.broadcast %626 : vector<8x1xf32> to vector<8x8xf32>
    %628 = arith.subf %624, %627 : vector<8x8xf32>
    %629 = math.exp %628 : vector<8x8xf32>
    %cst_270 = arith.constant dense<0.000000e+00> : vector<8xf32>
    %630 = vector.multi_reduction <add>, %629, %cst_270 [1] : vector<8x8xf32> to vector<8xf32>
    %631 = vector.shape_cast %630 : vector<8xf32> to vector<8x1xf32>
    %cst_271 = arith.constant 1.000000e+00 : f32
    %632 = vector.broadcast %cst_271 : f32 to vector<8x1xf32>
    %633 = arith.divf %632, %631 : vector<8x1xf32>
    %634 = vector.broadcast %633 : vector<8x1xf32> to vector<8x8xf32>
    %635 = arith.mulf %629, %634 : vector<8x8xf32>
    %636 = arith.truncf %635 : vector<8x8xf32> to vector<8x8xbf16>
    %637 = vector.extract_strided_slice %616 {offsets = [0, 0], sizes = [8, 8], strides = [1, 1]} : vector<8x32xbf16> to vector<8x8xbf16>
    %cst_272 = arith.constant dense<0.000000e+00> : vector<8x8xf32>
    %638 = tpu.matmul %636, %637, %cst_272 {dimension_numbers = #tpu.dot_dimension_numbers<[1], [0], [0], [1], [0, 0, 1, 1], [], []>} : vector<8x8xbf16>, vector<8x8xbf16>, vector<8x8xf32> -> vector<8x8xf32>
    %639 = vector.extract_strided_slice %611 {offsets = [0, 0], sizes = [8, 32], strides = [1, 1]} : vector<32x32xbf16> to vector<8x32xbf16>
    %640 = arith.truncf %638 : vector<8x8xf32> to vector<8x8xbf16>
    %cst_273 = arith.constant dense<0.000000e+00> : vector<8x32xf32>
    %641 = tpu.matmul %640, %639, %cst_273 {dimension_numbers = #tpu.dot_dimension_numbers<[1], [0], [0], [1], [0, 0, 1, 1], [], []>} : vector<8x8xbf16>, vector<8x32xbf16>, vector<8x32xf32> -> vector<8x32xf32>
    %642 = arith.addf %619, %641 : vector<8x32xf32>
    %643 = vector.extract_strided_slice %614 {offsets = [0, 8], sizes = [8, 8], strides = [1, 1]} : vector<8x32xbf16> to vector<8x8xbf16>
    %644 = vector.extract_strided_slice %615 {offsets = [0, 8], sizes = [8, 8], strides = [1, 1]} : vector<8x32xbf16> to vector<8x8xbf16>
    %cst_274 = arith.constant dense<0.000000e+00> : vector<8x8xf32>
    %645 = tpu.matmul %643, %644, %cst_274 {dimension_numbers = #tpu.dot_dimension_numbers<[1], [1], [0], [0], [0, 0, 1, 0], [], []>} : vector<8x8xbf16>, vector<8x8xbf16>, vector<8x8xf32> -> vector<8x8xf32>
    %cst_275 = arith.constant 0.353553385 : f32
    %646 = vector.broadcast %cst_275 : f32 to vector<8x8xf32>
    %647 = arith.mulf %645, %646 : vector<8x8xf32>
    %cst_276 = arith.constant dense<0xFF800000> : vector<8xf32>
    %648 = vector.multi_reduction <maximumf>, %647, %cst_276 [1] : vector<8x8xf32> to vector<8xf32>
    %649 = vector.shape_cast %648 : vector<8xf32> to vector<8x1xf32>
    %650 = vector.broadcast %649 : vector<8x1xf32> to vector<8x8xf32>
    %651 = arith.subf %647, %650 : vector<8x8xf32>
    %652 = math.exp %651 : vector<8x8xf32>
    %cst_277 = arith.constant dense<0.000000e+00> : vector<8xf32>
    %653 = vector.multi_reduction <add>, %652, %cst_277 [1] : vector<8x8xf32> to vector<8xf32>
    %654 = vector.shape_cast %653 : vector<8xf32> to vector<8x1xf32>
    %cst_278 = arith.constant 1.000000e+00 : f32
    %655 = vector.broadcast %cst_278 : f32 to vector<8x1xf32>
    %656 = arith.divf %655, %654 : vector<8x1xf32>
    %657 = vector.broadcast %656 : vector<8x1xf32> to vector<8x8xf32>
    %658 = arith.mulf %652, %657 : vector<8x8xf32>
    %659 = arith.truncf %658 : vector<8x8xf32> to vector<8x8xbf16>
    %660 = vector.extract_strided_slice %616 {offsets = [0, 8], sizes = [8, 8], strides = [1, 1]} : vector<8x32xbf16> to vector<8x8xbf16>
    %cst_279 = arith.constant dense<0.000000e+00> : vector<8x8xf32>
    %661 = tpu.matmul %659, %660, %cst_279 {dimension_numbers = #tpu.dot_dimension_numbers<[1], [0], [0], [1], [0, 0, 1, 1], [], []>} : vector<8x8xbf16>, vector<8x8xbf16>, vector<8x8xf32> -> vector<8x8xf32>
    %662 = vector.extract_strided_slice %611 {offsets = [8, 0], sizes = [8, 32], strides = [1, 1]} : vector<32x32xbf16> to vector<8x32xbf16>
    %663 = arith.truncf %661 : vector<8x8xf32> to vector<8x8xbf16>
    %cst_280 = arith.constant dense<0.000000e+00> : vector<8x32xf32>
    %664 = tpu.matmul %663, %662, %cst_280 {dimension_numbers = #tpu.dot_dimension_numbers<[1], [0], [0], [1], [0, 0, 1, 1], [], []>} : vector<8x8xbf16>, vector<8x32xbf16>, vector<8x32xf32> -> vector<8x32xf32>
    %665 = arith.addf %642, %664 : vector<8x32xf32>
    %666 = vector.extract_strided_slice %614 {offsets = [0, 16], sizes = [8, 8], strides = [1, 1]} : vector<8x32xbf16> to vector<8x8xbf16>
    %667 = vector.extract_strided_slice %615 {offsets = [0, 16], sizes = [8, 8], strides = [1, 1]} : vector<8x32xbf16> to vector<8x8xbf16>
    %cst_281 = arith.constant dense<0.000000e+00> : vector<8x8xf32>
    %668 = tpu.matmul %666, %667, %cst_281 {dimension_numbers = #tpu.dot_dimension_numbers<[1], [1], [0], [0], [0, 0, 1, 0], [], []>} : vector<8x8xbf16>, vector<8x8xbf16>, vector<8x8xf32> -> vector<8x8xf32>
    %cst_282 = arith.constant 0.353553385 : f32
    %669 = vector.broadcast %cst_282 : f32 to vector<8x8xf32>
    %670 = arith.mulf %668, %669 : vector<8x8xf32>
    %cst_283 = arith.constant dense<0xFF800000> : vector<8xf32>
    %671 = vector.multi_reduction <maximumf>, %670, %cst_283 [1] : vector<8x8xf32> to vector<8xf32>
    %672 = vector.shape_cast %671 : vector<8xf32> to vector<8x1xf32>
    %673 = vector.broadcast %672 : vector<8x1xf32> to vector<8x8xf32>
    %674 = arith.subf %670, %673 : vector<8x8xf32>
    %675 = math.exp %674 : vector<8x8xf32>
    %cst_284 = arith.constant dense<0.000000e+00> : vector<8xf32>
    %676 = vector.multi_reduction <add>, %675, %cst_284 [1] : vector<8x8xf32> to vector<8xf32>
    %677 = vector.shape_cast %676 : vector<8xf32> to vector<8x1xf32>
    %cst_285 = arith.constant 1.000000e+00 : f32
    %678 = vector.broadcast %cst_285 : f32 to vector<8x1xf32>
    %679 = arith.divf %678, %677 : vector<8x1xf32>
    %680 = vector.broadcast %679 : vector<8x1xf32> to vector<8x8xf32>
    %681 = arith.mulf %675, %680 : vector<8x8xf32>
    %682 = arith.truncf %681 : vector<8x8xf32> to vector<8x8xbf16>
    %683 = vector.extract_strided_slice %616 {offsets = [0, 16], sizes = [8, 8], strides = [1, 1]} : vector<8x32xbf16> to vector<8x8xbf16>
    %cst_286 = arith.constant dense<0.000000e+00> : vector<8x8xf32>
    %684 = tpu.matmul %682, %683, %cst_286 {dimension_numbers = #tpu.dot_dimension_numbers<[1], [0], [0], [1], [0, 0, 1, 1], [], []>} : vector<8x8xbf16>, vector<8x8xbf16>, vector<8x8xf32> -> vector<8x8xf32>
    %685 = vector.extract_strided_slice %611 {offsets = [16, 0], sizes = [8, 32], strides = [1, 1]} : vector<32x32xbf16> to vector<8x32xbf16>
    %686 = arith.truncf %684 : vector<8x8xf32> to vector<8x8xbf16>
    %cst_287 = arith.constant dense<0.000000e+00> : vector<8x32xf32>
    %687 = tpu.matmul %686, %685, %cst_287 {dimension_numbers = #tpu.dot_dimension_numbers<[1], [0], [0], [1], [0, 0, 1, 1], [], []>} : vector<8x8xbf16>, vector<8x32xbf16>, vector<8x32xf32> -> vector<8x32xf32>
    %688 = arith.addf %665, %687 : vector<8x32xf32>
    %689 = vector.extract_strided_slice %614 {offsets = [0, 24], sizes = [8, 8], strides = [1, 1]} : vector<8x32xbf16> to vector<8x8xbf16>
    %690 = vector.extract_strided_slice %615 {offsets = [0, 24], sizes = [8, 8], strides = [1, 1]} : vector<8x32xbf16> to vector<8x8xbf16>
    %cst_288 = arith.constant dense<0.000000e+00> : vector<8x8xf32>
    %691 = tpu.matmul %689, %690, %cst_288 {dimension_numbers = #tpu.dot_dimension_numbers<[1], [1], [0], [0], [0, 0, 1, 0], [], []>} : vector<8x8xbf16>, vector<8x8xbf16>, vector<8x8xf32> -> vector<8x8xf32>
    %cst_289 = arith.constant 0.353553385 : f32
    %692 = vector.broadcast %cst_289 : f32 to vector<8x8xf32>
    %693 = arith.mulf %691, %692 : vector<8x8xf32>
    %cst_290 = arith.constant dense<0xFF800000> : vector<8xf32>
    %694 = vector.multi_reduction <maximumf>, %693, %cst_290 [1] : vector<8x8xf32> to vector<8xf32>
    %695 = vector.shape_cast %694 : vector<8xf32> to vector<8x1xf32>
    %696 = vector.broadcast %695 : vector<8x1xf32> to vector<8x8xf32>
    %697 = arith.subf %693, %696 : vector<8x8xf32>
    %698 = math.exp %697 : vector<8x8xf32>
    %cst_291 = arith.constant dense<0.000000e+00> : vector<8xf32>
    %699 = vector.multi_reduction <add>, %698, %cst_291 [1] : vector<8x8xf32> to vector<8xf32>
    %700 = vector.shape_cast %699 : vector<8xf32> to vector<8x1xf32>
    %cst_292 = arith.constant 1.000000e+00 : f32
    %701 = vector.broadcast %cst_292 : f32 to vector<8x1xf32>
    %702 = arith.divf %701, %700 : vector<8x1xf32>
    %703 = vector.broadcast %702 : vector<8x1xf32> to vector<8x8xf32>
    %704 = arith.mulf %698, %703 : vector<8x8xf32>
    %705 = arith.truncf %704 : vector<8x8xf32> to vector<8x8xbf16>
    %706 = vector.extract_strided_slice %616 {offsets = [0, 24], sizes = [8, 8], strides = [1, 1]} : vector<8x32xbf16> to vector<8x8xbf16>
    %cst_293 = arith.constant dense<0.000000e+00> : vector<8x8xf32>
    %707 = tpu.matmul %705, %706, %cst_293 {dimension_numbers = #tpu.dot_dimension_numbers<[1], [0], [0], [1], [0, 0, 1, 1], [], []>} : vector<8x8xbf16>, vector<8x8xbf16>, vector<8x8xf32> -> vector<8x8xf32>
    %708 = vector.extract_strided_slice %611 {offsets = [24, 0], sizes = [8, 32], strides = [1, 1]} : vector<32x32xbf16> to vector<8x32xbf16>
    %709 = arith.truncf %707 : vector<8x8xf32> to vector<8x8xbf16>
    %cst_294 = arith.constant dense<0.000000e+00> : vector<8x32xf32>
    %710 = tpu.matmul %709, %708, %cst_294 {dimension_numbers = #tpu.dot_dimension_numbers<[1], [0], [0], [1], [0, 0, 1, 1], [], []>} : vector<8x8xbf16>, vector<8x32xbf16>, vector<8x32xf32> -> vector<8x32xf32>
    %711 = arith.addf %688, %710 : vector<8x32xf32>
    %712 = arith.addf %591, %711 : vector<8x32xf32>
    %c0_295 = arith.constant 0 : index
    %c0_296 = arith.constant 0 : index
    %c0_297 = arith.constant 0 : index
    %713 = vector.load %arg33[%c0_295, %c0_296, %c0_297] : memref<2x1x32xf32, #tpu.memory_space<vmem>>, vector<1x1x32xf32>
    %714 = vector.shape_cast %713 : vector<1x1x32xf32> to vector<1x32xf32>
    %c0_298 = arith.constant 0 : index
    %c0_299 = arith.constant 0 : index
    %c0_300 = arith.constant 0 : index
    %715 = vector.load %arg34[%c0_298, %c0_299, %c0_300] : memref<2x1x32xf32, #tpu.memory_space<vmem>>, vector<1x1x32xf32>
    %716 = vector.shape_cast %715 : vector<1x1x32xf32> to vector<1x32xf32>
    %cst_301 = arith.constant dense<0.000000e+00> : vector<8xf32>
    %717 = vector.multi_reduction <add>, %712, %cst_301 [1] : vector<8x32xf32> to vector<8xf32>
    %718 = vector.shape_cast %717 : vector<8xf32> to vector<8x1xf32>
    %cst_302 = arith.constant 3.200000e+01 : f32
    %719 = vector.broadcast %cst_302 : f32 to vector<8x1xf32>
    %720 = arith.divf %718, %719 : vector<8x1xf32>
    %721 = vector.broadcast %720 : vector<8x1xf32> to vector<8x32xf32>
    %722 = arith.subf %712, %721 : vector<8x32xf32>
    %723 = arith.mulf %722, %722 : vector<8x32xf32>
    %cst_303 = arith.constant dense<0.000000e+00> : vector<8xf32>
    %724 = vector.multi_reduction <add>, %723, %cst_303 [1] : vector<8x32xf32> to vector<8xf32>
    %725 = vector.shape_cast %724 : vector<8xf32> to vector<8x1xf32>
    %cst_304 = arith.constant 3.200000e+01 : f32
    %726 = vector.broadcast %cst_304 : f32 to vector<8x1xf32>
    %727 = arith.divf %725, %726 : vector<8x1xf32>
    %728 = vector.broadcast %720 : vector<8x1xf32> to vector<8x32xf32>
    %729 = arith.subf %712, %728 : vector<8x32xf32>
    %cst_305 = arith.constant 9.99999974E-6 : f32
    %730 = vector.broadcast %cst_305 : f32 to vector<8x1xf32>
    %731 = arith.addf %727, %730 : vector<8x1xf32>
    %732 = math.rsqrt %731 : vector<8x1xf32>
    %733 = vector.broadcast %732 : vector<8x1xf32> to vector<8x32xf32>
    %734 = arith.mulf %729, %733 : vector<8x32xf32>
    %735 = vector.broadcast %714 : vector<1x32xf32> to vector<8x32xf32>
    %736 = arith.mulf %734, %735 : vector<8x32xf32>
    %737 = vector.broadcast %716 : vector<1x32xf32> to vector<8x32xf32>
    %738 = arith.addf %736, %737 : vector<8x32xf32>
    %c0_306 = arith.constant 0 : index
    %c0_307 = arith.constant 0 : index
    %c0_308 = arith.constant 0 : index
    %739 = vector.load %arg35[%c0_306, %c0_307, %c0_308] : memref<2x32x128xbf16, #tpu.memory_space<vmem>>, vector<1x32x128xbf16>
    %740 = vector.shape_cast %739 : vector<1x32x128xbf16> to vector<32x128xbf16>
    %741 = arith.truncf %738 : vector<8x32xf32> to vector<8x32xbf16>
    %cst_309 = arith.constant dense<0.000000e+00> : vector<8x128xf32>
    %742 = tpu.matmul %741, %740, %cst_309 {dimension_numbers = #tpu.dot_dimension_numbers<[1], [0], [0], [1], [0, 0, 1, 1], [], []>} : vector<8x32xbf16>, vector<32x128xbf16>, vector<8x128xf32> -> vector<8x128xf32>
    %c0_310 = arith.constant 0 : index
    %c0_311 = arith.constant 0 : index
    %c0_312 = arith.constant 0 : index
    %743 = vector.load %arg36[%c0_310, %c0_311, %c0_312] : memref<2x1x128xf32, #tpu.memory_space<vmem>>, vector<1x1x128xf32>
    %744 = vector.shape_cast %743 : vector<1x1x128xf32> to vector<1x128xf32>
    %745 = vector.broadcast %744 : vector<1x128xf32> to vector<8x128xf32>
    %746 = arith.addf %742, %745 : vector<8x128xf32>
    %cst_313 = arith.constant 0.000000e+00 : f32
    %747 = vector.broadcast %cst_313 : f32 to vector<8x128xf32>
    %748 = arith.maximumf %746, %747 : vector<8x128xf32>
    %c0_314 = arith.constant 0 : index
    %c0_315 = arith.constant 0 : index
    %c0_316 = arith.constant 0 : index
    %749 = vector.load %arg37[%c0_314, %c0_315, %c0_316] : memref<2x128x32xbf16, #tpu.memory_space<vmem>>, vector<1x128x32xbf16>
    %750 = vector.shape_cast %749 : vector<1x128x32xbf16> to vector<128x32xbf16>
    %751 = arith.truncf %748 : vector<8x128xf32> to vector<8x128xbf16>
    %cst_317 = arith.constant dense<0.000000e+00> : vector<8x32xf32>
    %752 = tpu.matmul %751, %750, %cst_317 {dimension_numbers = #tpu.dot_dimension_numbers<[1], [0], [0], [1], [0, 0, 1, 1], [], []>} : vector<8x128xbf16>, vector<128x32xbf16>, vector<8x32xf32> -> vector<8x32xf32>
    %c0_318 = arith.constant 0 : index
    %c0_319 = arith.constant 0 : index
    %c0_320 = arith.constant 0 : index
    %753 = vector.load %arg38[%c0_318, %c0_319, %c0_320] : memref<2x1x32xf32, #tpu.memory_space<vmem>>, vector<1x1x32xf32>
    %754 = vector.shape_cast %753 : vector<1x1x32xf32> to vector<1x32xf32>
    %755 = vector.broadcast %754 : vector<1x32xf32> to vector<8x32xf32>
    %756 = arith.addf %752, %755 : vector<8x32xf32>
    %757 = arith.addf %738, %756 : vector<8x32xf32>
    %c0_321 = arith.constant 0 : index
    %c0_322 = arith.constant 0 : index
    %c0_323 = arith.constant 0 : index
    %758 = vector.load %arg39[%c0_321, %c0_322, %c0_323] : memref<2x1x32xf32, #tpu.memory_space<vmem>>, vector<1x1x32xf32>
    %759 = vector.shape_cast %758 : vector<1x1x32xf32> to vector<1x32xf32>
    %c0_324 = arith.constant 0 : index
    %c0_325 = arith.constant 0 : index
    %c0_326 = arith.constant 0 : index
    %760 = vector.load %arg40[%c0_324, %c0_325, %c0_326] : memref<2x1x32xf32, #tpu.memory_space<vmem>>, vector<1x1x32xf32>
    %761 = vector.shape_cast %760 : vector<1x1x32xf32> to vector<1x32xf32>
    %cst_327 = arith.constant dense<0.000000e+00> : vector<8xf32>
    %762 = vector.multi_reduction <add>, %757, %cst_327 [1] : vector<8x32xf32> to vector<8xf32>
    %763 = vector.shape_cast %762 : vector<8xf32> to vector<8x1xf32>
    %cst_328 = arith.constant 3.200000e+01 : f32
    %764 = vector.broadcast %cst_328 : f32 to vector<8x1xf32>
    %765 = arith.divf %763, %764 : vector<8x1xf32>
    %766 = vector.broadcast %765 : vector<8x1xf32> to vector<8x32xf32>
    %767 = arith.subf %757, %766 : vector<8x32xf32>
    %768 = arith.mulf %767, %767 : vector<8x32xf32>
    %cst_329 = arith.constant dense<0.000000e+00> : vector<8xf32>
    %769 = vector.multi_reduction <add>, %768, %cst_329 [1] : vector<8x32xf32> to vector<8xf32>
    %770 = vector.shape_cast %769 : vector<8xf32> to vector<8x1xf32>
    %cst_330 = arith.constant 3.200000e+01 : f32
    %771 = vector.broadcast %cst_330 : f32 to vector<8x1xf32>
    %772 = arith.divf %770, %771 : vector<8x1xf32>
    %773 = vector.broadcast %765 : vector<8x1xf32> to vector<8x32xf32>
    %774 = arith.subf %757, %773 : vector<8x32xf32>
    %cst_331 = arith.constant 9.99999974E-6 : f32
    %775 = vector.broadcast %cst_331 : f32 to vector<8x1xf32>
    %776 = arith.addf %772, %775 : vector<8x1xf32>
    %777 = math.rsqrt %776 : vector<8x1xf32>
    %778 = vector.broadcast %777 : vector<8x1xf32> to vector<8x32xf32>
    %779 = arith.mulf %774, %778 : vector<8x32xf32>
    %780 = vector.broadcast %759 : vector<1x32xf32> to vector<8x32xf32>
    %781 = arith.mulf %779, %780 : vector<8x32xf32>
    %782 = vector.broadcast %761 : vector<1x32xf32> to vector<8x32xf32>
    %783 = arith.addf %781, %782 : vector<8x32xf32>
    %c1_332 = arith.constant 1 : index
    %c0_333 = arith.constant 0 : index
    %c0_334 = arith.constant 0 : index
    %784 = vector.load %arg21[%c1_332, %c0_333, %c0_334] : memref<2x32x96xbf16, #tpu.memory_space<vmem>>, vector<1x32x96xbf16>
    %785 = vector.shape_cast %784 : vector<1x32x96xbf16> to vector<32x96xbf16>
    %786 = arith.truncf %783 : vector<8x32xf32> to vector<8x32xbf16>
    %cst_335 = arith.constant dense<0.000000e+00> : vector<8x96xf32>
    %787 = tpu.matmul %786, %785, %cst_335 {dimension_numbers = #tpu.dot_dimension_numbers<[1], [0], [0], [1], [0, 0, 1, 1], [], []>} : vector<8x32xbf16>, vector<32x96xbf16>, vector<8x96xf32> -> vector<8x96xf32>
    %c1_336 = arith.constant 1 : index
    %c0_337 = arith.constant 0 : index
    %c0_338 = arith.constant 0 : index
    %788 = vector.load %arg22[%c1_336, %c0_337, %c0_338] : memref<2x1x96xf32, #tpu.memory_space<vmem>>, vector<1x1x96xf32>
    %789 = vector.shape_cast %788 : vector<1x1x96xf32> to vector<1x96xf32>
    %790 = vector.broadcast %789 : vector<1x96xf32> to vector<8x96xf32>
    %791 = arith.addf %787, %790 : vector<8x96xf32>
    %792 = vector.extract_strided_slice %791 {offsets = [0, 0], sizes = [8, 32], strides = [1, 1]} : vector<8x96xf32> to vector<8x32xf32>
    %793 = vector.extract_strided_slice %791 {offsets = [0, 32], sizes = [8, 32], strides = [1, 1]} : vector<8x96xf32> to vector<8x32xf32>
    %794 = vector.extract_strided_slice %791 {offsets = [0, 64], sizes = [8, 32], strides = [1, 1]} : vector<8x96xf32> to vector<8x32xf32>
    %c1_339 = arith.constant 1 : index
    %c0_340 = arith.constant 0 : index
    %c0_341 = arith.constant 0 : index
    %795 = vector.load %arg23[%c1_339, %c0_340, %c0_341] : memref<2x32x32xbf16, #tpu.memory_space<vmem>>, vector<1x32x32xbf16>
    %796 = vector.shape_cast %795 : vector<1x32x32xbf16> to vector<32x32xbf16>
    %c1_342 = arith.constant 1 : index
    %c0_343 = arith.constant 0 : index
    %c0_344 = arith.constant 0 : index
    %797 = vector.load %arg24[%c1_342, %c0_343, %c0_344] : memref<2x1x32xf32, #tpu.memory_space<vmem>>, vector<1x1x32xf32>
    %798 = vector.shape_cast %797 : vector<1x1x32xf32> to vector<1x32xf32>
    %799 = arith.truncf %792 : vector<8x32xf32> to vector<8x32xbf16>
    %800 = arith.truncf %793 : vector<8x32xf32> to vector<8x32xbf16>
    %801 = arith.truncf %794 : vector<8x32xf32> to vector<8x32xbf16>
    %cst_345 = arith.constant 0.000000e+00 : f32
    %802 = vector.broadcast %cst_345 : f32 to vector<8x32xf32>
    %803 = vector.broadcast %798 : vector<1x32xf32> to vector<8x32xf32>
    %804 = arith.addf %802, %803 : vector<8x32xf32>
    %805 = vector.extract_strided_slice %799 {offsets = [0, 0], sizes = [8, 8], strides = [1, 1]} : vector<8x32xbf16> to vector<8x8xbf16>
    %806 = vector.extract_strided_slice %800 {offsets = [0, 0], sizes = [8, 8], strides = [1, 1]} : vector<8x32xbf16> to vector<8x8xbf16>
    %cst_346 = arith.constant dense<0.000000e+00> : vector<8x8xf32>
    %807 = tpu.matmul %805, %806, %cst_346 {dimension_numbers = #tpu.dot_dimension_numbers<[1], [1], [0], [0], [0, 0, 1, 0], [], []>} : vector<8x8xbf16>, vector<8x8xbf16>, vector<8x8xf32> -> vector<8x8xf32>
    %cst_347 = arith.constant 0.353553385 : f32
    %808 = vector.broadcast %cst_347 : f32 to vector<8x8xf32>
    %809 = arith.mulf %807, %808 : vector<8x8xf32>
    %810 = arith.addf %809, %37 : vector<8x8xf32>
    %cst_348 = arith.constant dense<0xFF800000> : vector<8xf32>
    %811 = vector.multi_reduction <maximumf>, %810, %cst_348 [1] : vector<8x8xf32> to vector<8xf32>
    %812 = vector.shape_cast %811 : vector<8xf32> to vector<8x1xf32>
    %813 = vector.broadcast %812 : vector<8x1xf32> to vector<8x8xf32>
    %814 = arith.subf %810, %813 : vector<8x8xf32>
    %815 = math.exp %814 : vector<8x8xf32>
    %cst_349 = arith.constant dense<0.000000e+00> : vector<8xf32>
    %816 = vector.multi_reduction <add>, %815, %cst_349 [1] : vector<8x8xf32> to vector<8xf32>
    %817 = vector.shape_cast %816 : vector<8xf32> to vector<8x1xf32>
    %cst_350 = arith.constant 1.000000e+00 : f32
    %818 = vector.broadcast %cst_350 : f32 to vector<8x1xf32>
    %819 = arith.divf %818, %817 : vector<8x1xf32>
    %820 = vector.broadcast %819 : vector<8x1xf32> to vector<8x8xf32>
    %821 = arith.mulf %815, %820 : vector<8x8xf32>
    %822 = arith.truncf %821 : vector<8x8xf32> to vector<8x8xbf16>
    %823 = vector.extract_strided_slice %801 {offsets = [0, 0], sizes = [8, 8], strides = [1, 1]} : vector<8x32xbf16> to vector<8x8xbf16>
    %cst_351 = arith.constant dense<0.000000e+00> : vector<8x8xf32>
    %824 = tpu.matmul %822, %823, %cst_351 {dimension_numbers = #tpu.dot_dimension_numbers<[1], [0], [0], [1], [0, 0, 1, 1], [], []>} : vector<8x8xbf16>, vector<8x8xbf16>, vector<8x8xf32> -> vector<8x8xf32>
    %825 = vector.extract_strided_slice %796 {offsets = [0, 0], sizes = [8, 32], strides = [1, 1]} : vector<32x32xbf16> to vector<8x32xbf16>
    %826 = arith.truncf %824 : vector<8x8xf32> to vector<8x8xbf16>
    %cst_352 = arith.constant dense<0.000000e+00> : vector<8x32xf32>
    %827 = tpu.matmul %826, %825, %cst_352 {dimension_numbers = #tpu.dot_dimension_numbers<[1], [0], [0], [1], [0, 0, 1, 1], [], []>} : vector<8x8xbf16>, vector<8x32xbf16>, vector<8x32xf32> -> vector<8x32xf32>
    %828 = arith.addf %804, %827 : vector<8x32xf32>
    %829 = vector.extract_strided_slice %799 {offsets = [0, 8], sizes = [8, 8], strides = [1, 1]} : vector<8x32xbf16> to vector<8x8xbf16>
    %830 = vector.extract_strided_slice %800 {offsets = [0, 8], sizes = [8, 8], strides = [1, 1]} : vector<8x32xbf16> to vector<8x8xbf16>
    %cst_353 = arith.constant dense<0.000000e+00> : vector<8x8xf32>
    %831 = tpu.matmul %829, %830, %cst_353 {dimension_numbers = #tpu.dot_dimension_numbers<[1], [1], [0], [0], [0, 0, 1, 0], [], []>} : vector<8x8xbf16>, vector<8x8xbf16>, vector<8x8xf32> -> vector<8x8xf32>
    %cst_354 = arith.constant 0.353553385 : f32
    %832 = vector.broadcast %cst_354 : f32 to vector<8x8xf32>
    %833 = arith.mulf %831, %832 : vector<8x8xf32>
    %834 = arith.addf %833, %37 : vector<8x8xf32>
    %cst_355 = arith.constant dense<0xFF800000> : vector<8xf32>
    %835 = vector.multi_reduction <maximumf>, %834, %cst_355 [1] : vector<8x8xf32> to vector<8xf32>
    %836 = vector.shape_cast %835 : vector<8xf32> to vector<8x1xf32>
    %837 = vector.broadcast %836 : vector<8x1xf32> to vector<8x8xf32>
    %838 = arith.subf %834, %837 : vector<8x8xf32>
    %839 = math.exp %838 : vector<8x8xf32>
    %cst_356 = arith.constant dense<0.000000e+00> : vector<8xf32>
    %840 = vector.multi_reduction <add>, %839, %cst_356 [1] : vector<8x8xf32> to vector<8xf32>
    %841 = vector.shape_cast %840 : vector<8xf32> to vector<8x1xf32>
    %cst_357 = arith.constant 1.000000e+00 : f32
    %842 = vector.broadcast %cst_357 : f32 to vector<8x1xf32>
    %843 = arith.divf %842, %841 : vector<8x1xf32>
    %844 = vector.broadcast %843 : vector<8x1xf32> to vector<8x8xf32>
    %845 = arith.mulf %839, %844 : vector<8x8xf32>
    %846 = arith.truncf %845 : vector<8x8xf32> to vector<8x8xbf16>
    %847 = vector.extract_strided_slice %801 {offsets = [0, 8], sizes = [8, 8], strides = [1, 1]} : vector<8x32xbf16> to vector<8x8xbf16>
    %cst_358 = arith.constant dense<0.000000e+00> : vector<8x8xf32>
    %848 = tpu.matmul %846, %847, %cst_358 {dimension_numbers = #tpu.dot_dimension_numbers<[1], [0], [0], [1], [0, 0, 1, 1], [], []>} : vector<8x8xbf16>, vector<8x8xbf16>, vector<8x8xf32> -> vector<8x8xf32>
    %849 = vector.extract_strided_slice %796 {offsets = [8, 0], sizes = [8, 32], strides = [1, 1]} : vector<32x32xbf16> to vector<8x32xbf16>
    %850 = arith.truncf %848 : vector<8x8xf32> to vector<8x8xbf16>
    %cst_359 = arith.constant dense<0.000000e+00> : vector<8x32xf32>
    %851 = tpu.matmul %850, %849, %cst_359 {dimension_numbers = #tpu.dot_dimension_numbers<[1], [0], [0], [1], [0, 0, 1, 1], [], []>} : vector<8x8xbf16>, vector<8x32xbf16>, vector<8x32xf32> -> vector<8x32xf32>
    %852 = arith.addf %828, %851 : vector<8x32xf32>
    %853 = vector.extract_strided_slice %799 {offsets = [0, 16], sizes = [8, 8], strides = [1, 1]} : vector<8x32xbf16> to vector<8x8xbf16>
    %854 = vector.extract_strided_slice %800 {offsets = [0, 16], sizes = [8, 8], strides = [1, 1]} : vector<8x32xbf16> to vector<8x8xbf16>
    %cst_360 = arith.constant dense<0.000000e+00> : vector<8x8xf32>
    %855 = tpu.matmul %853, %854, %cst_360 {dimension_numbers = #tpu.dot_dimension_numbers<[1], [1], [0], [0], [0, 0, 1, 0], [], []>} : vector<8x8xbf16>, vector<8x8xbf16>, vector<8x8xf32> -> vector<8x8xf32>
    %cst_361 = arith.constant 0.353553385 : f32
    %856 = vector.broadcast %cst_361 : f32 to vector<8x8xf32>
    %857 = arith.mulf %855, %856 : vector<8x8xf32>
    %858 = arith.addf %857, %37 : vector<8x8xf32>
    %cst_362 = arith.constant dense<0xFF800000> : vector<8xf32>
    %859 = vector.multi_reduction <maximumf>, %858, %cst_362 [1] : vector<8x8xf32> to vector<8xf32>
    %860 = vector.shape_cast %859 : vector<8xf32> to vector<8x1xf32>
    %861 = vector.broadcast %860 : vector<8x1xf32> to vector<8x8xf32>
    %862 = arith.subf %858, %861 : vector<8x8xf32>
    %863 = math.exp %862 : vector<8x8xf32>
    %cst_363 = arith.constant dense<0.000000e+00> : vector<8xf32>
    %864 = vector.multi_reduction <add>, %863, %cst_363 [1] : vector<8x8xf32> to vector<8xf32>
    %865 = vector.shape_cast %864 : vector<8xf32> to vector<8x1xf32>
    %cst_364 = arith.constant 1.000000e+00 : f32
    %866 = vector.broadcast %cst_364 : f32 to vector<8x1xf32>
    %867 = arith.divf %866, %865 : vector<8x1xf32>
    %868 = vector.broadcast %867 : vector<8x1xf32> to vector<8x8xf32>
    %869 = arith.mulf %863, %868 : vector<8x8xf32>
    %870 = arith.truncf %869 : vector<8x8xf32> to vector<8x8xbf16>
    %871 = vector.extract_strided_slice %801 {offsets = [0, 16], sizes = [8, 8], strides = [1, 1]} : vector<8x32xbf16> to vector<8x8xbf16>
    %cst_365 = arith.constant dense<0.000000e+00> : vector<8x8xf32>
    %872 = tpu.matmul %870, %871, %cst_365 {dimension_numbers = #tpu.dot_dimension_numbers<[1], [0], [0], [1], [0, 0, 1, 1], [], []>} : vector<8x8xbf16>, vector<8x8xbf16>, vector<8x8xf32> -> vector<8x8xf32>
    %873 = vector.extract_strided_slice %796 {offsets = [16, 0], sizes = [8, 32], strides = [1, 1]} : vector<32x32xbf16> to vector<8x32xbf16>
    %874 = arith.truncf %872 : vector<8x8xf32> to vector<8x8xbf16>
    %cst_366 = arith.constant dense<0.000000e+00> : vector<8x32xf32>
    %875 = tpu.matmul %874, %873, %cst_366 {dimension_numbers = #tpu.dot_dimension_numbers<[1], [0], [0], [1], [0, 0, 1, 1], [], []>} : vector<8x8xbf16>, vector<8x32xbf16>, vector<8x32xf32> -> vector<8x32xf32>
    %876 = arith.addf %852, %875 : vector<8x32xf32>
    %877 = vector.extract_strided_slice %799 {offsets = [0, 24], sizes = [8, 8], strides = [1, 1]} : vector<8x32xbf16> to vector<8x8xbf16>
    %878 = vector.extract_strided_slice %800 {offsets = [0, 24], sizes = [8, 8], strides = [1, 1]} : vector<8x32xbf16> to vector<8x8xbf16>
    %cst_367 = arith.constant dense<0.000000e+00> : vector<8x8xf32>
    %879 = tpu.matmul %877, %878, %cst_367 {dimension_numbers = #tpu.dot_dimension_numbers<[1], [1], [0], [0], [0, 0, 1, 0], [], []>} : vector<8x8xbf16>, vector<8x8xbf16>, vector<8x8xf32> -> vector<8x8xf32>
    %cst_368 = arith.constant 0.353553385 : f32
    %880 = vector.broadcast %cst_368 : f32 to vector<8x8xf32>
    %881 = arith.mulf %879, %880 : vector<8x8xf32>
    %882 = arith.addf %881, %37 : vector<8x8xf32>
    %cst_369 = arith.constant dense<0xFF800000> : vector<8xf32>
    %883 = vector.multi_reduction <maximumf>, %882, %cst_369 [1] : vector<8x8xf32> to vector<8xf32>
    %884 = vector.shape_cast %883 : vector<8xf32> to vector<8x1xf32>
    %885 = vector.broadcast %884 : vector<8x1xf32> to vector<8x8xf32>
    %886 = arith.subf %882, %885 : vector<8x8xf32>
    %887 = math.exp %886 : vector<8x8xf32>
    %cst_370 = arith.constant dense<0.000000e+00> : vector<8xf32>
    %888 = vector.multi_reduction <add>, %887, %cst_370 [1] : vector<8x8xf32> to vector<8xf32>
    %889 = vector.shape_cast %888 : vector<8xf32> to vector<8x1xf32>
    %cst_371 = arith.constant 1.000000e+00 : f32
    %890 = vector.broadcast %cst_371 : f32 to vector<8x1xf32>
    %891 = arith.divf %890, %889 : vector<8x1xf32>
    %892 = vector.broadcast %891 : vector<8x1xf32> to vector<8x8xf32>
    %893 = arith.mulf %887, %892 : vector<8x8xf32>
    %894 = arith.truncf %893 : vector<8x8xf32> to vector<8x8xbf16>
    %895 = vector.extract_strided_slice %801 {offsets = [0, 24], sizes = [8, 8], strides = [1, 1]} : vector<8x32xbf16> to vector<8x8xbf16>
    %cst_372 = arith.constant dense<0.000000e+00> : vector<8x8xf32>
    %896 = tpu.matmul %894, %895, %cst_372 {dimension_numbers = #tpu.dot_dimension_numbers<[1], [0], [0], [1], [0, 0, 1, 1], [], []>} : vector<8x8xbf16>, vector<8x8xbf16>, vector<8x8xf32> -> vector<8x8xf32>
    %897 = vector.extract_strided_slice %796 {offsets = [24, 0], sizes = [8, 32], strides = [1, 1]} : vector<32x32xbf16> to vector<8x32xbf16>
    %898 = arith.truncf %896 : vector<8x8xf32> to vector<8x8xbf16>
    %cst_373 = arith.constant dense<0.000000e+00> : vector<8x32xf32>
    %899 = tpu.matmul %898, %897, %cst_373 {dimension_numbers = #tpu.dot_dimension_numbers<[1], [0], [0], [1], [0, 0, 1, 1], [], []>} : vector<8x8xbf16>, vector<8x32xbf16>, vector<8x32xf32> -> vector<8x32xf32>
    %900 = arith.addf %876, %899 : vector<8x32xf32>
    %901 = arith.addf %783, %900 : vector<8x32xf32>
    %c1_374 = arith.constant 1 : index
    %c0_375 = arith.constant 0 : index
    %c0_376 = arith.constant 0 : index
    %902 = vector.load %arg25[%c1_374, %c0_375, %c0_376] : memref<2x1x32xf32, #tpu.memory_space<vmem>>, vector<1x1x32xf32>
    %903 = vector.shape_cast %902 : vector<1x1x32xf32> to vector<1x32xf32>
    %c1_377 = arith.constant 1 : index
    %c0_378 = arith.constant 0 : index
    %c0_379 = arith.constant 0 : index
    %904 = vector.load %arg26[%c1_377, %c0_378, %c0_379] : memref<2x1x32xf32, #tpu.memory_space<vmem>>, vector<1x1x32xf32>
    %905 = vector.shape_cast %904 : vector<1x1x32xf32> to vector<1x32xf32>
    %cst_380 = arith.constant dense<0.000000e+00> : vector<8xf32>
    %906 = vector.multi_reduction <add>, %901, %cst_380 [1] : vector<8x32xf32> to vector<8xf32>
    %907 = vector.shape_cast %906 : vector<8xf32> to vector<8x1xf32>
    %cst_381 = arith.constant 3.200000e+01 : f32
    %908 = vector.broadcast %cst_381 : f32 to vector<8x1xf32>
    %909 = arith.divf %907, %908 : vector<8x1xf32>
    %910 = vector.broadcast %909 : vector<8x1xf32> to vector<8x32xf32>
    %911 = arith.subf %901, %910 : vector<8x32xf32>
    %912 = arith.mulf %911, %911 : vector<8x32xf32>
    %cst_382 = arith.constant dense<0.000000e+00> : vector<8xf32>
    %913 = vector.multi_reduction <add>, %912, %cst_382 [1] : vector<8x32xf32> to vector<8xf32>
    %914 = vector.shape_cast %913 : vector<8xf32> to vector<8x1xf32>
    %cst_383 = arith.constant 3.200000e+01 : f32
    %915 = vector.broadcast %cst_383 : f32 to vector<8x1xf32>
    %916 = arith.divf %914, %915 : vector<8x1xf32>
    %917 = vector.broadcast %909 : vector<8x1xf32> to vector<8x32xf32>
    %918 = arith.subf %901, %917 : vector<8x32xf32>
    %cst_384 = arith.constant 9.99999974E-6 : f32
    %919 = vector.broadcast %cst_384 : f32 to vector<8x1xf32>
    %920 = arith.addf %916, %919 : vector<8x1xf32>
    %921 = math.rsqrt %920 : vector<8x1xf32>
    %922 = vector.broadcast %921 : vector<8x1xf32> to vector<8x32xf32>
    %923 = arith.mulf %918, %922 : vector<8x32xf32>
    %924 = vector.broadcast %903 : vector<1x32xf32> to vector<8x32xf32>
    %925 = arith.mulf %923, %924 : vector<8x32xf32>
    %926 = vector.broadcast %905 : vector<1x32xf32> to vector<8x32xf32>
    %927 = arith.addf %925, %926 : vector<8x32xf32>
    %c1_385 = arith.constant 1 : index
    %c0_386 = arith.constant 0 : index
    %c0_387 = arith.constant 0 : index
    %928 = vector.load %arg27[%c1_385, %c0_386, %c0_387] : memref<2x32x32xbf16, #tpu.memory_space<vmem>>, vector<1x32x32xbf16>
    %929 = vector.shape_cast %928 : vector<1x32x32xbf16> to vector<32x32xbf16>
    %930 = arith.truncf %927 : vector<8x32xf32> to vector<8x32xbf16>
    %cst_388 = arith.constant dense<0.000000e+00> : vector<8x32xf32>
    %931 = tpu.matmul %930, %929, %cst_388 {dimension_numbers = #tpu.dot_dimension_numbers<[1], [0], [0], [1], [0, 0, 1, 1], [], []>} : vector<8x32xbf16>, vector<32x32xbf16>, vector<8x32xf32> -> vector<8x32xf32>
    %c1_389 = arith.constant 1 : index
    %c0_390 = arith.constant 0 : index
    %c0_391 = arith.constant 0 : index
    %932 = vector.load %arg28[%c1_389, %c0_390, %c0_391] : memref<2x1x32xf32, #tpu.memory_space<vmem>>, vector<1x1x32xf32>
    %933 = vector.shape_cast %932 : vector<1x1x32xf32> to vector<1x32xf32>
    %934 = vector.broadcast %933 : vector<1x32xf32> to vector<8x32xf32>
    %935 = arith.addf %931, %934 : vector<8x32xf32>
    %c1_392 = arith.constant 1 : index
    %c0_393 = arith.constant 0 : index
    %c0_394 = arith.constant 0 : index
    %936 = vector.load %arg29[%c1_392, %c0_393, %c0_394] : memref<2x32x64xbf16, #tpu.memory_space<vmem>>, vector<1x32x64xbf16>
    %937 = vector.shape_cast %936 : vector<1x32x64xbf16> to vector<32x64xbf16>
    %938 = arith.truncf %447 : vector<8x32xf32> to vector<8x32xbf16>
    %cst_395 = arith.constant dense<0.000000e+00> : vector<8x64xf32>
    %939 = tpu.matmul %938, %937, %cst_395 {dimension_numbers = #tpu.dot_dimension_numbers<[1], [0], [0], [1], [0, 0, 1, 1], [], []>} : vector<8x32xbf16>, vector<32x64xbf16>, vector<8x64xf32> -> vector<8x64xf32>
    %c1_396 = arith.constant 1 : index
    %c0_397 = arith.constant 0 : index
    %c0_398 = arith.constant 0 : index
    %940 = vector.load %arg30[%c1_396, %c0_397, %c0_398] : memref<2x1x64xf32, #tpu.memory_space<vmem>>, vector<1x1x64xf32>
    %941 = vector.shape_cast %940 : vector<1x1x64xf32> to vector<1x64xf32>
    %942 = vector.broadcast %941 : vector<1x64xf32> to vector<8x64xf32>
    %943 = arith.addf %939, %942 : vector<8x64xf32>
    %944 = vector.extract_strided_slice %943 {offsets = [0, 0], sizes = [8, 32], strides = [1, 1]} : vector<8x64xf32> to vector<8x32xf32>
    %945 = vector.extract_strided_slice %943 {offsets = [0, 32], sizes = [8, 32], strides = [1, 1]} : vector<8x64xf32> to vector<8x32xf32>
    %c1_399 = arith.constant 1 : index
    %c0_400 = arith.constant 0 : index
    %c0_401 = arith.constant 0 : index
    %946 = vector.load %arg31[%c1_399, %c0_400, %c0_401] : memref<2x32x32xbf16, #tpu.memory_space<vmem>>, vector<1x32x32xbf16>
    %947 = vector.shape_cast %946 : vector<1x32x32xbf16> to vector<32x32xbf16>
    %c1_402 = arith.constant 1 : index
    %c0_403 = arith.constant 0 : index
    %c0_404 = arith.constant 0 : index
    %948 = vector.load %arg32[%c1_402, %c0_403, %c0_404] : memref<2x1x32xf32, #tpu.memory_space<vmem>>, vector<1x1x32xf32>
    %949 = vector.shape_cast %948 : vector<1x1x32xf32> to vector<1x32xf32>
    %950 = arith.truncf %935 : vector<8x32xf32> to vector<8x32xbf16>
    %951 = arith.truncf %944 : vector<8x32xf32> to vector<8x32xbf16>
    %952 = arith.truncf %945 : vector<8x32xf32> to vector<8x32xbf16>
    %cst_405 = arith.constant 0.000000e+00 : f32
    %953 = vector.broadcast %cst_405 : f32 to vector<8x32xf32>
    %954 = vector.broadcast %949 : vector<1x32xf32> to vector<8x32xf32>
    %955 = arith.addf %953, %954 : vector<8x32xf32>
    %956 = vector.extract_strided_slice %950 {offsets = [0, 0], sizes = [8, 8], strides = [1, 1]} : vector<8x32xbf16> to vector<8x8xbf16>
    %957 = vector.extract_strided_slice %951 {offsets = [0, 0], sizes = [8, 8], strides = [1, 1]} : vector<8x32xbf16> to vector<8x8xbf16>
    %cst_406 = arith.constant dense<0.000000e+00> : vector<8x8xf32>
    %958 = tpu.matmul %956, %957, %cst_406 {dimension_numbers = #tpu.dot_dimension_numbers<[1], [1], [0], [0], [0, 0, 1, 0], [], []>} : vector<8x8xbf16>, vector<8x8xbf16>, vector<8x8xf32> -> vector<8x8xf32>
    %cst_407 = arith.constant 0.353553385 : f32
    %959 = vector.broadcast %cst_407 : f32 to vector<8x8xf32>
    %960 = arith.mulf %958, %959 : vector<8x8xf32>
    %cst_408 = arith.constant dense<0xFF800000> : vector<8xf32>
    %961 = vector.multi_reduction <maximumf>, %960, %cst_408 [1] : vector<8x8xf32> to vector<8xf32>
    %962 = vector.shape_cast %961 : vector<8xf32> to vector<8x1xf32>
    %963 = vector.broadcast %962 : vector<8x1xf32> to vector<8x8xf32>
    %964 = arith.subf %960, %963 : vector<8x8xf32>
    %965 = math.exp %964 : vector<8x8xf32>
    %cst_409 = arith.constant dense<0.000000e+00> : vector<8xf32>
    %966 = vector.multi_reduction <add>, %965, %cst_409 [1] : vector<8x8xf32> to vector<8xf32>
    %967 = vector.shape_cast %966 : vector<8xf32> to vector<8x1xf32>
    %cst_410 = arith.constant 1.000000e+00 : f32
    %968 = vector.broadcast %cst_410 : f32 to vector<8x1xf32>
    %969 = arith.divf %968, %967 : vector<8x1xf32>
    %970 = vector.broadcast %969 : vector<8x1xf32> to vector<8x8xf32>
    %971 = arith.mulf %965, %970 : vector<8x8xf32>
    %972 = arith.truncf %971 : vector<8x8xf32> to vector<8x8xbf16>
    %973 = vector.extract_strided_slice %952 {offsets = [0, 0], sizes = [8, 8], strides = [1, 1]} : vector<8x32xbf16> to vector<8x8xbf16>
    %cst_411 = arith.constant dense<0.000000e+00> : vector<8x8xf32>
    %974 = tpu.matmul %972, %973, %cst_411 {dimension_numbers = #tpu.dot_dimension_numbers<[1], [0], [0], [1], [0, 0, 1, 1], [], []>} : vector<8x8xbf16>, vector<8x8xbf16>, vector<8x8xf32> -> vector<8x8xf32>
    %975 = vector.extract_strided_slice %947 {offsets = [0, 0], sizes = [8, 32], strides = [1, 1]} : vector<32x32xbf16> to vector<8x32xbf16>
    %976 = arith.truncf %974 : vector<8x8xf32> to vector<8x8xbf16>
    %cst_412 = arith.constant dense<0.000000e+00> : vector<8x32xf32>
    %977 = tpu.matmul %976, %975, %cst_412 {dimension_numbers = #tpu.dot_dimension_numbers<[1], [0], [0], [1], [0, 0, 1, 1], [], []>} : vector<8x8xbf16>, vector<8x32xbf16>, vector<8x32xf32> -> vector<8x32xf32>
    %978 = arith.addf %955, %977 : vector<8x32xf32>
    %979 = vector.extract_strided_slice %950 {offsets = [0, 8], sizes = [8, 8], strides = [1, 1]} : vector<8x32xbf16> to vector<8x8xbf16>
    %980 = vector.extract_strided_slice %951 {offsets = [0, 8], sizes = [8, 8], strides = [1, 1]} : vector<8x32xbf16> to vector<8x8xbf16>
    %cst_413 = arith.constant dense<0.000000e+00> : vector<8x8xf32>
    %981 = tpu.matmul %979, %980, %cst_413 {dimension_numbers = #tpu.dot_dimension_numbers<[1], [1], [0], [0], [0, 0, 1, 0], [], []>} : vector<8x8xbf16>, vector<8x8xbf16>, vector<8x8xf32> -> vector<8x8xf32>
    %cst_414 = arith.constant 0.353553385 : f32
    %982 = vector.broadcast %cst_414 : f32 to vector<8x8xf32>
    %983 = arith.mulf %981, %982 : vector<8x8xf32>
    %cst_415 = arith.constant dense<0xFF800000> : vector<8xf32>
    %984 = vector.multi_reduction <maximumf>, %983, %cst_415 [1] : vector<8x8xf32> to vector<8xf32>
    %985 = vector.shape_cast %984 : vector<8xf32> to vector<8x1xf32>
    %986 = vector.broadcast %985 : vector<8x1xf32> to vector<8x8xf32>
    %987 = arith.subf %983, %986 : vector<8x8xf32>
    %988 = math.exp %987 : vector<8x8xf32>
    %cst_416 = arith.constant dense<0.000000e+00> : vector<8xf32>
    %989 = vector.multi_reduction <add>, %988, %cst_416 [1] : vector<8x8xf32> to vector<8xf32>
    %990 = vector.shape_cast %989 : vector<8xf32> to vector<8x1xf32>
    %cst_417 = arith.constant 1.000000e+00 : f32
    %991 = vector.broadcast %cst_417 : f32 to vector<8x1xf32>
    %992 = arith.divf %991, %990 : vector<8x1xf32>
    %993 = vector.broadcast %992 : vector<8x1xf32> to vector<8x8xf32>
    %994 = arith.mulf %988, %993 : vector<8x8xf32>
    %995 = arith.truncf %994 : vector<8x8xf32> to vector<8x8xbf16>
    %996 = vector.extract_strided_slice %952 {offsets = [0, 8], sizes = [8, 8], strides = [1, 1]} : vector<8x32xbf16> to vector<8x8xbf16>
    %cst_418 = arith.constant dense<0.000000e+00> : vector<8x8xf32>
    %997 = tpu.matmul %995, %996, %cst_418 {dimension_numbers = #tpu.dot_dimension_numbers<[1], [0], [0], [1], [0, 0, 1, 1], [], []>} : vector<8x8xbf16>, vector<8x8xbf16>, vector<8x8xf32> -> vector<8x8xf32>
    %998 = vector.extract_strided_slice %947 {offsets = [8, 0], sizes = [8, 32], strides = [1, 1]} : vector<32x32xbf16> to vector<8x32xbf16>
    %999 = arith.truncf %997 : vector<8x8xf32> to vector<8x8xbf16>
    %cst_419 = arith.constant dense<0.000000e+00> : vector<8x32xf32>
    %1000 = tpu.matmul %999, %998, %cst_419 {dimension_numbers = #tpu.dot_dimension_numbers<[1], [0], [0], [1], [0, 0, 1, 1], [], []>} : vector<8x8xbf16>, vector<8x32xbf16>, vector<8x32xf32> -> vector<8x32xf32>
    %1001 = arith.addf %978, %1000 : vector<8x32xf32>
    %1002 = vector.extract_strided_slice %950 {offsets = [0, 16], sizes = [8, 8], strides = [1, 1]} : vector<8x32xbf16> to vector<8x8xbf16>
    %1003 = vector.extract_strided_slice %951 {offsets = [0, 16], sizes = [8, 8], strides = [1, 1]} : vector<8x32xbf16> to vector<8x8xbf16>
    %cst_420 = arith.constant dense<0.000000e+00> : vector<8x8xf32>
    %1004 = tpu.matmul %1002, %1003, %cst_420 {dimension_numbers = #tpu.dot_dimension_numbers<[1], [1], [0], [0], [0, 0, 1, 0], [], []>} : vector<8x8xbf16>, vector<8x8xbf16>, vector<8x8xf32> -> vector<8x8xf32>
    %cst_421 = arith.constant 0.353553385 : f32
    %1005 = vector.broadcast %cst_421 : f32 to vector<8x8xf32>
    %1006 = arith.mulf %1004, %1005 : vector<8x8xf32>
    %cst_422 = arith.constant dense<0xFF800000> : vector<8xf32>
    %1007 = vector.multi_reduction <maximumf>, %1006, %cst_422 [1] : vector<8x8xf32> to vector<8xf32>
    %1008 = vector.shape_cast %1007 : vector<8xf32> to vector<8x1xf32>
    %1009 = vector.broadcast %1008 : vector<8x1xf32> to vector<8x8xf32>
    %1010 = arith.subf %1006, %1009 : vector<8x8xf32>
    %1011 = math.exp %1010 : vector<8x8xf32>
    %cst_423 = arith.constant dense<0.000000e+00> : vector<8xf32>
    %1012 = vector.multi_reduction <add>, %1011, %cst_423 [1] : vector<8x8xf32> to vector<8xf32>
    %1013 = vector.shape_cast %1012 : vector<8xf32> to vector<8x1xf32>
    %cst_424 = arith.constant 1.000000e+00 : f32
    %1014 = vector.broadcast %cst_424 : f32 to vector<8x1xf32>
    %1015 = arith.divf %1014, %1013 : vector<8x1xf32>
    %1016 = vector.broadcast %1015 : vector<8x1xf32> to vector<8x8xf32>
    %1017 = arith.mulf %1011, %1016 : vector<8x8xf32>
    %1018 = arith.truncf %1017 : vector<8x8xf32> to vector<8x8xbf16>
    %1019 = vector.extract_strided_slice %952 {offsets = [0, 16], sizes = [8, 8], strides = [1, 1]} : vector<8x32xbf16> to vector<8x8xbf16>
    %cst_425 = arith.constant dense<0.000000e+00> : vector<8x8xf32>
    %1020 = tpu.matmul %1018, %1019, %cst_425 {dimension_numbers = #tpu.dot_dimension_numbers<[1], [0], [0], [1], [0, 0, 1, 1], [], []>} : vector<8x8xbf16>, vector<8x8xbf16>, vector<8x8xf32> -> vector<8x8xf32>
    %1021 = vector.extract_strided_slice %947 {offsets = [16, 0], sizes = [8, 32], strides = [1, 1]} : vector<32x32xbf16> to vector<8x32xbf16>
    %1022 = arith.truncf %1020 : vector<8x8xf32> to vector<8x8xbf16>
    %cst_426 = arith.constant dense<0.000000e+00> : vector<8x32xf32>
    %1023 = tpu.matmul %1022, %1021, %cst_426 {dimension_numbers = #tpu.dot_dimension_numbers<[1], [0], [0], [1], [0, 0, 1, 1], [], []>} : vector<8x8xbf16>, vector<8x32xbf16>, vector<8x32xf32> -> vector<8x32xf32>
    %1024 = arith.addf %1001, %1023 : vector<8x32xf32>
    %1025 = vector.extract_strided_slice %950 {offsets = [0, 24], sizes = [8, 8], strides = [1, 1]} : vector<8x32xbf16> to vector<8x8xbf16>
    %1026 = vector.extract_strided_slice %951 {offsets = [0, 24], sizes = [8, 8], strides = [1, 1]} : vector<8x32xbf16> to vector<8x8xbf16>
    %cst_427 = arith.constant dense<0.000000e+00> : vector<8x8xf32>
    %1027 = tpu.matmul %1025, %1026, %cst_427 {dimension_numbers = #tpu.dot_dimension_numbers<[1], [1], [0], [0], [0, 0, 1, 0], [], []>} : vector<8x8xbf16>, vector<8x8xbf16>, vector<8x8xf32> -> vector<8x8xf32>
    %cst_428 = arith.constant 0.353553385 : f32
    %1028 = vector.broadcast %cst_428 : f32 to vector<8x8xf32>
    %1029 = arith.mulf %1027, %1028 : vector<8x8xf32>
    %cst_429 = arith.constant dense<0xFF800000> : vector<8xf32>
    %1030 = vector.multi_reduction <maximumf>, %1029, %cst_429 [1] : vector<8x8xf32> to vector<8xf32>
    %1031 = vector.shape_cast %1030 : vector<8xf32> to vector<8x1xf32>
    %1032 = vector.broadcast %1031 : vector<8x1xf32> to vector<8x8xf32>
    %1033 = arith.subf %1029, %1032 : vector<8x8xf32>
    %1034 = math.exp %1033 : vector<8x8xf32>
    %cst_430 = arith.constant dense<0.000000e+00> : vector<8xf32>
    %1035 = vector.multi_reduction <add>, %1034, %cst_430 [1] : vector<8x8xf32> to vector<8xf32>
    %1036 = vector.shape_cast %1035 : vector<8xf32> to vector<8x1xf32>
    %cst_431 = arith.constant 1.000000e+00 : f32
    %1037 = vector.broadcast %cst_431 : f32 to vector<8x1xf32>
    %1038 = arith.divf %1037, %1036 : vector<8x1xf32>
    %1039 = vector.broadcast %1038 : vector<8x1xf32> to vector<8x8xf32>
    %1040 = arith.mulf %1034, %1039 : vector<8x8xf32>
    %1041 = arith.truncf %1040 : vector<8x8xf32> to vector<8x8xbf16>
    %1042 = vector.extract_strided_slice %952 {offsets = [0, 24], sizes = [8, 8], strides = [1, 1]} : vector<8x32xbf16> to vector<8x8xbf16>
    %cst_432 = arith.constant dense<0.000000e+00> : vector<8x8xf32>
    %1043 = tpu.matmul %1041, %1042, %cst_432 {dimension_numbers = #tpu.dot_dimension_numbers<[1], [0], [0], [1], [0, 0, 1, 1], [], []>} : vector<8x8xbf16>, vector<8x8xbf16>, vector<8x8xf32> -> vector<8x8xf32>
    %1044 = vector.extract_strided_slice %947 {offsets = [24, 0], sizes = [8, 32], strides = [1, 1]} : vector<32x32xbf16> to vector<8x32xbf16>
    %1045 = arith.truncf %1043 : vector<8x8xf32> to vector<8x8xbf16>
    %cst_433 = arith.constant dense<0.000000e+00> : vector<8x32xf32>
    %1046 = tpu.matmul %1045, %1044, %cst_433 {dimension_numbers = #tpu.dot_dimension_numbers<[1], [0], [0], [1], [0, 0, 1, 1], [], []>} : vector<8x8xbf16>, vector<8x32xbf16>, vector<8x32xf32> -> vector<8x32xf32>
    %1047 = arith.addf %1024, %1046 : vector<8x32xf32>
    %1048 = arith.addf %927, %1047 : vector<8x32xf32>
    %c1_434 = arith.constant 1 : index
    %c0_435 = arith.constant 0 : index
    %c0_436 = arith.constant 0 : index
    %1049 = vector.load %arg33[%c1_434, %c0_435, %c0_436] : memref<2x1x32xf32, #tpu.memory_space<vmem>>, vector<1x1x32xf32>
    %1050 = vector.shape_cast %1049 : vector<1x1x32xf32> to vector<1x32xf32>
    %c1_437 = arith.constant 1 : index
    %c0_438 = arith.constant 0 : index
    %c0_439 = arith.constant 0 : index
    %1051 = vector.load %arg34[%c1_437, %c0_438, %c0_439] : memref<2x1x32xf32, #tpu.memory_space<vmem>>, vector<1x1x32xf32>
    %1052 = vector.shape_cast %1051 : vector<1x1x32xf32> to vector<1x32xf32>
    %cst_440 = arith.constant dense<0.000000e+00> : vector<8xf32>
    %1053 = vector.multi_reduction <add>, %1048, %cst_440 [1] : vector<8x32xf32> to vector<8xf32>
    %1054 = vector.shape_cast %1053 : vector<8xf32> to vector<8x1xf32>
    %cst_441 = arith.constant 3.200000e+01 : f32
    %1055 = vector.broadcast %cst_441 : f32 to vector<8x1xf32>
    %1056 = arith.divf %1054, %1055 : vector<8x1xf32>
    %1057 = vector.broadcast %1056 : vector<8x1xf32> to vector<8x32xf32>
    %1058 = arith.subf %1048, %1057 : vector<8x32xf32>
    %1059 = arith.mulf %1058, %1058 : vector<8x32xf32>
    %cst_442 = arith.constant dense<0.000000e+00> : vector<8xf32>
    %1060 = vector.multi_reduction <add>, %1059, %cst_442 [1] : vector<8x32xf32> to vector<8xf32>
    %1061 = vector.shape_cast %1060 : vector<8xf32> to vector<8x1xf32>
    %cst_443 = arith.constant 3.200000e+01 : f32
    %1062 = vector.broadcast %cst_443 : f32 to vector<8x1xf32>
    %1063 = arith.divf %1061, %1062 : vector<8x1xf32>
    %1064 = vector.broadcast %1056 : vector<8x1xf32> to vector<8x32xf32>
    %1065 = arith.subf %1048, %1064 : vector<8x32xf32>
    %cst_444 = arith.constant 9.99999974E-6 : f32
    %1066 = vector.broadcast %cst_444 : f32 to vector<8x1xf32>
    %1067 = arith.addf %1063, %1066 : vector<8x1xf32>
    %1068 = math.rsqrt %1067 : vector<8x1xf32>
    %1069 = vector.broadcast %1068 : vector<8x1xf32> to vector<8x32xf32>
    %1070 = arith.mulf %1065, %1069 : vector<8x32xf32>
    %1071 = vector.broadcast %1050 : vector<1x32xf32> to vector<8x32xf32>
    %1072 = arith.mulf %1070, %1071 : vector<8x32xf32>
    %1073 = vector.broadcast %1052 : vector<1x32xf32> to vector<8x32xf32>
    %1074 = arith.addf %1072, %1073 : vector<8x32xf32>
    %c1_445 = arith.constant 1 : index
    %c0_446 = arith.constant 0 : index
    %c0_447 = arith.constant 0 : index
    %1075 = vector.load %arg35[%c1_445, %c0_446, %c0_447] : memref<2x32x128xbf16, #tpu.memory_space<vmem>>, vector<1x32x128xbf16>
    %1076 = vector.shape_cast %1075 : vector<1x32x128xbf16> to vector<32x128xbf16>
    %1077 = arith.truncf %1074 : vector<8x32xf32> to vector<8x32xbf16>
    %cst_448 = arith.constant dense<0.000000e+00> : vector<8x128xf32>
    %1078 = tpu.matmul %1077, %1076, %cst_448 {dimension_numbers = #tpu.dot_dimension_numbers<[1], [0], [0], [1], [0, 0, 1, 1], [], []>} : vector<8x32xbf16>, vector<32x128xbf16>, vector<8x128xf32> -> vector<8x128xf32>
    %c1_449 = arith.constant 1 : index
    %c0_450 = arith.constant 0 : index
    %c0_451 = arith.constant 0 : index
    %1079 = vector.load %arg36[%c1_449, %c0_450, %c0_451] : memref<2x1x128xf32, #tpu.memory_space<vmem>>, vector<1x1x128xf32>
    %1080 = vector.shape_cast %1079 : vector<1x1x128xf32> to vector<1x128xf32>
    %1081 = vector.broadcast %1080 : vector<1x128xf32> to vector<8x128xf32>
    %1082 = arith.addf %1078, %1081 : vector<8x128xf32>
    %cst_452 = arith.constant 0.000000e+00 : f32
    %1083 = vector.broadcast %cst_452 : f32 to vector<8x128xf32>
    %1084 = arith.maximumf %1082, %1083 : vector<8x128xf32>
    %c1_453 = arith.constant 1 : index
    %c0_454 = arith.constant 0 : index
    %c0_455 = arith.constant 0 : index
    %1085 = vector.load %arg37[%c1_453, %c0_454, %c0_455] : memref<2x128x32xbf16, #tpu.memory_space<vmem>>, vector<1x128x32xbf16>
    %1086 = vector.shape_cast %1085 : vector<1x128x32xbf16> to vector<128x32xbf16>
    %1087 = arith.truncf %1084 : vector<8x128xf32> to vector<8x128xbf16>
    %cst_456 = arith.constant dense<0.000000e+00> : vector<8x32xf32>
    %1088 = tpu.matmul %1087, %1086, %cst_456 {dimension_numbers = #tpu.dot_dimension_numbers<[1], [0], [0], [1], [0, 0, 1, 1], [], []>} : vector<8x128xbf16>, vector<128x32xbf16>, vector<8x32xf32> -> vector<8x32xf32>
    %c1_457 = arith.constant 1 : index
    %c0_458 = arith.constant 0 : index
    %c0_459 = arith.constant 0 : index
    %1089 = vector.load %arg38[%c1_457, %c0_458, %c0_459] : memref<2x1x32xf32, #tpu.memory_space<vmem>>, vector<1x1x32xf32>
    %1090 = vector.shape_cast %1089 : vector<1x1x32xf32> to vector<1x32xf32>
    %1091 = vector.broadcast %1090 : vector<1x32xf32> to vector<8x32xf32>
    %1092 = arith.addf %1088, %1091 : vector<8x32xf32>
    %1093 = arith.addf %1074, %1092 : vector<8x32xf32>
    %c1_460 = arith.constant 1 : index
    %c0_461 = arith.constant 0 : index
    %c0_462 = arith.constant 0 : index
    %1094 = vector.load %arg39[%c1_460, %c0_461, %c0_462] : memref<2x1x32xf32, #tpu.memory_space<vmem>>, vector<1x1x32xf32>
    %1095 = vector.shape_cast %1094 : vector<1x1x32xf32> to vector<1x32xf32>
    %c1_463 = arith.constant 1 : index
    %c0_464 = arith.constant 0 : index
    %c0_465 = arith.constant 0 : index
    %1096 = vector.load %arg40[%c1_463, %c0_464, %c0_465] : memref<2x1x32xf32, #tpu.memory_space<vmem>>, vector<1x1x32xf32>
    %1097 = vector.shape_cast %1096 : vector<1x1x32xf32> to vector<1x32xf32>
    %cst_466 = arith.constant dense<0.000000e+00> : vector<8xf32>
    %1098 = vector.multi_reduction <add>, %1093, %cst_466 [1] : vector<8x32xf32> to vector<8xf32>
    %1099 = vector.shape_cast %1098 : vector<8xf32> to vector<8x1xf32>
    %cst_467 = arith.constant 3.200000e+01 : f32
    %1100 = vector.broadcast %cst_467 : f32 to vector<8x1xf32>
    %1101 = arith.divf %1099, %1100 : vector<8x1xf32>
    %1102 = vector.broadcast %1101 : vector<8x1xf32> to vector<8x32xf32>
    %1103 = arith.subf %1093, %1102 : vector<8x32xf32>
    %1104 = arith.mulf %1103, %1103 : vector<8x32xf32>
    %cst_468 = arith.constant dense<0.000000e+00> : vector<8xf32>
    %1105 = vector.multi_reduction <add>, %1104, %cst_468 [1] : vector<8x32xf32> to vector<8xf32>
    %1106 = vector.shape_cast %1105 : vector<8xf32> to vector<8x1xf32>
    %cst_469 = arith.constant 3.200000e+01 : f32
    %1107 = vector.broadcast %cst_469 : f32 to vector<8x1xf32>
    %1108 = arith.divf %1106, %1107 : vector<8x1xf32>
    %1109 = vector.broadcast %1101 : vector<8x1xf32> to vector<8x32xf32>
    %1110 = arith.subf %1093, %1109 : vector<8x32xf32>
    %cst_470 = arith.constant 9.99999974E-6 : f32
    %1111 = vector.broadcast %cst_470 : f32 to vector<8x1xf32>
    %1112 = arith.addf %1108, %1111 : vector<8x1xf32>
    %1113 = math.rsqrt %1112 : vector<8x1xf32>
    %1114 = vector.broadcast %1113 : vector<8x1xf32> to vector<8x32xf32>
    %1115 = arith.mulf %1110, %1114 : vector<8x32xf32>
    %1116 = vector.broadcast %1095 : vector<1x32xf32> to vector<8x32xf32>
    %1117 = arith.mulf %1115, %1116 : vector<8x32xf32>
    %1118 = vector.broadcast %1097 : vector<1x32xf32> to vector<8x32xf32>
    %1119 = arith.addf %1117, %1118 : vector<8x32xf32>
    %c0_471 = arith.constant 0 : index
    %c0_472 = arith.constant 0 : index
    %1120 = vector.load %arg41[%c0_471, %c0_472] : memref<1x32xf32, #tpu.memory_space<vmem>>, vector<1x32xf32>
    %c0_473 = arith.constant 0 : index
    %c0_474 = arith.constant 0 : index
    %1121 = vector.load %arg42[%c0_473, %c0_474] : memref<1x32xf32, #tpu.memory_space<vmem>>, vector<1x32xf32>
    %cst_475 = arith.constant dense<0.000000e+00> : vector<8xf32>
    %1122 = vector.multi_reduction <add>, %1119, %cst_475 [1] : vector<8x32xf32> to vector<8xf32>
    %1123 = vector.shape_cast %1122 : vector<8xf32> to vector<8x1xf32>
    %cst_476 = arith.constant 3.200000e+01 : f32
    %1124 = vector.broadcast %cst_476 : f32 to vector<8x1xf32>
    %1125 = arith.divf %1123, %1124 : vector<8x1xf32>
    %1126 = vector.broadcast %1125 : vector<8x1xf32> to vector<8x32xf32>
    %1127 = arith.subf %1119, %1126 : vector<8x32xf32>
    %1128 = arith.mulf %1127, %1127 : vector<8x32xf32>
    %cst_477 = arith.constant dense<0.000000e+00> : vector<8xf32>
    %1129 = vector.multi_reduction <add>, %1128, %cst_477 [1] : vector<8x32xf32> to vector<8xf32>
    %1130 = vector.shape_cast %1129 : vector<8xf32> to vector<8x1xf32>
    %cst_478 = arith.constant 3.200000e+01 : f32
    %1131 = vector.broadcast %cst_478 : f32 to vector<8x1xf32>
    %1132 = arith.divf %1130, %1131 : vector<8x1xf32>
    %1133 = vector.broadcast %1125 : vector<8x1xf32> to vector<8x32xf32>
    %1134 = arith.subf %1119, %1133 : vector<8x32xf32>
    %cst_479 = arith.constant 9.99999974E-6 : f32
    %1135 = vector.broadcast %cst_479 : f32 to vector<8x1xf32>
    %1136 = arith.addf %1132, %1135 : vector<8x1xf32>
    %1137 = math.rsqrt %1136 : vector<8x1xf32>
    %1138 = vector.broadcast %1137 : vector<8x1xf32> to vector<8x32xf32>
    %1139 = arith.mulf %1134, %1138 : vector<8x32xf32>
    %1140 = vector.broadcast %1120 : vector<1x32xf32> to vector<8x32xf32>
    %1141 = arith.mulf %1139, %1140 : vector<8x32xf32>
    %1142 = vector.broadcast %1121 : vector<1x32xf32> to vector<8x32xf32>
    %1143 = arith.addf %1141, %1142 : vector<8x32xf32>
    %c0_480 = arith.constant 0 : index
    %c0_481 = arith.constant 0 : index
    %1144 = vector.load %arg43[%c0_480, %c0_481] : memref<32x6xbf16, #tpu.memory_space<vmem>>, vector<32x6xbf16>
    %1145 = arith.truncf %1143 : vector<8x32xf32> to vector<8x32xbf16>
    %cst_482 = arith.constant dense<0.000000e+00> : vector<8x6xf32>
    %1146 = tpu.matmul %1145, %1144, %cst_482 {dimension_numbers = #tpu.dot_dimension_numbers<[1], [0], [0], [1], [0, 0, 1, 1], [], []>} : vector<8x32xbf16>, vector<32x6xbf16>, vector<8x6xf32> -> vector<8x6xf32>
    %c0_483 = arith.constant 0 : index
    %c0_484 = arith.constant 0 : index
    %1147 = vector.load %arg44[%c0_483, %c0_484] : memref<1x6xf32, #tpu.memory_space<vmem>>, vector<1x6xf32>
    %1148 = vector.broadcast %1147 : vector<1x6xf32> to vector<8x6xf32>
    %1149 = arith.addf %1146, %1148 : vector<8x6xf32>
    %c0_485 = arith.constant 0 : index
    %c0_486 = arith.constant 0 : index
    %c0_487 = arith.constant 0 : index
    %1150 = vector.load %arg45[%c0_485, %c0_486, %c0_487] : memref<1x8x6xf32, #tpu.memory_space<vmem>>, vector<1x8x6xf32>
    %1151 = vector.shape_cast %1150 : vector<1x8x6xf32> to vector<8x6xf32>
    %1152 = vector.shape_cast %1149 : vector<8x6xf32> to vector<1x8x6xf32>
    tpu.vector_store %arg45[%c0_485, %c0_486, %c0_487], %1152 {strides = array<i32>} : memref<1x8x6xf32, #tpu.memory_space<vmem>>, vector<1x8x6xf32>,
    return
  }
  func.func @transform_0(%arg0: i32) -> (i32, i32, i32) {
    %c0_i32 = arith.constant 0 : i32
    %c0_i32_0 = arith.constant 0 : i32
    %c0_i32_1 = arith.constant 0 : i32
    return %arg0, %c0_i32, %c0_i32_0 : i32, i32, i32
  }
  func.func @transform_1(%arg0: i32) -> (i32, i32, i32) {
    %c0_i32 = arith.constant 0 : i32
    %c0_i32_0 = arith.constant 0 : i32
    %c0_i32_1 = arith.constant 0 : i32
    return %arg0, %c0_i32, %c0_i32_0 : i32, i32, i32
  }
  func.func @transform_2(%arg0: i32) -> (i32, i32, i32) {
    %c0_i32 = arith.constant 0 : i32
    %c0_i32_0 = arith.constant 0 : i32
    %c0_i32_1 = arith.constant 0 : i32
    return %arg0, %c0_i32, %c0_i32_0 : i32, i32, i32
  }
  func.func @transform_3(%arg0: i32) -> (i32, i32, i32) {
    %c0_i32 = arith.constant 0 : i32
    %c0_i32_0 = arith.constant 0 : i32
    %c0_i32_1 = arith.constant 0 : i32
    return %arg0, %c0_i32, %c0_i32_0 : i32, i32, i32
  }
  func.func @transform_4(%arg0: i32) -> (i32, i32) {
    %c0_i32 = arith.constant 0 : i32
    %c0_i32_0 = arith.constant 0 : i32
    %c0_i32_1 = arith.constant 0 : i32
    return %c0_i32, %c0_i32_0 : i32, i32
  }
  func.func @transform_5(%arg0: i32) -> (i32, i32) {
    %c0_i32 = arith.constant 0 : i32
    %c0_i32_0 = arith.constant 0 : i32
    %c0_i32_1 = arith.constant 0 : i32
    return %c0_i32, %c0_i32_0 : i32, i32
  }
  func.func @transform_6(%arg0: i32) -> (i32, i32, i32) {
    %c0_i32 = arith.constant 0 : i32
    %c0_i32_0 = arith.constant 0 : i32
    %c0_i32_1 = arith.constant 0 : i32
    %c0_i32_2 = arith.constant 0 : i32
    return %c0_i32, %c0_i32_0, %c0_i32_1 : i32, i32, i32
  }
  func.func @transform_7(%arg0: i32) -> (i32, i32, i32) {
    %c0_i32 = arith.constant 0 : i32
    %c0_i32_0 = arith.constant 0 : i32
    %c0_i32_1 = arith.constant 0 : i32
    %c0_i32_2 = arith.constant 0 : i32
    return %c0_i32, %c0_i32_0, %c0_i32_1 : i32, i32, i32
  }
  func.func @transform_8(%arg0: i32) -> (i32, i32, i32) {
    %c0_i32 = arith.constant 0 : i32
    %c0_i32_0 = arith.constant 0 : i32
    %c0_i32_1 = arith.constant 0 : i32
    %c0_i32_2 = arith.constant 0 : i32
    return %c0_i32, %c0_i32_0, %c0_i32_1 : i32, i32, i32
  }
  func.func @transform_9(%arg0: i32) -> (i32, i32, i32) {
    %c0_i32 = arith.constant 0 : i32
    %c0_i32_0 = arith.constant 0 : i32
    %c0_i32_1 = arith.constant 0 : i32
    %c0_i32_2 = arith.constant 0 : i32
    return %c0_i32, %c0_i32_0, %c0_i32_1 : i32, i32, i32
  }
  func.func @transform_10(%arg0: i32) -> (i32, i32, i32) {
    %c0_i32 = arith.constant 0 : i32
    %c0_i32_0 = arith.constant 0 : i32
    %c0_i32_1 = arith.constant 0 : i32
    %c0_i32_2 = arith.constant 0 : i32
    return %c0_i32, %c0_i32_0, %c0_i32_1 : i32, i32, i32
  }
  func.func @transform_11(%arg0: i32) -> (i32, i32, i32) {
    %c0_i32 = arith.constant 0 : i32
    %c0_i32_0 = arith.constant 0 : i32
    %c0_i32_1 = arith.constant 0 : i32
    %c0_i32_2 = arith.constant 0 : i32
    return %c0_i32, %c0_i32_0, %c0_i32_1 : i32, i32, i32
  }
  func.func @transform_12(%arg0: i32) -> (i32, i32, i32) {
    %c0_i32 = arith.constant 0 : i32
    %c0_i32_0 = arith.constant 0 : i32
    %c0_i32_1 = arith.constant 0 : i32
    %c0_i32_2 = arith.constant 0 : i32
    return %c0_i32, %c0_i32_0, %c0_i32_1 : i32, i32, i32
  }
  func.func @transform_13(%arg0: i32) -> (i32, i32, i32) {
    %c0_i32 = arith.constant 0 : i32
    %c0_i32_0 = arith.constant 0 : i32
    %c0_i32_1 = arith.constant 0 : i32
    %c0_i32_2 = arith.constant 0 : i32
    return %c0_i32, %c0_i32_0, %c0_i32_1 : i32, i32, i32
  }
  func.func @transform_14(%arg0: i32) -> (i32, i32, i32) {
    %c0_i32 = arith.constant 0 : i32
    %c0_i32_0 = arith.constant 0 : i32
    %c0_i32_1 = arith.constant 0 : i32
    %c0_i32_2 = arith.constant 0 : i32
    return %c0_i32, %c0_i32_0, %c0_i32_1 : i32, i32, i32
  }
  func.func @transform_15(%arg0: i32) -> (i32, i32, i32) {
    %c0_i32 = arith.constant 0 : i32
    %c0_i32_0 = arith.constant 0 : i32
    %c0_i32_1 = arith.constant 0 : i32
    %c0_i32_2 = arith.constant 0 : i32
    return %c0_i32, %c0_i32_0, %c0_i32_1 : i32, i32, i32
  }
  func.func @transform_16(%arg0: i32) -> (i32, i32, i32) {
    %c0_i32 = arith.constant 0 : i32
    %c0_i32_0 = arith.constant 0 : i32
    %c0_i32_1 = arith.constant 0 : i32
    %c0_i32_2 = arith.constant 0 : i32
    return %c0_i32, %c0_i32_0, %c0_i32_1 : i32, i32, i32
  }
  func.func @transform_17(%arg0: i32) -> (i32, i32, i32) {
    %c0_i32 = arith.constant 0 : i32
    %c0_i32_0 = arith.constant 0 : i32
    %c0_i32_1 = arith.constant 0 : i32
    %c0_i32_2 = arith.constant 0 : i32
    return %c0_i32, %c0_i32_0, %c0_i32_1 : i32, i32, i32
  }
  func.func @transform_18(%arg0: i32) -> (i32, i32) {
    %c0_i32 = arith.constant 0 : i32
    %c0_i32_0 = arith.constant 0 : i32
    %c0_i32_1 = arith.constant 0 : i32
    return %c0_i32, %c0_i32_0 : i32, i32
  }
  func.func @transform_19(%arg0: i32) -> (i32, i32) {
    %c0_i32 = arith.constant 0 : i32
    %c0_i32_0 = arith.constant 0 : i32
    %c0_i32_1 = arith.constant 0 : i32
    return %c0_i32, %c0_i32_0 : i32, i32
  }
  func.func @transform_20(%arg0: i32) -> (i32, i32, i32) {
    %c0_i32 = arith.constant 0 : i32
    %c0_i32_0 = arith.constant 0 : i32
    %c0_i32_1 = arith.constant 0 : i32
    %c0_i32_2 = arith.constant 0 : i32
    return %c0_i32, %c0_i32_0, %c0_i32_1 : i32, i32, i32
  }
  func.func @transform_21(%arg0: i32) -> (i32, i32, i32) {
    %c0_i32 = arith.constant 0 : i32
    %c0_i32_0 = arith.constant 0 : i32
    %c0_i32_1 = arith.constant 0 : i32
    %c0_i32_2 = arith.constant 0 : i32
    return %c0_i32, %c0_i32_0, %c0_i32_1 : i32, i32, i32
  }
  func.func @transform_22(%arg0: i32) -> (i32, i32, i32) {
    %c0_i32 = arith.constant 0 : i32
    %c0_i32_0 = arith.constant 0 : i32
    %c0_i32_1 = arith.constant 0 : i32
    %c0_i32_2 = arith.constant 0 : i32
    return %c0_i32, %c0_i32_0, %c0_i32_1 : i32, i32, i32
  }
  func.func @transform_23(%arg0: i32) -> (i32, i32, i32) {
    %c0_i32 = arith.constant 0 : i32
    %c0_i32_0 = arith.constant 0 : i32
    %c0_i32_1 = arith.constant 0 : i32
    %c0_i32_2 = arith.constant 0 : i32
    return %c0_i32, %c0_i32_0, %c0_i32_1 : i32, i32, i32
  }
  func.func @transform_24(%arg0: i32) -> (i32, i32, i32) {
    %c0_i32 = arith.constant 0 : i32
    %c0_i32_0 = arith.constant 0 : i32
    %c0_i32_1 = arith.constant 0 : i32
    %c0_i32_2 = arith.constant 0 : i32
    return %c0_i32, %c0_i32_0, %c0_i32_1 : i32, i32, i32
  }
  func.func @transform_25(%arg0: i32) -> (i32, i32, i32) {
    %c0_i32 = arith.constant 0 : i32
    %c0_i32_0 = arith.constant 0 : i32
    %c0_i32_1 = arith.constant 0 : i32
    %c0_i32_2 = arith.constant 0 : i32
    return %c0_i32, %c0_i32_0, %c0_i32_1 : i32, i32, i32
  }
  func.func @transform_26(%arg0: i32) -> (i32, i32, i32) {
    %c0_i32 = arith.constant 0 : i32
    %c0_i32_0 = arith.constant 0 : i32
    %c0_i32_1 = arith.constant 0 : i32
    %c0_i32_2 = arith.constant 0 : i32
    return %c0_i32, %c0_i32_0, %c0_i32_1 : i32, i32, i32
  }
  func.func @transform_27(%arg0: i32) -> (i32, i32, i32) {
    %c0_i32 = arith.constant 0 : i32
    %c0_i32_0 = arith.constant 0 : i32
    %c0_i32_1 = arith.constant 0 : i32
    %c0_i32_2 = arith.constant 0 : i32
    return %c0_i32, %c0_i32_0, %c0_i32_1 : i32, i32, i32
  }
  func.func @transform_28(%arg0: i32) -> (i32, i32, i32) {
    %c0_i32 = arith.constant 0 : i32
    %c0_i32_0 = arith.constant 0 : i32
    %c0_i32_1 = arith.constant 0 : i32
    %c0_i32_2 = arith.constant 0 : i32
    return %c0_i32, %c0_i32_0, %c0_i32_1 : i32, i32, i32
  }
  func.func @transform_29(%arg0: i32) -> (i32, i32, i32) {
    %c0_i32 = arith.constant 0 : i32
    %c0_i32_0 = arith.constant 0 : i32
    %c0_i32_1 = arith.constant 0 : i32
    %c0_i32_2 = arith.constant 0 : i32
    return %c0_i32, %c0_i32_0, %c0_i32_1 : i32, i32, i32
  }
  func.func @transform_30(%arg0: i32) -> (i32, i32, i32) {
    %c0_i32 = arith.constant 0 : i32
    %c0_i32_0 = arith.constant 0 : i32
    %c0_i32_1 = arith.constant 0 : i32
    %c0_i32_2 = arith.constant 0 : i32
    return %c0_i32, %c0_i32_0, %c0_i32_1 : i32, i32, i32
  }
  func.func @transform_31(%arg0: i32) -> (i32, i32, i32) {
    %c0_i32 = arith.constant 0 : i32
    %c0_i32_0 = arith.constant 0 : i32
    %c0_i32_1 = arith.constant 0 : i32
    %c0_i32_2 = arith.constant 0 : i32
    return %c0_i32, %c0_i32_0, %c0_i32_1 : i32, i32, i32
  }
  func.func @transform_32(%arg0: i32) -> (i32, i32, i32) {
    %c0_i32 = arith.constant 0 : i32
    %c0_i32_0 = arith.constant 0 : i32
    %c0_i32_1 = arith.constant 0 : i32
    %c0_i32_2 = arith.constant 0 : i32
    return %c0_i32, %c0_i32_0, %c0_i32_1 : i32, i32, i32
  }
  func.func @transform_33(%arg0: i32) -> (i32, i32, i32) {
    %c0_i32 = arith.constant 0 : i32
    %c0_i32_0 = arith.constant 0 : i32
    %c0_i32_1 = arith.constant 0 : i32
    %c0_i32_2 = arith.constant 0 : i32
    return %c0_i32, %c0_i32_0, %c0_i32_1 : i32, i32, i32
  }
  func.func @transform_34(%arg0: i32) -> (i32, i32, i32) {
    %c0_i32 = arith.constant 0 : i32
    %c0_i32_0 = arith.constant 0 : i32
    %c0_i32_1 = arith.constant 0 : i32
    %c0_i32_2 = arith.constant 0 : i32
    return %c0_i32, %c0_i32_0, %c0_i32_1 : i32, i32, i32
  }
  func.func @transform_35(%arg0: i32) -> (i32, i32, i32) {
    %c0_i32 = arith.constant 0 : i32
    %c0_i32_0 = arith.constant 0 : i32
    %c0_i32_1 = arith.constant 0 : i32
    %c0_i32_2 = arith.constant 0 : i32
    return %c0_i32, %c0_i32_0, %c0_i32_1 : i32, i32, i32
  }
  func.func @transform_36(%arg0: i32) -> (i32, i32, i32) {
    %c0_i32 = arith.constant 0 : i32
    %c0_i32_0 = arith.constant 0 : i32
    %c0_i32_1 = arith.constant 0 : i32
    %c0_i32_2 = arith.constant 0 : i32
    return %c0_i32, %c0_i32_0, %c0_i32_1 : i32, i32, i32
  }
  func.func @transform_37(%arg0: i32) -> (i32, i32, i32) {
    %c0_i32 = arith.constant 0 : i32
    %c0_i32_0 = arith.constant 0 : i32
    %c0_i32_1 = arith.constant 0 : i32
    %c0_i32_2 = arith.constant 0 : i32
    return %c0_i32, %c0_i32_0, %c0_i32_1 : i32, i32, i32
  }
  func.func @transform_38(%arg0: i32) -> (i32, i32, i32) {
    %c0_i32 = arith.constant 0 : i32
    %c0_i32_0 = arith.constant 0 : i32
    %c0_i32_1 = arith.constant 0 : i32
    %c0_i32_2 = arith.constant 0 : i32
    return %c0_i32, %c0_i32_0, %c0_i32_1 : i32, i32, i32
  }
  func.func @transform_39(%arg0: i32) -> (i32, i32, i32) {
    %c0_i32 = arith.constant 0 : i32
    %c0_i32_0 = arith.constant 0 : i32
    %c0_i32_1 = arith.constant 0 : i32
    %c0_i32_2 = arith.constant 0 : i32
    return %c0_i32, %c0_i32_0, %c0_i32_1 : i32, i32, i32
  }
  func.func @transform_40(%arg0: i32) -> (i32, i32) {
    %c0_i32 = arith.constant 0 : i32
    %c0_i32_0 = arith.constant 0 : i32
    %c0_i32_1 = arith.constant 0 : i32
    return %c0_i32, %c0_i32_0 : i32, i32
  }
  func.func @transform_41(%arg0: i32) -> (i32, i32) {
    %c0_i32 = arith.constant 0 : i32
    %c0_i32_0 = arith.constant 0 : i32
    %c0_i32_1 = arith.constant 0 : i32
    return %c0_i32, %c0_i32_0 : i32, i32
  }
  func.func @transform_42(%arg0: i32) -> (i32, i32) {
    %c0_i32 = arith.constant 0 : i32
    %c0_i32_0 = arith.constant 0 : i32
    %c0_i32_1 = arith.constant 0 : i32
    return %c0_i32, %c0_i32_0 : i32, i32
  }
  func.func @transform_43(%arg0: i32) -> (i32, i32) {
    %c0_i32 = arith.constant 0 : i32
    %c0_i32_0 = arith.constant 0 : i32
    %c0_i32_1 = arith.constant 0 : i32
    return %c0_i32, %c0_i32_0 : i32, i32
  }
  func.func @transform_44(%arg0: i32) -> (i32, i32, i32) {
    %c0_i32 = arith.constant 0 : i32
    %c0_i32_0 = arith.constant 0 : i32
    %c0_i32_1 = arith.constant 0 : i32
    return %arg0, %c0_i32, %c0_i32_0 : i32, i32, i32
  }
}

</mosaic_0001>

<llo_original>
// kernel: particle_transformer_forward.1
$region0: #{particle_transformer_forward.1}
  #allocation0 [shape = 'u32[]', space=smem, size = 0x4, offset = 0x4, fixed_abs, tag = 'smem constant byte address 0x4 - core index']
  #allocation1 [shape = 'u32[144,128]{1,0:T(1,128)}', space=vmem, size = 0x12000, scoped, tag = 'internal scratch']
  %s0 = inlined_call_operand.smem [shape: u32[45], index: -1, kind: input, shape index: {}]
  %s1 = sld [smem:[%s0]]
  %s2 = scalar_lea.smem %s0, 1
  %s3 = sld [smem:[%s2]]
  %s4 = scalar_lea.smem %s0, 2
  %s5 = sld [smem:[%s4]]
  %s6 = scalar_lea.smem %s0, 3
  %s7 = sld [smem:[%s6]]
  %s8 = scalar_lea.smem %s0, 4
  %s9 = sld [smem:[%s8]]
  %s10 = scalar_lea.smem %s0, 5
  %s11 = sld [smem:[%s10]]
  %s12 = scalar_lea.smem %s0, 6
  %s13 = sld [smem:[%s12]]
  %s14 = scalar_lea.smem %s0, 7
  %s15 = sld [smem:[%s14]]
  %s16 = scalar_lea.smem %s0, 8
  %s17 = sld [smem:[%s16]]
  %s18 = scalar_lea.smem %s0, 9
  %s19 = sld [smem:[%s18]]
  %s20 = scalar_lea.smem %s0, 10
  %s21 = sld [smem:[%s20]]
  %s22 = scalar_lea.smem %s0, 11
  %s23 = sld [smem:[%s22]]
  %s24 = scalar_lea.smem %s0, 12
  %s25 = sld [smem:[%s24]]
  %s26 = scalar_lea.smem %s0, 13
  %s27 = sld [smem:[%s26]]
  %s28 = scalar_lea.smem %s0, 14
  %s29 = sld [smem:[%s28]]
  %s30 = scalar_lea.smem %s0, 15
  %s31 = sld [smem:[%s30]]
  %s32 = scalar_lea.smem %s0, 16
  %s33 = sld [smem:[%s32]]
  %s34 = scalar_lea.smem %s0, 17
  %s35 = sld [smem:[%s34]]
  %s36 = scalar_lea.smem %s0, 18
  %s37 = sld [smem:[%s36]]
  %s38 = scalar_lea.smem %s0, 19
  %s39 = sld [smem:[%s38]]
  %s40 = scalar_lea.smem %s0, 20
  %s41 = sld [smem:[%s40]]
  %s42 = scalar_lea.smem %s0, 21
  %s43 = sld [smem:[%s42]]
  %s44 = scalar_lea.smem %s0, 22
  %s45 = sld [smem:[%s44]]
  %s46 = scalar_lea.smem %s0, 23
  %s47 = sld [smem:[%s46]]
  %s48 = scalar_lea.smem %s0, 24
  %s49 = sld [smem:[%s48]]
  %s50 = scalar_lea.smem %s0, 25
  %s51 = sld [smem:[%s50]]
  %s52 = scalar_lea.smem %s0, 26
  %s53 = sld [smem:[%s52]]
  %s54 = scalar_lea.smem %s0, 27
  %s55 = sld [smem:[%s54]]
  %s56 = scalar_lea.smem %s0, 28
  %s57 = sld [smem:[%s56]]
  %s58 = scalar_lea.smem %s0, 29
  %s59 = sld [smem:[%s58]]
  %s60 = scalar_lea.smem %s0, 30
  %s61 = sld [smem:[%s60]]
  %s62 = scalar_lea.smem %s0, 31
  %s63 = sld [smem:[%s62]]
  %s64 = scalar_lea.smem %s0, 32
  %s65 = sld [smem:[%s64]]
  %s66 = scalar_lea.smem %s0, 33
  %s67 = sld [smem:[%s66]]
  %s68 = scalar_lea.smem %s0, 34
  %s69 = sld [smem:[%s68]]
  %s70 = scalar_lea.smem %s0, 35
  %s71 = sld [smem:[%s70]]
  %s72 = scalar_lea.smem %s0, 36
  %s73 = sld [smem:[%s72]]
  %s74 = scalar_lea.smem %s0, 37
  %s75 = sld [smem:[%s74]]
  %s76 = scalar_lea.smem %s0, 38
  %s77 = sld [smem:[%s76]]
  %s78 = scalar_lea.smem %s0, 39
  %s79 = sld [smem:[%s78]]
  %s80 = scalar_lea.smem %s0, 40
  %s81 = sld [smem:[%s80]]
  %s82 = scalar_lea.smem %s0, 41
  %s83 = sld [smem:[%s82]]
  %s84 = scalar_lea.smem %s0, 42
  %s85 = sld [smem:[%s84]]
  %s86 = scalar_lea.smem %s0, 43
  %s87 = sld [smem:[%s86]]
  %s88 = scalar_lea.smem %s0, 44
  %s89 = sld [smem:[%s88]]
  %s90 = sld [smem:[#allocation0]]
  $region217: #{particle_transformer_forward.1} parent=0
    _
  %s92 = ssub.s32 1, %s90
  %s93 = scalar_select 0, %s92, %s90
  $region1: #{particle_transformer_forward.1} parent=0
    #allocation2 [shape = 'u8[1024]{0}', space=vmem, size = 0x400, scoped, tag = 'input window, operand 35, single buffered']
    #allocation3 [shape = 's32[2]{0}', space=sflag, size = 0x8, scoped, tag = 'scoped memory for particle_transformer_forward.1']
    #allocation4 [shape = 'u8[1024]{0}', space=vmem, size = 0x400, scoped, tag = 'input window, operand 37, single buffered']
    #allocation5 [shape = 's32[1]{0}', space=sflag, size = 0x4, scoped, tag = 'scoped memory for particle_transformer_forward.1']
    %94 = vsyncpa [#allocation3], 0
    %95 = vsyncpa [#allocation5], 0
    loop: start=0, step=1, limit=4
    $region2: #{particle_transformer_forward.1} parent=1 // loop_pre_header
      _
    $region3: #{particle_transformer_forward.1} parent=1 // loop_header
      %s97 = sphi 0, %s101
      %p98 = scmp.ge.s32.totalorder %s97, 4
      %s107 = sphi 0, %s109
      %s110 = sphi 0, %s107
      %s111 = sphi 0, %s110
      %s127 = sphi 0, %s111
      %s133 = sphi 0, %s135
      %s136 = sphi 0, %s133
      %s137 = sphi 0, %s136
      %s153 = sphi 0, %s137
      %s159 = sphi 0, %s161
      %s162 = sphi 0, %s159
      %s163 = sphi 0, %s162
      %s179 = sphi 0, %s163
      %s185 = sphi 0, %s187
      %s188 = sphi 0, %s185
      %s189 = sphi 0, %s188
      %s205 = sphi 0, %s189
      %s209 = sphi 0, %s209
      %s211 = sphi 0, %s209
      %s212 = sphi 0, %s211
      %s226 = sphi 0, %s212
      %s230 = sphi 0, %s230
      %s232 = sphi 0, %s230
      %s233 = sphi 0, %s232
      %s247 = sphi 0, %s233
      %s251 = sphi 0, %s251
      %s253 = sphi 0, %s251
      %s254 = sphi 0, %s253
      %s268 = sphi 0, %s254
      %s272 = sphi 0, %s272
      %s274 = sphi 0, %s272
      %s275 = sphi 0, %s274
      %s289 = sphi 0, %s275
      %s293 = sphi 0, %s293
      %s295 = sphi 0, %s293
      %s296 = sphi 0, %s295
      %s310 = sphi 0, %s296
      %s314 = sphi 0, %s314
      %s316 = sphi 0, %s314
      %s317 = sphi 0, %s316
      %s331 = sphi 0, %s317
      %s335 = sphi 0, %s335
      %s337 = sphi 0, %s335
      %s338 = sphi 0, %s337
      %s352 = sphi 0, %s338
      %s356 = sphi 0, %s356
      %s358 = sphi 0, %s356
      %s359 = sphi 0, %s358
      %s373 = sphi 0, %s359
      %s377 = sphi 0, %s377
      %s379 = sphi 0, %s377
      %s380 = sphi 0, %s379
      %s394 = sphi 0, %s380
      %s398 = sphi 0, %s398
      %s400 = sphi 0, %s398
      %s401 = sphi 0, %s400
      %s415 = sphi 0, %s401
      %s419 = sphi 0, %s419
      %s421 = sphi 0, %s419
      %s422 = sphi 0, %s421
      %s436 = sphi 0, %s422
      %s440 = sphi 0, %s440
      %s442 = sphi 0, %s440
      %s443 = sphi 0, %s442
      %s457 = sphi 0, %s443
      %s461 = sphi 0, %s461
      %s463 = sphi 0, %s461
      %s464 = sphi 0, %s463
      %s478 = sphi 0, %s464
      %s482 = sphi 0, %s482
      %s484 = sphi 0, %s482
      %s485 = sphi 0, %s484
      %s499 = sphi 0, %s485
      %s503 = sphi 0, %s503
      %s505 = sphi 0, %s503
      %s506 = sphi 0, %s505
      %s520 = sphi 0, %s506
      %s524 = sphi 0, %s524
      %s526 = sphi 0, %s524
      %s527 = sphi 0, %s526
      %s541 = sphi 0, %s527
      %s545 = sphi 0, %s545
      %s547 = sphi 0, %s545
      %s548 = sphi 0, %s547
      %s562 = sphi 0, %s548
      %s566 = sphi 0, %s566
      %s568 = sphi 0, %s566
      %s569 = sphi 0, %s568
      %s583 = sphi 0, %s569
      %s587 = sphi 0, %s587
      %s589 = sphi 0, %s587
      %s590 = sphi 0, %s589
      %s604 = sphi 0, %s590
      %s608 = sphi 0, %s608
      %s610 = sphi 0, %s608
      %s611 = sphi 0, %s610
      %s625 = sphi 0, %s611
      %s629 = sphi 0, %s629
      %s631 = sphi 0, %s629
      %s632 = sphi 0, %s631
      %s646 = sphi 0, %s632
      %s650 = sphi 0, %s650
      %s652 = sphi 0, %s650
      %s653 = sphi 0, %s652
      %s667 = sphi 0, %s653
      %s671 = sphi 0, %s671
      %s673 = sphi 0, %s671
      %s674 = sphi 0, %s673
      %s688 = sphi 0, %s674
      %s692 = sphi 0, %s692
      %s694 = sphi 0, %s692
      %s695 = sphi 0, %s694
      %s709 = sphi 0, %s695
      %s713 = sphi 0, %s713
      %s715 = sphi 0, %s713
      %s716 = sphi 0, %s715
      %s730 = sphi 0, %s716
      %s734 = sphi 0, %s734
      %s736 = sphi 0, %s734
      %s737 = sphi 0, %s736
      %s751 = sphi 0, %s737
      %s755 = sphi 0, %s755
      %s757 = sphi 0, %s755
      %s758 = sphi 0, %s757
      %s772 = sphi 0, %s758
      %s776 = sphi 0, %s776
      %s778 = sphi 0, %s776
      %s779 = sphi 0, %s778
      %s793 = sphi 0, %s779
      %s797 = sphi 0, %s797
      %s799 = sphi 0, %s797
      %s800 = sphi 0, %s799
      %s814 = sphi 0, %s800
      %s818 = sphi 0, %s818
      %s820 = sphi 0, %s818
      %s821 = sphi 0, %s820
      %s835 = sphi 0, %s821
      %s839 = sphi 0, %s839
      %s841 = sphi 0, %s839
      %s842 = sphi 0, %s841
      %s856 = sphi 0, %s842
      %s860 = sphi 0, %s860
      %s862 = sphi 0, %s860
      %s863 = sphi 0, %s862
      %s877 = sphi 0, %s863
      %s881 = sphi 0, %s881
      %s883 = sphi 0, %s881
      %s884 = sphi 0, %s883
      %s898 = sphi 0, %s884
      %s902 = sphi 0, %s902
      %s904 = sphi 0, %s902
      %s905 = sphi 0, %s904
      %s919 = sphi 0, %s905
      %s923 = sphi 0, %s923
      %s925 = sphi 0, %s923
      %s926 = sphi 0, %s925
      %s940 = sphi 0, %s926
      %s944 = sphi 0, %s944
      %s946 = sphi 0, %s944
      %s947 = sphi 0, %s946
      %s961 = sphi 0, %s947
      %s965 = sphi 0, %s965
      %s967 = sphi 0, %s965
      %s968 = sphi 0, %s967
      %s982 = sphi 0, %s968
      %s986 = sphi 0, %s986
      %s988 = sphi 0, %s986
      %s989 = sphi 0, %s988
      %s1003 = sphi 0, %s989
      %s1007 = sphi 0, %s1007
      %s1009 = sphi 0, %s1007
      %s1010 = sphi 0, %s1009
      %s1024 = sphi 0, %s1010
      %s1028 = sphi 0, %s1028
      %s1030 = sphi 0, %s1028
      %s1031 = sphi 0, %s1030
      %s1045 = sphi 0, %s1031
      %s1051 = sphi 0, %s1053
      %s1054 = sphi 0, %s1051
      %s1055 = sphi 0, %s1054
      %s1071 = sphi 0, %s1055
    $region4: #{particle_transformer_forward.1} parent=1 // loop_header_branch
      %100 = sbr.rel (%p98) target = $region8
    $region5: #{particle_transformer_forward.1} parent=1 // loop_body
      %s102 = ssub.s32 %s97, 1
      %s103 = ssub.s32 %s97, 2
      %s104 = sadd.s32 %s97, 1
      %s105 = ssub.s32 %s97, %s104
      %p106 = scmp.eq.s32.totalorder %s105, 0
      %s108 = sadd.s32 %s107, 1
      %s109 = scalar_select %p106, %s107, %s108
      %p112 = pneg %p106
      %p113 = scmp.eq.s32.totalorder %s97, 1
      %p114 = por %p112, %p113
      %p115 = scmp.ne.s32.totalorder %s107, %s110
      %p116 = scmp.eq.s32.totalorder %s97, 0
      %p117 = por %p115, %p116
      %p118 = scmp.ne.s32.totalorder %s107, %s110
      %p119 = scmp.eq.s32.totalorder %s102, 1
      %p120 = por %p118, %p119
      %p121 = scmp.ne.s32.totalorder %s110, %s111
      %p122 = scmp.eq.s32.totalorder %s102, 0
      %p123 = por %p121, %p122
      %p124 = scmp.ne.s32.totalorder %s110, %s111
      %p125 = scmp.eq.s32.totalorder %s103, 1
      %p126 = por %p124, %p125
      %p128 = scmp.ne.s32.totalorder %s111, %s127
      %p129 = scmp.eq.s32.totalorder %s103, 0
      %p130 = por %p128, %p129
      %s131 = ssub.s32 %s97, %s104
      %p132 = scmp.eq.s32.totalorder %s131, 0
      %s134 = sadd.s32 %s133, 1
      %s135 = scalar_select %p132, %s133, %s134
      %p138 = pneg %p132
      %p139 = scmp.eq.s32.totalorder %s97, 1
      %p140 = por %p138, %p139
      %p141 = scmp.ne.s32.totalorder %s133, %s136
      %p142 = scmp.eq.s32.totalorder %s97, 0
      %p143 = por %p141, %p142
      %p144 = scmp.ne.s32.totalorder %s133, %s136
      %p145 = scmp.eq.s32.totalorder %s102, 1
      %p146 = por %p144, %p145
      %p147 = scmp.ne.s32.totalorder %s136, %s137
      %p148 = scmp.eq.s32.totalorder %s102, 0
      %p149 = por %p147, %p148
      %p150 = scmp.ne.s32.totalorder %s136, %s137
      %p151 = scmp.eq.s32.totalorder %s103, 1
      %p152 = por %p150, %p151
      %p154 = scmp.ne.s32.totalorder %s137, %s153
      %p155 = scmp.eq.s32.totalorder %s103, 0
      %p156 = por %p154, %p155
      %s157 = ssub.s32 %s97, %s104
      %p158 = scmp.eq.s32.totalorder %s157, 0
      %s160 = sadd.s32 %s159, 1
      %s161 = scalar_select %p158, %s159, %s160
      %p164 = pneg %p158
      %p165 = scmp.eq.s32.totalorder %s97, 1
      %p166 = por %p164, %p165
      %p167 = scmp.ne.s32.totalorder %s159, %s162
      %p168 = scmp.eq.s32.totalorder %s97, 0
      %p169 = por %p167, %p168
      %p170 = scmp.ne.s32.totalorder %s159, %s162
      %p171 = scmp.eq.s32.totalorder %s102, 1
      %p172 = por %p170, %p171
      %p173 = scmp.ne.s32.totalorder %s162, %s163
      %p174 = scmp.eq.s32.totalorder %s102, 0
      %p175 = por %p173, %p174
      %p176 = scmp.ne.s32.totalorder %s162, %s163
      %p177 = scmp.eq.s32.totalorder %s103, 1
      %p178 = por %p176, %p177
      %p180 = scmp.ne.s32.totalorder %s163, %s179
      %p181 = scmp.eq.s32.totalorder %s103, 0
      %p182 = por %p180, %p181
      %s183 = ssub.s32 %s97, %s104
      %p184 = scmp.eq.s32.totalorder %s183, 0
      %s186 = sadd.s32 %s185, 1
      %s187 = scalar_select %p184, %s185, %s186
      %p190 = pneg %p184
      %p191 = scmp.eq.s32.totalorder %s97, 1
      %p192 = por %p190, %p191
      %p193 = scmp.ne.s32.totalorder %s185, %s188
      %p194 = scmp.eq.s32.totalorder %s97, 0
      %p195 = por %p193, %p194
      %p196 = scmp.ne.s32.totalorder %s185, %s188
      %p197 = scmp.eq.s32.totalorder %s102, 1
      %p198 = por %p196, %p197
      %p199 = scmp.ne.s32.totalorder %s188, %s189
      %p200 = scmp.eq.s32.totalorder %s102, 0
      %p201 = por %p199, %p200
      %p202 = scmp.ne.s32.totalorder %s188, %s189
      %p203 = scmp.eq.s32.totalorder %s103, 1
      %p204 = por %p202, %p203
      %p206 = scmp.ne.s32.totalorder %s189, %s205
      %p207 = scmp.eq.s32.totalorder %s103, 0
      %p208 = por %p206, %p207
      %s210 = sadd.s32 %s209, 1
      %p213 = scmp.eq.s32.totalorder %s97, 1
      %p214 = scmp.ne.s32.totalorder %s209, %s211
      %p215 = scmp.eq.s32.totalorder %s97, 0
      %p216 = por %p214, %p215
      %p217 = scmp.ne.s32.totalorder %s209, %s211
      %p218 = scmp.eq.s32.totalorder %s102, 1
      %p219 = por %p217, %p218
      %p220 = scmp.ne.s32.totalorder %s211, %s212
      %p221 = scmp.eq.s32.totalorder %s102, 0
      %p222 = por %p220, %p221
      %p223 = scmp.ne.s32.totalorder %s211, %s212
      %p224 = scmp.eq.s32.totalorder %s103, 1
      %p225 = por %p223, %p224
      %p227 = scmp.ne.s32.totalorder %s212, %s226
      %p228 = scmp.eq.s32.totalorder %s103, 0
      %p229 = por %p227, %p228
      %s231 = sadd.s32 %s230, 1
      %p234 = scmp.eq.s32.totalorder %s97, 1
      %p235 = scmp.ne.s32.totalorder %s230, %s232
      %p236 = scmp.eq.s32.totalorder %s97, 0
      %p237 = por %p235, %p236
      %p238 = scmp.ne.s32.totalorder %s230, %s232
      %p239 = scmp.eq.s32.totalorder %s102, 1
      %p240 = por %p238, %p239
      %p241 = scmp.ne.s32.totalorder %s232, %s233
      %p242 = scmp.eq.s32.totalorder %s102, 0
      %p243 = por %p241, %p242
      %p244 = scmp.ne.s32.totalorder %s232, %s233
      %p245 = scmp.eq.s32.totalorder %s103, 1
      %p246 = por %p244, %p245
      %p248 = scmp.ne.s32.totalorder %s233, %s247
      %p249 = scmp.eq.s32.totalorder %s103, 0
      %p250 = por %p248, %p249
      %s252 = sadd.s32 %s251, 1
      %p255 = scmp.eq.s32.totalorder %s97, 1
      %p256 = scmp.ne.s32.totalorder %s251, %s253
      %p257 = scmp.eq.s32.totalorder %s97, 0
      %p258 = por %p256, %p257
      %p259 = scmp.ne.s32.totalorder %s251, %s253
      %p260 = scmp.eq.s32.totalorder %s102, 1
      %p261 = por %p259, %p260
      %p262 = scmp.ne.s32.totalorder %s253, %s254
      %p263 = scmp.eq.s32.totalorder %s102, 0
      %p264 = por %p262, %p263
      %p265 = scmp.ne.s32.totalorder %s253, %s254
      %p266 = scmp.eq.s32.totalorder %s103, 1
      %p267 = por %p265, %p266
      %p269 = scmp.ne.s32.totalorder %s254, %s268
      %p270 = scmp.eq.s32.totalorder %s103, 0
      %p271 = por %p269, %p270
      %s273 = sadd.s32 %s272, 1
      %p276 = scmp.eq.s32.totalorder %s97, 1
      %p277 = scmp.ne.s32.totalorder %s272, %s274
      %p278 = scmp.eq.s32.totalorder %s97, 0
      %p279 = por %p277, %p278
      %p280 = scmp.ne.s32.totalorder %s272, %s274
      %p281 = scmp.eq.s32.totalorder %s102, 1
      %p282 = por %p280, %p281
      %p283 = scmp.ne.s32.totalorder %s274, %s275
      %p284 = scmp.eq.s32.totalorder %s102, 0
      %p285 = por %p283, %p284
      %p286 = scmp.ne.s32.totalorder %s274, %s275
      %p287 = scmp.eq.s32.totalorder %s103, 1
      %p288 = por %p286, %p287
      %p290 = scmp.ne.s32.totalorder %s275, %s289
      %p291 = scmp.eq.s32.totalorder %s103, 0
      %p292 = por %p290, %p291
      %s294 = sadd.s32 %s293, 1
      %p297 = scmp.eq.s32.totalorder %s97, 1
      %p298 = scmp.ne.s32.totalorder %s293, %s295
      %p299 = scmp.eq.s32.totalorder %s97, 0
      %p300 = por %p298, %p299
      %p301 = scmp.ne.s32.totalorder %s293, %s295
      %p302 = scmp.eq.s32.totalorder %s102, 1
      %p303 = por %p301, %p302
      %p304 = scmp.ne.s32.totalorder %s295, %s296
      %p305 = scmp.eq.s32.totalorder %s102, 0
      %p306 = por %p304, %p305
      %p307 = scmp.ne.s32.totalorder %s295, %s296
      %p308 = scmp.eq.s32.totalorder %s103, 1
      %p309 = por %p307, %p308
      %p311 = scmp.ne.s32.totalorder %s296, %s310
      %p312 = scmp.eq.s32.totalorder %s103, 0
      %p313 = por %p311, %p312
      %s315 = sadd.s32 %s314, 1
      %p318 = scmp.eq.s32.totalorder %s97, 1
      %p319 = scmp.ne.s32.totalorder %s314, %s316
      %p320 = scmp.eq.s32.totalorder %s97, 0
      %p321 = por %p319, %p320
      %p322 = scmp.ne.s32.totalorder %s314, %s316
      %p323 = scmp.eq.s32.totalorder %s102, 1
      %p324 = por %p322, %p323
      %p325 = scmp.ne.s32.totalorder %s316, %s317
      %p326 = scmp.eq.s32.totalorder %s102, 0
      %p327 = por %p325, %p326
      %p328 = scmp.ne.s32.totalorder %s316, %s317
      %p329 = scmp.eq.s32.totalorder %s103, 1
      %p330 = por %p328, %p329
      %p332 = scmp.ne.s32.totalorder %s317, %s331
      %p333 = scmp.eq.s32.totalorder %s103, 0
      %p334 = por %p332, %p333
      %s336 = sadd.s32 %s335, 1
      %p339 = scmp.eq.s32.totalorder %s97, 1
      %p340 = scmp.ne.s32.totalorder %s335, %s337
      %p341 = scmp.eq.s32.totalorder %s97, 0
      %p342 = por %p340, %p341
      %p343 = scmp.ne.s32.totalorder %s335, %s337
      %p344 = scmp.eq.s32.totalorder %s102, 1
      %p345 = por %p343, %p344
      %p346 = scmp.ne.s32.totalorder %s337, %s338
      %p347 = scmp.eq.s32.totalorder %s102, 0
      %p348 = por %p346, %p347
      %p349 = scmp.ne.s32.totalorder %s337, %s338
      %p350 = scmp.eq.s32.totalorder %s103, 1
      %p351 = por %p349, %p350
      %p353 = scmp.ne.s32.totalorder %s338, %s352
      %p354 = scmp.eq.s32.totalorder %s103, 0
      %p355 = por %p353, %p354
      %s357 = sadd.s32 %s356, 1
      %p360 = scmp.eq.s32.totalorder %s97, 1
      %p361 = scmp.ne.s32.totalorder %s356, %s358
      %p362 = scmp.eq.s32.totalorder %s97, 0
      %p363 = por %p361, %p362
      %p364 = scmp.ne.s32.totalorder %s356, %s358
      %p365 = scmp.eq.s32.totalorder %s102, 1
      %p366 = por %p364, %p365
      %p367 = scmp.ne.s32.totalorder %s358, %s359
      %p368 = scmp.eq.s32.totalorder %s102, 0
      %p369 = por %p367, %p368
      %p370 = scmp.ne.s32.totalorder %s358, %s359
      %p371 = scmp.eq.s32.totalorder %s103, 1
      %p372 = por %p370, %p371
      %p374 = scmp.ne.s32.totalorder %s359, %s373
      %p375 = scmp.eq.s32.totalorder %s103, 0
      %p376 = por %p374, %p375
      %s378 = sadd.s32 %s377, 1
      %p381 = scmp.eq.s32.totalorder %s97, 1
      %p382 = scmp.ne.s32.totalorder %s377, %s379
      %p383 = scmp.eq.s32.totalorder %s97, 0
      %p384 = por %p382, %p383
      %p385 = scmp.ne.s32.totalorder %s377, %s379
      %p386 = scmp.eq.s32.totalorder %s102, 1
      %p387 = por %p385, %p386
      %p388 = scmp.ne.s32.totalorder %s379, %s380
      %p389 = scmp.eq.s32.totalorder %s102, 0
      %p390 = por %p388, %p389
      %p391 = scmp.ne.s32.totalorder %s379, %s380
      %p392 = scmp.eq.s32.totalorder %s103, 1
      %p393 = por %p391, %p392
      %p395 = scmp.ne.s32.totalorder %s380, %s394
      %p396 = scmp.eq.s32.totalorder %s103, 0
      %p397 = por %p395, %p396
      %s399 = sadd.s32 %s398, 1
      %p402 = scmp.eq.s32.totalorder %s97, 1
      %p403 = scmp.ne.s32.totalorder %s398, %s400
      %p404 = scmp.eq.s32.totalorder %s97, 0
      %p405 = por %p403, %p404
      %p406 = scmp.ne.s32.totalorder %s398, %s400
      %p407 = scmp.eq.s32.totalorder %s102, 1
      %p408 = por %p406, %p407
      %p409 = scmp.ne.s32.totalorder %s400, %s401
      %p410 = scmp.eq.s32.totalorder %s102, 0
      %p411 = por %p409, %p410
      %p412 = scmp.ne.s32.totalorder %s400, %s401
      %p413 = scmp.eq.s32.totalorder %s103, 1
      %p414 = por %p412, %p413
      %p416 = scmp.ne.s32.totalorder %s401, %s415
      %p417 = scmp.eq.s32.totalorder %s103, 0
      %p418 = por %p416, %p417
      %s420 = sadd.s32 %s419, 1
      %p423 = scmp.eq.s32.totalorder %s97, 1
      %p424 = scmp.ne.s32.totalorder %s419, %s421
      %p425 = scmp.eq.s32.totalorder %s97, 0
      %p426 = por %p424, %p425
      %p427 = scmp.ne.s32.totalorder %s419, %s421
      %p428 = scmp.eq.s32.totalorder %s102, 1
      %p429 = por %p427, %p428
      %p430 = scmp.ne.s32.totalorder %s421, %s422
      %p431 = scmp.eq.s32.totalorder %s102, 0
      %p432 = por %p430, %p431
      %p433 = scmp.ne.s32.totalorder %s421, %s422
      %p434 = scmp.eq.s32.totalorder %s103, 1
      %p435 = por %p433, %p434
      %p437 = scmp.ne.s32.totalorder %s422, %s436
      %p438 = scmp.eq.s32.totalorder %s103, 0
      %p439 = por %p437, %p438
      %s441 = sadd.s32 %s440, 1
      %p444 = scmp.eq.s32.totalorder %s97, 1
      %p445 = scmp.ne.s32.totalorder %s440, %s442
      %p446 = scmp.eq.s32.totalorder %s97, 0
      %p447 = por %p445, %p446
      %p448 = scmp.ne.s32.totalorder %s440, %s442
      %p449 = scmp.eq.s32.totalorder %s102, 1
      %p450 = por %p448, %p449
      %p451 = scmp.ne.s32.totalorder %s442, %s443
      %p452 = scmp.eq.s32.totalorder %s102, 0
      %p453 = por %p451, %p452
      %p454 = scmp.ne.s32.totalorder %s442, %s443
      %p455 = scmp.eq.s32.totalorder %s103, 1
      %p456 = por %p454, %p455
      %p458 = scmp.ne.s32.totalorder %s443, %s457
      %p459 = scmp.eq.s32.totalorder %s103, 0
      %p460 = por %p458, %p459
      %s462 = sadd.s32 %s461, 1
      %p465 = scmp.eq.s32.totalorder %s97, 1
      %p466 = scmp.ne.s32.totalorder %s461, %s463
      %p467 = scmp.eq.s32.totalorder %s97, 0
      %p468 = por %p466, %p467
      %p469 = scmp.ne.s32.totalorder %s461, %s463
      %p470 = scmp.eq.s32.totalorder %s102, 1
      %p471 = por %p469, %p470
      %p472 = scmp.ne.s32.totalorder %s463, %s464
      %p473 = scmp.eq.s32.totalorder %s102, 0
      %p474 = por %p472, %p473
      %p475 = scmp.ne.s32.totalorder %s463, %s464
      %p476 = scmp.eq.s32.totalorder %s103, 1
      %p477 = por %p475, %p476
      %p479 = scmp.ne.s32.totalorder %s464, %s478
      %p480 = scmp.eq.s32.totalorder %s103, 0
      %p481 = por %p479, %p480
      %s483 = sadd.s32 %s482, 1
      %p486 = scmp.eq.s32.totalorder %s97, 1
      %p487 = scmp.ne.s32.totalorder %s482, %s484
      %p488 = scmp.eq.s32.totalorder %s97, 0
      %p489 = por %p487, %p488
      %p490 = scmp.ne.s32.totalorder %s482, %s484
      %p491 = scmp.eq.s32.totalorder %s102, 1
      %p492 = por %p490, %p491
      %p493 = scmp.ne.s32.totalorder %s484, %s485
      %p494 = scmp.eq.s32.totalorder %s102, 0
      %p495 = por %p493, %p494
      %p496 = scmp.ne.s32.totalorder %s484, %s485
      %p497 = scmp.eq.s32.totalorder %s103, 1
      %p498 = por %p496, %p497
      %p500 = scmp.ne.s32.totalorder %s485, %s499
      %p501 = scmp.eq.s32.totalorder %s103, 0
      %p502 = por %p500, %p501
      %s504 = sadd.s32 %s503, 1
      %p507 = scmp.eq.s32.totalorder %s97, 1
      %p508 = scmp.ne.s32.totalorder %s503, %s505
      %p509 = scmp.eq.s32.totalorder %s97, 0
      %p510 = por %p508, %p509
      %p511 = scmp.ne.s32.totalorder %s503, %s505
      %p512 = scmp.eq.s32.totalorder %s102, 1
      %p513 = por %p511, %p512
      %p514 = scmp.ne.s32.totalorder %s505, %s506
      %p515 = scmp.eq.s32.totalorder %s102, 0
      %p516 = por %p514, %p515
      %p517 = scmp.ne.s32.totalorder %s505, %s506
      %p518 = scmp.eq.s32.totalorder %s103, 1
      %p519 = por %p517, %p518
      %p521 = scmp.ne.s32.totalorder %s506, %s520
      %p522 = scmp.eq.s32.totalorder %s103, 0
      %p523 = por %p521, %p522
      %s525 = sadd.s32 %s524, 1
      %p528 = scmp.eq.s32.totalorder %s97, 1
      %p529 = scmp.ne.s32.totalorder %s524, %s526
      %p530 = scmp.eq.s32.totalorder %s97, 0
      %p531 = por %p529, %p530
      %p532 = scmp.ne.s32.totalorder %s524, %s526
      %p533 = scmp.eq.s32.totalorder %s102, 1
      %p534 = por %p532, %p533
      %p535 = scmp.ne.s32.totalorder %s526, %s527
      %p536 = scmp.eq.s32.totalorder %s102, 0
      %p537 = por %p535, %p536
      %p538 = scmp.ne.s32.totalorder %s526, %s527
      %p539 = scmp.eq.s32.totalorder %s103, 1
      %p540 = por %p538, %p539
      %p542 = scmp.ne.s32.totalorder %s527, %s541
      %p543 = scmp.eq.s32.totalorder %s103, 0
      %p544 = por %p542, %p543
      %s546 = sadd.s32 %s545, 1
      %p549 = scmp.eq.s32.totalorder %s97, 1
      %p550 = scmp.ne.s32.totalorder %s545, %s547
      %p551 = scmp.eq.s32.totalorder %s97, 0
      %p552 = por %p550, %p551
      %p553 = scmp.ne.s32.totalorder %s545, %s547
      %p554 = scmp.eq.s32.totalorder %s102, 1
      %p555 = por %p553, %p554
      %p556 = scmp.ne.s32.totalorder %s547, %s548
      %p557 = scmp.eq.s32.totalorder %s102, 0
      %p558 = por %p556, %p557
      %p559 = scmp.ne.s32.totalorder %s547, %s548
      %p560 = scmp.eq.s32.totalorder %s103, 1
      %p561 = por %p559, %p560
      %p563 = scmp.ne.s32.totalorder %s548, %s562
      %p564 = scmp.eq.s32.totalorder %s103, 0
      %p565 = por %p563, %p564
      %s567 = sadd.s32 %s566, 1
      %p570 = scmp.eq.s32.totalorder %s97, 1
      %p571 = scmp.ne.s32.totalorder %s566, %s568
      %p572 = scmp.eq.s32.totalorder %s97, 0
      %p573 = por %p571, %p572
      %p574 = scmp.ne.s32.totalorder %s566, %s568
      %p575 = scmp.eq.s32.totalorder %s102, 1
      %p576 = por %p574, %p575
      %p577 = scmp.ne.s32.totalorder %s568, %s569
      %p578 = scmp.eq.s32.totalorder %s102, 0
      %p579 = por %p577, %p578
      %p580 = scmp.ne.s32.totalorder %s568, %s569
      %p581 = scmp.eq.s32.totalorder %s103, 1
      %p582 = por %p580, %p581
      %p584 = scmp.ne.s32.totalorder %s569, %s583
      %p585 = scmp.eq.s32.totalorder %s103, 0
      %p586 = por %p584, %p585
      %s588 = sadd.s32 %s587, 1
      %p591 = scmp.eq.s32.totalorder %s97, 1
      %p592 = scmp.ne.s32.totalorder %s587, %s589
      %p593 = scmp.eq.s32.totalorder %s97, 0
      %p594 = por %p592, %p593
      %p595 = scmp.ne.s32.totalorder %s587, %s589
      %p596 = scmp.eq.s32.totalorder %s102, 1
      %p597 = por %p595, %p596
      %p598 = scmp.ne.s32.totalorder %s589, %s590
      %p599 = scmp.eq.s32.totalorder %s102, 0
      %p600 = por %p598, %p599
      %p601 = scmp.ne.s32.totalorder %s589, %s590
      %p602 = scmp.eq.s32.totalorder %s103, 1
      %p603 = por %p601, %p602
      %p605 = scmp.ne.s32.totalorder %s590, %s604
      %p606 = scmp.eq.s32.totalorder %s103, 0
      %p607 = por %p605, %p606
      %s609 = sadd.s32 %s608, 1
      %p612 = scmp.eq.s32.totalorder %s97, 1
      %p613 = scmp.ne.s32.totalorder %s608, %s610
      %p614 = scmp.eq.s32.totalorder %s97, 0
      %p615 = por %p613, %p614
      %p616 = scmp.ne.s32.totalorder %s608, %s610
      %p617 = scmp.eq.s32.totalorder %s102, 1
      %p618 = por %p616, %p617
      %p619 = scmp.ne.s32.totalorder %s610, %s611
      %p620 = scmp.eq.s32.totalorder %s102, 0
      %p621 = por %p619, %p620
      %p622 = scmp.ne.s32.totalorder %s610, %s611
      %p623 = scmp.eq.s32.totalorder %s103, 1
      %p624 = por %p622, %p623
      %p626 = scmp.ne.s32.totalorder %s611, %s625
      %p627 = scmp.eq.s32.totalorder %s103, 0
      %p628 = por %p626, %p627
      %s630 = sadd.s32 %s629, 1
      %p633 = scmp.eq.s32.totalorder %s97, 1
      %p634 = scmp.ne.s32.totalorder %s629, %s631
      %p635 = scmp.eq.s32.totalorder %s97, 0
      %p636 = por %p634, %p635
      %p637 = scmp.ne.s32.totalorder %s629, %s631
      %p638 = scmp.eq.s32.totalorder %s102, 1
      %p639 = por %p637, %p638
      %p640 = scmp.ne.s32.totalorder %s631, %s632
      %p641 = scmp.eq.s32.totalorder %s102, 0
      %p642 = por %p640, %p641
      %p643 = scmp.ne.s32.totalorder %s631, %s632
      %p644 = scmp.eq.s32.totalorder %s103, 1
      %p645 = por %p643, %p644
      %p647 = scmp.ne.s32.totalorder %s632, %s646
      %p648 = scmp.eq.s32.totalorder %s103, 0
      %p649 = por %p647, %p648
      %s651 = sadd.s32 %s650, 1
      %p654 = scmp.eq.s32.totalorder %s97, 1
      %p655 = scmp.ne.s32.totalorder %s650, %s652
      %p656 = scmp.eq.s32.totalorder %s97, 0
      %p657 = por %p655, %p656
      %p658 = scmp.ne.s32.totalorder %s650, %s652
      %p659 = scmp.eq.s32.totalorder %s102, 1
      %p660 = por %p658, %p659
      %p661 = scmp.ne.s32.totalorder %s652, %s653
      %p662 = scmp.eq.s32.totalorder %s102, 0
      %p663 = por %p661, %p662
      %p664 = scmp.ne.s32.totalorder %s652, %s653
      %p665 = scmp.eq.s32.totalorder %s103, 1
      %p666 = por %p664, %p665
      %p668 = scmp.ne.s32.totalorder %s653, %s667
      %p669 = scmp.eq.s32.totalorder %s103, 0
      %p670 = por %p668, %p669
      %s672 = sadd.s32 %s671, 1
      %p675 = scmp.eq.s32.totalorder %s97, 1
      %p676 = scmp.ne.s32.totalorder %s671, %s673
      %p677 = scmp.eq.s32.totalorder %s97, 0
      %p678 = por %p676, %p677
      %p679 = scmp.ne.s32.totalorder %s671, %s673
      %p680 = scmp.eq.s32.totalorder %s102, 1
      %p681 = por %p679, %p680
      %p682 = scmp.ne.s32.totalorder %s673, %s674
      %p683 = scmp.eq.s32.totalorder %s102, 0
      %p684 = por %p682, %p683
      %p685 = scmp.ne.s32.totalorder %s673, %s674
      %p686 = scmp.eq.s32.totalorder %s103, 1
      %p687 = por %p685, %p686
      %p689 = scmp.ne.s32.totalorder %s674, %s688
      %p690 = scmp.eq.s32.totalorder %s103, 0
      %p691 = por %p689, %p690
      %s693 = sadd.s32 %s692, 1
      %p696 = scmp.eq.s32.totalorder %s97, 1
      %p697 = scmp.ne.s32.totalorder %s692, %s694
      %p698 = scmp.eq.s32.totalorder %s97, 0
      %p699 = por %p697, %p698
      %p700 = scmp.ne.s32.totalorder %s692, %s694
      %p701 = scmp.eq.s32.totalorder %s102, 1
      %p702 = por %p700, %p701
      %p703 = scmp.ne.s32.totalorder %s694, %s695
      %p704 = scmp.eq.s32.totalorder %s102, 0
      %p705 = por %p703, %p704
      %p706 = scmp.ne.s32.totalorder %s694, %s695
      %p707 = scmp.eq.s32.totalorder %s103, 1
      %p708 = por %p706, %p707
      %p710 = scmp.ne.s32.totalorder %s695, %s709
      %p711 = scmp.eq.s32.totalorder %s103, 0
      %p712 = por %p710, %p711
      %s714 = sadd.s32 %s713, 1
      %p717 = scmp.eq.s32.totalorder %s97, 1
      %p718 = scmp.ne.s32.totalorder %s713, %s715
      %p719 = scmp.eq.s32.totalorder %s97, 0
      %p720 = por %p718, %p719
      %p721 = scmp.ne.s32.totalorder %s713, %s715
      %p722 = scmp.eq.s32.totalorder %s102, 1
      %p723 = por %p721, %p722
      %p724 = scmp.ne.s32.totalorder %s715, %s716
      %p725 = scmp.eq.s32.totalorder %s102, 0
      %p726 = por %p724, %p725
      %p727 = scmp.ne.s32.totalorder %s715, %s716
      %p728 = scmp.eq.s32.totalorder %s103, 1
      %p729 = por %p727, %p728
      %p731 = scmp.ne.s32.totalorder %s716, %s730
      %p732 = scmp.eq.s32.totalorder %s103, 0
      %p733 = por %p731, %p732
      %s735 = sadd.s32 %s734, 1
      %p738 = scmp.eq.s32.totalorder %s97, 1
      %p739 = scmp.ne.s32.totalorder %s734, %s736
      %p740 = scmp.eq.s32.totalorder %s97, 0
      %p741 = por %p739, %p740
      %p742 = scmp.ne.s32.totalorder %s734, %s736
      %p743 = scmp.eq.s32.totalorder %s102, 1
      %p744 = por %p742, %p743
      %p745 = scmp.ne.s32.totalorder %s736, %s737
      %p746 = scmp.eq.s32.totalorder %s102, 0
      %p747 = por %p745, %p746
      %p748 = scmp.ne.s32.totalorder %s736, %s737
      %p749 = scmp.eq.s32.totalorder %s103, 1
      %p750 = por %p748, %p749
      %p752 = scmp.ne.s32.totalorder %s737, %s751
      %p753 = scmp.eq.s32.totalorder %s103, 0
      %p754 = por %p752, %p753
      %s756 = sadd.s32 %s755, 1
      %p759 = scmp.eq.s32.totalorder %s97, 1
      %p760 = scmp.ne.s32.totalorder %s755, %s757
      %p761 = scmp.eq.s32.totalorder %s97, 0
      %p762 = por %p760, %p761
      %p763 = scmp.ne.s32.totalorder %s755, %s757
      %p764 = scmp.eq.s32.totalorder %s102, 1
      %p765 = por %p763, %p764
      %p766 = scmp.ne.s32.totalorder %s757, %s758
      %p767 = scmp.eq.s32.totalorder %s102, 0
      %p768 = por %p766, %p767
      %p769 = scmp.ne.s32.totalorder %s757, %s758
      %p770 = scmp.eq.s32.totalorder %s103, 1
      %p771 = por %p769, %p770
      %p773 = scmp.ne.s32.totalorder %s758, %s772
      %p774 = scmp.eq.s32.totalorder %s103, 0
      %p775 = por %p773, %p774
      %s777 = sadd.s32 %s776, 1
      %p780 = scmp.eq.s32.totalorder %s97, 1
      %p781 = scmp.ne.s32.totalorder %s776, %s778
      %p782 = scmp.eq.s32.totalorder %s97, 0
      %p783 = por %p781, %p782
      %p784 = scmp.ne.s32.totalorder %s776, %s778
      %p785 = scmp.eq.s32.totalorder %s102, 1
      %p786 = por %p784, %p785
      %p787 = scmp.ne.s32.totalorder %s778, %s779
      %p788 = scmp.eq.s32.totalorder %s102, 0
      %p789 = por %p787, %p788
      %p790 = scmp.ne.s32.totalorder %s778, %s779
      %p791 = scmp.eq.s32.totalorder %s103, 1
      %p792 = por %p790, %p791
      %p794 = scmp.ne.s32.totalorder %s779, %s793
      %p795 = scmp.eq.s32.totalorder %s103, 0
      %p796 = por %p794, %p795
      %s798 = sadd.s32 %s797, 1
      %p801 = scmp.eq.s32.totalorder %s97, 1
      %p802 = scmp.ne.s32.totalorder %s797, %s799
      %p803 = scmp.eq.s32.totalorder %s97, 0
      %p804 = por %p802, %p803
      %p805 = scmp.ne.s32.totalorder %s797, %s799
      %p806 = scmp.eq.s32.totalorder %s102, 1
      %p807 = por %p805, %p806
      %p808 = scmp.ne.s32.totalorder %s799, %s800
      %p809 = scmp.eq.s32.totalorder %s102, 0
      %p810 = por %p808, %p809
      %p811 = scmp.ne.s32.totalorder %s799, %s800
      %p812 = scmp.eq.s32.totalorder %s103, 1
      %p813 = por %p811, %p812
      %p815 = scmp.ne.s32.totalorder %s800, %s814
      %p816 = scmp.eq.s32.totalorder %s103, 0
      %p817 = por %p815, %p816
      %s819 = sadd.s32 %s818, 1
      %p822 = scmp.eq.s32.totalorder %s97, 1
      %p823 = scmp.ne.s32.totalorder %s818, %s820
      %p824 = scmp.eq.s32.totalorder %s97, 0
      %p825 = por %p823, %p824
      %p826 = scmp.ne.s32.totalorder %s818, %s820
      %p827 = scmp.eq.s32.totalorder %s102, 1
      %p828 = por %p826, %p827
      %p829 = scmp.ne.s32.totalorder %s820, %s821
      %p830 = scmp.eq.s32.totalorder %s102, 0
      %p831 = por %p829, %p830
      %p832 = scmp.ne.s32.totalorder %s820, %s821
      %p833 = scmp.eq.s32.totalorder %s103, 1
      %p834 = por %p832, %p833
      %p836 = scmp.ne.s32.totalorder %s821, %s835
      %p837 = scmp.eq.s32.totalorder %s103, 0
      %p838 = por %p836, %p837
      %s840 = sadd.s32 %s839, 1
      %p843 = scmp.eq.s32.totalorder %s97, 1
      %p844 = scmp.ne.s32.totalorder %s839, %s841
      %p845 = scmp.eq.s32.totalorder %s97, 0
      %p846 = por %p844, %p845
      %p847 = scmp.ne.s32.totalorder %s839, %s841
      %p848 = scmp.eq.s32.totalorder %s102, 1
      %p849 = por %p847, %p848
      %p850 = scmp.ne.s32.totalorder %s841, %s842
      %p851 = scmp.eq.s32.totalorder %s102, 0
      %p852 = por %p850, %p851
      %p853 = scmp.ne.s32.totalorder %s841, %s842
      %p854 = scmp.eq.s32.totalorder %s103, 1
      %p855 = por %p853, %p854
      %p857 = scmp.ne.s32.totalorder %s842, %s856
      %p858 = scmp.eq.s32.totalorder %s103, 0
      %p859 = por %p857, %p858
      %s861 = sadd.s32 %s860, 1
      %p864 = scmp.eq.s32.totalorder %s97, 1
      %p865 = scmp.ne.s32.totalorder %s860, %s862
      %p866 = scmp.eq.s32.totalorder %s97, 0
      %p867 = por %p865, %p866
      %p868 = scmp.ne.s32.totalorder %s860, %s862
      %p869 = scmp.eq.s32.totalorder %s102, 1
      %p870 = por %p868, %p869
      %p871 = scmp.ne.s32.totalorder %s862, %s863
      %p872 = scmp.eq.s32.totalorder %s102, 0
      %p873 = por %p871, %p872
      %p874 = scmp.ne.s32.totalorder %s862, %s863
      %p875 = scmp.eq.s32.totalorder %s103, 1
      %p876 = por %p874, %p875
      %p878 = scmp.ne.s32.totalorder %s863, %s877
      %p879 = scmp.eq.s32.totalorder %s103, 0
      %p880 = por %p878, %p879
      %s882 = sadd.s32 %s881, 1
      %p885 = scmp.eq.s32.totalorder %s97, 1
      %p886 = scmp.ne.s32.totalorder %s881, %s883
      %p887 = scmp.eq.s32.totalorder %s97, 0
      %p888 = por %p886, %p887
      %p889 = scmp.ne.s32.totalorder %s881, %s883
      %p890 = scmp.eq.s32.totalorder %s102, 1
      %p891 = por %p889, %p890
      %p892 = scmp.ne.s32.totalorder %s883, %s884
      %p893 = scmp.eq.s32.totalorder %s102, 0
      %p894 = por %p892, %p893
      %p895 = scmp.ne.s32.totalorder %s883, %s884
      %p896 = scmp.eq.s32.totalorder %s103, 1
      %p897 = por %p895, %p896
      %p899 = scmp.ne.s32.totalorder %s884, %s898
      %p900 = scmp.eq.s32.totalorder %s103, 0
      %p901 = por %p899, %p900
      %s903 = sadd.s32 %s902, 1
      %p906 = scmp.eq.s32.totalorder %s97, 1
      %p907 = scmp.ne.s32.totalorder %s902, %s904
      %p908 = scmp.eq.s32.totalorder %s97, 0
      %p909 = por %p907, %p908
      %p910 = scmp.ne.s32.totalorder %s902, %s904
      %p911 = scmp.eq.s32.totalorder %s102, 1
      %p912 = por %p910, %p911
      %p913 = scmp.ne.s32.totalorder %s904, %s905
      %p914 = scmp.eq.s32.totalorder %s102, 0
      %p915 = por %p913, %p914
      %p916 = scmp.ne.s32.totalorder %s904, %s905
      %p917 = scmp.eq.s32.totalorder %s103, 1
      %p918 = por %p916, %p917
      %p920 = scmp.ne.s32.totalorder %s905, %s919
      %p921 = scmp.eq.s32.totalorder %s103, 0
      %p922 = por %p920, %p921
      %s924 = sadd.s32 %s923, 1
      %p927 = scmp.eq.s32.totalorder %s97, 1
      %p928 = scmp.ne.s32.totalorder %s923, %s925
      %p929 = scmp.eq.s32.totalorder %s97, 0
      %p930 = por %p928, %p929
      %p931 = scmp.ne.s32.totalorder %s923, %s925
      %p932 = scmp.eq.s32.totalorder %s102, 1
      %p933 = por %p931, %p932
      %p934 = scmp.ne.s32.totalorder %s925, %s926
      %p935 = scmp.eq.s32.totalorder %s102, 0
      %p936 = por %p934, %p935
      %p937 = scmp.ne.s32.totalorder %s925, %s926
      %p938 = scmp.eq.s32.totalorder %s103, 1
      %p939 = por %p937, %p938
      %p941 = scmp.ne.s32.totalorder %s926, %s940
      %p942 = scmp.eq.s32.totalorder %s103, 0
      %p943 = por %p941, %p942
      %s945 = sadd.s32 %s944, 1
      %p948 = scmp.eq.s32.totalorder %s97, 1
      %p949 = scmp.ne.s32.totalorder %s944, %s946
      %p950 = scmp.eq.s32.totalorder %s97, 0
      %p951 = por %p949, %p950
      %p952 = scmp.ne.s32.totalorder %s944, %s946
      %p953 = scmp.eq.s32.totalorder %s102, 1
      %p954 = por %p952, %p953
      %p955 = scmp.ne.s32.totalorder %s946, %s947
      %p956 = scmp.eq.s32.totalorder %s102, 0
      %p957 = por %p955, %p956
      %p958 = scmp.ne.s32.totalorder %s946, %s947
      %p959 = scmp.eq.s32.totalorder %s103, 1
      %p960 = por %p958, %p959
      %p962 = scmp.ne.s32.totalorder %s947, %s961
      %p963 = scmp.eq.s32.totalorder %s103, 0
      %p964 = por %p962, %p963
      %s966 = sadd.s32 %s965, 1
      %p969 = scmp.eq.s32.totalorder %s97, 1
      %p970 = scmp.ne.s32.totalorder %s965, %s967
      %p971 = scmp.eq.s32.totalorder %s97, 0
      %p972 = por %p970, %p971
      %p973 = scmp.ne.s32.totalorder %s965, %s967
      %p974 = scmp.eq.s32.totalorder %s102, 1
      %p975 = por %p973, %p974
      %p976 = scmp.ne.s32.totalorder %s967, %s968
      %p977 = scmp.eq.s32.totalorder %s102, 0
      %p978 = por %p976, %p977
      %p979 = scmp.ne.s32.totalorder %s967, %s968
      %p980 = scmp.eq.s32.totalorder %s103, 1
      %p981 = por %p979, %p980
      %p983 = scmp.ne.s32.totalorder %s968, %s982
      %p984 = scmp.eq.s32.totalorder %s103, 0
      %p985 = por %p983, %p984
      %s987 = sadd.s32 %s986, 1
      %p990 = scmp.eq.s32.totalorder %s97, 1
      %p991 = scmp.ne.s32.totalorder %s986, %s988
      %p992 = scmp.eq.s32.totalorder %s97, 0
      %p993 = por %p991, %p992
      %p994 = scmp.ne.s32.totalorder %s986, %s988
      %p995 = scmp.eq.s32.totalorder %s102, 1
      %p996 = por %p994, %p995
      %p997 = scmp.ne.s32.totalorder %s988, %s989
      %p998 = scmp.eq.s32.totalorder %s102, 0
      %p999 = por %p997, %p998
      %p1000 = scmp.ne.s32.totalorder %s988, %s989
      %p1001 = scmp.eq.s32.totalorder %s103, 1
      %p1002 = por %p1000, %p1001
      %p1004 = scmp.ne.s32.totalorder %s989, %s1003
      %p1005 = scmp.eq.s32.totalorder %s103, 0
      %p1006 = por %p1004, %p1005
      %s1008 = sadd.s32 %s1007, 1
      %p1011 = scmp.eq.s32.totalorder %s97, 1
      %p1012 = scmp.ne.s32.totalorder %s1007, %s1009
      %p1013 = scmp.eq.s32.totalorder %s97, 0
      %p1014 = por %p1012, %p1013
      %p1015 = scmp.ne.s32.totalorder %s1007, %s1009
      %p1016 = scmp.eq.s32.totalorder %s102, 1
      %p1017 = por %p1015, %p1016
      %p1018 = scmp.ne.s32.totalorder %s1009, %s1010
      %p1019 = scmp.eq.s32.totalorder %s102, 0
      %p1020 = por %p1018, %p1019
      %p1021 = scmp.ne.s32.totalorder %s1009, %s1010
      %p1022 = scmp.eq.s32.totalorder %s103, 1
      %p1023 = por %p1021, %p1022
      %p1025 = scmp.ne.s32.totalorder %s1010, %s1024
      %p1026 = scmp.eq.s32.totalorder %s103, 0
      %p1027 = por %p1025, %p1026
      %s1029 = sadd.s32 %s1028, 1
      %p1032 = scmp.eq.s32.totalorder %s97, 1
      %p1033 = scmp.ne.s32.totalorder %s1028, %s1030
      %p1034 = scmp.eq.s32.totalorder %s97, 0
      %p1035 = por %p1033, %p1034
      %p1036 = scmp.ne.s32.totalorder %s1028, %s1030
      %p1037 = scmp.eq.s32.totalorder %s102, 1
      %p1038 = por %p1036, %p1037
      %p1039 = scmp.ne.s32.totalorder %s1030, %s1031
      %p1040 = scmp.eq.s32.totalorder %s102, 0
      %p1041 = por %p1039, %p1040
      %p1042 = scmp.ne.s32.totalorder %s1030, %s1031
      %p1043 = scmp.eq.s32.totalorder %s103, 1
      %p1044 = por %p1042, %p1043
      %p1046 = scmp.ne.s32.totalorder %s1031, %s1045
      %p1047 = scmp.eq.s32.totalorder %s103, 0
      %p1048 = por %p1046, %p1047
      %s1049 = ssub.s32 %s97, %s104
      %p1050 = scmp.eq.s32.totalorder %s1049, 0
      %s1052 = sadd.s32 %s1051, 1
      %s1053 = scalar_select %p1050, %s1051, %s1052
      %p1056 = pneg %p1050
      %p1057 = scmp.eq.s32.totalorder %s97, 1
      %p1058 = por %p1056, %p1057
      %p1059 = scmp.ne.s32.totalorder %s1051, %s1054
      %p1060 = scmp.eq.s32.totalorder %s97, 0
      %p1061 = por %p1059, %p1060
      %p1062 = scmp.ne.s32.totalorder %s1051, %s1054
      %p1063 = scmp.eq.s32.totalorder %s102, 1
      %p1064 = por %p1062, %p1063
      %p1065 = scmp.ne.s32.totalorder %s1054, %s1055
      %p1066 = scmp.eq.s32.totalorder %s102, 0
      %p1067 = por %p1065, %p1066
      %p1068 = scmp.ne.s32.totalorder %s1054, %s1055
      %p1069 = scmp.eq.s32.totalorder %s103, 1
      %p1070 = por %p1068, %p1069
      %p1072 = scmp.ne.s32.totalorder %s1055, %s1071
      %p1073 = scmp.eq.s32.totalorder %s103, 0
      %p1074 = por %p1072, %p1073
      %p1075 = scmp.le.s32.totalorder 1, %s97
      %p1076 = scmp.lt.s32.totalorder %s97, 3
      %p1077 = pnand %p1075, %p1076
      %p1078 = pneg %p1077
      // Predicated region
      $region9: #{particle_transformer_forward.1} parent=5 // pred_check
        _
      $region10: #{particle_transformer_forward.1} parent=5 // pred_check_branch
        %1080 = sbr.rel (%p1077) target = $region12
      $region11: #{particle_transformer_forward.1} parent=5 // pred_region
        %s1081 = ssub.s32 %s97, 1
        // Predicated region
        $region13: #{particle_transformer_forward.1} parent=11 // pred_check
          %p1082 = pneg %p222
        $region14: #{particle_transformer_forward.1} parent=11 // pred_check_branch
          %1084 = sbr.rel (%p1082) target = $region16
        $region15: #{particle_transformer_forward.1} parent=11 // pred_region
          _
        $region16: #{particle_transformer_forward.1} parent=11 // pred_fallthru
          _
        // Predicated region
        $region17: #{particle_transformer_forward.1} parent=11 // pred_check
          %p1085 = pneg %p243
        $region18: #{particle_transformer_forward.1} parent=11 // pred_check_branch
          %1087 = sbr.rel (%p1085) target = $region20
        $region19: #{particle_transformer_forward.1} parent=11 // pred_region
          _
        $region20: #{particle_transformer_forward.1} parent=11 // pred_fallthru
          _
        // Predicated region
        $region21: #{particle_transformer_forward.1} parent=11 // pred_check
          %p1088 = pneg %p264
        $region22: #{particle_transformer_forward.1} parent=11 // pred_check_branch
          %1090 = sbr.rel (%p1088) target = $region24
        $region23: #{particle_transformer_forward.1} parent=11 // pred_region
          _
        $region24: #{particle_transformer_forward.1} parent=11 // pred_fallthru
          _
        // Predicated region
        $region25: #{particle_transformer_forward.1} parent=11 // pred_check
          %p1091 = pneg %p285
        $region26: #{particle_transformer_forward.1} parent=11 // pred_check_branch
          %1093 = sbr.rel (%p1091) target = $region28
        $region27: #{particle_transformer_forward.1} parent=11 // pred_region
          _
        $region28: #{particle_transformer_forward.1} parent=11 // pred_fallthru
          _
        // Predicated region
        $region29: #{particle_transformer_forward.1} parent=11 // pred_check
          %p1094 = pneg %p306
        $region30: #{particle_transformer_forward.1} parent=11 // pred_check_branch
          %1096 = sbr.rel (%p1094) target = $region32
        $region31: #{particle_transformer_forward.1} parent=11 // pred_region
          _
        $region32: #{particle_transformer_forward.1} parent=11 // pred_fallthru
          _
        // Predicated region
        $region33: #{particle_transformer_forward.1} parent=11 // pred_check
          %p1097 = pneg %p327
        $region34: #{particle_transformer_forward.1} parent=11 // pred_check_branch
          %1099 = sbr.rel (%p1097) target = $region36
        $region35: #{particle_transformer_forward.1} parent=11 // pred_region
          _
        $region36: #{particle_transformer_forward.1} parent=11 // pred_fallthru
          _
        // Predicated region
        $region37: #{particle_transformer_forward.1} parent=11 // pred_check
          %p1100 = pneg %p348
        $region38: #{particle_transformer_forward.1} parent=11 // pred_check_branch
          %1102 = sbr.rel (%p1100) target = $region40
        $region39: #{particle_transformer_forward.1} parent=11 // pred_region
          _
        $region40: #{particle_transformer_forward.1} parent=11 // pred_fallthru
          _
        // Predicated region
        $region41: #{particle_transformer_forward.1} parent=11 // pred_check
          %p1103 = pneg %p369
        $region42: #{particle_transformer_forward.1} parent=11 // pred_check_branch
          %1105 = sbr.rel (%p1103) target = $region44
        $region43: #{particle_transformer_forward.1} parent=11 // pred_region
          _
        $region44: #{particle_transformer_forward.1} parent=11 // pred_fallthru
          _
        // Predicated region
        $region45: #{particle_transformer_forward.1} parent=11 // pred_check
          %p1106 = pneg %p390
        $region46: #{particle_transformer_forward.1} parent=11 // pred_check_branch
          %1108 = sbr.rel (%p1106) target = $region48
        $region47: #{particle_transformer_forward.1} parent=11 // pred_region
          _
        $region48: #{particle_transformer_forward.1} parent=11 // pred_fallthru
          _
        // Predicated region
        $region49: #{particle_transformer_forward.1} parent=11 // pred_check
          %p1109 = pneg %p411
        $region50: #{particle_transformer_forward.1} parent=11 // pred_check_branch
          %1111 = sbr.rel (%p1109) target = $region52
        $region51: #{particle_transformer_forward.1} parent=11 // pred_region
          _
        $region52: #{particle_transformer_forward.1} parent=11 // pred_fallthru
          _
        // Predicated region
        $region53: #{particle_transformer_forward.1} parent=11 // pred_check
          %p1112 = pneg %p432
        $region54: #{particle_transformer_forward.1} parent=11 // pred_check_branch
          %1114 = sbr.rel (%p1112) target = $region56
        $region55: #{particle_transformer_forward.1} parent=11 // pred_region
          _
        $region56: #{particle_transformer_forward.1} parent=11 // pred_fallthru
          _
        // Predicated region
        $region57: #{particle_transformer_forward.1} parent=11 // pred_check
          %p1115 = pneg %p453
        $region58: #{particle_transformer_forward.1} parent=11 // pred_check_branch
          %1117 = sbr.rel (%p1115) target = $region60
        $region59: #{particle_transformer_forward.1} parent=11 // pred_region
          _
        $region60: #{particle_transformer_forward.1} parent=11 // pred_fallthru
          _
        // Predicated region
        $region61: #{particle_transformer_forward.1} parent=11 // pred_check
          %p1118 = pneg %p474
        $region62: #{particle_transformer_forward.1} parent=11 // pred_check_branch
          %1120 = sbr.rel (%p1118) target = $region64
        $region63: #{particle_transformer_forward.1} parent=11 // pred_region
          _
        $region64: #{particle_transformer_forward.1} parent=11 // pred_fallthru
          _
        // Predicated region
        $region65: #{particle_transformer_forward.1} parent=11 // pred_check
          %p1121 = pneg %p495
        $region66: #{particle_transformer_forward.1} parent=11 // pred_check_branch
          %1123 = sbr.rel (%p1121) target = $region68
        $region67: #{particle_transformer_forward.1} parent=11 // pred_region
          _
        $region68: #{particle_transformer_forward.1} parent=11 // pred_fallthru
          _
        // Predicated region
        $region69: #{particle_transformer_forward.1} parent=11 // pred_check
          %p1124 = pneg %p516
        $region70: #{particle_transformer_forward.1} parent=11 // pred_check_branch
          %1126 = sbr.rel (%p1124) target = $region72
        $region71: #{particle_transformer_forward.1} parent=11 // pred_region
          _
        $region72: #{particle_transformer_forward.1} parent=11 // pred_fallthru
          _
        // Predicated region
        $region73: #{particle_transformer_forward.1} parent=11 // pred_check
          %p1127 = pneg %p537
        $region74: #{particle_transformer_forward.1} parent=11 // pred_check_branch
          %1129 = sbr.rel (%p1127) target = $region76
        $region75: #{particle_transformer_forward.1} parent=11 // pred_region
          _
        $region76: #{particle_transformer_forward.1} parent=11 // pred_fallthru
          _
        // Predicated region
        $region77: #{particle_transformer_forward.1} parent=11 // pred_check
          %p1130 = pneg %p558
        $region78: #{particle_transformer_forward.1} parent=11 // pred_check_branch
          %1132 = sbr.rel (%p1130) target = $region80
        $region79: #{particle_transformer_forward.1} parent=11 // pred_region
          _
        $region80: #{particle_transformer_forward.1} parent=11 // pred_fallthru
          _
        // Predicated region
        $region81: #{particle_transformer_forward.1} parent=11 // pred_check
          %p1133 = pneg %p579
        $region82: #{particle_transformer_forward.1} parent=11 // pred_check_branch
          %1135 = sbr.rel (%p1133) target = $region84
        $region83: #{particle_transformer_forward.1} parent=11 // pred_region
          _
        $region84: #{particle_transformer_forward.1} parent=11 // pred_fallthru
          _
        // Predicated region
        $region85: #{particle_transformer_forward.1} parent=11 // pred_check
          %p1136 = pneg %p600
        $region86: #{particle_transformer_forward.1} parent=11 // pred_check_branch
          %1138 = sbr.rel (%p1136) target = $region88
        $region87: #{particle_transformer_forward.1} parent=11 // pred_region
          _
        $region88: #{particle_transformer_forward.1} parent=11 // pred_fallthru
          _
        // Predicated region
        $region89: #{particle_transformer_forward.1} parent=11 // pred_check
          %p1139 = pneg %p621
        $region90: #{particle_transformer_forward.1} parent=11 // pred_check_branch
          %1141 = sbr.rel (%p1139) target = $region92
        $region91: #{particle_transformer_forward.1} parent=11 // pred_region
          _
        $region92: #{particle_transformer_forward.1} parent=11 // pred_fallthru
          _
        // Predicated region
        $region93: #{particle_transformer_forward.1} parent=11 // pred_check
          %p1142 = pneg %p642
        $region94: #{particle_transformer_forward.1} parent=11 // pred_check_branch
          %1144 = sbr.rel (%p1142) target = $region96
        $region95: #{particle_transformer_forward.1} parent=11 // pred_region
          _
        $region96: #{particle_transformer_forward.1} parent=11 // pred_fallthru
          _
        // Predicated region
        $region97: #{particle_transformer_forward.1} parent=11 // pred_check
          %p1145 = pneg %p663
        $region98: #{particle_transformer_forward.1} parent=11 // pred_check_branch
          %1147 = sbr.rel (%p1145) target = $region100
        $region99: #{particle_transformer_forward.1} parent=11 // pred_region
          _
        $region100: #{particle_transformer_forward.1} parent=11 // pred_fallthru
          _
        // Predicated region
        $region101: #{particle_transformer_forward.1} parent=11 // pred_check
          %p1148 = pneg %p684
        $region102: #{particle_transformer_forward.1} parent=11 // pred_check_branch
          %1150 = sbr.rel (%p1148) target = $region104
        $region103: #{particle_transformer_forward.1} parent=11 // pred_region
          _
        $region104: #{particle_transformer_forward.1} parent=11 // pred_fallthru
          _
        // Predicated region
        $region105: #{particle_transformer_forward.1} parent=11 // pred_check
          %p1151 = pneg %p705
        $region106: #{particle_transformer_forward.1} parent=11 // pred_check_branch
          %1153 = sbr.rel (%p1151) target = $region108
        $region107: #{particle_transformer_forward.1} parent=11 // pred_region
          _
        $region108: #{particle_transformer_forward.1} parent=11 // pred_fallthru
          _
        // Predicated region
        $region109: #{particle_transformer_forward.1} parent=11 // pred_check
          %p1154 = pneg %p726
        $region110: #{particle_transformer_forward.1} parent=11 // pred_check_branch
          %1156 = sbr.rel (%p1154) target = $region112
        $region111: #{particle_transformer_forward.1} parent=11 // pred_region
          _
        $region112: #{particle_transformer_forward.1} parent=11 // pred_fallthru
          _
        // Predicated region
        $region113: #{particle_transformer_forward.1} parent=11 // pred_check
          %p1157 = pneg %p747
        $region114: #{particle_transformer_forward.1} parent=11 // pred_check_branch
          %1159 = sbr.rel (%p1157) target = $region116
        $region115: #{particle_transformer_forward.1} parent=11 // pred_region
          _
        $region116: #{particle_transformer_forward.1} parent=11 // pred_fallthru
          _
        // Predicated region
        $region117: #{particle_transformer_forward.1} parent=11 // pred_check
          %p1160 = pneg %p768
        $region118: #{particle_transformer_forward.1} parent=11 // pred_check_branch
          %1162 = sbr.rel (%p1160) target = $region120
        $region119: #{particle_transformer_forward.1} parent=11 // pred_region
          _
        $region120: #{particle_transformer_forward.1} parent=11 // pred_fallthru
          _
        // Predicated region
        $region121: #{particle_transformer_forward.1} parent=11 // pred_check
          %p1163 = pneg %p789
        $region122: #{particle_transformer_forward.1} parent=11 // pred_check_branch
          %1165 = sbr.rel (%p1163) target = $region124
        $region123: #{particle_transformer_forward.1} parent=11 // pred_region
          _
        $region124: #{particle_transformer_forward.1} parent=11 // pred_fallthru
          _
        // Predicated region
        $region125: #{particle_transformer_forward.1} parent=11 // pred_check
          %p1166 = pneg %p810
        $region126: #{particle_transformer_forward.1} parent=11 // pred_check_branch
          %1168 = sbr.rel (%p1166) target = $region128
        $region127: #{particle_transformer_forward.1} parent=11 // pred_region
          _
        $region128: #{particle_transformer_forward.1} parent=11 // pred_fallthru
          _
        // Predicated region
        $region129: #{particle_transformer_forward.1} parent=11 // pred_check
          %p1169 = pneg %p831
        $region130: #{particle_transformer_forward.1} parent=11 // pred_check_branch
          %1171 = sbr.rel (%p1169) target = $region132
        $region131: #{particle_transformer_forward.1} parent=11 // pred_region
          _
        $region132: #{particle_transformer_forward.1} parent=11 // pred_fallthru
          _
        // Predicated region
        $region133: #{particle_transformer_forward.1} parent=11 // pred_check
          %p1172 = pneg %p852
        $region134: #{particle_transformer_forward.1} parent=11 // pred_check_branch
          %1174 = sbr.rel (%p1172) target = $region136
        $region135: #{particle_transformer_forward.1} parent=11 // pred_region
          _
        $region136: #{particle_transformer_forward.1} parent=11 // pred_fallthru
          _
        // Predicated region
        $region137: #{particle_transformer_forward.1} parent=11 // pred_check
          %p1175 = pneg %p873
        $region138: #{particle_transformer_forward.1} parent=11 // pred_check_branch
          %1177 = sbr.rel (%p1175) target = $region140
        $region139: #{particle_transformer_forward.1} parent=11 // pred_region
          %s1179 = ssub.s32 32, 32
          %1180 = vsyncadd [#allocation3], %s1179
          %s1181 = sshll.u32 [#allocation2], 4
          %s1182 = int_to_ptr.vmem [resolvable:$true] %s1181
          %1187 = dma.hbm_to_vmem [thread:$0]  %s71, 32, %s1182, [#allocation3], 16, 16, 1
        $region140: #{particle_transformer_forward.1} parent=11 // pred_fallthru
          _
        // Predicated region
        $region141: #{particle_transformer_forward.1} parent=11 // pred_check
          %p1188 = pneg %p894
        $region142: #{particle_transformer_forward.1} parent=11 // pred_check_branch
          %1190 = sbr.rel (%p1188) target = $region144
        $region143: #{particle_transformer_forward.1} parent=11 // pred_region
          _
        $region144: #{particle_transformer_forward.1} parent=11 // pred_fallthru
          _
        // Predicated region
        $region145: #{particle_transformer_forward.1} parent=11 // pred_check
          %p1191 = pneg %p915
        $region146: #{particle_transformer_forward.1} parent=11 // pred_check_branch
          %1193 = sbr.rel (%p1191) target = $region148
        $region147: #{particle_transformer_forward.1} parent=11 // pred_region
          %s1195 = ssub.s32 32, 32
          %1196 = vsyncadd [#allocation5], %s1195
          %s1197 = sshll.u32 [#allocation4], 4
          %s1198 = int_to_ptr.vmem [resolvable:$true] %s1197
          %1203 = dma.hbm_to_vmem [thread:$0]  %s75, 32, %s1198, [#allocation5], 16, 16, 1
        $region148: #{particle_transformer_forward.1} parent=11 // pred_fallthru
          _
        // Predicated region
        $region149: #{particle_transformer_forward.1} parent=11 // pred_check
          %p1204 = pneg %p936
        $region150: #{particle_transformer_forward.1} parent=11 // pred_check_branch
          %1206 = sbr.rel (%p1204) target = $region152
        $region151: #{particle_transformer_forward.1} parent=11 // pred_region
          _
        $region152: #{particle_transformer_forward.1} parent=11 // pred_fallthru
          _
        // Predicated region
        $region153: #{particle_transformer_forward.1} parent=11 // pred_check
          %p1207 = pneg %p957
        $region154: #{particle_transformer_forward.1} parent=11 // pred_check_branch
          %1209 = sbr.rel (%p1207) target = $region156
        $region155: #{particle_transformer_forward.1} parent=11 // pred_region
          _
        $region156: #{particle_transformer_forward.1} parent=11 // pred_fallthru
          _
        // Predicated region
        $region157: #{particle_transformer_forward.1} parent=11 // pred_check
          %p1210 = pneg %p978
        $region158: #{particle_transformer_forward.1} parent=11 // pred_check_branch
          %1212 = sbr.rel (%p1210) target = $region160
        $region159: #{particle_transformer_forward.1} parent=11 // pred_region
          _
        $region160: #{particle_transformer_forward.1} parent=11 // pred_fallthru
          _
        // Predicated region
        $region161: #{particle_transformer_forward.1} parent=11 // pred_check
          %p1213 = pneg %p999
        $region162: #{particle_transformer_forward.1} parent=11 // pred_check_branch
          %1215 = sbr.rel (%p1213) target = $region164
        $region163: #{particle_transformer_forward.1} parent=11 // pred_region
          _
        $region164: #{particle_transformer_forward.1} parent=11 // pred_fallthru
          _
        // Predicated region
        $region165: #{particle_transformer_forward.1} parent=11 // pred_check
          %p1216 = pneg %p1020
        $region166: #{particle_transformer_forward.1} parent=11 // pred_check_branch
          %1218 = sbr.rel (%p1216) target = $region168
        $region167: #{particle_transformer_forward.1} parent=11 // pred_region
          _
        $region168: #{particle_transformer_forward.1} parent=11 // pred_fallthru
          _
        // Predicated region
        $region169: #{particle_transformer_forward.1} parent=11 // pred_check
          %p1219 = pneg %p1041
        $region170: #{particle_transformer_forward.1} parent=11 // pred_check_branch
          %1221 = sbr.rel (%p1219) target = $region172
        $region171: #{particle_transformer_forward.1} parent=11 // pred_region
          _
        $region172: #{particle_transformer_forward.1} parent=11 // pred_fallthru
          _
      $region12: #{particle_transformer_forward.1} parent=5 // pred_fallthru
        _
      %p1222 = scmp.lt.s32.totalorder %s97, 2
      // Predicated region
      $region173: #{particle_transformer_forward.1} parent=5 // pred_check
        %p1223 = pneg %p1222
      $region174: #{particle_transformer_forward.1} parent=5 // pred_check_branch
        %1225 = sbr.rel (%p1223) target = $region176
      $region175: #{particle_transformer_forward.1} parent=5 // pred_region
        // Predicated region
        $region177: #{particle_transformer_forward.1} parent=175 // pred_check
          %p1226 = pneg %p117
        $region178: #{particle_transformer_forward.1} parent=175 // pred_check_branch
          %1228 = sbr.rel (%p1226) target = $region180
        $region179: #{particle_transformer_forward.1} parent=175 // pred_region
          %p1229 = scmp.lt.s32.totalorder %s97, 1
          %s1230 = scalar_select %p1229, %s97, 1
          %s1231 = smul.addr %s1230, 8
          %s1232 = scalar_lea.vmem %s1, %s1231
        $region180: #{particle_transformer_forward.1} parent=175 // pred_fallthru
          _
        // Predicated region
        $region181: #{particle_transformer_forward.1} parent=175 // pred_check
          %p1233 = pneg %p143
        $region182: #{particle_transformer_forward.1} parent=175 // pred_check_branch
          %1235 = sbr.rel (%p1233) target = $region184
        $region183: #{particle_transformer_forward.1} parent=175 // pred_region
          %p1236 = scmp.lt.s32.totalorder %s97, 1
          %s1237 = scalar_select %p1236, %s97, 1
          %s1238 = smul.addr %s1237, 8
          %s1239 = scalar_lea.vmem %s3, %s1238
        $region184: #{particle_transformer_forward.1} parent=175 // pred_fallthru
          _
        // Predicated region
        $region185: #{particle_transformer_forward.1} parent=175 // pred_check
          %p1240 = pneg %p169
        $region186: #{particle_transformer_forward.1} parent=175 // pred_check_branch
          %1242 = sbr.rel (%p1240) target = $region188
        $region187: #{particle_transformer_forward.1} parent=175 // pred_region
          %p1243 = scmp.lt.s32.totalorder %s97, 1
          %s1244 = scalar_select %p1243, %s97, 1
          %s1245 = scalar_lea.vmem %s5, %s1244
        $region188: #{particle_transformer_forward.1} parent=175 // pred_fallthru
          _
        // Predicated region
        $region189: #{particle_transformer_forward.1} parent=175 // pred_check
          %p1246 = pneg %p195
        $region190: #{particle_transformer_forward.1} parent=175 // pred_check_branch
          %1248 = sbr.rel (%p1246) target = $region192
        $region191: #{particle_transformer_forward.1} parent=175 // pred_region
          %p1249 = scmp.lt.s32.totalorder %s97, 1
          %s1250 = scalar_select %p1249, %s97, 1
          %s1251 = scalar_lea.vmem %s7, %s1250
        $region192: #{particle_transformer_forward.1} parent=175 // pred_fallthru
          _
      $region176: #{particle_transformer_forward.1} parent=5 // pred_fallthru
        _
      %p1252 = scmp.le.s32.totalorder 1, %s97
      %p1253 = scmp.lt.s32.totalorder %s97, 3
      %p1254 = pnand %p1252, %p1253
      %p1255 = pneg %p1254
      // Predicated region
      $region193: #{particle_transformer_forward.1} parent=5 // pred_check
        _
      $region194: #{particle_transformer_forward.1} parent=5 // pred_check_branch
        %1257 = sbr.rel (%p1254) target = $region196
      $region195: #{particle_transformer_forward.1} parent=5 // pred_region
        %s1258 = ssub.s32 %s97, 1
        // Predicated region
        $region197: #{particle_transformer_forward.1} parent=195 // pred_check
          %p1259 = pneg %p873
        $region198: #{particle_transformer_forward.1} parent=195 // pred_check_branch
          %1261 = sbr.rel (%p1259) target = $region200
        $region199: #{particle_transformer_forward.1} parent=195 // pred_region
          %1262 = dma.done [#allocation3], 32
        $region200: #{particle_transformer_forward.1} parent=195 // pred_fallthru
          _
        // Predicated region
        $region201: #{particle_transformer_forward.1} parent=195 // pred_check
          %p1263 = pneg %p915
        $region202: #{particle_transformer_forward.1} parent=195 // pred_check_branch
          %1265 = sbr.rel (%p1263) target = $region204
        $region203: #{particle_transformer_forward.1} parent=195 // pred_region
          %1266 = dma.done [#allocation5], 32
        $region204: #{particle_transformer_forward.1} parent=195 // pred_fallthru
          _
        %p1267 = scmp.lt.s32.totalorder %s102, 1
        %s1268 = scalar_select %p1267, %s102, 1
        %s1269 = smul.addr %s1268, 8
        %s1270 = scalar_lea.vmem %s1, %s1269
        %p1271 = pneg %p123
        %p1272 = pneg %p120
        %p1273 = scmp.lt.s32.totalorder %s102, 1
        %s1274 = scalar_select %p1273, %s102, 1
        %s1275 = smul.addr %s1274, 8
        %s1276 = scalar_lea.vmem %s3, %s1275
        %p1277 = pneg %p149
        %p1278 = pneg %p146
        %p1279 = scmp.lt.s32.totalorder %s102, 1
        %s1280 = scalar_select %p1279, %s102, 1
        %s1281 = scalar_lea.vmem %s5, %s1280
        %p1282 = pneg %p175
        %p1283 = pneg %p172
        %p1284 = scmp.lt.s32.totalorder %s102, 1
        %s1285 = scalar_select %p1284, %s102, 1
        %s1286 = scalar_lea.vmem %s7, %s1285
        %p1287 = pneg %p201
        %p1288 = pneg %p198
        %p1289 = pneg %p222
        %p1290 = pneg %p219
        %p1291 = pneg %p243
        %p1292 = pneg %p240
        %p1293 = pneg %p264
        %p1294 = pneg %p261
        %p1295 = pneg %p285
        %p1296 = pneg %p282
        %p1297 = pneg %p306
        %p1298 = pneg %p303
        %p1299 = pneg %p327
        %p1300 = pneg %p324
        %p1301 = pneg %p348
        %p1302 = pneg %p345
        %p1303 = pneg %p369
        %p1304 = pneg %p366
        %p1305 = pneg %p390
        %p1306 = pneg %p387
        %p1307 = pneg %p411
        %p1308 = pneg %p408
        %p1309 = pneg %p432
        %p1310 = pneg %p429
        %p1311 = pneg %p453
        %p1312 = pneg %p450
        %p1313 = pneg %p474
        %p1314 = pneg %p471
        %p1315 = pneg %p495
        %p1316 = pneg %p492
        %p1317 = pneg %p516
        %p1318 = pneg %p513
        %p1319 = pneg %p537
        %p1320 = pneg %p534
        %p1321 = pneg %p558
        %p1322 = pneg %p555
        %p1323 = pneg %p579
        %p1324 = pneg %p576
        %p1325 = pneg %p600
        %p1326 = pneg %p597
        %p1327 = pneg %p621
        %p1328 = pneg %p618
        %p1329 = pneg %p642
        %p1330 = pneg %p639
        %p1331 = pneg %p663
        %p1332 = pneg %p660
        %p1333 = pneg %p684
        %p1334 = pneg %p681
        %p1335 = pneg %p705
        %p1336 = pneg %p702
        %p1337 = pneg %p726
        %p1338 = pneg %p723
        %p1339 = pneg %p747
        %p1340 = pneg %p744
        %p1341 = pneg %p768
        %p1342 = pneg %p765
        %p1343 = pneg %p789
        %p1344 = pneg %p786
        %p1345 = pneg %p810
        %p1346 = pneg %p807
        %p1347 = pneg %p831
        %p1348 = pneg %p828
        %p1349 = pneg %p852
        %p1350 = pneg %p849
        %p1351 = pneg %p873
        %p1352 = pneg %p870
        %p1353 = pneg %p894
        %p1354 = pneg %p891
        %p1355 = pneg %p915
        %p1356 = pneg %p912
        %p1357 = pneg %p936
        %p1358 = pneg %p933
        %p1359 = pneg %p957
        %p1360 = pneg %p954
        %p1361 = pneg %p978
        %p1362 = pneg %p975
        %p1363 = pneg %p999
        %p1364 = pneg %p996
        %p1365 = pneg %p1020
        %p1366 = pneg %p1017
        %p1367 = pneg %p1041
        %p1368 = pneg %p1038
        %p1369 = pneg %p1067
        %p1370 = pneg %p1064
        %p1371 = scmp.lt.s32.totalorder %s102, 1
        %s1372 = scalar_select %p1371, %s102, 1
        %s1373 = smul.addr %s1372, 8
        %s1374 = scalar_lea.vmem %s89, %s1373
        %p1375 = scmp.lt.s32.totalorder %s102, 1
        %s1376 = scalar_select %p1375, %s102, 1
        %s1377 = smul.addr %s1376, 8
        %s1378 = scalar_lea.vmem %s1, %s1377
        %p1379 = scmp.lt.s32.totalorder %s102, 1
        %s1380 = scalar_select %p1379, %s102, 1
        %s1381 = smul.addr %s1380, 8
        %s1382 = scalar_lea.vmem %s3, %s1381
        %p1383 = scmp.lt.s32.totalorder %s102, 1
        %s1384 = scalar_select %p1383, %s102, 1
        %s1385 = scalar_lea.vmem %s5, %s1384
        %p1386 = scmp.lt.s32.totalorder %s102, 1
        %s1387 = scalar_select %p1386, %s102, 1
        %s1388 = scalar_lea.vmem %s7, %s1387
        %p1389 = scmp.lt.s32.totalorder %s102, 1
        %s1390 = scalar_select %p1389, %s102, 1
        %s1391 = smul.addr %s1390, 8
        %s1392 = scalar_lea.vmem %s89, %s1391
        %v1394 = vld [vmem:[%s1378] sm:$0xff]
        %v1395 = vld [vmem:[%s9] sm:$0x7]
        %v1396 = vpack.c.bf16 %v1394, %v1394
        %v1397 = vld [vmem:[%s11] sm:$0x1]
        %v1399 = vlaneseq
        %v1400 = vshrl.u32 %v1399, 7
        %v1401 = vsub.s32 0, %v1400
        %v1402 = vrot.slane %v1397, %v1401
        %vm1404 = vcmask 48128
        %v1406 = vsel %vm1404, %v1396, 0
        %vm1408 = vcmask 1042432
        %v1410 = vsel %vm1408, %v1395, 0
        %1412 = vmatprep.subr.bf16.mxu0 0
        %1413 = vmatpush1.bf16.msra.mxu0 %v1410
        %1414 = vmatprep.subr.bf16.mxu0 0
        %1415 = vmatpush1.bf16.msra.mxu0 0
        %1416 = vmatprep.subr.bf16.mxu0 0
        %1417 = vmatpush1.bf16.msra.mxu0 0
        %1418 = vmatprep.subr.bf16.mxu0 0
        %1419 = vmatpush1.bf16.msra.mxu0 0
        %1420 = vmatprep.subr.bf16.mxu0 0
        %1421 = vmatpush1.bf16.msra.mxu0 0
        %1422 = vmatprep.subr.bf16.mxu0 0
        %1423 = vmatpush1.bf16.msra.mxu0 0
        %1424 = vmatprep.subr.bf16.mxu0 0
        %1425 = vmatpush1.bf16.msra.mxu0 0
        %1426 = vmatprep.subr.bf16.mxu0 0
        %1427 = vmatpush1.bf16.msra.mxu0 0
        %1428 = vmatprep.subr.bf16.mxu0 0
        %1429 = vmatpush1.bf16.msra.mxu0 0
        %1430 = vmatprep.subr.bf16.mxu0 0
        %1431 = vmatpush1.bf16.msra.mxu0 0
        %1432 = vmatprep.subr.bf16.mxu0 0
        %1433 = vmatpush1.bf16.msra.mxu0 0
        %1434 = vmatprep.subr.bf16.mxu0 0
        %1435 = vmatpush1.bf16.msra.mxu0 0
        %1436 = vmatprep.subr.bf16.mxu0 0
        %1437 = vmatpush1.bf16.msra.mxu0 0
        %1438 = vmatprep.subr.bf16.mxu0 0
        %1439 = vmatpush1.bf16.msra.mxu0 0
        %1440 = vmatprep.subr.bf16.mxu0 0
        %1441 = vmatpush1.bf16.msra.mxu0 0
        %1442 = vmatprep.subr.bf16.mxu0 0
        %1443 = vmatpush1.bf16.msra.mxu0 0
        %1444 = vmatprep.mubr.bf16.mxu0 0
        %1445 = vmatmul.mubr.bf16.gmra.mrb[0].mxu0 %v1406
        %v1446 = vpop.f32.mrb[0].mxu0
        %v1447 = vadd.f32 %v1402, %v1446
        %v1448 = vpop.f32.mrb[0].mxu0
        %v1449 = vpop.f32.mrb[0].mxu0
        %v1450 = vpop.f32.mrb[0].mxu0
        %1451 = vdwg.mxu0
        %v1452 = vld [vmem:[%s1382] sm:$0xff]
        %v1453 = vpack.c.bf16 %v1452, %v1452
        %v1455 = vsel %vm1404, %v1453, 0
        %1457 = vmatprep.subr.bf16.mxu0 0
        %1458 = vmatpush1.bf16.msra.mxu0 %v1410
        %1459 = vmatprep.subr.bf16.mxu0 0
        %1460 = vmatpush1.bf16.msra.mxu0 0
        %1461 = vmatprep.subr.bf16.mxu0 0
        %1462 = vmatpush1.bf16.msra.mxu0 0
        %1463 = vmatprep.subr.bf16.mxu0 0
        %1464 = vmatpush1.bf16.msra.mxu0 0
        %1465 = vmatprep.subr.bf16.mxu0 0
        %1466 = vmatpush1.bf16.msra.mxu0 0
        %1467 = vmatprep.subr.bf16.mxu0 0
        %1468 = vmatpush1.bf16.msra.mxu0 0
        %1469 = vmatprep.subr.bf16.mxu0 0
        %1470 = vmatpush1.bf16.msra.mxu0 0
        %1471 = vmatprep.subr.bf16.mxu0 0
        %1472 = vmatpush1.bf16.msra.mxu0 0
        %1473 = vmatprep.subr.bf16.mxu0 0
        %1474 = vmatpush1.bf16.msra.mxu0 0
        %1475 = vmatprep.subr.bf16.mxu0 0
        %1476 = vmatpush1.bf16.msra.mxu0 0
        %1477 = vmatprep.subr.bf16.mxu0 0
        %1478 = vmatpush1.bf16.msra.mxu0 0
        %1479 = vmatprep.subr.bf16.mxu0 0
        %1480 = vmatpush1.bf16.msra.mxu0 0
        %1481 = vmatprep.subr.bf16.mxu0 0
        %1482 = vmatpush1.bf16.msra.mxu0 0
        %1483 = vmatprep.subr.bf16.mxu0 0
        %1484 = vmatpush1.bf16.msra.mxu0 0
        %1485 = vmatprep.subr.bf16.mxu0 0
        %1486 = vmatpush1.bf16.msra.mxu0 0
        %1487 = vmatprep.subr.bf16.mxu0 0
        %1488 = vmatpush1.bf16.msra.mxu0 0
        %1489 = vmatprep.mubr.bf16.mxu0 0
        %1490 = vmatmul.mubr.bf16.gmra.mrb[0].mxu0 %v1455
        %v1491 = vpop.f32.mrb[0].mxu0
        %v1492 = vadd.f32 %v1402, %v1491
        %v1493 = vpop.f32.mrb[0].mxu0
        %v1494 = vpop.f32.mrb[0].mxu0
        %v1495 = vpop.f32.mrb[0].mxu0
        %1496 = vdwg.mxu0
        %v1497 = vld [vmem:[%s1385] sm:$0x1]
        %v1498 = vld [vmem:[%s1388] sm:$0x1]
        %vm1499 = vcmp.gt.s32.totalorder %v1497, 0
        %v1500 = vsel %vm1499, -1e+09, 0.0
        %v1501 = vlaneseq
        %v1502 = vshrl.u32 %v1501, 7
        %v1503 = vlaneseq
        %v1504 = vand.u32 %v1503, 127
        %vm1505 = vcmp.lt.s32.totalorder %v1502, %v1504
        %v1506 = vsel %vm1505, -1e+09, 0.0
        %vm1507 = vcmp.gt.s32.totalorder %v1498, 0
        %v1508 = vsel %vm1507, -1e+09, 0.0
        %v1510 = vlaneseq
        %v1511 = vshrl.u32 %v1510, 7
        %v1512 = vsub.s32 0, %v1511
        %v1513 = vrot.slane %v1508, %v1512
        %v1515 = vadd.f32 %v1506, %v1513
        %v1516 = vld [vmem:[%s13] sm:$0xf]
        %v1517 = vld [vmem:[%s13 + $0x4] sm:$0xf]
        %v1518 = vld [vmem:[%s13 + $0x8] sm:$0xf]
        %v1519 = vld [vmem:[%s13 + $0xc] sm:$0xf]
        %v1520 = vpack.c.bf16 %v1447, %v1447
        %v1521 = vld [vmem:[%s15] sm:$0x1]
        %v1523 = vlaneseq
        %v1524 = vshrl.u32 %v1523, 7
        %v1525 = vsub.s32 0, %v1524
        %v1526 = vrot.slane %v1521, %v1525
        %v1532 = vunpack.c.l.b16 %v1516
        %v1533 = vunpack.c.l.b16 %v1517
        %v1534 = vunpack.c.l.b16 %v1518
        %v1535 = vunpack.c.l.b16 %v1519
        %v1536 = vpack.c.b16 %v1533, %v1532
        %v1537 = vpack.c.b16 %v1535, %v1534
        %vm1540 = vcmask 261120
        %v1542 = vsel %vm1540, %v1520, 0
        %1544 = vmatprep.subr.bf16.mxu0 0
        %1545 = vmatpush1.bf16.msra.mxu0 %v1536
        %1546 = vmatprep.subr.bf16.mxu0 0
        %1547 = vmatpush1.bf16.msra.mxu0 %v1537
        %1548 = vmatprep.subr.bf16.mxu0 0
        %1549 = vmatpush1.bf16.msra.mxu0 0
        %1550 = vmatprep.subr.bf16.mxu0 0
        %1551 = vmatpush1.bf16.msra.mxu0 0
        %1552 = vmatprep.subr.bf16.mxu0 0
        %1553 = vmatpush1.bf16.msra.mxu0 0
        %1554 = vmatprep.subr.bf16.mxu0 0
        %1555 = vmatpush1.bf16.msra.mxu0 0
        %1556 = vmatprep.subr.bf16.mxu0 0
        %1557 = vmatpush1.bf16.msra.mxu0 0
        %1558 = vmatprep.subr.bf16.mxu0 0
        %1559 = vmatpush1.bf16.msra.mxu0 0
        %1560 = vmatprep.subr.bf16.mxu0 0
        %1561 = vmatpush1.bf16.msra.mxu0 0
        %1562 = vmatprep.subr.bf16.mxu0 0
        %1563 = vmatpush1.bf16.msra.mxu0 0
        %1564 = vmatprep.subr.bf16.mxu0 0
        %1565 = vmatpush1.bf16.msra.mxu0 0
        %1566 = vmatprep.subr.bf16.mxu0 0
        %1567 = vmatpush1.bf16.msra.mxu0 0
        %1568 = vmatprep.subr.bf16.mxu0 0
        %1569 = vmatpush1.bf16.msra.mxu0 0
        %1570 = vmatprep.subr.bf16.mxu0 0
        %1571 = vmatpush1.bf16.msra.mxu0 0
        %1572 = vmatprep.subr.bf16.mxu0 0
        %1573 = vmatpush1.bf16.msra.mxu0 0
        %1574 = vmatprep.subr.bf16.mxu0 0
        %1575 = vmatpush1.bf16.msra.mxu0 0
        %1576 = vmatprep.mubr.bf16.mxu0 0
        %1577 = vmatmul.mubr.bf16.gmra.mrb[0].mxu0 %v1542
        %v1578 = vpop.f32.mrb[0].mxu0
        %v1579 = vadd.f32 %v1526, %v1578
        %v1580 = vpop.f32.mrb[0].mxu0
        %v1581 = vpop.f32.mrb[0].mxu0
        %v1582 = vpop.f32.mrb[0].mxu0
        %1583 = vdwg.mxu0
        %v1584 = vld [vmem:[%s17] sm:$0xf]
        %v1585 = vld [vmem:[%s17 + $0x4] sm:$0xf]
        %v1586 = vld [vmem:[%s17 + $0x8] sm:$0xf]
        %v1587 = vld [vmem:[%s17 + $0xc] sm:$0xf]
        %v1588 = vld [vmem:[%s19] sm:$0x1]
        %v1589 = vpack.c.bf16 %v1579, %v1579
        %v1591 = vlaneseq
        %v1592 = vshrl.u32 %v1591, 7
        %v1593 = vsub.s32 0, %v1592
        %v1594 = vrot.slane %v1588, %v1593
        %v1596 = vadd.f32 %v1594, 0.0
        %1598 = vrot.lane.b32.xlu0 %v1589, 96
        %v1599 = vpop.permute.xlu0 %1598
        %vm1600 = vcmask 64512
        %v1602 = vsel %vm1600, %v1589, 0
        %v1605 = vsel %vm1600, %v1599, 0
        %1607 = vmatprep.subr.bf16.mxu0 0
        %1608 = vmatpush1.bf16.xpose.msra.mxu0 %v1605
        %1609 = vmatprep.subr.bf16.mxu0 0
        %1610 = vmatpush1.bf16.xpose.msra.mxu0 0
        %1611 = vmatprep.subr.bf16.mxu0 0
        %1612 = vmatpush1.bf16.xpose.msra.mxu0 0
        %1613 = vmatprep.subr.bf16.mxu0 0
        %1614 = vmatpush1.bf16.xpose.msra.mxu0 0
        %1615 = vmatprep.subr.bf16.mxu0 0
        %1616 = vmatpush1.bf16.xpose.msra.mxu0 0
        %1617 = vmatprep.subr.bf16.mxu0 0
        %1618 = vmatpush1.bf16.xpose.msra.mxu0 0
        %1619 = vmatprep.subr.bf16.mxu0 0
        %1620 = vmatpush1.bf16.xpose.msra.mxu0 0
        %1621 = vmatprep.subr.bf16.mxu0 0
        %1622 = vmatpush1.bf16.xpose.msra.mxu0 0
        %1623 = vmatprep.subr.bf16.mxu0 0
        %1624 = vmatpush1.bf16.xpose.msra.mxu0 0
        %1625 = vmatprep.subr.bf16.mxu0 0
        %1626 = vmatpush1.bf16.xpose.msra.mxu0 0
        %1627 = vmatprep.subr.bf16.mxu0 0
        %1628 = vmatpush1.bf16.xpose.msra.mxu0 0
        %1629 = vmatprep.subr.bf16.mxu0 0
        %1630 = vmatpush1.bf16.xpose.msra.mxu0 0
        %1631 = vmatprep.subr.bf16.mxu0 0
        %1632 = vmatpush1.bf16.xpose.msra.mxu0 0
        %1633 = vmatprep.subr.bf16.mxu0 0
        %1634 = vmatpush1.bf16.xpose.msra.mxu0 0
        %1635 = vmatprep.subr.bf16.mxu0 0
        %1636 = vmatpush1.bf16.xpose.msra.mxu0 0
        %1637 = vmatprep.subr.bf16.mxu0 0
        %1638 = vmatpush1.bf16.xpose.msra.mxu0 0
        %1639 = vmatprep.mubr.bf16.mxu0 0
        %1640 = vmatmul.mubr.bf16.gmra.mrb[0].mxu0 %v1602
        %v1641 = vpop.f32.mrb[0].mxu0
        %v1642 = vadd.f32 0.0, %v1641
        %v1643 = vpop.f32.mrb[0].mxu0
        %v1644 = vpop.f32.mrb[0].mxu0
        %v1645 = vpop.f32.mrb[0].mxu0
        %1646 = vdwg.mxu0
        %v1647 = vmul.f32 %v1642, 0.35355338
        %v1649 = vlaneseq
        %v1650 = vshrl.u32 %v1649, 7
        %v1651 = vsub.s32 0, %v1650
        %v1652 = vrot.slane %v1500, %v1651
        %v1654 = vadd.f32 %v1647, %v1652
        %v1655 = vsel %vm1600, %v1654, -inf
        %1656 = vmax.xlane.f32.xlu0 %v1655
        %v1657 = vpop.xlane.xlu0 %1656
        %v1658 = vsub.f32 %v1654, %v1657
        %v1659 = vmul.f32 %v1658, 1.442695
        %v1660 = vpow.pop %v1659
        %v1661 = vsel %vm1600, %v1660, 0.0
        %1662 = vadd.xlane.f32.xlu0 %v1661
        %v1663 = vpop.xlane.xlu0 %1662
        %v1664 = vrcp.pop %v1663
        %v1665 = vmul.f32 1.0, %v1664
        %v1666 = vmul.f32 %v1660, %v1665
        %v1667 = vpack.c.bf16 %v1666, %v1666
        %1668 = vrot.lane.b32.xlu0 %v1589, 64
        %v1669 = vpop.permute.xlu0 %1668
        %v1671 = vsel %vm1600, %v1667, 0
        %vm1673 = vcmask 1043456
        %v1675 = vsel %vm1673, %v1669, 0
        %1677 = vmatprep.subr.bf16.mxu0 0
        %1678 = vmatpush1.bf16.msra.mxu0 %v1675
        %1679 = vmatprep.subr.bf16.mxu0 0
        %1680 = vmatpush1.bf16.msra.mxu0 0
        %1681 = vmatprep.subr.bf16.mxu0 0
        %1682 = vmatpush1.bf16.msra.mxu0 0
        %1683 = vmatprep.subr.bf16.mxu0 0
        %1684 = vmatpush1.bf16.msra.mxu0 0
        %1685 = vmatprep.subr.bf16.mxu0 0
        %1686 = vmatpush1.bf16.msra.mxu0 0
        %1687 = vmatprep.subr.bf16.mxu0 0
        %1688 = vmatpush1.bf16.msra.mxu0 0
        %1689 = vmatprep.subr.bf16.mxu0 0
        %1690 = vmatpush1.bf16.msra.mxu0 0
        %1691 = vmatprep.subr.bf16.mxu0 0
        %1692 = vmatpush1.bf16.msra.mxu0 0
        %1693 = vmatprep.subr.bf16.mxu0 0
        %1694 = vmatpush1.bf16.msra.mxu0 0
        %1695 = vmatprep.subr.bf16.mxu0 0
        %1696 = vmatpush1.bf16.msra.mxu0 0
        %1697 = vmatprep.subr.bf16.mxu0 0
        %1698 = vmatpush1.bf16.msra.mxu0 0
        %1699 = vmatprep.subr.bf16.mxu0 0
        %1700 = vmatpush1.bf16.msra.mxu0 0
        %1701 = vmatprep.subr.bf16.mxu0 0
        %1702 = vmatpush1.bf16.msra.mxu0 0
        %1703 = vmatprep.subr.bf16.mxu0 0
        %1704 = vmatpush1.bf16.msra.mxu0 0
        %1705 = vmatprep.subr.bf16.mxu0 0
        %1706 = vmatpush1.bf16.msra.mxu0 0
        %1707 = vmatprep.subr.bf16.mxu0 0
        %1708 = vmatpush1.bf16.msra.mxu0 0
        %1709 = vmatprep.mubr.bf16.mxu0 0
        %1710 = vmatmul.mubr.bf16.gmra.mrb[0].mxu0 %v1671
        %v1711 = vpop.f32.mrb[0].mxu0
        %v1712 = vadd.f32 0.0, %v1711
        %v1713 = vpop.f32.mrb[0].mxu0
        %v1714 = vpop.f32.mrb[0].mxu0
        %v1715 = vpop.f32.mrb[0].mxu0
        %1716 = vdwg.mxu0
        %v1717 = vpack.c.bf16 %v1712, %v1712
        %v1719 = vsel %vm1600, %v1717, 0
        %v1722 = vsel %vm1673, %v1584, 0
        %1724 = vmatprep.subr.bf16.mxu0 0
        %1725 = vmatpush1.bf16.msra.mxu0 %v1722
        %1726 = vmatprep.subr.bf16.mxu0 0
        %1727 = vmatpush1.bf16.msra.mxu0 0
        %1728 = vmatprep.subr.bf16.mxu0 0
        %1729 = vmatpush1.bf16.msra.mxu0 0
        %1730 = vmatprep.subr.bf16.mxu0 0
        %1731 = vmatpush1.bf16.msra.mxu0 0
        %1732 = vmatprep.subr.bf16.mxu0 0
        %1733 = vmatpush1.bf16.msra.mxu0 0
        %1734 = vmatprep.subr.bf16.mxu0 0
        %1735 = vmatpush1.bf16.msra.mxu0 0
        %1736 = vmatprep.subr.bf16.mxu0 0
        %1737 = vmatpush1.bf16.msra.mxu0 0
        %1738 = vmatprep.subr.bf16.mxu0 0
        %1739 = vmatpush1.bf16.msra.mxu0 0
        %1740 = vmatprep.subr.bf16.mxu0 0
        %1741 = vmatpush1.bf16.msra.mxu0 0
        %1742 = vmatprep.subr.bf16.mxu0 0
        %1743 = vmatpush1.bf16.msra.mxu0 0
        %1744 = vmatprep.subr.bf16.mxu0 0
        %1745 = vmatpush1.bf16.msra.mxu0 0
        %1746 = vmatprep.subr.bf16.mxu0 0
        %1747 = vmatpush1.bf16.msra.mxu0 0
        %1748 = vmatprep.subr.bf16.mxu0 0
        %1749 = vmatpush1.bf16.msra.mxu0 0
        %1750 = vmatprep.subr.bf16.mxu0 0
        %1751 = vmatpush1.bf16.msra.mxu0 0
        %1752 = vmatprep.subr.bf16.mxu0 0
        %1753 = vmatpush1.bf16.msra.mxu0 0
        %1754 = vmatprep.subr.bf16.mxu0 0
        %1755 = vmatpush1.bf16.msra.mxu0 0
        %1756 = vmatprep.mubr.bf16.mxu0 0
        %1757 = vmatmul.mubr.bf16.gmra.mrb[0].mxu0 %v1719
        %v1758 = vpop.f32.mrb[0].mxu0
        %v1759 = vadd.f32 0.0, %v1758
        %v1760 = vpop.f32.mrb[0].mxu0
        %v1761 = vpop.f32.mrb[0].mxu0
        %v1762 = vpop.f32.mrb[0].mxu0
        %1763 = vdwg.mxu0
        %v1764 = vadd.f32 %v1596, %v1759
        %1765 = vrot.lane.b32.xlu0 %v1589, 120
        %v1766 = vpop.permute.xlu0 %1765
        %1767 = vrot.lane.b32.xlu0 %v1589, 88
        %v1768 = vpop.permute.xlu0 %1767
        %v1770 = vsel %vm1600, %v1766, 0
        %v1773 = vsel %vm1600, %v1768, 0
        %1775 = vmatprep.subr.bf16.mxu0 0
        %1776 = vmatpush1.bf16.xpose.msra.mxu0 %v1773
        %1777 = vmatprep.subr.bf16.mxu0 0
        %1778 = vmatpush1.bf16.xpose.msra.mxu0 0
        %1779 = vmatprep.subr.bf16.mxu0 0
        %1780 = vmatpush1.bf16.xpose.msra.mxu0 0
        %1781 = vmatprep.subr.bf16.mxu0 0
        %1782 = vmatpush1.bf16.xpose.msra.mxu0 0
        %1783 = vmatprep.subr.bf16.mxu0 0
        %1784 = vmatpush1.bf16.xpose.msra.mxu0 0
        %1785 = vmatprep.subr.bf16.mxu0 0
        %1786 = vmatpush1.bf16.xpose.msra.mxu0 0
        %1787 = vmatprep.subr.bf16.mxu0 0
        %1788 = vmatpush1.bf16.xpose.msra.mxu0 0
        %1789 = vmatprep.subr.bf16.mxu0 0
        %1790 = vmatpush1.bf16.xpose.msra.mxu0 0
        %1791 = vmatprep.subr.bf16.mxu0 0
        %1792 = vmatpush1.bf16.xpose.msra.mxu0 0
        %1793 = vmatprep.subr.bf16.mxu0 0
        %1794 = vmatpush1.bf16.xpose.msra.mxu0 0
        %1795 = vmatprep.subr.bf16.mxu0 0
        %1796 = vmatpush1.bf16.xpose.msra.mxu0 0
        %1797 = vmatprep.subr.bf16.mxu0 0
        %1798 = vmatpush1.bf16.xpose.msra.mxu0 0
        %1799 = vmatprep.subr.bf16.mxu0 0
        %1800 = vmatpush1.bf16.xpose.msra.mxu0 0
        %1801 = vmatprep.subr.bf16.mxu0 0
        %1802 = vmatpush1.bf16.xpose.msra.mxu0 0
        %1803 = vmatprep.subr.bf16.mxu0 0
        %1804 = vmatpush1.bf16.xpose.msra.mxu0 0
        %1805 = vmatprep.subr.bf16.mxu0 0
        %1806 = vmatpush1.bf16.xpose.msra.mxu0 0
        %1807 = vmatprep.mubr.bf16.mxu0 0
        %1808 = vmatmul.mubr.bf16.gmra.mrb[0].mxu0 %v1770
        %v1809 = vpop.f32.mrb[0].mxu0
        %v1810 = vadd.f32 0.0, %v1809
        %v1811 = vpop.f32.mrb[0].mxu0
        %v1812 = vpop.f32.mrb[0].mxu0
        %v1813 = vpop.f32.mrb[0].mxu0
        %1814 = vdwg.mxu0
        %v1815 = vmul.f32 %v1810, 0.35355338
        %v1816 = vadd.f32 %v1815, %v1652
        %v1817 = vsel %vm1600, %v1816, -inf
        %1818 = vmax.xlane.f32.xlu0 %v1817
        %v1819 = vpop.xlane.xlu0 %1818
        %v1820 = vsub.f32 %v1816, %v1819
        %v1821 = vmul.f32 %v1820, 1.442695
        %v1822 = vpow.pop %v1821
        %v1823 = vsel %vm1600, %v1822, 0.0
        %1824 = vadd.xlane.f32.xlu0 %v1823
        %v1825 = vpop.xlane.xlu0 %1824
        %v1826 = vrcp.pop %v1825
        %v1827 = vmul.f32 1.0, %v1826
        %v1828 = vmul.f32 %v1822, %v1827
        %v1829 = vpack.c.bf16 %v1828, %v1828
        %1830 = vrot.lane.b32.xlu0 %v1589, 56
        %v1831 = vpop.permute.xlu0 %1830
        %v1833 = vsel %vm1600, %v1829, 0
        %v1836 = vsel %vm1673, %v1831, 0
        %1838 = vmatprep.subr.bf16.mxu0 0
        %1839 = vmatpush1.bf16.msra.mxu0 %v1836
        %1840 = vmatprep.subr.bf16.mxu0 0
        %1841 = vmatpush1.bf16.msra.mxu0 0
        %1842 = vmatprep.subr.bf16.mxu0 0
        %1843 = vmatpush1.bf16.msra.mxu0 0
        %1844 = vmatprep.subr.bf16.mxu0 0
        %1845 = vmatpush1.bf16.msra.mxu0 0
        %1846 = vmatprep.subr.bf16.mxu0 0
        %1847 = vmatpush1.bf16.msra.mxu0 0
        %1848 = vmatprep.subr.bf16.mxu0 0
        %1849 = vmatpush1.bf16.msra.mxu0 0
        %1850 = vmatprep.subr.bf16.mxu0 0
        %1851 = vmatpush1.bf16.msra.mxu0 0
        %1852 = vmatprep.subr.bf16.mxu0 0
        %1853 = vmatpush1.bf16.msra.mxu0 0
        %1854 = vmatprep.subr.bf16.mxu0 0
        %1855 = vmatpush1.bf16.msra.mxu0 0
        %1856 = vmatprep.subr.bf16.mxu0 0
        %1857 = vmatpush1.bf16.msra.mxu0 0
        %1858 = vmatprep.subr.bf16.mxu0 0
        %1859 = vmatpush1.bf16.msra.mxu0 0
        %1860 = vmatprep.subr.bf16.mxu0 0
        %1861 = vmatpush1.bf16.msra.mxu0 0
        %1862 = vmatprep.subr.bf16.mxu0 0
        %1863 = vmatpush1.bf16.msra.mxu0 0
        %1864 = vmatprep.subr.bf16.mxu0 0
        %1865 = vmatpush1.bf16.msra.mxu0 0
        %1866 = vmatprep.subr.bf16.mxu0 0
        %1867 = vmatpush1.bf16.msra.mxu0 0
        %1868 = vmatprep.subr.bf16.mxu0 0
        %1869 = vmatpush1.bf16.msra.mxu0 0
        %1870 = vmatprep.mubr.bf16.mxu0 0
        %1871 = vmatmul.mubr.bf16.gmra.mrb[0].mxu0 %v1833
        %v1872 = vpop.f32.mrb[0].mxu0
        %v1873 = vadd.f32 0.0, %v1872
        %v1874 = vpop.f32.mrb[0].mxu0
        %v1875 = vpop.f32.mrb[0].mxu0
        %v1876 = vpop.f32.mrb[0].mxu0
        %1877 = vdwg.mxu0
        %v1878 = vpack.c.bf16 %v1873, %v1873
        %v1880 = vsel %vm1600, %v1878, 0
        %v1883 = vsel %vm1673, %v1585, 0
        %1885 = vmatprep.subr.bf16.mxu0 0
        %1886 = vmatpush1.bf16.msra.mxu0 %v1883
        %1887 = vmatprep.subr.bf16.mxu0 0
        %1888 = vmatpush1.bf16.msra.mxu0 0
        %1889 = vmatprep.subr.bf16.mxu0 0
        %1890 = vmatpush1.bf16.msra.mxu0 0
        %1891 = vmatprep.subr.bf16.mxu0 0
        %1892 = vmatpush1.bf16.msra.mxu0 0
        %1893 = vmatprep.subr.bf16.mxu0 0
        %1894 = vmatpush1.bf16.msra.mxu0 0
        %1895 = vmatprep.subr.bf16.mxu0 0
        %1896 = vmatpush1.bf16.msra.mxu0 0
        %1897 = vmatprep.subr.bf16.mxu0 0
        %1898 = vmatpush1.bf16.msra.mxu0 0
        %1899 = vmatprep.subr.bf16.mxu0 0
        %1900 = vmatpush1.bf16.msra.mxu0 0
        %1901 = vmatprep.subr.bf16.mxu0 0
        %1902 = vmatpush1.bf16.msra.mxu0 0
        %1903 = vmatprep.subr.bf16.mxu0 0
        %1904 = vmatpush1.bf16.msra.mxu0 0
        %1905 = vmatprep.subr.bf16.mxu0 0
        %1906 = vmatpush1.bf16.msra.mxu0 0
        %1907 = vmatprep.subr.bf16.mxu0 0
        %1908 = vmatpush1.bf16.msra.mxu0 0
        %1909 = vmatprep.subr.bf16.mxu0 0
        %1910 = vmatpush1.bf16.msra.mxu0 0
        %1911 = vmatprep.subr.bf16.mxu0 0
        %1912 = vmatpush1.bf16.msra.mxu0 0
        %1913 = vmatprep.subr.bf16.mxu0 0
        %1914 = vmatpush1.bf16.msra.mxu0 0
        %1915 = vmatprep.subr.bf16.mxu0 0
        %1916 = vmatpush1.bf16.msra.mxu0 0
        %1917 = vmatprep.mubr.bf16.mxu0 0
        %1918 = vmatmul.mubr.bf16.gmra.mrb[0].mxu0 %v1880
        %v1919 = vpop.f32.mrb[0].mxu0
        %v1920 = vadd.f32 0.0, %v1919
        %v1921 = vpop.f32.mrb[0].mxu0
        %v1922 = vpop.f32.mrb[0].mxu0
        %v1923 = vpop.f32.mrb[0].mxu0
        %1924 = vdwg.mxu0
        %v1925 = vadd.f32 %v1764, %v1920
        %1926 = vrot.lane.b32.xlu0 %v1589, 112
        %v1927 = vpop.permute.xlu0 %1926
        %1928 = vrot.lane.b32.xlu0 %v1589, 80
        %v1929 = vpop.permute.xlu0 %1928
        %v1931 = vsel %vm1600, %v1927, 0
        %v1934 = vsel %vm1600, %v1929, 0
        %1936 = vmatprep.subr.bf16.mxu0 0
        %1937 = vmatpush1.bf16.xpose.msra.mxu0 %v1934
        %1938 = vmatprep.subr.bf16.mxu0 0
        %1939 = vmatpush1.bf16.xpose.msra.mxu0 0
        %1940 = vmatprep.subr.bf16.mxu0 0
        %1941 = vmatpush1.bf16.xpose.msra.mxu0 0
        %1942 = vmatprep.subr.bf16.mxu0 0
        %1943 = vmatpush1.bf16.xpose.msra.mxu0 0
        %1944 = vmatprep.subr.bf16.mxu0 0
        %1945 = vmatpush1.bf16.xpose.msra.mxu0 0
        %1946 = vmatprep.subr.bf16.mxu0 0
        %1947 = vmatpush1.bf16.xpose.msra.mxu0 0
        %1948 = vmatprep.subr.bf16.mxu0 0
        %1949 = vmatpush1.bf16.xpose.msra.mxu0 0
        %1950 = vmatprep.subr.bf16.mxu0 0
        %1951 = vmatpush1.bf16.xpose.msra.mxu0 0
        %1952 = vmatprep.subr.bf16.mxu0 0
        %1953 = vmatpush1.bf16.xpose.msra.mxu0 0
        %1954 = vmatprep.subr.bf16.mxu0 0
        %1955 = vmatpush1.bf16.xpose.msra.mxu0 0
        %1956 = vmatprep.subr.bf16.mxu0 0
        %1957 = vmatpush1.bf16.xpose.msra.mxu0 0
        %1958 = vmatprep.subr.bf16.mxu0 0
        %1959 = vmatpush1.bf16.xpose.msra.mxu0 0
        %1960 = vmatprep.subr.bf16.mxu0 0
        %1961 = vmatpush1.bf16.xpose.msra.mxu0 0
        %1962 = vmatprep.subr.bf16.mxu0 0
        %1963 = vmatpush1.bf16.xpose.msra.mxu0 0
        %1964 = vmatprep.subr.bf16.mxu0 0
        %1965 = vmatpush1.bf16.xpose.msra.mxu0 0
        %1966 = vmatprep.subr.bf16.mxu0 0
        %1967 = vmatpush1.bf16.xpose.msra.mxu0 0
        %1968 = vmatprep.mubr.bf16.mxu0 0
        %1969 = vmatmul.mubr.bf16.gmra.mrb[0].mxu0 %v1931
        %v1970 = vpop.f32.mrb[0].mxu0
        %v1971 = vadd.f32 0.0, %v1970
        %v1972 = vpop.f32.mrb[0].mxu0
        %v1973 = vpop.f32.mrb[0].mxu0
        %v1974 = vpop.f32.mrb[0].mxu0
        %1975 = vdwg.mxu0
        %v1976 = vmul.f32 %v1971, 0.35355338
        %v1977 = vadd.f32 %v1976, %v1652
        %v1978 = vsel %vm1600, %v1977, -inf
        %1979 = vmax.xlane.f32.xlu0 %v1978
        %v1980 = vpop.xlane.xlu0 %1979
        %v1981 = vsub.f32 %v1977, %v1980
        %v1982 = vmul.f32 %v1981, 1.442695
        %v1983 = vpow.pop %v1982
        %v1984 = vsel %vm1600, %v1983, 0.0
        %1985 = vadd.xlane.f32.xlu0 %v1984
        %v1986 = vpop.xlane.xlu0 %1985
        %v1987 = vrcp.pop %v1986
        %v1988 = vmul.f32 1.0, %v1987
        %v1989 = vmul.f32 %v1983, %v1988
        %v1990 = vpack.c.bf16 %v1989, %v1989
        %1991 = vrot.lane.b32.xlu0 %v1589, 48
        %v1992 = vpop.permute.xlu0 %1991
        %v1994 = vsel %vm1600, %v1990, 0
        %v1997 = vsel %vm1673, %v1992, 0
        %1999 = vmatprep.subr.bf16.mxu0 0
        %2000 = vmatpush1.bf16.msra.mxu0 %v1997
        %2001 = vmatprep.subr.bf16.mxu0 0
        %2002 = vmatpush1.bf16.msra.mxu0 0
        %2003 = vmatprep.subr.bf16.mxu0 0
        %2004 = vmatpush1.bf16.msra.mxu0 0
        %2005 = vmatprep.subr.bf16.mxu0 0
        %2006 = vmatpush1.bf16.msra.mxu0 0
        %2007 = vmatprep.subr.bf16.mxu0 0
        %2008 = vmatpush1.bf16.msra.mxu0 0
        %2009 = vmatprep.subr.bf16.mxu0 0
        %2010 = vmatpush1.bf16.msra.mxu0 0
        %2011 = vmatprep.subr.bf16.mxu0 0
        %2012 = vmatpush1.bf16.msra.mxu0 0
        %2013 = vmatprep.subr.bf16.mxu0 0
        %2014 = vmatpush1.bf16.msra.mxu0 0
        %2015 = vmatprep.subr.bf16.mxu0 0
        %2016 = vmatpush1.bf16.msra.mxu0 0
        %2017 = vmatprep.subr.bf16.mxu0 0
        %2018 = vmatpush1.bf16.msra.mxu0 0
        %2019 = vmatprep.subr.bf16.mxu0 0
        %2020 = vmatpush1.bf16.msra.mxu0 0
        %2021 = vmatprep.subr.bf16.mxu0 0
        %2022 = vmatpush1.bf16.msra.mxu0 0
        %2023 = vmatprep.subr.bf16.mxu0 0
        %2024 = vmatpush1.bf16.msra.mxu0 0
        %2025 = vmatprep.subr.bf16.mxu0 0
        %2026 = vmatpush1.bf16.msra.mxu0 0
        %2027 = vmatprep.subr.bf16.mxu0 0
        %2028 = vmatpush1.bf16.msra.mxu0 0
        %2029 = vmatprep.subr.bf16.mxu0 0
        %2030 = vmatpush1.bf16.msra.mxu0 0
        %2031 = vmatprep.mubr.bf16.mxu0 0
        %2032 = vmatmul.mubr.bf16.gmra.mrb[0].mxu0 %v1994
        %v2033 = vpop.f32.mrb[0].mxu0
        %v2034 = vadd.f32 0.0, %v2033
        %v2035 = vpop.f32.mrb[0].mxu0
        %v2036 = vpop.f32.mrb[0].mxu0
        %v2037 = vpop.f32.mrb[0].mxu0
        %2038 = vdwg.mxu0
        %v2039 = vpack.c.bf16 %v2034, %v2034
        %v2041 = vsel %vm1600, %v2039, 0
        %v2044 = vsel %vm1673, %v1586, 0
        %2046 = vmatprep.subr.bf16.mxu0 0
        %2047 = vmatpush1.bf16.msra.mxu0 %v2044
        %2048 = vmatprep.subr.bf16.mxu0 0
        %2049 = vmatpush1.bf16.msra.mxu0 0
        %2050 = vmatprep.subr.bf16.mxu0 0
        %2051 = vmatpush1.bf16.msra.mxu0 0
        %2052 = vmatprep.subr.bf16.mxu0 0
        %2053 = vmatpush1.bf16.msra.mxu0 0
        %2054 = vmatprep.subr.bf16.mxu0 0
        %2055 = vmatpush1.bf16.msra.mxu0 0
        %2056 = vmatprep.subr.bf16.mxu0 0
        %2057 = vmatpush1.bf16.msra.mxu0 0
        %2058 = vmatprep.subr.bf16.mxu0 0
        %2059 = vmatpush1.bf16.msra.mxu0 0
        %2060 = vmatprep.subr.bf16.mxu0 0
        %2061 = vmatpush1.bf16.msra.mxu0 0
        %2062 = vmatprep.subr.bf16.mxu0 0
        %2063 = vmatpush1.bf16.msra.mxu0 0
        %2064 = vmatprep.subr.bf16.mxu0 0
        %2065 = vmatpush1.bf16.msra.mxu0 0
        %2066 = vmatprep.subr.bf16.mxu0 0
        %2067 = vmatpush1.bf16.msra.mxu0 0
        %2068 = vmatprep.subr.bf16.mxu0 0
        %2069 = vmatpush1.bf16.msra.mxu0 0
        %2070 = vmatprep.subr.bf16.mxu0 0
        %2071 = vmatpush1.bf16.msra.mxu0 0
        %2072 = vmatprep.subr.bf16.mxu0 0
        %2073 = vmatpush1.bf16.msra.mxu0 0
        %2074 = vmatprep.subr.bf16.mxu0 0
        %2075 = vmatpush1.bf16.msra.mxu0 0
        %2076 = vmatprep.subr.bf16.mxu0 0
        %2077 = vmatpush1.bf16.msra.mxu0 0
        %2078 = vmatprep.mubr.bf16.mxu0 0
        %2079 = vmatmul.mubr.bf16.gmra.mrb[0].mxu0 %v2041
        %v2080 = vpop.f32.mrb[0].mxu0
        %v2081 = vadd.f32 0.0, %v2080
        %v2082 = vpop.f32.mrb[0].mxu0
        %v2083 = vpop.f32.mrb[0].mxu0
        %v2084 = vpop.f32.mrb[0].mxu0
        %2085 = vdwg.mxu0
        %v2086 = vadd.f32 %v1925, %v2081
        %2087 = vrot.lane.b32.xlu0 %v1589, 104
        %v2088 = vpop.permute.xlu0 %2087
        %2089 = vrot.lane.b32.xlu0 %v1589, 72
        %v2090 = vpop.permute.xlu0 %2089
        %v2092 = vsel %vm1600, %v2088, 0
        %v2095 = vsel %vm1600, %v2090, 0
        %2097 = vmatprep.subr.bf16.mxu0 0
        %2098 = vmatpush1.bf16.xpose.msra.mxu0 %v2095
        %2099 = vmatprep.subr.bf16.mxu0 0
        %2100 = vmatpush1.bf16.xpose.msra.mxu0 0
        %2101 = vmatprep.subr.bf16.mxu0 0
        %2102 = vmatpush1.bf16.xpose.msra.mxu0 0
        %2103 = vmatprep.subr.bf16.mxu0 0
        %2104 = vmatpush1.bf16.xpose.msra.mxu0 0
        %2105 = vmatprep.subr.bf16.mxu0 0
        %2106 = vmatpush1.bf16.xpose.msra.mxu0 0
        %2107 = vmatprep.subr.bf16.mxu0 0
        %2108 = vmatpush1.bf16.xpose.msra.mxu0 0
        %2109 = vmatprep.subr.bf16.mxu0 0
        %2110 = vmatpush1.bf16.xpose.msra.mxu0 0
        %2111 = vmatprep.subr.bf16.mxu0 0
        %2112 = vmatpush1.bf16.xpose.msra.mxu0 0
        %2113 = vmatprep.subr.bf16.mxu0 0
        %2114 = vmatpush1.bf16.xpose.msra.mxu0 0
        %2115 = vmatprep.subr.bf16.mxu0 0
        %2116 = vmatpush1.bf16.xpose.msra.mxu0 0
        %2117 = vmatprep.subr.bf16.mxu0 0
        %2118 = vmatpush1.bf16.xpose.msra.mxu0 0
        %2119 = vmatprep.subr.bf16.mxu0 0
        %2120 = vmatpush1.bf16.xpose.msra.mxu0 0
        %2121 = vmatprep.subr.bf16.mxu0 0
        %2122 = vmatpush1.bf16.xpose.msra.mxu0 0
        %2123 = vmatprep.subr.bf16.mxu0 0
        %2124 = vmatpush1.bf16.xpose.msra.mxu0 0
        %2125 = vmatprep.subr.bf16.mxu0 0
        %2126 = vmatpush1.bf16.xpose.msra.mxu0 0
        %2127 = vmatprep.subr.bf16.mxu0 0
        %2128 = vmatpush1.bf16.xpose.msra.mxu0 0
        %2129 = vmatprep.mubr.bf16.mxu0 0
        %2130 = vmatmul.mubr.bf16.gmra.mrb[0].mxu0 %v2092
        %v2131 = vpop.f32.mrb[0].mxu0
        %v2132 = vadd.f32 0.0, %v2131
        %v2133 = vpop.f32.mrb[0].mxu0
        %v2134 = vpop.f32.mrb[0].mxu0
        %v2135 = vpop.f32.mrb[0].mxu0
        %2136 = vdwg.mxu0
        %v2137 = vmul.f32 %v2132, 0.35355338
        %v2138 = vadd.f32 %v2137, %v1652
        %v2139 = vsel %vm1600, %v2138, -inf
        %2140 = vmax.xlane.f32.xlu0 %v2139
        %v2141 = vpop.xlane.xlu0 %2140
        %v2142 = vsub.f32 %v2138, %v2141
        %v2143 = vmul.f32 %v2142, 1.442695
        %v2144 = vpow.pop %v2143
        %v2145 = vsel %vm1600, %v2144, 0.0
        %2146 = vadd.xlane.f32.xlu0 %v2145
        %v2147 = vpop.xlane.xlu0 %2146
        %v2148 = vrcp.pop %v2147
        %v2149 = vmul.f32 1.0, %v2148
        %v2150 = vmul.f32 %v2144, %v2149
        %v2151 = vpack.c.bf16 %v2150, %v2150
        %2152 = vrot.lane.b32.xlu0 %v1589, 40
        %v2153 = vpop.permute.xlu0 %2152
        %v2155 = vsel %vm1600, %v2151, 0
        %v2158 = vsel %vm1673, %v2153, 0
        %2160 = vmatprep.subr.bf16.mxu0 0
        %2161 = vmatpush1.bf16.msra.mxu0 %v2158
        %2162 = vmatprep.subr.bf16.mxu0 0
        %2163 = vmatpush1.bf16.msra.mxu0 0
        %2164 = vmatprep.subr.bf16.mxu0 0
        %2165 = vmatpush1.bf16.msra.mxu0 0
        %2166 = vmatprep.subr.bf16.mxu0 0
        %2167 = vmatpush1.bf16.msra.mxu0 0
        %2168 = vmatprep.subr.bf16.mxu0 0
        %2169 = vmatpush1.bf16.msra.mxu0 0
        %2170 = vmatprep.subr.bf16.mxu0 0
        %2171 = vmatpush1.bf16.msra.mxu0 0
        %2172 = vmatprep.subr.bf16.mxu0 0
        %2173 = vmatpush1.bf16.msra.mxu0 0
        %2174 = vmatprep.subr.bf16.mxu0 0
        %2175 = vmatpush1.bf16.msra.mxu0 0
        %2176 = vmatprep.subr.bf16.mxu0 0
        %2177 = vmatpush1.bf16.msra.mxu0 0
        %2178 = vmatprep.subr.bf16.mxu0 0
        %2179 = vmatpush1.bf16.msra.mxu0 0
        %2180 = vmatprep.subr.bf16.mxu0 0
        %2181 = vmatpush1.bf16.msra.mxu0 0
        %2182 = vmatprep.subr.bf16.mxu0 0
        %2183 = vmatpush1.bf16.msra.mxu0 0
        %2184 = vmatprep.subr.bf16.mxu0 0
        %2185 = vmatpush1.bf16.msra.mxu0 0
        %2186 = vmatprep.subr.bf16.mxu0 0
        %2187 = vmatpush1.bf16.msra.mxu0 0
        %2188 = vmatprep.subr.bf16.mxu0 0
        %2189 = vmatpush1.bf16.msra.mxu0 0
        %2190 = vmatprep.subr.bf16.mxu0 0
        %2191 = vmatpush1.bf16.msra.mxu0 0
        %2192 = vmatprep.mubr.bf16.mxu0 0
        %2193 = vmatmul.mubr.bf16.gmra.mrb[0].mxu0 %v2155
        %v2194 = vpop.f32.mrb[0].mxu0
        %v2195 = vadd.f32 0.0, %v2194
        %v2196 = vpop.f32.mrb[0].mxu0
        %v2197 = vpop.f32.mrb[0].mxu0
        %v2198 = vpop.f32.mrb[0].mxu0
        %2199 = vdwg.mxu0
        %v2200 = vpack.c.bf16 %v2195, %v2195
        %v2202 = vsel %vm1600, %v2200, 0
        %v2205 = vsel %vm1673, %v1587, 0
        %2207 = vmatprep.subr.bf16.mxu0 0
        %2208 = vmatpush1.bf16.msra.mxu0 %v2205
        %2209 = vmatprep.subr.bf16.mxu0 0
        %2210 = vmatpush1.bf16.msra.mxu0 0
        %2211 = vmatprep.subr.bf16.mxu0 0
        %2212 = vmatpush1.bf16.msra.mxu0 0
        %2213 = vmatprep.subr.bf16.mxu0 0
        %2214 = vmatpush1.bf16.msra.mxu0 0
        %2215 = vmatprep.subr.bf16.mxu0 0
        %2216 = vmatpush1.bf16.msra.mxu0 0
        %2217 = vmatprep.subr.bf16.mxu0 0
        %2218 = vmatpush1.bf16.msra.mxu0 0
        %2219 = vmatprep.subr.bf16.mxu0 0
        %2220 = vmatpush1.bf16.msra.mxu0 0
        %2221 = vmatprep.subr.bf16.mxu0 0
        %2222 = vmatpush1.bf16.msra.mxu0 0
        %2223 = vmatprep.subr.bf16.mxu0 0
        %2224 = vmatpush1.bf16.msra.mxu0 0
        %2225 = vmatprep.subr.bf16.mxu0 0
        %2226 = vmatpush1.bf16.msra.mxu0 0
        %2227 = vmatprep.subr.bf16.mxu0 0
        %2228 = vmatpush1.bf16.msra.mxu0 0
        %2229 = vmatprep.subr.bf16.mxu0 0
        %2230 = vmatpush1.bf16.msra.mxu0 0
        %2231 = vmatprep.subr.bf16.mxu0 0
        %2232 = vmatpush1.bf16.msra.mxu0 0
        %2233 = vmatprep.subr.bf16.mxu0 0
        %2234 = vmatpush1.bf16.msra.mxu0 0
        %2235 = vmatprep.subr.bf16.mxu0 0
        %2236 = vmatpush1.bf16.msra.mxu0 0
        %2237 = vmatprep.subr.bf16.mxu0 0
        %2238 = vmatpush1.bf16.msra.mxu0 0
        %2239 = vmatprep.mubr.bf16.mxu0 0
        %2240 = vmatmul.mubr.bf16.gmra.mrb[0].mxu0 %v2202
        %v2241 = vpop.f32.mrb[0].mxu0
        %v2242 = vadd.f32 0.0, %v2241
        %v2243 = vpop.f32.mrb[0].mxu0
        %v2244 = vpop.f32.mrb[0].mxu0
        %v2245 = vpop.f32.mrb[0].mxu0
        %2246 = vdwg.mxu0
        %v2247 = vadd.f32 %v2086, %v2242
        %v2248 = vadd.f32 %v1447, %v2247
        %v2249 = vld [vmem:[%s21] sm:$0x1]
        %v2250 = vld [vmem:[%s23] sm:$0x1]
        %v2251 = vsel %vm1540, %v2248, 0.0
        %2252 = vadd.xlane.f32.xlu0 %v2251
        %v2253 = vpop.xlane.xlu0 %2252
        %v2254 = vrcp.pop 32.0
        %v2255 = vmul.f32 %v2253, %v2254
        %v2256 = vsub.f32 %v2248, %v2255
        %v2257 = vmul.f32 %v2256, %v2256
        %v2258 = vsel %vm1540, %v2257, 0.0
        %2259 = vadd.xlane.f32.xlu0 %v2258
        %v2260 = vpop.xlane.xlu0 %2259
        %v2261 = vmul.f32 %v2260, %v2254
        %v2262 = vadd.f32 %v2261, 1e-05
        %v2263 = vrsqrt.pop %v2262
        %v2264 = vmul.f32 %v2256, %v2263
        %v2266 = vlaneseq
        %v2267 = vshrl.u32 %v2266, 7
        %v2268 = vsub.s32 0, %v2267
        %v2269 = vrot.slane %v2249, %v2268
        %v2271 = vmul.f32 %v2264, %v2269
        %v2273 = vlaneseq
        %v2274 = vshrl.u32 %v2273, 7
        %v2275 = vsub.s32 0, %v2274
        %v2276 = vrot.slane %v2250, %v2275
        %v2278 = vadd.f32 %v2271, %v2276
        %v2279 = vld [vmem:[%s25] sm:$0xf]
        %v2280 = vld [vmem:[%s25 + $0x4] sm:$0xf]
        %v2281 = vld [vmem:[%s25 + $0x8] sm:$0xf]
        %v2282 = vld [vmem:[%s25 + $0xc] sm:$0xf]
        %v2283 = vpack.c.bf16 %v2278, %v2278
        %v2284 = vld [vmem:[%s27] sm:$0x1]
        %v2286 = vlaneseq
        %v2287 = vshrl.u32 %v2286, 7
        %v2288 = vsub.s32 0, %v2287
        %v2289 = vrot.slane %v2284, %v2288
        %v2295 = vunpack.c.l.b16 %v2279
        %v2296 = vunpack.c.l.b16 %v2280
        %v2297 = vunpack.c.l.b16 %v2281
        %v2298 = vunpack.c.l.b16 %v2282
        %v2299 = vpack.c.b16 %v2296, %v2295
        %v2300 = vpack.c.b16 %v2298, %v2297
        %v2304 = vsel %vm1540, %v2283, 0
        %2306 = vmatprep.subr.bf16.mxu0 0
        %2307 = vmatpush1.bf16.msra.mxu0 %v2299
        %2308 = vmatprep.subr.bf16.mxu0 0
        %2309 = vmatpush1.bf16.msra.mxu0 %v2300
        %2310 = vmatprep.subr.bf16.mxu0 0
        %2311 = vmatpush1.bf16.msra.mxu0 0
        %2312 = vmatprep.subr.bf16.mxu0 0
        %2313 = vmatpush1.bf16.msra.mxu0 0
        %2314 = vmatprep.subr.bf16.mxu0 0
        %2315 = vmatpush1.bf16.msra.mxu0 0
        %2316 = vmatprep.subr.bf16.mxu0 0
        %2317 = vmatpush1.bf16.msra.mxu0 0
        %2318 = vmatprep.subr.bf16.mxu0 0
        %2319 = vmatpush1.bf16.msra.mxu0 0
        %2320 = vmatprep.subr.bf16.mxu0 0
        %2321 = vmatpush1.bf16.msra.mxu0 0
        %2322 = vmatprep.subr.bf16.mxu0 0
        %2323 = vmatpush1.bf16.msra.mxu0 0
        %2324 = vmatprep.subr.bf16.mxu0 0
        %2325 = vmatpush1.bf16.msra.mxu0 0
        %2326 = vmatprep.subr.bf16.mxu0 0
        %2327 = vmatpush1.bf16.msra.mxu0 0
        %2328 = vmatprep.subr.bf16.mxu0 0
        %2329 = vmatpush1.bf16.msra.mxu0 0
        %2330 = vmatprep.subr.bf16.mxu0 0
        %2331 = vmatpush1.bf16.msra.mxu0 0
        %2332 = vmatprep.subr.bf16.mxu0 0
        %2333 = vmatpush1.bf16.msra.mxu0 0
        %2334 = vmatprep.subr.bf16.mxu0 0
        %2335 = vmatpush1.bf16.msra.mxu0 0
        %2336 = vmatprep.subr.bf16.mxu0 0
        %2337 = vmatpush1.bf16.msra.mxu0 0
        %2338 = vmatprep.mubr.bf16.mxu0 0
        %2339 = vmatmul.mubr.bf16.gmra.mrb[0].mxu0 %v2304
        %v2340 = vpop.f32.mrb[0].mxu0
        %v2341 = vadd.f32 %v2289, %v2340
        %v2342 = vpop.f32.mrb[0].mxu0
        %v2343 = vpop.f32.mrb[0].mxu0
        %v2344 = vpop.f32.mrb[0].mxu0
        %2345 = vdwg.mxu0
        %v2346 = vmax.f32 %v2341, 0.0
        %v2347 = vld [vmem:[%s29] sm:$0xf]
        %v2348 = vld [vmem:[%s29 + $0x4] sm:$0xf]
        %v2349 = vld [vmem:[%s29 + $0x8] sm:$0xf]
        %v2350 = vld [vmem:[%s29 + $0xc] sm:$0xf]
        %v2351 = vld [vmem:[%s29 + $0x10] sm:$0xf]
        %v2352 = vld [vmem:[%s29 + $0x14] sm:$0xf]
        %v2353 = vld [vmem:[%s29 + $0x18] sm:$0xf]
        %v2354 = vld [vmem:[%s29 + $0x1c] sm:$0xf]
        %v2355 = vld [vmem:[%s29 + $0x20] sm:$0xf]
        %v2356 = vld [vmem:[%s29 + $0x24] sm:$0xf]
        %v2357 = vld [vmem:[%s29 + $0x28] sm:$0xf]
        %v2358 = vld [vmem:[%s29 + $0x2c] sm:$0xf]
        %v2359 = vld [vmem:[%s29 + $0x30] sm:$0xf]
        %v2360 = vld [vmem:[%s29 + $0x34] sm:$0xf]
        %v2361 = vld [vmem:[%s29 + $0x38] sm:$0xf]
        %v2362 = vld [vmem:[%s29 + $0x3c] sm:$0xf]
        %v2363 = vpack.c.bf16 %v2346, %v2346
        %v2364 = vld [vmem:[%s31] sm:$0x1]
        %v2366 = vlaneseq
        %v2367 = vshrl.u32 %v2366, 7
        %v2368 = vsub.s32 0, %v2367
        %v2369 = vrot.slane %v2364, %v2368
        %v2387 = vunpack.c.l.b16 %v2347
        %v2388 = vunpack.c.l.b16 %v2348
        %v2389 = vunpack.c.l.b16 %v2349
        %v2390 = vunpack.c.l.b16 %v2350
        %v2391 = vunpack.c.l.b16 %v2351
        %v2392 = vunpack.c.l.b16 %v2352
        %v2393 = vunpack.c.l.b16 %v2353
        %v2394 = vunpack.c.l.b16 %v2354
        %v2395 = vunpack.c.l.b16 %v2355
        %v2396 = vunpack.c.l.b16 %v2356
        %v2397 = vunpack.c.l.b16 %v2357
        %v2398 = vunpack.c.l.b16 %v2358
        %v2399 = vunpack.c.l.b16 %v2359
        %v2400 = vunpack.c.l.b16 %v2360
        %v2401 = vunpack.c.l.b16 %v2361
        %v2402 = vunpack.c.l.b16 %v2362
        %v2403 = vpack.c.b16 %v2388, %v2387
        %v2404 = vpack.c.b16 %v2390, %v2389
        %v2405 = vpack.c.b16 %v2392, %v2391
        %v2406 = vpack.c.b16 %v2394, %v2393
        %v2407 = vpack.c.b16 %v2396, %v2395
        %v2408 = vpack.c.b16 %v2398, %v2397
        %v2409 = vpack.c.b16 %v2400, %v2399
        %v2410 = vpack.c.b16 %v2402, %v2401
        %2419 = vmatprep.subr.bf16.mxu0 0
        %2420 = vmatpush1.bf16.msra.mxu0 %v2403
        %2421 = vmatprep.subr.bf16.mxu0 0
        %2422 = vmatpush1.bf16.msra.mxu0 %v2404
        %2423 = vmatprep.subr.bf16.mxu0 0
        %2424 = vmatpush1.bf16.msra.mxu0 %v2405
        %2425 = vmatprep.subr.bf16.mxu0 0
        %2426 = vmatpush1.bf16.msra.mxu0 %v2406
        %2427 = vmatprep.subr.bf16.mxu0 0
        %2428 = vmatpush1.bf16.msra.mxu0 %v2407
        %2429 = vmatprep.subr.bf16.mxu0 0
        %2430 = vmatpush1.bf16.msra.mxu0 %v2408
        %2431 = vmatprep.subr.bf16.mxu0 0
        %2432 = vmatpush1.bf16.msra.mxu0 %v2409
        %2433 = vmatprep.subr.bf16.mxu0 0
        %2434 = vmatpush1.bf16.msra.mxu0 %v2410
        %2435 = vmatprep.subr.bf16.mxu0 0
        %2436 = vmatpush1.bf16.msra.mxu0 0
        %2437 = vmatprep.subr.bf16.mxu0 0
        %2438 = vmatpush1.bf16.msra.mxu0 0
        %2439 = vmatprep.subr.bf16.mxu0 0
        %2440 = vmatpush1.bf16.msra.mxu0 0
        %2441 = vmatprep.subr.bf16.mxu0 0
        %2442 = vmatpush1.bf16.msra.mxu0 0
        %2443 = vmatprep.subr.bf16.mxu0 0
        %2444 = vmatpush1.bf16.msra.mxu0 0
        %2445 = vmatprep.subr.bf16.mxu0 0
        %2446 = vmatpush1.bf16.msra.mxu0 0
        %2447 = vmatprep.subr.bf16.mxu0 0
        %2448 = vmatpush1.bf16.msra.mxu0 0
        %2449 = vmatprep.subr.bf16.mxu0 0
        %2450 = vmatpush1.bf16.msra.mxu0 0
        %2451 = vmatprep.mubr.bf16.mxu0 0
        %2452 = vmatmul.mubr.bf16.gmra.mrb[0].mxu0 %v2363
        %v2453 = vpop.f32.mrb[0].mxu0
        %v2454 = vadd.f32 %v2369, %v2453
        %v2455 = vpop.f32.mrb[0].mxu0
        %v2456 = vpop.f32.mrb[0].mxu0
        %v2457 = vpop.f32.mrb[0].mxu0
        %2458 = vdwg.mxu0
        %v2459 = vadd.f32 %v2278, %v2454
        %v2460 = vld [vmem:[%s33] sm:$0x1]
        %v2461 = vld [vmem:[%s35] sm:$0x1]
        %v2462 = vsel %vm1540, %v2459, 0.0
        %2463 = vadd.xlane.f32.xlu0 %v2462
        %v2464 = vpop.xlane.xlu0 %2463
        %v2465 = vmul.f32 %v2464, %v2254
        %v2466 = vsub.f32 %v2459, %v2465
        %v2467 = vmul.f32 %v2466, %v2466
        %v2468 = vsel %vm1540, %v2467, 0.0
        %2469 = vadd.xlane.f32.xlu0 %v2468
        %v2470 = vpop.xlane.xlu0 %2469
        %v2471 = vmul.f32 %v2470, %v2254
        %v2472 = vadd.f32 %v2471, 1e-05
        %v2473 = vrsqrt.pop %v2472
        %v2474 = vmul.f32 %v2466, %v2473
        %v2476 = vlaneseq
        %v2477 = vshrl.u32 %v2476, 7
        %v2478 = vsub.s32 0, %v2477
        %v2479 = vrot.slane %v2460, %v2478
        %v2481 = vmul.f32 %v2474, %v2479
        %v2483 = vlaneseq
        %v2484 = vshrl.u32 %v2483, 7
        %v2485 = vsub.s32 0, %v2484
        %v2486 = vrot.slane %v2461, %v2485
        %v2488 = vadd.f32 %v2481, %v2486
        %s2489 = scalar_lea.vmem %s13, 16
        %v2490 = vld [vmem:[%s2489] sm:$0xf]
        %v2491 = vld [vmem:[%s2489 + $0x4] sm:$0xf]
        %v2492 = vld [vmem:[%s2489 + $0x8] sm:$0xf]
        %v2493 = vld [vmem:[%s2489 + $0xc] sm:$0xf]
        %v2494 = vpack.c.bf16 %v2488, %v2488
        %s2495 = scalar_lea.vmem %s15, 1
        %v2496 = vld [vmem:[%s2495] sm:$0x1]
        %v2498 = vlaneseq
        %v2499 = vshrl.u32 %v2498, 7
        %v2500 = vsub.s32 0, %v2499
        %v2501 = vrot.slane %v2496, %v2500
        %v2507 = vunpack.c.l.b16 %v2490
        %v2508 = vunpack.c.l.b16 %v2491
        %v2509 = vunpack.c.l.b16 %v2492
        %v2510 = vunpack.c.l.b16 %v2493
        %v2511 = vpack.c.b16 %v2508, %v2507
        %v2512 = vpack.c.b16 %v2510, %v2509
        %v2516 = vsel %vm1540, %v2494, 0
        %2518 = vmatprep.subr.bf16.mxu0 0
        %2519 = vmatpush1.bf16.msra.mxu0 %v2511
        %2520 = vmatprep.subr.bf16.mxu0 0
        %2521 = vmatpush1.bf16.msra.mxu0 %v2512
        %2522 = vmatprep.subr.bf16.mxu0 0
        %2523 = vmatpush1.bf16.msra.mxu0 0
        %2524 = vmatprep.subr.bf16.mxu0 0
        %2525 = vmatpush1.bf16.msra.mxu0 0
        %2526 = vmatprep.subr.bf16.mxu0 0
        %2527 = vmatpush1.bf16.msra.mxu0 0
        %2528 = vmatprep.subr.bf16.mxu0 0
        %2529 = vmatpush1.bf16.msra.mxu0 0
        %2530 = vmatprep.subr.bf16.mxu0 0
        %2531 = vmatpush1.bf16.msra.mxu0 0
        %2532 = vmatprep.subr.bf16.mxu0 0
        %2533 = vmatpush1.bf16.msra.mxu0 0
        %2534 = vmatprep.subr.bf16.mxu0 0
        %2535 = vmatpush1.bf16.msra.mxu0 0
        %2536 = vmatprep.subr.bf16.mxu0 0
        %2537 = vmatpush1.bf16.msra.mxu0 0
        %2538 = vmatprep.subr.bf16.mxu0 0
        %2539 = vmatpush1.bf16.msra.mxu0 0
        %2540 = vmatprep.subr.bf16.mxu0 0
        %2541 = vmatpush1.bf16.msra.mxu0 0
        %2542 = vmatprep.subr.bf16.mxu0 0
        %2543 = vmatpush1.bf16.msra.mxu0 0
        %2544 = vmatprep.subr.bf16.mxu0 0
        %2545 = vmatpush1.bf16.msra.mxu0 0
        %2546 = vmatprep.subr.bf16.mxu0 0
        %2547 = vmatpush1.bf16.msra.mxu0 0
        %2548 = vmatprep.subr.bf16.mxu0 0
        %2549 = vmatpush1.bf16.msra.mxu0 0
        %2550 = vmatprep.mubr.bf16.mxu0 0
        %2551 = vmatmul.mubr.bf16.gmra.mrb[0].mxu0 %v2516
        %v2552 = vpop.f32.mrb[0].mxu0
        %v2553 = vadd.f32 %v2501, %v2552
        %v2554 = vpop.f32.mrb[0].mxu0
        %v2555 = vpop.f32.mrb[0].mxu0
        %v2556 = vpop.f32.mrb[0].mxu0
        %2557 = vdwg.mxu0
        %s2558 = scalar_lea.vmem %s17, 16
        %v2559 = vld [vmem:[%s2558] sm:$0xf]
        %v2560 = vld [vmem:[%s2558 + $0x4] sm:$0xf]
        %v2561 = vld [vmem:[%s2558 + $0x8] sm:$0xf]
        %v2562 = vld [vmem:[%s2558 + $0xc] sm:$0xf]
        %s2563 = scalar_lea.vmem %s19, 1
        %v2564 = vld [vmem:[%s2563] sm:$0x1]
        %v2565 = vpack.c.bf16 %v2553, %v2553
        %v2567 = vlaneseq
        %v2568 = vshrl.u32 %v2567, 7
        %v2569 = vsub.s32 0, %v2568
        %v2570 = vrot.slane %v2564, %v2569
        %v2572 = vadd.f32 %v2570, 0.0
        %2574 = vrot.lane.b32.xlu0 %v2565, 96
        %v2575 = vpop.permute.xlu0 %2574
        %v2577 = vsel %vm1600, %v2565, 0
        %v2580 = vsel %vm1600, %v2575, 0
        %2582 = vmatprep.subr.bf16.mxu0 0
        %2583 = vmatpush1.bf16.xpose.msra.mxu0 %v2580
        %2584 = vmatprep.subr.bf16.mxu0 0
        %2585 = vmatpush1.bf16.xpose.msra.mxu0 0
        %2586 = vmatprep.subr.bf16.mxu0 0
        %2587 = vmatpush1.bf16.xpose.msra.mxu0 0
        %2588 = vmatprep.subr.bf16.mxu0 0
        %2589 = vmatpush1.bf16.xpose.msra.mxu0 0
        %2590 = vmatprep.subr.bf16.mxu0 0
        %2591 = vmatpush1.bf16.xpose.msra.mxu0 0
        %2592 = vmatprep.subr.bf16.mxu0 0
        %2593 = vmatpush1.bf16.xpose.msra.mxu0 0
        %2594 = vmatprep.subr.bf16.mxu0 0
        %2595 = vmatpush1.bf16.xpose.msra.mxu0 0
        %2596 = vmatprep.subr.bf16.mxu0 0
        %2597 = vmatpush1.bf16.xpose.msra.mxu0 0
        %2598 = vmatprep.subr.bf16.mxu0 0
        %2599 = vmatpush1.bf16.xpose.msra.mxu0 0
        %2600 = vmatprep.subr.bf16.mxu0 0
        %2601 = vmatpush1.bf16.xpose.msra.mxu0 0
        %2602 = vmatprep.subr.bf16.mxu0 0
        %2603 = vmatpush1.bf16.xpose.msra.mxu0 0
        %2604 = vmatprep.subr.bf16.mxu0 0
        %2605 = vmatpush1.bf16.xpose.msra.mxu0 0
        %2606 = vmatprep.subr.bf16.mxu0 0
        %2607 = vmatpush1.bf16.xpose.msra.mxu0 0
        %2608 = vmatprep.subr.bf16.mxu0 0
        %2609 = vmatpush1.bf16.xpose.msra.mxu0 0
        %2610 = vmatprep.subr.bf16.mxu0 0
        %2611 = vmatpush1.bf16.xpose.msra.mxu0 0
        %2612 = vmatprep.subr.bf16.mxu0 0
        %2613 = vmatpush1.bf16.xpose.msra.mxu0 0
        %2614 = vmatprep.mubr.bf16.mxu0 0
        %2615 = vmatmul.mubr.bf16.gmra.mrb[0].mxu0 %v2577
        %v2616 = vpop.f32.mrb[0].mxu0
        %v2617 = vadd.f32 0.0, %v2616
        %v2618 = vpop.f32.mrb[0].mxu0
        %v2619 = vpop.f32.mrb[0].mxu0
        %v2620 = vpop.f32.mrb[0].mxu0
        %2621 = vdwg.mxu0
        %v2622 = vmul.f32 %v2617, 0.35355338
        %v2623 = vadd.f32 %v2622, %v1652
        %v2624 = vsel %vm1600, %v2623, -inf
        %2625 = vmax.xlane.f32.xlu0 %v2624
        %v2626 = vpop.xlane.xlu0 %2625
        %v2627 = vsub.f32 %v2623, %v2626
        %v2628 = vmul.f32 %v2627, 1.442695
        %v2629 = vpow.pop %v2628
        %v2630 = vsel %vm1600, %v2629, 0.0
        %2631 = vadd.xlane.f32.xlu0 %v2630
        %v2632 = vpop.xlane.xlu0 %2631
        %v2633 = vrcp.pop %v2632
        %v2634 = vmul.f32 1.0, %v2633
        %v2635 = vmul.f32 %v2629, %v2634
        %v2636 = vpack.c.bf16 %v2635, %v2635
        %2637 = vrot.lane.b32.xlu0 %v2565, 64
        %v2638 = vpop.permute.xlu0 %2637
        %v2640 = vsel %vm1600, %v2636, 0
        %v2643 = vsel %vm1673, %v2638, 0
        %2645 = vmatprep.subr.bf16.mxu0 0
        %2646 = vmatpush1.bf16.msra.mxu0 %v2643
        %2647 = vmatprep.subr.bf16.mxu0 0
        %2648 = vmatpush1.bf16.msra.mxu0 0
        %2649 = vmatprep.subr.bf16.mxu0 0
        %2650 = vmatpush1.bf16.msra.mxu0 0
        %2651 = vmatprep.subr.bf16.mxu0 0
        %2652 = vmatpush1.bf16.msra.mxu0 0
        %2653 = vmatprep.subr.bf16.mxu0 0
        %2654 = vmatpush1.bf16.msra.mxu0 0
        %2655 = vmatprep.subr.bf16.mxu0 0
        %2656 = vmatpush1.bf16.msra.mxu0 0
        %2657 = vmatprep.subr.bf16.mxu0 0
        %2658 = vmatpush1.bf16.msra.mxu0 0
        %2659 = vmatprep.subr.bf16.mxu0 0
        %2660 = vmatpush1.bf16.msra.mxu0 0
        %2661 = vmatprep.subr.bf16.mxu0 0
        %2662 = vmatpush1.bf16.msra.mxu0 0
        %2663 = vmatprep.subr.bf16.mxu0 0
        %2664 = vmatpush1.bf16.msra.mxu0 0
        %2665 = vmatprep.subr.bf16.mxu0 0
        %2666 = vmatpush1.bf16.msra.mxu0 0
        %2667 = vmatprep.subr.bf16.mxu0 0
        %2668 = vmatpush1.bf16.msra.mxu0 0
        %2669 = vmatprep.subr.bf16.mxu0 0
        %2670 = vmatpush1.bf16.msra.mxu0 0
        %2671 = vmatprep.subr.bf16.mxu0 0
        %2672 = vmatpush1.bf16.msra.mxu0 0
        %2673 = vmatprep.subr.bf16.mxu0 0
        %2674 = vmatpush1.bf16.msra.mxu0 0
        %2675 = vmatprep.subr.bf16.mxu0 0
        %2676 = vmatpush1.bf16.msra.mxu0 0
        %2677 = vmatprep.mubr.bf16.mxu0 0
        %2678 = vmatmul.mubr.bf16.gmra.mrb[0].mxu0 %v2640
        %v2679 = vpop.f32.mrb[0].mxu0
        %v2680 = vadd.f32 0.0, %v2679
        %v2681 = vpop.f32.mrb[0].mxu0
        %v2682 = vpop.f32.mrb[0].mxu0
        %v2683 = vpop.f32.mrb[0].mxu0
        %2684 = vdwg.mxu0
        %v2685 = vpack.c.bf16 %v2680, %v2680
        %v2687 = vsel %vm1600, %v2685, 0
        %v2690 = vsel %vm1673, %v2559, 0
        %2692 = vmatprep.subr.bf16.mxu0 0
        %2693 = vmatpush1.bf16.msra.mxu0 %v2690
        %2694 = vmatprep.subr.bf16.mxu0 0
        %2695 = vmatpush1.bf16.msra.mxu0 0
        %2696 = vmatprep.subr.bf16.mxu0 0
        %2697 = vmatpush1.bf16.msra.mxu0 0
        %2698 = vmatprep.subr.bf16.mxu0 0
        %2699 = vmatpush1.bf16.msra.mxu0 0
        %2700 = vmatprep.subr.bf16.mxu0 0
        %2701 = vmatpush1.bf16.msra.mxu0 0
        %2702 = vmatprep.subr.bf16.mxu0 0
        %2703 = vmatpush1.bf16.msra.mxu0 0
        %2704 = vmatprep.subr.bf16.mxu0 0
        %2705 = vmatpush1.bf16.msra.mxu0 0
        %2706 = vmatprep.subr.bf16.mxu0 0
        %2707 = vmatpush1.bf16.msra.mxu0 0
        %2708 = vmatprep.subr.bf16.mxu0 0
        %2709 = vmatpush1.bf16.msra.mxu0 0
        %2710 = vmatprep.subr.bf16.mxu0 0
        %2711 = vmatpush1.bf16.msra.mxu0 0
        %2712 = vmatprep.subr.bf16.mxu0 0
        %2713 = vmatpush1.bf16.msra.mxu0 0
        %2714 = vmatprep.subr.bf16.mxu0 0
        %2715 = vmatpush1.bf16.msra.mxu0 0
        %2716 = vmatprep.subr.bf16.mxu0 0
        %2717 = vmatpush1.bf16.msra.mxu0 0
        %2718 = vmatprep.subr.bf16.mxu0 0
        %2719 = vmatpush1.bf16.msra.mxu0 0
        %2720 = vmatprep.subr.bf16.mxu0 0
        %2721 = vmatpush1.bf16.msra.mxu0 0
        %2722 = vmatprep.subr.bf16.mxu0 0
        %2723 = vmatpush1.bf16.msra.mxu0 0
        %2724 = vmatprep.mubr.bf16.mxu0 0
        %2725 = vmatmul.mubr.bf16.gmra.mrb[0].mxu0 %v2687
        %v2726 = vpop.f32.mrb[0].mxu0
        %v2727 = vadd.f32 0.0, %v2726
        %v2728 = vpop.f32.mrb[0].mxu0
        %v2729 = vpop.f32.mrb[0].mxu0
        %v2730 = vpop.f32.mrb[0].mxu0
        %2731 = vdwg.mxu0
        %v2732 = vadd.f32 %v2572, %v2727
        %2733 = vrot.lane.b32.xlu0 %v2565, 120
        %v2734 = vpop.permute.xlu0 %2733
        %2735 = vrot.lane.b32.xlu0 %v2565, 88
        %v2736 = vpop.permute.xlu0 %2735
        %v2738 = vsel %vm1600, %v2734, 0
        %v2741 = vsel %vm1600, %v2736, 0
        %2743 = vmatprep.subr.bf16.mxu0 0
        %2744 = vmatpush1.bf16.xpose.msra.mxu0 %v2741
        %2745 = vmatprep.subr.bf16.mxu0 0
        %2746 = vmatpush1.bf16.xpose.msra.mxu0 0
        %2747 = vmatprep.subr.bf16.mxu0 0
        %2748 = vmatpush1.bf16.xpose.msra.mxu0 0
        %2749 = vmatprep.subr.bf16.mxu0 0
        %2750 = vmatpush1.bf16.xpose.msra.mxu0 0
        %2751 = vmatprep.subr.bf16.mxu0 0
        %2752 = vmatpush1.bf16.xpose.msra.mxu0 0
        %2753 = vmatprep.subr.bf16.mxu0 0
        %2754 = vmatpush1.bf16.xpose.msra.mxu0 0
        %2755 = vmatprep.subr.bf16.mxu0 0
        %2756 = vmatpush1.bf16.xpose.msra.mxu0 0
        %2757 = vmatprep.subr.bf16.mxu0 0
        %2758 = vmatpush1.bf16.xpose.msra.mxu0 0
        %2759 = vmatprep.subr.bf16.mxu0 0
        %2760 = vmatpush1.bf16.xpose.msra.mxu0 0
        %2761 = vmatprep.subr.bf16.mxu0 0
        %2762 = vmatpush1.bf16.xpose.msra.mxu0 0
        %2763 = vmatprep.subr.bf16.mxu0 0
        %2764 = vmatpush1.bf16.xpose.msra.mxu0 0
        %2765 = vmatprep.subr.bf16.mxu0 0
        %2766 = vmatpush1.bf16.xpose.msra.mxu0 0
        %2767 = vmatprep.subr.bf16.mxu0 0
        %2768 = vmatpush1.bf16.xpose.msra.mxu0 0
        %2769 = vmatprep.subr.bf16.mxu0 0
        %2770 = vmatpush1.bf16.xpose.msra.mxu0 0
        %2771 = vmatprep.subr.bf16.mxu0 0
        %2772 = vmatpush1.bf16.xpose.msra.mxu0 0
        %2773 = vmatprep.subr.bf16.mxu0 0
        %2774 = vmatpush1.bf16.xpose.msra.mxu0 0
        %2775 = vmatprep.mubr.bf16.mxu0 0
        %2776 = vmatmul.mubr.bf16.gmra.mrb[0].mxu0 %v2738
        %v2777 = vpop.f32.mrb[0].mxu0
        %v2778 = vadd.f32 0.0, %v2777
        %v2779 = vpop.f32.mrb[0].mxu0
        %v2780 = vpop.f32.mrb[0].mxu0
        %v2781 = vpop.f32.mrb[0].mxu0
        %2782 = vdwg.mxu0
        %v2783 = vmul.f32 %v2778, 0.35355338
        %v2784 = vadd.f32 %v2783, %v1652
        %v2785 = vsel %vm1600, %v2784, -inf
        %2786 = vmax.xlane.f32.xlu0 %v2785
        %v2787 = vpop.xlane.xlu0 %2786
        %v2788 = vsub.f32 %v2784, %v2787
        %v2789 = vmul.f32 %v2788, 1.442695
        %v2790 = vpow.pop %v2789
        %v2791 = vsel %vm1600, %v2790, 0.0
        %2792 = vadd.xlane.f32.xlu0 %v2791
        %v2793 = vpop.xlane.xlu0 %2792
        %v2794 = vrcp.pop %v2793
        %v2795 = vmul.f32 1.0, %v2794
        %v2796 = vmul.f32 %v2790, %v2795
        %v2797 = vpack.c.bf16 %v2796, %v2796
        %2798 = vrot.lane.b32.xlu0 %v2565, 56
        %v2799 = vpop.permute.xlu0 %2798
        %v2801 = vsel %vm1600, %v2797, 0
        %v2804 = vsel %vm1673, %v2799, 0
        %2806 = vmatprep.subr.bf16.mxu0 0
        %2807 = vmatpush1.bf16.msra.mxu0 %v2804
        %2808 = vmatprep.subr.bf16.mxu0 0
        %2809 = vmatpush1.bf16.msra.mxu0 0
        %2810 = vmatprep.subr.bf16.mxu0 0
        %2811 = vmatpush1.bf16.msra.mxu0 0
        %2812 = vmatprep.subr.bf16.mxu0 0
        %2813 = vmatpush1.bf16.msra.mxu0 0
        %2814 = vmatprep.subr.bf16.mxu0 0
        %2815 = vmatpush1.bf16.msra.mxu0 0
        %2816 = vmatprep.subr.bf16.mxu0 0
        %2817 = vmatpush1.bf16.msra.mxu0 0
        %2818 = vmatprep.subr.bf16.mxu0 0
        %2819 = vmatpush1.bf16.msra.mxu0 0
        %2820 = vmatprep.subr.bf16.mxu0 0
        %2821 = vmatpush1.bf16.msra.mxu0 0
        %2822 = vmatprep.subr.bf16.mxu0 0
        %2823 = vmatpush1.bf16.msra.mxu0 0
        %2824 = vmatprep.subr.bf16.mxu0 0
        %2825 = vmatpush1.bf16.msra.mxu0 0
        %2826 = vmatprep.subr.bf16.mxu0 0
        %2827 = vmatpush1.bf16.msra.mxu0 0
        %2828 = vmatprep.subr.bf16.mxu0 0
        %2829 = vmatpush1.bf16.msra.mxu0 0
        %2830 = vmatprep.subr.bf16.mxu0 0
        %2831 = vmatpush1.bf16.msra.mxu0 0
        %2832 = vmatprep.subr.bf16.mxu0 0
        %2833 = vmatpush1.bf16.msra.mxu0 0
        %2834 = vmatprep.subr.bf16.mxu0 0
        %2835 = vmatpush1.bf16.msra.mxu0 0
        %2836 = vmatprep.subr.bf16.mxu0 0
        %2837 = vmatpush1.bf16.msra.mxu0 0
        %2838 = vmatprep.mubr.bf16.mxu0 0
        %2839 = vmatmul.mubr.bf16.gmra.mrb[0].mxu0 %v2801
        %v2840 = vpop.f32.mrb[0].mxu0
        %v2841 = vadd.f32 0.0, %v2840
        %v2842 = vpop.f32.mrb[0].mxu0
        %v2843 = vpop.f32.mrb[0].mxu0
        %v2844 = vpop.f32.mrb[0].mxu0
        %2845 = vdwg.mxu0
        %v2846 = vpack.c.bf16 %v2841, %v2841
        %v2848 = vsel %vm1600, %v2846, 0
        %v2851 = vsel %vm1673, %v2560, 0
        %2853 = vmatprep.subr.bf16.mxu0 0
        %2854 = vmatpush1.bf16.msra.mxu0 %v2851
        %2855 = vmatprep.subr.bf16.mxu0 0
        %2856 = vmatpush1.bf16.msra.mxu0 0
        %2857 = vmatprep.subr.bf16.mxu0 0
        %2858 = vmatpush1.bf16.msra.mxu0 0
        %2859 = vmatprep.subr.bf16.mxu0 0
        %2860 = vmatpush1.bf16.msra.mxu0 0
        %2861 = vmatprep.subr.bf16.mxu0 0
        %2862 = vmatpush1.bf16.msra.mxu0 0
        %2863 = vmatprep.subr.bf16.mxu0 0
        %2864 = vmatpush1.bf16.msra.mxu0 0
        %2865 = vmatprep.subr.bf16.mxu0 0
        %2866 = vmatpush1.bf16.msra.mxu0 0
        %2867 = vmatprep.subr.bf16.mxu0 0
        %2868 = vmatpush1.bf16.msra.mxu0 0
        %2869 = vmatprep.subr.bf16.mxu0 0
        %2870 = vmatpush1.bf16.msra.mxu0 0
        %2871 = vmatprep.subr.bf16.mxu0 0
        %2872 = vmatpush1.bf16.msra.mxu0 0
        %2873 = vmatprep.subr.bf16.mxu0 0
        %2874 = vmatpush1.bf16.msra.mxu0 0
        %2875 = vmatprep.subr.bf16.mxu0 0
        %2876 = vmatpush1.bf16.msra.mxu0 0
        %2877 = vmatprep.subr.bf16.mxu0 0
        %2878 = vmatpush1.bf16.msra.mxu0 0
        %2879 = vmatprep.subr.bf16.mxu0 0
        %2880 = vmatpush1.bf16.msra.mxu0 0
        %2881 = vmatprep.subr.bf16.mxu0 0
        %2882 = vmatpush1.bf16.msra.mxu0 0
        %2883 = vmatprep.subr.bf16.mxu0 0
        %2884 = vmatpush1.bf16.msra.mxu0 0
        %2885 = vmatprep.mubr.bf16.mxu0 0
        %2886 = vmatmul.mubr.bf16.gmra.mrb[0].mxu0 %v2848
        %v2887 = vpop.f32.mrb[0].mxu0
        %v2888 = vadd.f32 0.0, %v2887
        %v2889 = vpop.f32.mrb[0].mxu0
        %v2890 = vpop.f32.mrb[0].mxu0
        %v2891 = vpop.f32.mrb[0].mxu0
        %2892 = vdwg.mxu0
        %v2893 = vadd.f32 %v2732, %v2888
        %2894 = vrot.lane.b32.xlu0 %v2565, 112
        %v2895 = vpop.permute.xlu0 %2894
        %2896 = vrot.lane.b32.xlu0 %v2565, 80
        %v2897 = vpop.permute.xlu0 %2896
        %v2899 = vsel %vm1600, %v2895, 0
        %v2902 = vsel %vm1600, %v2897, 0
        %2904 = vmatprep.subr.bf16.mxu0 0
        %2905 = vmatpush1.bf16.xpose.msra.mxu0 %v2902
        %2906 = vmatprep.subr.bf16.mxu0 0
        %2907 = vmatpush1.bf16.xpose.msra.mxu0 0
        %2908 = vmatprep.subr.bf16.mxu0 0
        %2909 = vmatpush1.bf16.xpose.msra.mxu0 0
        %2910 = vmatprep.subr.bf16.mxu0 0
        %2911 = vmatpush1.bf16.xpose.msra.mxu0 0
        %2912 = vmatprep.subr.bf16.mxu0 0
        %2913 = vmatpush1.bf16.xpose.msra.mxu0 0
        %2914 = vmatprep.subr.bf16.mxu0 0
        %2915 = vmatpush1.bf16.xpose.msra.mxu0 0
        %2916 = vmatprep.subr.bf16.mxu0 0
        %2917 = vmatpush1.bf16.xpose.msra.mxu0 0
        %2918 = vmatprep.subr.bf16.mxu0 0
        %2919 = vmatpush1.bf16.xpose.msra.mxu0 0
        %2920 = vmatprep.subr.bf16.mxu0 0
        %2921 = vmatpush1.bf16.xpose.msra.mxu0 0
        %2922 = vmatprep.subr.bf16.mxu0 0
        %2923 = vmatpush1.bf16.xpose.msra.mxu0 0
        %2924 = vmatprep.subr.bf16.mxu0 0
        %2925 = vmatpush1.bf16.xpose.msra.mxu0 0
        %2926 = vmatprep.subr.bf16.mxu0 0
        %2927 = vmatpush1.bf16.xpose.msra.mxu0 0
        %2928 = vmatprep.subr.bf16.mxu0 0
        %2929 = vmatpush1.bf16.xpose.msra.mxu0 0
        %2930 = vmatprep.subr.bf16.mxu0 0
        %2931 = vmatpush1.bf16.xpose.msra.mxu0 0
        %2932 = vmatprep.subr.bf16.mxu0 0
        %2933 = vmatpush1.bf16.xpose.msra.mxu0 0
        %2934 = vmatprep.subr.bf16.mxu0 0
        %2935 = vmatpush1.bf16.xpose.msra.mxu0 0
        %2936 = vmatprep.mubr.bf16.mxu0 0
        %2937 = vmatmul.mubr.bf16.gmra.mrb[0].mxu0 %v2899
        %v2938 = vpop.f32.mrb[0].mxu0
        %v2939 = vadd.f32 0.0, %v2938
        %v2940 = vpop.f32.mrb[0].mxu0
        %v2941 = vpop.f32.mrb[0].mxu0
        %v2942 = vpop.f32.mrb[0].mxu0
        %2943 = vdwg.mxu0
        %v2944 = vmul.f32 %v2939, 0.35355338
        %v2945 = vadd.f32 %v2944, %v1652
        %v2946 = vsel %vm1600, %v2945, -inf
        %2947 = vmax.xlane.f32.xlu0 %v2946
        %v2948 = vpop.xlane.xlu0 %2947
        %v2949 = vsub.f32 %v2945, %v2948
        %v2950 = vmul.f32 %v2949, 1.442695
        %v2951 = vpow.pop %v2950
        %v2952 = vsel %vm1600, %v2951, 0.0
        %2953 = vadd.xlane.f32.xlu0 %v2952
        %v2954 = vpop.xlane.xlu0 %2953
        %v2955 = vrcp.pop %v2954
        %v2956 = vmul.f32 1.0, %v2955
        %v2957 = vmul.f32 %v2951, %v2956
        %v2958 = vpack.c.bf16 %v2957, %v2957
        %2959 = vrot.lane.b32.xlu0 %v2565, 48
        %v2960 = vpop.permute.xlu0 %2959
        %v2962 = vsel %vm1600, %v2958, 0
        %v2965 = vsel %vm1673, %v2960, 0
        %2967 = vmatprep.subr.bf16.mxu0 0
        %2968 = vmatpush1.bf16.msra.mxu0 %v2965
        %2969 = vmatprep.subr.bf16.mxu0 0
        %2970 = vmatpush1.bf16.msra.mxu0 0
        %2971 = vmatprep.subr.bf16.mxu0 0
        %2972 = vmatpush1.bf16.msra.mxu0 0
        %2973 = vmatprep.subr.bf16.mxu0 0
        %2974 = vmatpush1.bf16.msra.mxu0 0
        %2975 = vmatprep.subr.bf16.mxu0 0
        %2976 = vmatpush1.bf16.msra.mxu0 0
        %2977 = vmatprep.subr.bf16.mxu0 0
        %2978 = vmatpush1.bf16.msra.mxu0 0
        %2979 = vmatprep.subr.bf16.mxu0 0
        %2980 = vmatpush1.bf16.msra.mxu0 0
        %2981 = vmatprep.subr.bf16.mxu0 0
        %2982 = vmatpush1.bf16.msra.mxu0 0
        %2983 = vmatprep.subr.bf16.mxu0 0
        %2984 = vmatpush1.bf16.msra.mxu0 0
        %2985 = vmatprep.subr.bf16.mxu0 0
        %2986 = vmatpush1.bf16.msra.mxu0 0
        %2987 = vmatprep.subr.bf16.mxu0 0
        %2988 = vmatpush1.bf16.msra.mxu0 0
        %2989 = vmatprep.subr.bf16.mxu0 0
        %2990 = vmatpush1.bf16.msra.mxu0 0
        %2991 = vmatprep.subr.bf16.mxu0 0
        %2992 = vmatpush1.bf16.msra.mxu0 0
        %2993 = vmatprep.subr.bf16.mxu0 0
        %2994 = vmatpush1.bf16.msra.mxu0 0
        %2995 = vmatprep.subr.bf16.mxu0 0
        %2996 = vmatpush1.bf16.msra.mxu0 0
        %2997 = vmatprep.subr.bf16.mxu0 0
        %2998 = vmatpush1.bf16.msra.mxu0 0
        %2999 = vmatprep.mubr.bf16.mxu0 0
        %3000 = vmatmul.mubr.bf16.gmra.mrb[0].mxu0 %v2962
        %v3001 = vpop.f32.mrb[0].mxu0
        %v3002 = vadd.f32 0.0, %v3001
        %v3003 = vpop.f32.mrb[0].mxu0
        %v3004 = vpop.f32.mrb[0].mxu0
        %v3005 = vpop.f32.mrb[0].mxu0
        %3006 = vdwg.mxu0
        %v3007 = vpack.c.bf16 %v3002, %v3002
        %v3009 = vsel %vm1600, %v3007, 0
        %v3012 = vsel %vm1673, %v2561, 0
        %3014 = vmatprep.subr.bf16.mxu0 0
        %3015 = vmatpush1.bf16.msra.mxu0 %v3012
        %3016 = vmatprep.subr.bf16.mxu0 0
        %3017 = vmatpush1.bf16.msra.mxu0 0
        %3018 = vmatprep.subr.bf16.mxu0 0
        %3019 = vmatpush1.bf16.msra.mxu0 0
        %3020 = vmatprep.subr.bf16.mxu0 0
        %3021 = vmatpush1.bf16.msra.mxu0 0
        %3022 = vmatprep.subr.bf16.mxu0 0
        %3023 = vmatpush1.bf16.msra.mxu0 0
        %3024 = vmatprep.subr.bf16.mxu0 0
        %3025 = vmatpush1.bf16.msra.mxu0 0
        %3026 = vmatprep.subr.bf16.mxu0 0
        %3027 = vmatpush1.bf16.msra.mxu0 0
        %3028 = vmatprep.subr.bf16.mxu0 0
        %3029 = vmatpush1.bf16.msra.mxu0 0
        %3030 = vmatprep.subr.bf16.mxu0 0
        %3031 = vmatpush1.bf16.msra.mxu0 0
        %3032 = vmatprep.subr.bf16.mxu0 0
        %3033 = vmatpush1.bf16.msra.mxu0 0
        %3034 = vmatprep.subr.bf16.mxu0 0
        %3035 = vmatpush1.bf16.msra.mxu0 0
        %3036 = vmatprep.subr.bf16.mxu0 0
        %3037 = vmatpush1.bf16.msra.mxu0 0
        %3038 = vmatprep.subr.bf16.mxu0 0
        %3039 = vmatpush1.bf16.msra.mxu0 0
        %3040 = vmatprep.subr.bf16.mxu0 0
        %3041 = vmatpush1.bf16.msra.mxu0 0
        %3042 = vmatprep.subr.bf16.mxu0 0
        %3043 = vmatpush1.bf16.msra.mxu0 0
        %3044 = vmatprep.subr.bf16.mxu0 0
        %3045 = vmatpush1.bf16.msra.mxu0 0
        %3046 = vmatprep.mubr.bf16.mxu0 0
        %3047 = vmatmul.mubr.bf16.gmra.mrb[0].mxu0 %v3009
        %v3048 = vpop.f32.mrb[0].mxu0
        %v3049 = vadd.f32 0.0, %v3048
        %v3050 = vpop.f32.mrb[0].mxu0
        %v3051 = vpop.f32.mrb[0].mxu0
        %v3052 = vpop.f32.mrb[0].mxu0
        %3053 = vdwg.mxu0
        %v3054 = vadd.f32 %v2893, %v3049
        %3055 = vrot.lane.b32.xlu0 %v2565, 104
        %v3056 = vpop.permute.xlu0 %3055
        %3057 = vrot.lane.b32.xlu0 %v2565, 72
        %v3058 = vpop.permute.xlu0 %3057
        %v3060 = vsel %vm1600, %v3056, 0
        %v3063 = vsel %vm1600, %v3058, 0
        %3065 = vmatprep.subr.bf16.mxu0 0
        %3066 = vmatpush1.bf16.xpose.msra.mxu0 %v3063
        %3067 = vmatprep.subr.bf16.mxu0 0
        %3068 = vmatpush1.bf16.xpose.msra.mxu0 0
        %3069 = vmatprep.subr.bf16.mxu0 0
        %3070 = vmatpush1.bf16.xpose.msra.mxu0 0
        %3071 = vmatprep.subr.bf16.mxu0 0
        %3072 = vmatpush1.bf16.xpose.msra.mxu0 0
        %3073 = vmatprep.subr.bf16.mxu0 0
        %3074 = vmatpush1.bf16.xpose.msra.mxu0 0
        %3075 = vmatprep.subr.bf16.mxu0 0
        %3076 = vmatpush1.bf16.xpose.msra.mxu0 0
        %3077 = vmatprep.subr.bf16.mxu0 0
        %3078 = vmatpush1.bf16.xpose.msra.mxu0 0
        %3079 = vmatprep.subr.bf16.mxu0 0
        %3080 = vmatpush1.bf16.xpose.msra.mxu0 0
        %3081 = vmatprep.subr.bf16.mxu0 0
        %3082 = vmatpush1.bf16.xpose.msra.mxu0 0
        %3083 = vmatprep.subr.bf16.mxu0 0
        %3084 = vmatpush1.bf16.xpose.msra.mxu0 0
        %3085 = vmatprep.subr.bf16.mxu0 0
        %3086 = vmatpush1.bf16.xpose.msra.mxu0 0
        %3087 = vmatprep.subr.bf16.mxu0 0
        %3088 = vmatpush1.bf16.xpose.msra.mxu0 0
        %3089 = vmatprep.subr.bf16.mxu0 0
        %3090 = vmatpush1.bf16.xpose.msra.mxu0 0
        %3091 = vmatprep.subr.bf16.mxu0 0
        %3092 = vmatpush1.bf16.xpose.msra.mxu0 0
        %3093 = vmatprep.subr.bf16.mxu0 0
        %3094 = vmatpush1.bf16.xpose.msra.mxu0 0
        %3095 = vmatprep.subr.bf16.mxu0 0
        %3096 = vmatpush1.bf16.xpose.msra.mxu0 0
        %3097 = vmatprep.mubr.bf16.mxu0 0
        %3098 = vmatmul.mubr.bf16.gmra.mrb[0].mxu0 %v3060
        %v3099 = vpop.f32.mrb[0].mxu0
        %v3100 = vadd.f32 0.0, %v3099
        %v3101 = vpop.f32.mrb[0].mxu0
        %v3102 = vpop.f32.mrb[0].mxu0
        %v3103 = vpop.f32.mrb[0].mxu0
        %3104 = vdwg.mxu0
        %v3105 = vmul.f32 %v3100, 0.35355338
        %v3106 = vadd.f32 %v3105, %v1652
        %v3107 = vsel %vm1600, %v3106, -inf
        %3108 = vmax.xlane.f32.xlu0 %v3107
        %v3109 = vpop.xlane.xlu0 %3108
        %v3110 = vsub.f32 %v3106, %v3109
        %v3111 = vmul.f32 %v3110, 1.442695
        %v3112 = vpow.pop %v3111
        %v3113 = vsel %vm1600, %v3112, 0.0
        %3114 = vadd.xlane.f32.xlu0 %v3113
        %v3115 = vpop.xlane.xlu0 %3114
        %v3116 = vrcp.pop %v3115
        %v3117 = vmul.f32 1.0, %v3116
        %v3118 = vmul.f32 %v3112, %v3117
        %v3119 = vpack.c.bf16 %v3118, %v3118
        %3120 = vrot.lane.b32.xlu0 %v2565, 40
        %v3121 = vpop.permute.xlu0 %3120
        %v3123 = vsel %vm1600, %v3119, 0
        %v3126 = vsel %vm1673, %v3121, 0
        %3128 = vmatprep.subr.bf16.mxu0 0
        %3129 = vmatpush1.bf16.msra.mxu0 %v3126
        %3130 = vmatprep.subr.bf16.mxu0 0
        %3131 = vmatpush1.bf16.msra.mxu0 0
        %3132 = vmatprep.subr.bf16.mxu0 0
        %3133 = vmatpush1.bf16.msra.mxu0 0
        %3134 = vmatprep.subr.bf16.mxu0 0
        %3135 = vmatpush1.bf16.msra.mxu0 0
        %3136 = vmatprep.subr.bf16.mxu0 0
        %3137 = vmatpush1.bf16.msra.mxu0 0
        %3138 = vmatprep.subr.bf16.mxu0 0
        %3139 = vmatpush1.bf16.msra.mxu0 0
        %3140 = vmatprep.subr.bf16.mxu0 0
        %3141 = vmatpush1.bf16.msra.mxu0 0
        %3142 = vmatprep.subr.bf16.mxu0 0
        %3143 = vmatpush1.bf16.msra.mxu0 0
        %3144 = vmatprep.subr.bf16.mxu0 0
        %3145 = vmatpush1.bf16.msra.mxu0 0
        %3146 = vmatprep.subr.bf16.mxu0 0
        %3147 = vmatpush1.bf16.msra.mxu0 0
        %3148 = vmatprep.subr.bf16.mxu0 0
        %3149 = vmatpush1.bf16.msra.mxu0 0
        %3150 = vmatprep.subr.bf16.mxu0 0
        %3151 = vmatpush1.bf16.msra.mxu0 0
        %3152 = vmatprep.subr.bf16.mxu0 0
        %3153 = vmatpush1.bf16.msra.mxu0 0
        %3154 = vmatprep.subr.bf16.mxu0 0
        %3155 = vmatpush1.bf16.msra.mxu0 0
        %3156 = vmatprep.subr.bf16.mxu0 0
        %3157 = vmatpush1.bf16.msra.mxu0 0
        %3158 = vmatprep.subr.bf16.mxu0 0
        %3159 = vmatpush1.bf16.msra.mxu0 0
        %3160 = vmatprep.mubr.bf16.mxu0 0
        %3161 = vmatmul.mubr.bf16.gmra.mrb[0].mxu0 %v3123
        %v3162 = vpop.f32.mrb[0].mxu0
        %v3163 = vadd.f32 0.0, %v3162
        %v3164 = vpop.f32.mrb[0].mxu0
        %v3165 = vpop.f32.mrb[0].mxu0
        %v3166 = vpop.f32.mrb[0].mxu0
        %3167 = vdwg.mxu0
        %v3168 = vpack.c.bf16 %v3163, %v3163
        %v3170 = vsel %vm1600, %v3168, 0
        %v3173 = vsel %vm1673, %v2562, 0
        %3175 = vmatprep.subr.bf16.mxu0 0
        %3176 = vmatpush1.bf16.msra.mxu0 %v3173
        %3177 = vmatprep.subr.bf16.mxu0 0
        %3178 = vmatpush1.bf16.msra.mxu0 0
        %3179 = vmatprep.subr.bf16.mxu0 0
        %3180 = vmatpush1.bf16.msra.mxu0 0
        %3181 = vmatprep.subr.bf16.mxu0 0
        %3182 = vmatpush1.bf16.msra.mxu0 0
        %3183 = vmatprep.subr.bf16.mxu0 0
        %3184 = vmatpush1.bf16.msra.mxu0 0
        %3185 = vmatprep.subr.bf16.mxu0 0
        %3186 = vmatpush1.bf16.msra.mxu0 0
        %3187 = vmatprep.subr.bf16.mxu0 0
        %3188 = vmatpush1.bf16.msra.mxu0 0
        %3189 = vmatprep.subr.bf16.mxu0 0
        %3190 = vmatpush1.bf16.msra.mxu0 0
        %3191 = vmatprep.subr.bf16.mxu0 0
        %3192 = vmatpush1.bf16.msra.mxu0 0
        %3193 = vmatprep.subr.bf16.mxu0 0
        %3194 = vmatpush1.bf16.msra.mxu0 0
        %3195 = vmatprep.subr.bf16.mxu0 0
        %3196 = vmatpush1.bf16.msra.mxu0 0
        %3197 = vmatprep.subr.bf16.mxu0 0
        %3198 = vmatpush1.bf16.msra.mxu0 0
        %3199 = vmatprep.subr.bf16.mxu0 0
        %3200 = vmatpush1.bf16.msra.mxu0 0
        %3201 = vmatprep.subr.bf16.mxu0 0
        %3202 = vmatpush1.bf16.msra.mxu0 0
        %3203 = vmatprep.subr.bf16.mxu0 0
        %3204 = vmatpush1.bf16.msra.mxu0 0
        %3205 = vmatprep.subr.bf16.mxu0 0
        %3206 = vmatpush1.bf16.msra.mxu0 0
        %3207 = vmatprep.mubr.bf16.mxu0 0
        %3208 = vmatmul.mubr.bf16.gmra.mrb[0].mxu0 %v3170
        %v3209 = vpop.f32.mrb[0].mxu0
        %v3210 = vadd.f32 0.0, %v3209
        %v3211 = vpop.f32.mrb[0].mxu0
        %v3212 = vpop.f32.mrb[0].mxu0
        %v3213 = vpop.f32.mrb[0].mxu0
        %3214 = vdwg.mxu0
        %v3215 = vadd.f32 %v3054, %v3210
        %v3216 = vadd.f32 %v2488, %v3215
        %s3217 = scalar_lea.vmem %s21, 1
        %v3218 = vld [vmem:[%s3217] sm:$0x1]
        %s3219 = scalar_lea.vmem %s23, 1
        %v3220 = vld [vmem:[%s3219] sm:$0x1]
        %v3221 = vsel %vm1540, %v3216, 0.0
        %3222 = vadd.xlane.f32.xlu0 %v3221
        %v3223 = vpop.xlane.xlu0 %3222
        %v3224 = vmul.f32 %v3223, %v2254
        %v3225 = vsub.f32 %v3216, %v3224
        %v3226 = vmul.f32 %v3225, %v3225
        %v3227 = vsel %vm1540, %v3226, 0.0
        %3228 = vadd.xlane.f32.xlu0 %v3227
        %v3229 = vpop.xlane.xlu0 %3228
        %v3230 = vmul.f32 %v3229, %v2254
        %v3231 = vadd.f32 %v3230, 1e-05
        %v3232 = vrsqrt.pop %v3231
        %v3233 = vmul.f32 %v3225, %v3232
        %v3235 = vlaneseq
        %v3236 = vshrl.u32 %v3235, 7
        %v3237 = vsub.s32 0, %v3236
        %v3238 = vrot.slane %v3218, %v3237
        %v3240 = vmul.f32 %v3233, %v3238
        %v3242 = vlaneseq
        %v3243 = vshrl.u32 %v3242, 7
        %v3244 = vsub.s32 0, %v3243
        %v3245 = vrot.slane %v3220, %v3244
        %v3247 = vadd.f32 %v3240, %v3245
        %s3248 = scalar_lea.vmem %s25, 16
        %v3249 = vld [vmem:[%s3248] sm:$0xf]
        %v3250 = vld [vmem:[%s3248 + $0x4] sm:$0xf]
        %v3251 = vld [vmem:[%s3248 + $0x8] sm:$0xf]
        %v3252 = vld [vmem:[%s3248 + $0xc] sm:$0xf]
        %v3253 = vpack.c.bf16 %v3247, %v3247
        %s3254 = scalar_lea.vmem %s27, 1
        %v3255 = vld [vmem:[%s3254] sm:$0x1]
        %v3257 = vlaneseq
        %v3258 = vshrl.u32 %v3257, 7
        %v3259 = vsub.s32 0, %v3258
        %v3260 = vrot.slane %v3255, %v3259
        %v3266 = vunpack.c.l.b16 %v3249
        %v3267 = vunpack.c.l.b16 %v3250
        %v3268 = vunpack.c.l.b16 %v3251
        %v3269 = vunpack.c.l.b16 %v3252
        %v3270 = vpack.c.b16 %v3267, %v3266
        %v3271 = vpack.c.b16 %v3269, %v3268
        %v3275 = vsel %vm1540, %v3253, 0
        %3277 = vmatprep.subr.bf16.mxu0 0
        %3278 = vmatpush1.bf16.msra.mxu0 %v3270
        %3279 = vmatprep.subr.bf16.mxu0 0
        %3280 = vmatpush1.bf16.msra.mxu0 %v3271
        %3281 = vmatprep.subr.bf16.mxu0 0
        %3282 = vmatpush1.bf16.msra.mxu0 0
        %3283 = vmatprep.subr.bf16.mxu0 0
        %3284 = vmatpush1.bf16.msra.mxu0 0
        %3285 = vmatprep.subr.bf16.mxu0 0
        %3286 = vmatpush1.bf16.msra.mxu0 0
        %3287 = vmatprep.subr.bf16.mxu0 0
        %3288 = vmatpush1.bf16.msra.mxu0 0
        %3289 = vmatprep.subr.bf16.mxu0 0
        %3290 = vmatpush1.bf16.msra.mxu0 0
        %3291 = vmatprep.subr.bf16.mxu0 0
        %3292 = vmatpush1.bf16.msra.mxu0 0
        %3293 = vmatprep.subr.bf16.mxu0 0
        %3294 = vmatpush1.bf16.msra.mxu0 0
        %3295 = vmatprep.subr.bf16.mxu0 0
        %3296 = vmatpush1.bf16.msra.mxu0 0
        %3297 = vmatprep.subr.bf16.mxu0 0
        %3298 = vmatpush1.bf16.msra.mxu0 0
        %3299 = vmatprep.subr.bf16.mxu0 0
        %3300 = vmatpush1.bf16.msra.mxu0 0
        %3301 = vmatprep.subr.bf16.mxu0 0
        %3302 = vmatpush1.bf16.msra.mxu0 0
        %3303 = vmatprep.subr.bf16.mxu0 0
        %3304 = vmatpush1.bf16.msra.mxu0 0
        %3305 = vmatprep.subr.bf16.mxu0 0
        %3306 = vmatpush1.bf16.msra.mxu0 0
        %3307 = vmatprep.subr.bf16.mxu0 0
        %3308 = vmatpush1.bf16.msra.mxu0 0
        %3309 = vmatprep.mubr.bf16.mxu0 0
        %3310 = vmatmul.mubr.bf16.gmra.mrb[0].mxu0 %v3275
        %v3311 = vpop.f32.mrb[0].mxu0
        %v3312 = vadd.f32 %v3260, %v3311
        %v3313 = vpop.f32.mrb[0].mxu0
        %v3314 = vpop.f32.mrb[0].mxu0
        %v3315 = vpop.f32.mrb[0].mxu0
        %3316 = vdwg.mxu0
        %v3317 = vmax.f32 %v3312, 0.0
        %s3318 = scalar_lea.vmem %s29, 64
        %v3319 = vld [vmem:[%s3318] sm:$0xf]
        %v3320 = vld [vmem:[%s3318 + $0x4] sm:$0xf]
        %v3321 = vld [vmem:[%s3318 + $0x8] sm:$0xf]
        %v3322 = vld [vmem:[%s3318 + $0xc] sm:$0xf]
        %v3323 = vld [vmem:[%s3318 + $0x10] sm:$0xf]
        %v3324 = vld [vmem:[%s3318 + $0x14] sm:$0xf]
        %v3325 = vld [vmem:[%s3318 + $0x18] sm:$0xf]
        %v3326 = vld [vmem:[%s3318 + $0x1c] sm:$0xf]
        %v3327 = vld [vmem:[%s3318 + $0x20] sm:$0xf]
        %v3328 = vld [vmem:[%s3318 + $0x24] sm:$0xf]
        %v3329 = vld [vmem:[%s3318 + $0x28] sm:$0xf]
        %v3330 = vld [vmem:[%s3318 + $0x2c] sm:$0xf]
        %v3331 = vld [vmem:[%s3318 + $0x30] sm:$0xf]
        %v3332 = vld [vmem:[%s3318 + $0x34] sm:$0xf]
        %v3333 = vld [vmem:[%s3318 + $0x38] sm:$0xf]
        %v3334 = vld [vmem:[%s3318 + $0x3c] sm:$0xf]
        %v3335 = vpack.c.bf16 %v3317, %v3317
        %s3336 = scalar_lea.vmem %s31, 1
        %v3337 = vld [vmem:[%s3336] sm:$0x1]
        %v3339 = vlaneseq
        %v3340 = vshrl.u32 %v3339, 7
        %v3341 = vsub.s32 0, %v3340
        %v3342 = vrot.slane %v3337, %v3341
        %v3360 = vunpack.c.l.b16 %v3319
        %v3361 = vunpack.c.l.b16 %v3320
        %v3362 = vunpack.c.l.b16 %v3321
        %v3363 = vunpack.c.l.b16 %v3322
        %v3364 = vunpack.c.l.b16 %v3323
        %v3365 = vunpack.c.l.b16 %v3324
        %v3366 = vunpack.c.l.b16 %v3325
        %v3367 = vunpack.c.l.b16 %v3326
        %v3368 = vunpack.c.l.b16 %v3327
        %v3369 = vunpack.c.l.b16 %v3328
        %v3370 = vunpack.c.l.b16 %v3329
        %v3371 = vunpack.c.l.b16 %v3330
        %v3372 = vunpack.c.l.b16 %v3331
        %v3373 = vunpack.c.l.b16 %v3332
        %v3374 = vunpack.c.l.b16 %v3333
        %v3375 = vunpack.c.l.b16 %v3334
        %v3376 = vpack.c.b16 %v3361, %v3360
        %v3377 = vpack.c.b16 %v3363, %v3362
        %v3378 = vpack.c.b16 %v3365, %v3364
        %v3379 = vpack.c.b16 %v3367, %v3366
        %v3380 = vpack.c.b16 %v3369, %v3368
        %v3381 = vpack.c.b16 %v3371, %v3370
        %v3382 = vpack.c.b16 %v3373, %v3372
        %v3383 = vpack.c.b16 %v3375, %v3374
        %3392 = vmatprep.subr.bf16.mxu0 0
        %3393 = vmatpush1.bf16.msra.mxu0 %v3376
        %3394 = vmatprep.subr.bf16.mxu0 0
        %3395 = vmatpush1.bf16.msra.mxu0 %v3377
        %3396 = vmatprep.subr.bf16.mxu0 0
        %3397 = vmatpush1.bf16.msra.mxu0 %v3378
        %3398 = vmatprep.subr.bf16.mxu0 0
        %3399 = vmatpush1.bf16.msra.mxu0 %v3379
        %3400 = vmatprep.subr.bf16.mxu0 0
        %3401 = vmatpush1.bf16.msra.mxu0 %v3380
        %3402 = vmatprep.subr.bf16.mxu0 0
        %3403 = vmatpush1.bf16.msra.mxu0 %v3381
        %3404 = vmatprep.subr.bf16.mxu0 0
        %3405 = vmatpush1.bf16.msra.mxu0 %v3382
        %3406 = vmatprep.subr.bf16.mxu0 0
        %3407 = vmatpush1.bf16.msra.mxu0 %v3383
        %3408 = vmatprep.subr.bf16.mxu0 0
        %3409 = vmatpush1.bf16.msra.mxu0 0
        %3410 = vmatprep.subr.bf16.mxu0 0
        %3411 = vmatpush1.bf16.msra.mxu0 0
        %3412 = vmatprep.subr.bf16.mxu0 0
        %3413 = vmatpush1.bf16.msra.mxu0 0
        %3414 = vmatprep.subr.bf16.mxu0 0
        %3415 = vmatpush1.bf16.msra.mxu0 0
        %3416 = vmatprep.subr.bf16.mxu0 0
        %3417 = vmatpush1.bf16.msra.mxu0 0
        %3418 = vmatprep.subr.bf16.mxu0 0
        %3419 = vmatpush1.bf16.msra.mxu0 0
        %3420 = vmatprep.subr.bf16.mxu0 0
        %3421 = vmatpush1.bf16.msra.mxu0 0
        %3422 = vmatprep.subr.bf16.mxu0 0
        %3423 = vmatpush1.bf16.msra.mxu0 0
        %3424 = vmatprep.mubr.bf16.mxu0 0
        %3425 = vmatmul.mubr.bf16.gmra.mrb[0].mxu0 %v3335
        %v3426 = vpop.f32.mrb[0].mxu0
        %v3427 = vadd.f32 %v3342, %v3426
        %v3428 = vpop.f32.mrb[0].mxu0
        %v3429 = vpop.f32.mrb[0].mxu0
        %v3430 = vpop.f32.mrb[0].mxu0
        %3431 = vdwg.mxu0
        %v3432 = vadd.f32 %v3247, %v3427
        %s3433 = scalar_lea.vmem %s33, 1
        %v3434 = vld [vmem:[%s3433] sm:$0x1]
        %s3435 = scalar_lea.vmem %s35, 1
        %v3436 = vld [vmem:[%s3435] sm:$0x1]
        %v3437 = vsel %vm1540, %v3432, 0.0
        %3438 = vadd.xlane.f32.xlu0 %v3437
        %v3439 = vpop.xlane.xlu0 %3438
        %v3440 = vmul.f32 %v3439, %v2254
        %v3441 = vsub.f32 %v3432, %v3440
        %v3442 = vmul.f32 %v3441, %v3441
        %v3443 = vsel %vm1540, %v3442, 0.0
        %3444 = vadd.xlane.f32.xlu0 %v3443
        %v3445 = vpop.xlane.xlu0 %3444
        %v3446 = vmul.f32 %v3445, %v2254
        %v3447 = vadd.f32 %v3446, 1e-05
        %v3448 = vrsqrt.pop %v3447
        %v3449 = vmul.f32 %v3441, %v3448
        %v3451 = vlaneseq
        %v3452 = vshrl.u32 %v3451, 7
        %v3453 = vsub.s32 0, %v3452
        %v3454 = vrot.slane %v3434, %v3453
        %v3456 = vmul.f32 %v3449, %v3454
        %v3458 = vlaneseq
        %v3459 = vshrl.u32 %v3458, 7
        %v3460 = vsub.s32 0, %v3459
        %v3461 = vrot.slane %v3436, %v3460
        %v3463 = vadd.f32 %v3456, %v3461
        %v3464 = vld [vmem:[%s37] sm:$0x1]
        %v3465 = vld [vmem:[%s39] sm:$0x1]
        %v3466 = vsel %vm1540, %v3463, 0.0
        %3467 = vadd.xlane.f32.xlu0 %v3466
        %v3468 = vpop.xlane.xlu0 %3467
        %v3469 = vmul.f32 %v3468, %v2254
        %v3470 = vsub.f32 %v3463, %v3469
        %v3471 = vmul.f32 %v3470, %v3470
        %v3472 = vsel %vm1540, %v3471, 0.0
        %3473 = vadd.xlane.f32.xlu0 %v3472
        %v3474 = vpop.xlane.xlu0 %3473
        %v3475 = vmul.f32 %v3474, %v2254
        %v3476 = vadd.f32 %v3475, 1e-05
        %v3477 = vrsqrt.pop %v3476
        %v3478 = vmul.f32 %v3470, %v3477
        %v3480 = vlaneseq
        %v3481 = vshrl.u32 %v3480, 7
        %v3482 = vsub.s32 0, %v3481
        %v3483 = vrot.slane %v3464, %v3482
        %v3485 = vmul.f32 %v3478, %v3483
        %v3487 = vlaneseq
        %v3488 = vshrl.u32 %v3487, 7
        %v3489 = vsub.s32 0, %v3488
        %v3490 = vrot.slane %v3465, %v3489
        %v3492 = vadd.f32 %v3485, %v3490
        %v3493 = vld [vmem:[%s41] sm:$0xf]
        %v3494 = vld [vmem:[%s41 + $0x4] sm:$0xf]
        %v3495 = vld [vmem:[%s41 + $0x8] sm:$0xf]
        %v3496 = vld [vmem:[%s41 + $0xc] sm:$0xf]
        %v3497 = vpack.c.bf16 %v1492, %v1492
        %v3498 = vld [vmem:[%s43] sm:$0x1]
        %v3500 = vlaneseq
        %v3501 = vshrl.u32 %v3500, 7
        %v3502 = vsub.s32 0, %v3501
        %v3503 = vrot.slane %v3498, %v3502
        %v3509 = vunpack.c.l.b16 %v3493
        %v3510 = vunpack.c.l.b16 %v3494
        %v3511 = vunpack.c.l.b16 %v3495
        %v3512 = vunpack.c.l.b16 %v3496
        %v3513 = vpack.c.b16 %v3510, %v3509
        %v3514 = vpack.c.b16 %v3512, %v3511
        %v3518 = vsel %vm1540, %v3497, 0
        %3520 = vmatprep.subr.bf16.mxu0 0
        %3521 = vmatpush1.bf16.msra.mxu0 %v3513
        %3522 = vmatprep.subr.bf16.mxu0 0
        %3523 = vmatpush1.bf16.msra.mxu0 %v3514
        %3524 = vmatprep.subr.bf16.mxu0 0
        %3525 = vmatpush1.bf16.msra.mxu0 0
        %3526 = vmatprep.subr.bf16.mxu0 0
        %3527 = vmatpush1.bf16.msra.mxu0 0
        %3528 = vmatprep.subr.bf16.mxu0 0
        %3529 = vmatpush1.bf16.msra.mxu0 0
        %3530 = vmatprep.subr.bf16.mxu0 0
        %3531 = vmatpush1.bf16.msra.mxu0 0
        %3532 = vmatprep.subr.bf16.mxu0 0
        %3533 = vmatpush1.bf16.msra.mxu0 0
        %3534 = vmatprep.subr.bf16.mxu0 0
        %3535 = vmatpush1.bf16.msra.mxu0 0
        %3536 = vmatprep.subr.bf16.mxu0 0
        %3537 = vmatpush1.bf16.msra.mxu0 0
        %3538 = vmatprep.subr.bf16.mxu0 0
        %3539 = vmatpush1.bf16.msra.mxu0 0
        %3540 = vmatprep.subr.bf16.mxu0 0
        %3541 = vmatpush1.bf16.msra.mxu0 0
        %3542 = vmatprep.subr.bf16.mxu0 0
        %3543 = vmatpush1.bf16.msra.mxu0 0
        %3544 = vmatprep.subr.bf16.mxu0 0
        %3545 = vmatpush1.bf16.msra.mxu0 0
        %3546 = vmatprep.subr.bf16.mxu0 0
        %3547 = vmatpush1.bf16.msra.mxu0 0
        %3548 = vmatprep.subr.bf16.mxu0 0
        %3549 = vmatpush1.bf16.msra.mxu0 0
        %3550 = vmatprep.subr.bf16.mxu0 0
        %3551 = vmatpush1.bf16.msra.mxu0 0
        %3552 = vmatprep.mubr.bf16.mxu0 0
        %3553 = vmatmul.mubr.bf16.gmra.mrb[0].mxu0 %v3518
        %v3554 = vpop.f32.mrb[0].mxu0
        %v3555 = vadd.f32 %v3503, %v3554
        %v3556 = vpop.f32.mrb[0].mxu0
        %v3557 = vpop.f32.mrb[0].mxu0
        %v3558 = vpop.f32.mrb[0].mxu0
        %3559 = vdwg.mxu0
        %v3560 = vld [vmem:[%s45] sm:$0xf]
        %v3561 = vld [vmem:[%s45 + $0x4] sm:$0xf]
        %v3562 = vld [vmem:[%s45 + $0x8] sm:$0xf]
        %v3563 = vld [vmem:[%s45 + $0xc] sm:$0xf]
        %v3564 = vld [vmem:[%s47] sm:$0x1]
        %v3565 = vpack.c.bf16 %v3555, %v3555
        %v3567 = vlaneseq
        %v3568 = vshrl.u32 %v3567, 7
        %v3569 = vsub.s32 0, %v3568
        %v3570 = vrot.slane %v3564, %v3569
        %v3572 = vadd.f32 %v3570, 0.0
        %3574 = vrot.lane.b32.xlu0 %v3565, 96
        %v3575 = vpop.permute.xlu0 %3574
        %v3577 = vsel %vm1600, %v3565, 0
        %v3580 = vsel %vm1600, %v3575, 0
        %3582 = vmatprep.subr.bf16.mxu0 0
        %3583 = vmatpush1.bf16.xpose.msra.mxu0 %v3580
        %3584 = vmatprep.subr.bf16.mxu0 0
        %3585 = vmatpush1.bf16.xpose.msra.mxu0 0
        %3586 = vmatprep.subr.bf16.mxu0 0
        %3587 = vmatpush1.bf16.xpose.msra.mxu0 0
        %3588 = vmatprep.subr.bf16.mxu0 0
        %3589 = vmatpush1.bf16.xpose.msra.mxu0 0
        %3590 = vmatprep.subr.bf16.mxu0 0
        %3591 = vmatpush1.bf16.xpose.msra.mxu0 0
        %3592 = vmatprep.subr.bf16.mxu0 0
        %3593 = vmatpush1.bf16.xpose.msra.mxu0 0
        %3594 = vmatprep.subr.bf16.mxu0 0
        %3595 = vmatpush1.bf16.xpose.msra.mxu0 0
        %3596 = vmatprep.subr.bf16.mxu0 0
        %3597 = vmatpush1.bf16.xpose.msra.mxu0 0
        %3598 = vmatprep.subr.bf16.mxu0 0
        %3599 = vmatpush1.bf16.xpose.msra.mxu0 0
        %3600 = vmatprep.subr.bf16.mxu0 0
        %3601 = vmatpush1.bf16.xpose.msra.mxu0 0
        %3602 = vmatprep.subr.bf16.mxu0 0
        %3603 = vmatpush1.bf16.xpose.msra.mxu0 0
        %3604 = vmatprep.subr.bf16.mxu0 0
        %3605 = vmatpush1.bf16.xpose.msra.mxu0 0
        %3606 = vmatprep.subr.bf16.mxu0 0
        %3607 = vmatpush1.bf16.xpose.msra.mxu0 0
        %3608 = vmatprep.subr.bf16.mxu0 0
        %3609 = vmatpush1.bf16.xpose.msra.mxu0 0
        %3610 = vmatprep.subr.bf16.mxu0 0
        %3611 = vmatpush1.bf16.xpose.msra.mxu0 0
        %3612 = vmatprep.subr.bf16.mxu0 0
        %3613 = vmatpush1.bf16.xpose.msra.mxu0 0
        %3614 = vmatprep.mubr.bf16.mxu0 0
        %3615 = vmatmul.mubr.bf16.gmra.mrb[0].mxu0 %v3577
        %v3616 = vpop.f32.mrb[0].mxu0
        %v3617 = vadd.f32 0.0, %v3616
        %v3618 = vpop.f32.mrb[0].mxu0
        %v3619 = vpop.f32.mrb[0].mxu0
        %v3620 = vpop.f32.mrb[0].mxu0
        %3621 = vdwg.mxu0
        %v3622 = vmul.f32 %v3617, 0.35355338
        %v3623 = vadd.f32 %v3622, %v1515
        %v3624 = vsel %vm1600, %v3623, -inf
        %3625 = vmax.xlane.f32.xlu0 %v3624
        %v3626 = vpop.xlane.xlu0 %3625
        %v3627 = vsub.f32 %v3623, %v3626
        %v3628 = vmul.f32 %v3627, 1.442695
        %v3629 = vpow.pop %v3628
        %v3630 = vsel %vm1600, %v3629, 0.0
        %3631 = vadd.xlane.f32.xlu0 %v3630
        %v3632 = vpop.xlane.xlu0 %3631
        %v3633 = vrcp.pop %v3632
        %v3634 = vmul.f32 1.0, %v3633
        %v3635 = vmul.f32 %v3629, %v3634
        %v3636 = vpack.c.bf16 %v3635, %v3635
        %3637 = vrot.lane.b32.xlu0 %v3565, 64
        %v3638 = vpop.permute.xlu0 %3637
        %v3640 = vsel %vm1600, %v3636, 0
        %v3643 = vsel %vm1673, %v3638, 0
        %3645 = vmatprep.subr.bf16.mxu0 0
        %3646 = vmatpush1.bf16.msra.mxu0 %v3643
        %3647 = vmatprep.subr.bf16.mxu0 0
        %3648 = vmatpush1.bf16.msra.mxu0 0
        %3649 = vmatprep.subr.bf16.mxu0 0
        %3650 = vmatpush1.bf16.msra.mxu0 0
        %3651 = vmatprep.subr.bf16.mxu0 0
        %3652 = vmatpush1.bf16.msra.mxu0 0
        %3653 = vmatprep.subr.bf16.mxu0 0
        %3654 = vmatpush1.bf16.msra.mxu0 0
        %3655 = vmatprep.subr.bf16.mxu0 0
        %3656 = vmatpush1.bf16.msra.mxu0 0
        %3657 = vmatprep.subr.bf16.mxu0 0
        %3658 = vmatpush1.bf16.msra.mxu0 0
        %3659 = vmatprep.subr.bf16.mxu0 0
        %3660 = vmatpush1.bf16.msra.mxu0 0
        %3661 = vmatprep.subr.bf16.mxu0 0
        %3662 = vmatpush1.bf16.msra.mxu0 0
        %3663 = vmatprep.subr.bf16.mxu0 0
        %3664 = vmatpush1.bf16.msra.mxu0 0
        %3665 = vmatprep.subr.bf16.mxu0 0
        %3666 = vmatpush1.bf16.msra.mxu0 0
        %3667 = vmatprep.subr.bf16.mxu0 0
        %3668 = vmatpush1.bf16.msra.mxu0 0
        %3669 = vmatprep.subr.bf16.mxu0 0
        %3670 = vmatpush1.bf16.msra.mxu0 0
        %3671 = vmatprep.subr.bf16.mxu0 0
        %3672 = vmatpush1.bf16.msra.mxu0 0
        %3673 = vmatprep.subr.bf16.mxu0 0
        %3674 = vmatpush1.bf16.msra.mxu0 0
        %3675 = vmatprep.subr.bf16.mxu0 0
        %3676 = vmatpush1.bf16.msra.mxu0 0
        %3677 = vmatprep.mubr.bf16.mxu0 0
        %3678 = vmatmul.mubr.bf16.gmra.mrb[0].mxu0 %v3640
        %v3679 = vpop.f32.mrb[0].mxu0
        %v3680 = vadd.f32 0.0, %v3679
        %v3681 = vpop.f32.mrb[0].mxu0
        %v3682 = vpop.f32.mrb[0].mxu0
        %v3683 = vpop.f32.mrb[0].mxu0
        %3684 = vdwg.mxu0
        %v3685 = vpack.c.bf16 %v3680, %v3680
        %v3687 = vsel %vm1600, %v3685, 0
        %v3690 = vsel %vm1673, %v3560, 0
        %3692 = vmatprep.subr.bf16.mxu0 0
        %3693 = vmatpush1.bf16.msra.mxu0 %v3690
        %3694 = vmatprep.subr.bf16.mxu0 0
        %3695 = vmatpush1.bf16.msra.mxu0 0
        %3696 = vmatprep.subr.bf16.mxu0 0
        %3697 = vmatpush1.bf16.msra.mxu0 0
        %3698 = vmatprep.subr.bf16.mxu0 0
        %3699 = vmatpush1.bf16.msra.mxu0 0
        %3700 = vmatprep.subr.bf16.mxu0 0
        %3701 = vmatpush1.bf16.msra.mxu0 0
        %3702 = vmatprep.subr.bf16.mxu0 0
        %3703 = vmatpush1.bf16.msra.mxu0 0
        %3704 = vmatprep.subr.bf16.mxu0 0
        %3705 = vmatpush1.bf16.msra.mxu0 0
        %3706 = vmatprep.subr.bf16.mxu0 0
        %3707 = vmatpush1.bf16.msra.mxu0 0
        %3708 = vmatprep.subr.bf16.mxu0 0
        %3709 = vmatpush1.bf16.msra.mxu0 0
        %3710 = vmatprep.subr.bf16.mxu0 0
        %3711 = vmatpush1.bf16.msra.mxu0 0
        %3712 = vmatprep.subr.bf16.mxu0 0
        %3713 = vmatpush1.bf16.msra.mxu0 0
        %3714 = vmatprep.subr.bf16.mxu0 0
        %3715 = vmatpush1.bf16.msra.mxu0 0
        %3716 = vmatprep.subr.bf16.mxu0 0
        %3717 = vmatpush1.bf16.msra.mxu0 0
        %3718 = vmatprep.subr.bf16.mxu0 0
        %3719 = vmatpush1.bf16.msra.mxu0 0
        %3720 = vmatprep.subr.bf16.mxu0 0
        %3721 = vmatpush1.bf16.msra.mxu0 0
        %3722 = vmatprep.subr.bf16.mxu0 0
        %3723 = vmatpush1.bf16.msra.mxu0 0
        %3724 = vmatprep.mubr.bf16.mxu0 0
        %3725 = vmatmul.mubr.bf16.gmra.mrb[0].mxu0 %v3687
        %v3726 = vpop.f32.mrb[0].mxu0
        %v3727 = vadd.f32 0.0, %v3726
        %v3728 = vpop.f32.mrb[0].mxu0
        %v3729 = vpop.f32.mrb[0].mxu0
        %v3730 = vpop.f32.mrb[0].mxu0
        %3731 = vdwg.mxu0
        %v3732 = vadd.f32 %v3572, %v3727
        %3733 = vrot.lane.b32.xlu0 %v3565, 120
        %v3734 = vpop.permute.xlu0 %3733
        %3735 = vrot.lane.b32.xlu0 %v3565, 88
        %v3736 = vpop.permute.xlu0 %3735
        %v3738 = vsel %vm1600, %v3734, 0
        %v3741 = vsel %vm1600, %v3736, 0
        %3743 = vmatprep.subr.bf16.mxu0 0
        %3744 = vmatpush1.bf16.xpose.msra.mxu0 %v3741
        %3745 = vmatprep.subr.bf16.mxu0 0
        %3746 = vmatpush1.bf16.xpose.msra.mxu0 0
        %3747 = vmatprep.subr.bf16.mxu0 0
        %3748 = vmatpush1.bf16.xpose.msra.mxu0 0
        %3749 = vmatprep.subr.bf16.mxu0 0
        %3750 = vmatpush1.bf16.xpose.msra.mxu0 0
        %3751 = vmatprep.subr.bf16.mxu0 0
        %3752 = vmatpush1.bf16.xpose.msra.mxu0 0
        %3753 = vmatprep.subr.bf16.mxu0 0
        %3754 = vmatpush1.bf16.xpose.msra.mxu0 0
        %3755 = vmatprep.subr.bf16.mxu0 0
        %3756 = vmatpush1.bf16.xpose.msra.mxu0 0
        %3757 = vmatprep.subr.bf16.mxu0 0
        %3758 = vmatpush1.bf16.xpose.msra.mxu0 0
        %3759 = vmatprep.subr.bf16.mxu0 0
        %3760 = vmatpush1.bf16.xpose.msra.mxu0 0
        %3761 = vmatprep.subr.bf16.mxu0 0
        %3762 = vmatpush1.bf16.xpose.msra.mxu0 0
        %3763 = vmatprep.subr.bf16.mxu0 0
        %3764 = vmatpush1.bf16.xpose.msra.mxu0 0
        %3765 = vmatprep.subr.bf16.mxu0 0
        %3766 = vmatpush1.bf16.xpose.msra.mxu0 0
        %3767 = vmatprep.subr.bf16.mxu0 0
        %3768 = vmatpush1.bf16.xpose.msra.mxu0 0
        %3769 = vmatprep.subr.bf16.mxu0 0
        %3770 = vmatpush1.bf16.xpose.msra.mxu0 0
        %3771 = vmatprep.subr.bf16.mxu0 0
        %3772 = vmatpush1.bf16.xpose.msra.mxu0 0
        %3773 = vmatprep.subr.bf16.mxu0 0
        %3774 = vmatpush1.bf16.xpose.msra.mxu0 0
        %3775 = vmatprep.mubr.bf16.mxu0 0
        %3776 = vmatmul.mubr.bf16.gmra.mrb[0].mxu0 %v3738
        %v3777 = vpop.f32.mrb[0].mxu0
        %v3778 = vadd.f32 0.0, %v3777
        %v3779 = vpop.f32.mrb[0].mxu0
        %v3780 = vpop.f32.mrb[0].mxu0
        %v3781 = vpop.f32.mrb[0].mxu0
        %3782 = vdwg.mxu0
        %v3783 = vmul.f32 %v3778, 0.35355338
        %v3784 = vadd.f32 %v3783, %v1515
        %v3785 = vsel %vm1600, %v3784, -inf
        %3786 = vmax.xlane.f32.xlu0 %v3785
        %v3787 = vpop.xlane.xlu0 %3786
        %v3788 = vsub.f32 %v3784, %v3787
        %v3789 = vmul.f32 %v3788, 1.442695
        %v3790 = vpow.pop %v3789
        %v3791 = vsel %vm1600, %v3790, 0.0
        %3792 = vadd.xlane.f32.xlu0 %v3791
        %v3793 = vpop.xlane.xlu0 %3792
        %v3794 = vrcp.pop %v3793
        %v3795 = vmul.f32 1.0, %v3794
        %v3796 = vmul.f32 %v3790, %v3795
        %v3797 = vpack.c.bf16 %v3796, %v3796
        %3798 = vrot.lane.b32.xlu0 %v3565, 56
        %v3799 = vpop.permute.xlu0 %3798
        %v3801 = vsel %vm1600, %v3797, 0
        %v3804 = vsel %vm1673, %v3799, 0
        %3806 = vmatprep.subr.bf16.mxu0 0
        %3807 = vmatpush1.bf16.msra.mxu0 %v3804
        %3808 = vmatprep.subr.bf16.mxu0 0
        %3809 = vmatpush1.bf16.msra.mxu0 0
        %3810 = vmatprep.subr.bf16.mxu0 0
        %3811 = vmatpush1.bf16.msra.mxu0 0
        %3812 = vmatprep.subr.bf16.mxu0 0
        %3813 = vmatpush1.bf16.msra.mxu0 0
        %3814 = vmatprep.subr.bf16.mxu0 0
        %3815 = vmatpush1.bf16.msra.mxu0 0
        %3816 = vmatprep.subr.bf16.mxu0 0
        %3817 = vmatpush1.bf16.msra.mxu0 0
        %3818 = vmatprep.subr.bf16.mxu0 0
        %3819 = vmatpush1.bf16.msra.mxu0 0
        %3820 = vmatprep.subr.bf16.mxu0 0
        %3821 = vmatpush1.bf16.msra.mxu0 0
        %3822 = vmatprep.subr.bf16.mxu0 0
        %3823 = vmatpush1.bf16.msra.mxu0 0
        %3824 = vmatprep.subr.bf16.mxu0 0
        %3825 = vmatpush1.bf16.msra.mxu0 0
        %3826 = vmatprep.subr.bf16.mxu0 0
        %3827 = vmatpush1.bf16.msra.mxu0 0
        %3828 = vmatprep.subr.bf16.mxu0 0
        %3829 = vmatpush1.bf16.msra.mxu0 0
        %3830 = vmatprep.subr.bf16.mxu0 0
        %3831 = vmatpush1.bf16.msra.mxu0 0
        %3832 = vmatprep.subr.bf16.mxu0 0
        %3833 = vmatpush1.bf16.msra.mxu0 0
        %3834 = vmatprep.subr.bf16.mxu0 0
        %3835 = vmatpush1.bf16.msra.mxu0 0
        %3836 = vmatprep.subr.bf16.mxu0 0
        %3837 = vmatpush1.bf16.msra.mxu0 0
        %3838 = vmatprep.mubr.bf16.mxu0 0
        %3839 = vmatmul.mubr.bf16.gmra.mrb[0].mxu0 %v3801
        %v3840 = vpop.f32.mrb[0].mxu0
        %v3841 = vadd.f32 0.0, %v3840
        %v3842 = vpop.f32.mrb[0].mxu0
        %v3843 = vpop.f32.mrb[0].mxu0
        %v3844 = vpop.f32.mrb[0].mxu0
        %3845 = vdwg.mxu0
        %v3846 = vpack.c.bf16 %v3841, %v3841
        %v3848 = vsel %vm1600, %v3846, 0
        %v3851 = vsel %vm1673, %v3561, 0
        %3853 = vmatprep.subr.bf16.mxu0 0
        %3854 = vmatpush1.bf16.msra.mxu0 %v3851
        %3855 = vmatprep.subr.bf16.mxu0 0
        %3856 = vmatpush1.bf16.msra.mxu0 0
        %3857 = vmatprep.subr.bf16.mxu0 0
        %3858 = vmatpush1.bf16.msra.mxu0 0
        %3859 = vmatprep.subr.bf16.mxu0 0
        %3860 = vmatpush1.bf16.msra.mxu0 0
        %3861 = vmatprep.subr.bf16.mxu0 0
        %3862 = vmatpush1.bf16.msra.mxu0 0
        %3863 = vmatprep.subr.bf16.mxu0 0
        %3864 = vmatpush1.bf16.msra.mxu0 0
        %3865 = vmatprep.subr.bf16.mxu0 0
        %3866 = vmatpush1.bf16.msra.mxu0 0
        %3867 = vmatprep.subr.bf16.mxu0 0
        %3868 = vmatpush1.bf16.msra.mxu0 0
        %3869 = vmatprep.subr.bf16.mxu0 0
        %3870 = vmatpush1.bf16.msra.mxu0 0
        %3871 = vmatprep.subr.bf16.mxu0 0
        %3872 = vmatpush1.bf16.msra.mxu0 0
        %3873 = vmatprep.subr.bf16.mxu0 0
        %3874 = vmatpush1.bf16.msra.mxu0 0
        %3875 = vmatprep.subr.bf16.mxu0 0
        %3876 = vmatpush1.bf16.msra.mxu0 0
        %3877 = vmatprep.subr.bf16.mxu0 0
        %3878 = vmatpush1.bf16.msra.mxu0 0
        %3879 = vmatprep.subr.bf16.mxu0 0
        %3880 = vmatpush1.bf16.msra.mxu0 0
        %3881 = vmatprep.subr.bf16.mxu0 0
        %3882 = vmatpush1.bf16.msra.mxu0 0
        %3883 = vmatprep.subr.bf16.mxu0 0
        %3884 = vmatpush1.bf16.msra.mxu0 0
        %3885 = vmatprep.mubr.bf16.mxu0 0
        %3886 = vmatmul.mubr.bf16.gmra.mrb[0].mxu0 %v3848
        %v3887 = vpop.f32.mrb[0].mxu0
        %v3888 = vadd.f32 0.0, %v3887
        %v3889 = vpop.f32.mrb[0].mxu0
        %v3890 = vpop.f32.mrb[0].mxu0
        %v3891 = vpop.f32.mrb[0].mxu0
        %3892 = vdwg.mxu0
        %v3893 = vadd.f32 %v3732, %v3888
        %3894 = vrot.lane.b32.xlu0 %v3565, 112
        %v3895 = vpop.permute.xlu0 %3894
        %3896 = vrot.lane.b32.xlu0 %v3565, 80
        %v3897 = vpop.permute.xlu0 %3896
        %v3899 = vsel %vm1600, %v3895, 0
        %v3902 = vsel %vm1600, %v3897, 0
        %3904 = vmatprep.subr.bf16.mxu0 0
        %3905 = vmatpush1.bf16.xpose.msra.mxu0 %v3902
        %3906 = vmatprep.subr.bf16.mxu0 0
        %3907 = vmatpush1.bf16.xpose.msra.mxu0 0
        %3908 = vmatprep.subr.bf16.mxu0 0
        %3909 = vmatpush1.bf16.xpose.msra.mxu0 0
        %3910 = vmatprep.subr.bf16.mxu0 0
        %3911 = vmatpush1.bf16.xpose.msra.mxu0 0
        %3912 = vmatprep.subr.bf16.mxu0 0
        %3913 = vmatpush1.bf16.xpose.msra.mxu0 0
        %3914 = vmatprep.subr.bf16.mxu0 0
        %3915 = vmatpush1.bf16.xpose.msra.mxu0 0
        %3916 = vmatprep.subr.bf16.mxu0 0
        %3917 = vmatpush1.bf16.xpose.msra.mxu0 0
        %3918 = vmatprep.subr.bf16.mxu0 0
        %3919 = vmatpush1.bf16.xpose.msra.mxu0 0
        %3920 = vmatprep.subr.bf16.mxu0 0
        %3921 = vmatpush1.bf16.xpose.msra.mxu0 0
        %3922 = vmatprep.subr.bf16.mxu0 0
        %3923 = vmatpush1.bf16.xpose.msra.mxu0 0
        %3924 = vmatprep.subr.bf16.mxu0 0
        %3925 = vmatpush1.bf16.xpose.msra.mxu0 0
        %3926 = vmatprep.subr.bf16.mxu0 0
        %3927 = vmatpush1.bf16.xpose.msra.mxu0 0
        %3928 = vmatprep.subr.bf16.mxu0 0
        %3929 = vmatpush1.bf16.xpose.msra.mxu0 0
        %3930 = vmatprep.subr.bf16.mxu0 0
        %3931 = vmatpush1.bf16.xpose.msra.mxu0 0
        %3932 = vmatprep.subr.bf16.mxu0 0
        %3933 = vmatpush1.bf16.xpose.msra.mxu0 0
        %3934 = vmatprep.subr.bf16.mxu0 0
        %3935 = vmatpush1.bf16.xpose.msra.mxu0 0
        %3936 = vmatprep.mubr.bf16.mxu0 0
        %3937 = vmatmul.mubr.bf16.gmra.mrb[0].mxu0 %v3899
        %v3938 = vpop.f32.mrb[0].mxu0
        %v3939 = vadd.f32 0.0, %v3938
        %v3940 = vpop.f32.mrb[0].mxu0
        %v3941 = vpop.f32.mrb[0].mxu0
        %v3942 = vpop.f32.mrb[0].mxu0
        %3943 = vdwg.mxu0
        %v3944 = vmul.f32 %v3939, 0.35355338
        %v3945 = vadd.f32 %v3944, %v1515
        %v3946 = vsel %vm1600, %v3945, -inf
        %3947 = vmax.xlane.f32.xlu0 %v3946
        %v3948 = vpop.xlane.xlu0 %3947
        %v3949 = vsub.f32 %v3945, %v3948
        %v3950 = vmul.f32 %v3949, 1.442695
        %v3951 = vpow.pop %v3950
        %v3952 = vsel %vm1600, %v3951, 0.0
        %3953 = vadd.xlane.f32.xlu0 %v3952
        %v3954 = vpop.xlane.xlu0 %3953
        %v3955 = vrcp.pop %v3954
        %v3956 = vmul.f32 1.0, %v3955
        %v3957 = vmul.f32 %v3951, %v3956
        %v3958 = vpack.c.bf16 %v3957, %v3957
        %3959 = vrot.lane.b32.xlu0 %v3565, 48
        %v3960 = vpop.permute.xlu0 %3959
        %v3962 = vsel %vm1600, %v3958, 0
        %v3965 = vsel %vm1673, %v3960, 0
        %3967 = vmatprep.subr.bf16.mxu0 0
        %3968 = vmatpush1.bf16.msra.mxu0 %v3965
        %3969 = vmatprep.subr.bf16.mxu0 0
        %3970 = vmatpush1.bf16.msra.mxu0 0
        %3971 = vmatprep.subr.bf16.mxu0 0
        %3972 = vmatpush1.bf16.msra.mxu0 0
        %3973 = vmatprep.subr.bf16.mxu0 0
        %3974 = vmatpush1.bf16.msra.mxu0 0
        %3975 = vmatprep.subr.bf16.mxu0 0
        %3976 = vmatpush1.bf16.msra.mxu0 0
        %3977 = vmatprep.subr.bf16.mxu0 0
        %3978 = vmatpush1.bf16.msra.mxu0 0
        %3979 = vmatprep.subr.bf16.mxu0 0
        %3980 = vmatpush1.bf16.msra.mxu0 0
        %3981 = vmatprep.subr.bf16.mxu0 0
        %3982 = vmatpush1.bf16.msra.mxu0 0
        %3983 = vmatprep.subr.bf16.mxu0 0
        %3984 = vmatpush1.bf16.msra.mxu0 0
        %3985 = vmatprep.subr.bf16.mxu0 0
        %3986 = vmatpush1.bf16.msra.mxu0 0
        %3987 = vmatprep.subr.bf16.mxu0 0
        %3988 = vmatpush1.bf16.msra.mxu0 0
        %3989 = vmatprep.subr.bf16.mxu0 0
        %3990 = vmatpush1.bf16.msra.mxu0 0
        %3991 = vmatprep.subr.bf16.mxu0 0
        %3992 = vmatpush1.bf16.msra.mxu0 0
        %3993 = vmatprep.subr.bf16.mxu0 0
        %3994 = vmatpush1.bf16.msra.mxu0 0
        %3995 = vmatprep.subr.bf16.mxu0 0
        %3996 = vmatpush1.bf16.msra.mxu0 0
        %3997 = vmatprep.subr.bf16.mxu0 0
        %3998 = vmatpush1.bf16.msra.mxu0 0
        %3999 = vmatprep.mubr.bf16.mxu0 0
        %4000 = vmatmul.mubr.bf16.gmra.mrb[0].mxu0 %v3962
        %v4001 = vpop.f32.mrb[0].mxu0
        %v4002 = vadd.f32 0.0, %v4001
        %v4003 = vpop.f32.mrb[0].mxu0
        %v4004 = vpop.f32.mrb[0].mxu0
        %v4005 = vpop.f32.mrb[0].mxu0
        %4006 = vdwg.mxu0
        %v4007 = vpack.c.bf16 %v4002, %v4002
        %v4009 = vsel %vm1600, %v4007, 0
        %v4012 = vsel %vm1673, %v3562, 0
        %4014 = vmatprep.subr.bf16.mxu0 0
        %4015 = vmatpush1.bf16.msra.mxu0 %v4012
        %4016 = vmatprep.subr.bf16.mxu0 0
        %4017 = vmatpush1.bf16.msra.mxu0 0
        %4018 = vmatprep.subr.bf16.mxu0 0
        %4019 = vmatpush1.bf16.msra.mxu0 0
        %4020 = vmatprep.subr.bf16.mxu0 0
        %4021 = vmatpush1.bf16.msra.mxu0 0
        %4022 = vmatprep.subr.bf16.mxu0 0
        %4023 = vmatpush1.bf16.msra.mxu0 0
        %4024 = vmatprep.subr.bf16.mxu0 0
        %4025 = vmatpush1.bf16.msra.mxu0 0
        %4026 = vmatprep.subr.bf16.mxu0 0
        %4027 = vmatpush1.bf16.msra.mxu0 0
        %4028 = vmatprep.subr.bf16.mxu0 0
        %4029 = vmatpush1.bf16.msra.mxu0 0
        %4030 = vmatprep.subr.bf16.mxu0 0
        %4031 = vmatpush1.bf16.msra.mxu0 0
        %4032 = vmatprep.subr.bf16.mxu0 0
        %4033 = vmatpush1.bf16.msra.mxu0 0
        %4034 = vmatprep.subr.bf16.mxu0 0
        %4035 = vmatpush1.bf16.msra.mxu0 0
        %4036 = vmatprep.subr.bf16.mxu0 0
        %4037 = vmatpush1.bf16.msra.mxu0 0
        %4038 = vmatprep.subr.bf16.mxu0 0
        %4039 = vmatpush1.bf16.msra.mxu0 0
        %4040 = vmatprep.subr.bf16.mxu0 0
        %4041 = vmatpush1.bf16.msra.mxu0 0
        %4042 = vmatprep.subr.bf16.mxu0 0
        %4043 = vmatpush1.bf16.msra.mxu0 0
        %4044 = vmatprep.subr.bf16.mxu0 0
        %4045 = vmatpush1.bf16.msra.mxu0 0
        %4046 = vmatprep.mubr.bf16.mxu0 0
        %4047 = vmatmul.mubr.bf16.gmra.mrb[0].mxu0 %v4009
        %v4048 = vpop.f32.mrb[0].mxu0
        %v4049 = vadd.f32 0.0, %v4048
        %v4050 = vpop.f32.mrb[0].mxu0
        %v4051 = vpop.f32.mrb[0].mxu0
        %v4052 = vpop.f32.mrb[0].mxu0
        %4053 = vdwg.mxu0
        %v4054 = vadd.f32 %v3893, %v4049
        %4055 = vrot.lane.b32.xlu0 %v3565, 104
        %v4056 = vpop.permute.xlu0 %4055
        %4057 = vrot.lane.b32.xlu0 %v3565, 72
        %v4058 = vpop.permute.xlu0 %4057
        %v4060 = vsel %vm1600, %v4056, 0
        %v4063 = vsel %vm1600, %v4058, 0
        %4065 = vmatprep.subr.bf16.mxu0 0
        %4066 = vmatpush1.bf16.xpose.msra.mxu0 %v4063
        %4067 = vmatprep.subr.bf16.mxu0 0
        %4068 = vmatpush1.bf16.xpose.msra.mxu0 0
        %4069 = vmatprep.subr.bf16.mxu0 0
        %4070 = vmatpush1.bf16.xpose.msra.mxu0 0
        %4071 = vmatprep.subr.bf16.mxu0 0
        %4072 = vmatpush1.bf16.xpose.msra.mxu0 0
        %4073 = vmatprep.subr.bf16.mxu0 0
        %4074 = vmatpush1.bf16.xpose.msra.mxu0 0
        %4075 = vmatprep.subr.bf16.mxu0 0
        %4076 = vmatpush1.bf16.xpose.msra.mxu0 0
        %4077 = vmatprep.subr.bf16.mxu0 0
        %4078 = vmatpush1.bf16.xpose.msra.mxu0 0
        %4079 = vmatprep.subr.bf16.mxu0 0
        %4080 = vmatpush1.bf16.xpose.msra.mxu0 0
        %4081 = vmatprep.subr.bf16.mxu0 0
        %4082 = vmatpush1.bf16.xpose.msra.mxu0 0
        %4083 = vmatprep.subr.bf16.mxu0 0
        %4084 = vmatpush1.bf16.xpose.msra.mxu0 0
        %4085 = vmatprep.subr.bf16.mxu0 0
        %4086 = vmatpush1.bf16.xpose.msra.mxu0 0
        %4087 = vmatprep.subr.bf16.mxu0 0
        %4088 = vmatpush1.bf16.xpose.msra.mxu0 0
        %4089 = vmatprep.subr.bf16.mxu0 0
        %4090 = vmatpush1.bf16.xpose.msra.mxu0 0
        %4091 = vmatprep.subr.bf16.mxu0 0
        %4092 = vmatpush1.bf16.xpose.msra.mxu0 0
        %4093 = vmatprep.subr.bf16.mxu0 0
        %4094 = vmatpush1.bf16.xpose.msra.mxu0 0
        %4095 = vmatprep.subr.bf16.mxu0 0
        %4096 = vmatpush1.bf16.xpose.msra.mxu0 0
        %4097 = vmatprep.mubr.bf16.mxu0 0
        %4098 = vmatmul.mubr.bf16.gmra.mrb[0].mxu0 %v4060
        %v4099 = vpop.f32.mrb[0].mxu0
        %v4100 = vadd.f32 0.0, %v4099
        %v4101 = vpop.f32.mrb[0].mxu0
        %v4102 = vpop.f32.mrb[0].mxu0
        %v4103 = vpop.f32.mrb[0].mxu0
        %4104 = vdwg.mxu0
        %v4105 = vmul.f32 %v4100, 0.35355338
        %v4106 = vadd.f32 %v4105, %v1515
        %v4107 = vsel %vm1600, %v4106, -inf
        %4108 = vmax.xlane.f32.xlu0 %v4107
        %v4109 = vpop.xlane.xlu0 %4108
        %v4110 = vsub.f32 %v4106, %v4109
        %v4111 = vmul.f32 %v4110, 1.442695
        %v4112 = vpow.pop %v4111
        %v4113 = vsel %vm1600, %v4112, 0.0
        %4114 = vadd.xlane.f32.xlu0 %v4113
        %v4115 = vpop.xlane.xlu0 %4114
        %v4116 = vrcp.pop %v4115
        %v4117 = vmul.f32 1.0, %v4116
        %v4118 = vmul.f32 %v4112, %v4117
        %v4119 = vpack.c.bf16 %v4118, %v4118
        %4120 = vrot.lane.b32.xlu0 %v3565, 40
        %v4121 = vpop.permute.xlu0 %4120
        %v4123 = vsel %vm1600, %v4119, 0
        %v4126 = vsel %vm1673, %v4121, 0
        %4128 = vmatprep.subr.bf16.mxu0 0
        %4129 = vmatpush1.bf16.msra.mxu0 %v4126
        %4130 = vmatprep.subr.bf16.mxu0 0
        %4131 = vmatpush1.bf16.msra.mxu0 0
        %4132 = vmatprep.subr.bf16.mxu0 0
        %4133 = vmatpush1.bf16.msra.mxu0 0
        %4134 = vmatprep.subr.bf16.mxu0 0
        %4135 = vmatpush1.bf16.msra.mxu0 0
        %4136 = vmatprep.subr.bf16.mxu0 0
        %4137 = vmatpush1.bf16.msra.mxu0 0
        %4138 = vmatprep.subr.bf16.mxu0 0
        %4139 = vmatpush1.bf16.msra.mxu0 0
        %4140 = vmatprep.subr.bf16.mxu0 0
        %4141 = vmatpush1.bf16.msra.mxu0 0
        %4142 = vmatprep.subr.bf16.mxu0 0
        %4143 = vmatpush1.bf16.msra.mxu0 0
        %4144 = vmatprep.subr.bf16.mxu0 0
        %4145 = vmatpush1.bf16.msra.mxu0 0
        %4146 = vmatprep.subr.bf16.mxu0 0
        %4147 = vmatpush1.bf16.msra.mxu0 0
        %4148 = vmatprep.subr.bf16.mxu0 0
        %4149 = vmatpush1.bf16.msra.mxu0 0
        %4150 = vmatprep.subr.bf16.mxu0 0
        %4151 = vmatpush1.bf16.msra.mxu0 0
        %4152 = vmatprep.subr.bf16.mxu0 0
        %4153 = vmatpush1.bf16.msra.mxu0 0
        %4154 = vmatprep.subr.bf16.mxu0 0
        %4155 = vmatpush1.bf16.msra.mxu0 0
        %4156 = vmatprep.subr.bf16.mxu0 0
        %4157 = vmatpush1.bf16.msra.mxu0 0
        %4158 = vmatprep.subr.bf16.mxu0 0
        %4159 = vmatpush1.bf16.msra.mxu0 0
        %4160 = vmatprep.mubr.bf16.mxu0 0
        %4161 = vmatmul.mubr.bf16.gmra.mrb[0].mxu0 %v4123
        %v4162 = vpop.f32.mrb[0].mxu0
        %v4163 = vadd.f32 0.0, %v4162
        %v4164 = vpop.f32.mrb[0].mxu0
        %v4165 = vpop.f32.mrb[0].mxu0
        %v4166 = vpop.f32.mrb[0].mxu0
        %4167 = vdwg.mxu0
        %v4168 = vpack.c.bf16 %v4163, %v4163
        %v4170 = vsel %vm1600, %v4168, 0
        %v4173 = vsel %vm1673, %v3563, 0
        %4175 = vmatprep.subr.bf16.mxu0 0
        %4176 = vmatpush1.bf16.msra.mxu0 %v4173
        %4177 = vmatprep.subr.bf16.mxu0 0
        %4178 = vmatpush1.bf16.msra.mxu0 0
        %4179 = vmatprep.subr.bf16.mxu0 0
        %4180 = vmatpush1.bf16.msra.mxu0 0
        %4181 = vmatprep.subr.bf16.mxu0 0
        %4182 = vmatpush1.bf16.msra.mxu0 0
        %4183 = vmatprep.subr.bf16.mxu0 0
        %4184 = vmatpush1.bf16.msra.mxu0 0
        %4185 = vmatprep.subr.bf16.mxu0 0
        %4186 = vmatpush1.bf16.msra.mxu0 0
        %4187 = vmatprep.subr.bf16.mxu0 0
        %4188 = vmatpush1.bf16.msra.mxu0 0
        %4189 = vmatprep.subr.bf16.mxu0 0
        %4190 = vmatpush1.bf16.msra.mxu0 0
        %4191 = vmatprep.subr.bf16.mxu0 0
        %4192 = vmatpush1.bf16.msra.mxu0 0
        %4193 = vmatprep.subr.bf16.mxu0 0
        %4194 = vmatpush1.bf16.msra.mxu0 0
        %4195 = vmatprep.subr.bf16.mxu0 0
        %4196 = vmatpush1.bf16.msra.mxu0 0
        %4197 = vmatprep.subr.bf16.mxu0 0
        %4198 = vmatpush1.bf16.msra.mxu0 0
        %4199 = vmatprep.subr.bf16.mxu0 0
        %4200 = vmatpush1.bf16.msra.mxu0 0
        %4201 = vmatprep.subr.bf16.mxu0 0
        %4202 = vmatpush1.bf16.msra.mxu0 0
        %4203 = vmatprep.subr.bf16.mxu0 0
        %4204 = vmatpush1.bf16.msra.mxu0 0
        %4205 = vmatprep.subr.bf16.mxu0 0
        %4206 = vmatpush1.bf16.msra.mxu0 0
        %4207 = vmatprep.mubr.bf16.mxu0 0
        %4208 = vmatmul.mubr.bf16.gmra.mrb[0].mxu0 %v4170
        %v4209 = vpop.f32.mrb[0].mxu0
        %v4210 = vadd.f32 0.0, %v4209
        %v4211 = vpop.f32.mrb[0].mxu0
        %v4212 = vpop.f32.mrb[0].mxu0
        %v4213 = vpop.f32.mrb[0].mxu0
        %4214 = vdwg.mxu0
        %v4215 = vadd.f32 %v4054, %v4210
        %v4216 = vadd.f32 %v1492, %v4215
        %v4217 = vld [vmem:[%s49] sm:$0x1]
        %v4218 = vld [vmem:[%s51] sm:$0x1]
        %v4219 = vsel %vm1540, %v4216, 0.0
        %4220 = vadd.xlane.f32.xlu0 %v4219
        %v4221 = vpop.xlane.xlu0 %4220
        %v4222 = vmul.f32 %v4221, %v2254
        %v4223 = vsub.f32 %v4216, %v4222
        %v4224 = vmul.f32 %v4223, %v4223
        %v4225 = vsel %vm1540, %v4224, 0.0
        %4226 = vadd.xlane.f32.xlu0 %v4225
        %v4227 = vpop.xlane.xlu0 %4226
        %v4228 = vmul.f32 %v4227, %v2254
        %v4229 = vadd.f32 %v4228, 1e-05
        %v4230 = vrsqrt.pop %v4229
        %v4231 = vmul.f32 %v4223, %v4230
        %v4233 = vlaneseq
        %v4234 = vshrl.u32 %v4233, 7
        %v4235 = vsub.s32 0, %v4234
        %v4236 = vrot.slane %v4217, %v4235
        %v4238 = vmul.f32 %v4231, %v4236
        %v4240 = vlaneseq
        %v4241 = vshrl.u32 %v4240, 7
        %v4242 = vsub.s32 0, %v4241
        %v4243 = vrot.slane %v4218, %v4242
        %v4245 = vadd.f32 %v4238, %v4243
        %v4246 = vld [vmem:[%s53] sm:$0xf]
        %v4247 = vld [vmem:[%s53 + $0x4] sm:$0xf]
        %v4248 = vld [vmem:[%s53 + $0x8] sm:$0xf]
        %v4249 = vld [vmem:[%s53 + $0xc] sm:$0xf]
        %v4250 = vpack.c.bf16 %v4245, %v4245
        %v4251 = vld [vmem:[%s55] sm:$0x1]
        %v4253 = vlaneseq
        %v4254 = vshrl.u32 %v4253, 7
        %v4255 = vsub.s32 0, %v4254
        %v4256 = vrot.slane %v4251, %v4255
        %v4262 = vunpack.c.l.b16 %v4246
        %v4263 = vunpack.c.l.b16 %v4247
        %v4264 = vunpack.c.l.b16 %v4248
        %v4265 = vunpack.c.l.b16 %v4249
        %v4266 = vpack.c.b16 %v4263, %v4262
        %v4267 = vpack.c.b16 %v4265, %v4264
        %v4271 = vsel %vm1540, %v4250, 0
        %4273 = vmatprep.subr.bf16.mxu0 0
        %4274 = vmatpush1.bf16.msra.mxu0 %v4266
        %4275 = vmatprep.subr.bf16.mxu0 0
        %4276 = vmatpush1.bf16.msra.mxu0 %v4267
        %4277 = vmatprep.subr.bf16.mxu0 0
        %4278 = vmatpush1.bf16.msra.mxu0 0
        %4279 = vmatprep.subr.bf16.mxu0 0
        %4280 = vmatpush1.bf16.msra.mxu0 0
        %4281 = vmatprep.subr.bf16.mxu0 0
        %4282 = vmatpush1.bf16.msra.mxu0 0
        %4283 = vmatprep.subr.bf16.mxu0 0
        %4284 = vmatpush1.bf16.msra.mxu0 0
        %4285 = vmatprep.subr.bf16.mxu0 0
        %4286 = vmatpush1.bf16.msra.mxu0 0
        %4287 = vmatprep.subr.bf16.mxu0 0
        %4288 = vmatpush1.bf16.msra.mxu0 0
        %4289 = vmatprep.subr.bf16.mxu0 0
        %4290 = vmatpush1.bf16.msra.mxu0 0
        %4291 = vmatprep.subr.bf16.mxu0 0
        %4292 = vmatpush1.bf16.msra.mxu0 0
        %4293 = vmatprep.subr.bf16.mxu0 0
        %4294 = vmatpush1.bf16.msra.mxu0 0
        %4295 = vmatprep.subr.bf16.mxu0 0
        %4296 = vmatpush1.bf16.msra.mxu0 0
        %4297 = vmatprep.subr.bf16.mxu0 0
        %4298 = vmatpush1.bf16.msra.mxu0 0
        %4299 = vmatprep.subr.bf16.mxu0 0
        %4300 = vmatpush1.bf16.msra.mxu0 0
        %4301 = vmatprep.subr.bf16.mxu0 0
        %4302 = vmatpush1.bf16.msra.mxu0 0
        %4303 = vmatprep.subr.bf16.mxu0 0
        %4304 = vmatpush1.bf16.msra.mxu0 0
        %4305 = vmatprep.mubr.bf16.mxu0 0
        %4306 = vmatmul.mubr.bf16.gmra.mrb[0].mxu0 %v4271
        %v4307 = vpop.f32.mrb[0].mxu0
        %v4308 = vadd.f32 %v4256, %v4307
        %v4309 = vpop.f32.mrb[0].mxu0
        %v4310 = vpop.f32.mrb[0].mxu0
        %v4311 = vpop.f32.mrb[0].mxu0
        %4312 = vdwg.mxu0
        %v4313 = vld [vmem:[%s57] sm:$0xf]
        %v4314 = vld [vmem:[%s57 + $0x4] sm:$0xf]
        %v4315 = vld [vmem:[%s57 + $0x8] sm:$0xf]
        %v4316 = vld [vmem:[%s57 + $0xc] sm:$0xf]
        %v4317 = vpack.c.bf16 %v3492, %v3492
        %v4318 = vld [vmem:[%s59] sm:$0x1]
        %v4320 = vlaneseq
        %v4321 = vshrl.u32 %v4320, 7
        %v4322 = vsub.s32 0, %v4321
        %v4323 = vrot.slane %v4318, %v4322
        %v4329 = vunpack.c.l.b16 %v4313
        %v4330 = vunpack.c.l.b16 %v4314
        %v4331 = vunpack.c.l.b16 %v4315
        %v4332 = vunpack.c.l.b16 %v4316
        %v4333 = vpack.c.b16 %v4330, %v4329
        %v4334 = vpack.c.b16 %v4332, %v4331
        %v4338 = vsel %vm1540, %v4317, 0
        %4340 = vmatprep.subr.bf16.mxu0 0
        %4341 = vmatpush1.bf16.msra.mxu0 %v4333
        %4342 = vmatprep.subr.bf16.mxu0 0
        %4343 = vmatpush1.bf16.msra.mxu0 %v4334
        %4344 = vmatprep.subr.bf16.mxu0 0
        %4345 = vmatpush1.bf16.msra.mxu0 0
        %4346 = vmatprep.subr.bf16.mxu0 0
        %4347 = vmatpush1.bf16.msra.mxu0 0
        %4348 = vmatprep.subr.bf16.mxu0 0
        %4349 = vmatpush1.bf16.msra.mxu0 0
        %4350 = vmatprep.subr.bf16.mxu0 0
        %4351 = vmatpush1.bf16.msra.mxu0 0
        %4352 = vmatprep.subr.bf16.mxu0 0
        %4353 = vmatpush1.bf16.msra.mxu0 0
        %4354 = vmatprep.subr.bf16.mxu0 0
        %4355 = vmatpush1.bf16.msra.mxu0 0
        %4356 = vmatprep.subr.bf16.mxu0 0
        %4357 = vmatpush1.bf16.msra.mxu0 0
        %4358 = vmatprep.subr.bf16.mxu0 0
        %4359 = vmatpush1.bf16.msra.mxu0 0
        %4360 = vmatprep.subr.bf16.mxu0 0
        %4361 = vmatpush1.bf16.msra.mxu0 0
        %4362 = vmatprep.subr.bf16.mxu0 0
        %4363 = vmatpush1.bf16.msra.mxu0 0
        %4364 = vmatprep.subr.bf16.mxu0 0
        %4365 = vmatpush1.bf16.msra.mxu0 0
        %4366 = vmatprep.subr.bf16.mxu0 0
        %4367 = vmatpush1.bf16.msra.mxu0 0
        %4368 = vmatprep.subr.bf16.mxu0 0
        %4369 = vmatpush1.bf16.msra.mxu0 0
        %4370 = vmatprep.subr.bf16.mxu0 0
        %4371 = vmatpush1.bf16.msra.mxu0 0
        %4372 = vmatprep.mubr.bf16.mxu0 0
        %4373 = vmatmul.mubr.bf16.gmra.mrb[0].mxu0 %v4338
        %v4374 = vpop.f32.mrb[0].mxu0
        %v4375 = vadd.f32 %v4323, %v4374
        %v4376 = vpop.f32.mrb[0].mxu0
        %v4377 = vpop.f32.mrb[0].mxu0
        %v4378 = vpop.f32.mrb[0].mxu0
        %4379 = vdwg.mxu0
        %v4380 = vld [vmem:[%s61] sm:$0xf]
        %v4381 = vld [vmem:[%s61 + $0x4] sm:$0xf]
        %v4382 = vld [vmem:[%s61 + $0x8] sm:$0xf]
        %v4383 = vld [vmem:[%s61 + $0xc] sm:$0xf]
        %v4384 = vld [vmem:[%s63] sm:$0x1]
        %v4385 = vpack.c.bf16 %v4308, %v4308
        %v4386 = vpack.c.bf16 %v4375, %v4375
        %v4388 = vlaneseq
        %v4389 = vshrl.u32 %v4388, 7
        %v4390 = vsub.s32 0, %v4389
        %v4391 = vrot.slane %v4384, %v4390
        %v4393 = vadd.f32 %v4391, 0.0
        %v4395 = vsel %vm1600, %v4385, 0
        %v4398 = vsel %vm1600, %v4386, 0
        %4400 = vmatprep.subr.bf16.mxu0 0
        %4401 = vmatpush1.bf16.xpose.msra.mxu0 %v4398
        %4402 = vmatprep.subr.bf16.mxu0 0
        %4403 = vmatpush1.bf16.xpose.msra.mxu0 0
        %4404 = vmatprep.subr.bf16.mxu0 0
        %4405 = vmatpush1.bf16.xpose.msra.mxu0 0
        %4406 = vmatprep.subr.bf16.mxu0 0
        %4407 = vmatpush1.bf16.xpose.msra.mxu0 0
        %4408 = vmatprep.subr.bf16.mxu0 0
        %4409 = vmatpush1.bf16.xpose.msra.mxu0 0
        %4410 = vmatprep.subr.bf16.mxu0 0
        %4411 = vmatpush1.bf16.xpose.msra.mxu0 0
        %4412 = vmatprep.subr.bf16.mxu0 0
        %4413 = vmatpush1.bf16.xpose.msra.mxu0 0
        %4414 = vmatprep.subr.bf16.mxu0 0
        %4415 = vmatpush1.bf16.xpose.msra.mxu0 0
        %4416 = vmatprep.subr.bf16.mxu0 0
        %4417 = vmatpush1.bf16.xpose.msra.mxu0 0
        %4418 = vmatprep.subr.bf16.mxu0 0
        %4419 = vmatpush1.bf16.xpose.msra.mxu0 0
        %4420 = vmatprep.subr.bf16.mxu0 0
        %4421 = vmatpush1.bf16.xpose.msra.mxu0 0
        %4422 = vmatprep.subr.bf16.mxu0 0
        %4423 = vmatpush1.bf16.xpose.msra.mxu0 0
        %4424 = vmatprep.subr.bf16.mxu0 0
        %4425 = vmatpush1.bf16.xpose.msra.mxu0 0
        %4426 = vmatprep.subr.bf16.mxu0 0
        %4427 = vmatpush1.bf16.xpose.msra.mxu0 0
        %4428 = vmatprep.subr.bf16.mxu0 0
        %4429 = vmatpush1.bf16.xpose.msra.mxu0 0
        %4430 = vmatprep.subr.bf16.mxu0 0
        %4431 = vmatpush1.bf16.xpose.msra.mxu0 0
        %4432 = vmatprep.mubr.bf16.mxu0 0
        %4433 = vmatmul.mubr.bf16.gmra.mrb[0].mxu0 %v4395
        %v4434 = vpop.f32.mrb[0].mxu0
        %v4435 = vadd.f32 0.0, %v4434
        %v4436 = vpop.f32.mrb[0].mxu0
        %v4437 = vpop.f32.mrb[0].mxu0
        %v4438 = vpop.f32.mrb[0].mxu0
        %4439 = vdwg.mxu0
        %v4440 = vmul.f32 %v4435, 0.35355338
        %v4441 = vsel %vm1600, %v4440, -inf
        %4442 = vmax.xlane.f32.xlu0 %v4441
        %v4443 = vpop.xlane.xlu0 %4442
        %v4444 = vsub.f32 %v4440, %v4443
        %v4445 = vmul.f32 %v4444, 1.442695
        %v4446 = vpow.pop %v4445
        %v4447 = vsel %vm1600, %v4446, 0.0
        %4448 = vadd.xlane.f32.xlu0 %v4447
        %v4449 = vpop.xlane.xlu0 %4448
        %v4450 = vrcp.pop %v4449
        %v4451 = vmul.f32 1.0, %v4450
        %v4452 = vmul.f32 %v4446, %v4451
        %v4453 = vpack.c.bf16 %v4452, %v4452
        %4455 = vrot.lane.b32.xlu0 %v4386, 96
        %v4456 = vpop.permute.xlu0 %4455
        %v4458 = vsel %vm1600, %v4453, 0
        %v4461 = vsel %vm1673, %v4456, 0
        %4463 = vmatprep.subr.bf16.mxu0 0
        %4464 = vmatpush1.bf16.msra.mxu0 %v4461
        %4465 = vmatprep.subr.bf16.mxu0 0
        %4466 = vmatpush1.bf16.msra.mxu0 0
        %4467 = vmatprep.subr.bf16.mxu0 0
        %4468 = vmatpush1.bf16.msra.mxu0 0
        %4469 = vmatprep.subr.bf16.mxu0 0
        %4470 = vmatpush1.bf16.msra.mxu0 0
        %4471 = vmatprep.subr.bf16.mxu0 0
        %4472 = vmatpush1.bf16.msra.mxu0 0
        %4473 = vmatprep.subr.bf16.mxu0 0
        %4474 = vmatpush1.bf16.msra.mxu0 0
        %4475 = vmatprep.subr.bf16.mxu0 0
        %4476 = vmatpush1.bf16.msra.mxu0 0
        %4477 = vmatprep.subr.bf16.mxu0 0
        %4478 = vmatpush1.bf16.msra.mxu0 0
        %4479 = vmatprep.subr.bf16.mxu0 0
        %4480 = vmatpush1.bf16.msra.mxu0 0
        %4481 = vmatprep.subr.bf16.mxu0 0
        %4482 = vmatpush1.bf16.msra.mxu0 0
        %4483 = vmatprep.subr.bf16.mxu0 0
        %4484 = vmatpush1.bf16.msra.mxu0 0
        %4485 = vmatprep.subr.bf16.mxu0 0
        %4486 = vmatpush1.bf16.msra.mxu0 0
        %4487 = vmatprep.subr.bf16.mxu0 0
        %4488 = vmatpush1.bf16.msra.mxu0 0
        %4489 = vmatprep.subr.bf16.mxu0 0
        %4490 = vmatpush1.bf16.msra.mxu0 0
        %4491 = vmatprep.subr.bf16.mxu0 0
        %4492 = vmatpush1.bf16.msra.mxu0 0
        %4493 = vmatprep.subr.bf16.mxu0 0
        %4494 = vmatpush1.bf16.msra.mxu0 0
        %4495 = vmatprep.mubr.bf16.mxu0 0
        %4496 = vmatmul.mubr.bf16.gmra.mrb[0].mxu0 %v4458
        %v4497 = vpop.f32.mrb[0].mxu0
        %v4498 = vadd.f32 0.0, %v4497
        %v4499 = vpop.f32.mrb[0].mxu0
        %v4500 = vpop.f32.mrb[0].mxu0
        %v4501 = vpop.f32.mrb[0].mxu0
        %4502 = vdwg.mxu0
        %v4503 = vpack.c.bf16 %v4498, %v4498
        %v4505 = vsel %vm1600, %v4503, 0
        %v4508 = vsel %vm1673, %v4380, 0
        %4510 = vmatprep.subr.bf16.mxu0 0
        %4511 = vmatpush1.bf16.msra.mxu0 %v4508
        %4512 = vmatprep.subr.bf16.mxu0 0
        %4513 = vmatpush1.bf16.msra.mxu0 0
        %4514 = vmatprep.subr.bf16.mxu0 0
        %4515 = vmatpush1.bf16.msra.mxu0 0
        %4516 = vmatprep.subr.bf16.mxu0 0
        %4517 = vmatpush1.bf16.msra.mxu0 0
        %4518 = vmatprep.subr.bf16.mxu0 0
        %4519 = vmatpush1.bf16.msra.mxu0 0
        %4520 = vmatprep.subr.bf16.mxu0 0
        %4521 = vmatpush1.bf16.msra.mxu0 0
        %4522 = vmatprep.subr.bf16.mxu0 0
        %4523 = vmatpush1.bf16.msra.mxu0 0
        %4524 = vmatprep.subr.bf16.mxu0 0
        %4525 = vmatpush1.bf16.msra.mxu0 0
        %4526 = vmatprep.subr.bf16.mxu0 0
        %4527 = vmatpush1.bf16.msra.mxu0 0
        %4528 = vmatprep.subr.bf16.mxu0 0
        %4529 = vmatpush1.bf16.msra.mxu0 0
        %4530 = vmatprep.subr.bf16.mxu0 0
        %4531 = vmatpush1.bf16.msra.mxu0 0
        %4532 = vmatprep.subr.bf16.mxu0 0
        %4533 = vmatpush1.bf16.msra.mxu0 0
        %4534 = vmatprep.subr.bf16.mxu0 0
        %4535 = vmatpush1.bf16.msra.mxu0 0
        %4536 = vmatprep.subr.bf16.mxu0 0
        %4537 = vmatpush1.bf16.msra.mxu0 0
        %4538 = vmatprep.subr.bf16.mxu0 0
        %4539 = vmatpush1.bf16.msra.mxu0 0
        %4540 = vmatprep.subr.bf16.mxu0 0
        %4541 = vmatpush1.bf16.msra.mxu0 0
        %4542 = vmatprep.mubr.bf16.mxu0 0
        %4543 = vmatmul.mubr.bf16.gmra.mrb[0].mxu0 %v4505
        %v4544 = vpop.f32.mrb[0].mxu0
        %v4545 = vadd.f32 0.0, %v4544
        %v4546 = vpop.f32.mrb[0].mxu0
        %v4547 = vpop.f32.mrb[0].mxu0
        %v4548 = vpop.f32.mrb[0].mxu0
        %4549 = vdwg.mxu0
        %v4550 = vadd.f32 %v4393, %v4545
        %4552 = vrot.lane.b32.xlu0 %v4385, 120
        %v4553 = vpop.permute.xlu0 %4552
        %4554 = vrot.lane.b32.xlu0 %v4386, 120
        %v4555 = vpop.permute.xlu0 %4554
        %v4557 = vsel %vm1600, %v4553, 0
        %v4560 = vsel %vm1600, %v4555, 0
        %4562 = vmatprep.subr.bf16.mxu0 0
        %4563 = vmatpush1.bf16.xpose.msra.mxu0 %v4560
        %4564 = vmatprep.subr.bf16.mxu0 0
        %4565 = vmatpush1.bf16.xpose.msra.mxu0 0
        %4566 = vmatprep.subr.bf16.mxu0 0
        %4567 = vmatpush1.bf16.xpose.msra.mxu0 0
        %4568 = vmatprep.subr.bf16.mxu0 0
        %4569 = vmatpush1.bf16.xpose.msra.mxu0 0
        %4570 = vmatprep.subr.bf16.mxu0 0
        %4571 = vmatpush1.bf16.xpose.msra.mxu0 0
        %4572 = vmatprep.subr.bf16.mxu0 0
        %4573 = vmatpush1.bf16.xpose.msra.mxu0 0
        %4574 = vmatprep.subr.bf16.mxu0 0
        %4575 = vmatpush1.bf16.xpose.msra.mxu0 0
        %4576 = vmatprep.subr.bf16.mxu0 0
        %4577 = vmatpush1.bf16.xpose.msra.mxu0 0
        %4578 = vmatprep.subr.bf16.mxu0 0
        %4579 = vmatpush1.bf16.xpose.msra.mxu0 0
        %4580 = vmatprep.subr.bf16.mxu0 0
        %4581 = vmatpush1.bf16.xpose.msra.mxu0 0
        %4582 = vmatprep.subr.bf16.mxu0 0
        %4583 = vmatpush1.bf16.xpose.msra.mxu0 0
        %4584 = vmatprep.subr.bf16.mxu0 0
        %4585 = vmatpush1.bf16.xpose.msra.mxu0 0
        %4586 = vmatprep.subr.bf16.mxu0 0
        %4587 = vmatpush1.bf16.xpose.msra.mxu0 0
        %4588 = vmatprep.subr.bf16.mxu0 0
        %4589 = vmatpush1.bf16.xpose.msra.mxu0 0
        %4590 = vmatprep.subr.bf16.mxu0 0
        %4591 = vmatpush1.bf16.xpose.msra.mxu0 0
        %4592 = vmatprep.subr.bf16.mxu0 0
        %4593 = vmatpush1.bf16.xpose.msra.mxu0 0
        %4594 = vmatprep.mubr.bf16.mxu0 0
        %4595 = vmatmul.mubr.bf16.gmra.mrb[0].mxu0 %v4557
        %v4596 = vpop.f32.mrb[0].mxu0
        %v4597 = vadd.f32 0.0, %v4596
        %v4598 = vpop.f32.mrb[0].mxu0
        %v4599 = vpop.f32.mrb[0].mxu0
        %v4600 = vpop.f32.mrb[0].mxu0
        %4601 = vdwg.mxu0
        %v4602 = vmul.f32 %v4597, 0.35355338
        %v4603 = vsel %vm1600, %v4602, -inf
        %4604 = vmax.xlane.f32.xlu0 %v4603
        %v4605 = vpop.xlane.xlu0 %4604
        %v4606 = vsub.f32 %v4602, %v4605
        %v4607 = vmul.f32 %v4606, 1.442695
        %v4608 = vpow.pop %v4607
        %v4609 = vsel %vm1600, %v4608, 0.0
        %4610 = vadd.xlane.f32.xlu0 %v4609
        %v4611 = vpop.xlane.xlu0 %4610
        %v4612 = vrcp.pop %v4611
        %v4613 = vmul.f32 1.0, %v4612
        %v4614 = vmul.f32 %v4608, %v4613
        %v4615 = vpack.c.bf16 %v4614, %v4614
        %4616 = vrot.lane.b32.xlu0 %v4386, 88
        %v4617 = vpop.permute.xlu0 %4616
        %v4619 = vsel %vm1600, %v4615, 0
        %v4622 = vsel %vm1673, %v4617, 0
        %4624 = vmatprep.subr.bf16.mxu0 0
        %4625 = vmatpush1.bf16.msra.mxu0 %v4622
        %4626 = vmatprep.subr.bf16.mxu0 0
        %4627 = vmatpush1.bf16.msra.mxu0 0
        %4628 = vmatprep.subr.bf16.mxu0 0
        %4629 = vmatpush1.bf16.msra.mxu0 0
        %4630 = vmatprep.subr.bf16.mxu0 0
        %4631 = vmatpush1.bf16.msra.mxu0 0
        %4632 = vmatprep.subr.bf16.mxu0 0
        %4633 = vmatpush1.bf16.msra.mxu0 0
        %4634 = vmatprep.subr.bf16.mxu0 0
        %4635 = vmatpush1.bf16.msra.mxu0 0
        %4636 = vmatprep.subr.bf16.mxu0 0
        %4637 = vmatpush1.bf16.msra.mxu0 0
        %4638 = vmatprep.subr.bf16.mxu0 0
        %4639 = vmatpush1.bf16.msra.mxu0 0
        %4640 = vmatprep.subr.bf16.mxu0 0
        %4641 = vmatpush1.bf16.msra.mxu0 0
        %4642 = vmatprep.subr.bf16.mxu0 0
        %4643 = vmatpush1.bf16.msra.mxu0 0
        %4644 = vmatprep.subr.bf16.mxu0 0
        %4645 = vmatpush1.bf16.msra.mxu0 0
        %4646 = vmatprep.subr.bf16.mxu0 0
        %4647 = vmatpush1.bf16.msra.mxu0 0
        %4648 = vmatprep.subr.bf16.mxu0 0
        %4649 = vmatpush1.bf16.msra.mxu0 0
        %4650 = vmatprep.subr.bf16.mxu0 0
        %4651 = vmatpush1.bf16.msra.mxu0 0
        %4652 = vmatprep.subr.bf16.mxu0 0
        %4653 = vmatpush1.bf16.msra.mxu0 0
        %4654 = vmatprep.subr.bf16.mxu0 0
        %4655 = vmatpush1.bf16.msra.mxu0 0
        %4656 = vmatprep.mubr.bf16.mxu0 0
        %4657 = vmatmul.mubr.bf16.gmra.mrb[0].mxu0 %v4619
        %v4658 = vpop.f32.mrb[0].mxu0
        %v4659 = vadd.f32 0.0, %v4658
        %v4660 = vpop.f32.mrb[0].mxu0
        %v4661 = vpop.f32.mrb[0].mxu0
        %v4662 = vpop.f32.mrb[0].mxu0
        %4663 = vdwg.mxu0
        %v4664 = vpack.c.bf16 %v4659, %v4659
        %v4666 = vsel %vm1600, %v4664, 0
        %v4669 = vsel %vm1673, %v4381, 0
        %4671 = vmatprep.subr.bf16.mxu0 0
        %4672 = vmatpush1.bf16.msra.mxu0 %v4669
        %4673 = vmatprep.subr.bf16.mxu0 0
        %4674 = vmatpush1.bf16.msra.mxu0 0
        %4675 = vmatprep.subr.bf16.mxu0 0
        %4676 = vmatpush1.bf16.msra.mxu0 0
        %4677 = vmatprep.subr.bf16.mxu0 0
        %4678 = vmatpush1.bf16.msra.mxu0 0
        %4679 = vmatprep.subr.bf16.mxu0 0
        %4680 = vmatpush1.bf16.msra.mxu0 0
        %4681 = vmatprep.subr.bf16.mxu0 0
        %4682 = vmatpush1.bf16.msra.mxu0 0
        %4683 = vmatprep.subr.bf16.mxu0 0
        %4684 = vmatpush1.bf16.msra.mxu0 0
        %4685 = vmatprep.subr.bf16.mxu0 0
        %4686 = vmatpush1.bf16.msra.mxu0 0
        %4687 = vmatprep.subr.bf16.mxu0 0
        %4688 = vmatpush1.bf16.msra.mxu0 0
        %4689 = vmatprep.subr.bf16.mxu0 0
        %4690 = vmatpush1.bf16.msra.mxu0 0
        %4691 = vmatprep.subr.bf16.mxu0 0
        %4692 = vmatpush1.bf16.msra.mxu0 0
        %4693 = vmatprep.subr.bf16.mxu0 0
        %4694 = vmatpush1.bf16.msra.mxu0 0
        %4695 = vmatprep.subr.bf16.mxu0 0
        %4696 = vmatpush1.bf16.msra.mxu0 0
        %4697 = vmatprep.subr.bf16.mxu0 0
        %4698 = vmatpush1.bf16.msra.mxu0 0
        %4699 = vmatprep.subr.bf16.mxu0 0
        %4700 = vmatpush1.bf16.msra.mxu0 0
        %4701 = vmatprep.subr.bf16.mxu0 0
        %4702 = vmatpush1.bf16.msra.mxu0 0
        %4703 = vmatprep.mubr.bf16.mxu0 0
        %4704 = vmatmul.mubr.bf16.gmra.mrb[0].mxu0 %v4666
        %v4705 = vpop.f32.mrb[0].mxu0
        %v4706 = vadd.f32 0.0, %v4705
        %v4707 = vpop.f32.mrb[0].mxu0
        %v4708 = vpop.f32.mrb[0].mxu0
        %v4709 = vpop.f32.mrb[0].mxu0
        %4710 = vdwg.mxu0
        %v4711 = vadd.f32 %v4550, %v4706
        %4712 = vrot.lane.b32.xlu0 %v4385, 112
        %v4713 = vpop.permute.xlu0 %4712
        %4714 = vrot.lane.b32.xlu0 %v4386, 112
        %v4715 = vpop.permute.xlu0 %4714
        %v4717 = vsel %vm1600, %v4713, 0
        %v4720 = vsel %vm1600, %v4715, 0
        %4722 = vmatprep.subr.bf16.mxu0 0
        %4723 = vmatpush1.bf16.xpose.msra.mxu0 %v4720
        %4724 = vmatprep.subr.bf16.mxu0 0
        %4725 = vmatpush1.bf16.xpose.msra.mxu0 0
        %4726 = vmatprep.subr.bf16.mxu0 0
        %4727 = vmatpush1.bf16.xpose.msra.mxu0 0
        %4728 = vmatprep.subr.bf16.mxu0 0
        %4729 = vmatpush1.bf16.xpose.msra.mxu0 0
        %4730 = vmatprep.subr.bf16.mxu0 0
        %4731 = vmatpush1.bf16.xpose.msra.mxu0 0
        %4732 = vmatprep.subr.bf16.mxu0 0
        %4733 = vmatpush1.bf16.xpose.msra.mxu0 0
        %4734 = vmatprep.subr.bf16.mxu0 0
        %4735 = vmatpush1.bf16.xpose.msra.mxu0 0
        %4736 = vmatprep.subr.bf16.mxu0 0
        %4737 = vmatpush1.bf16.xpose.msra.mxu0 0
        %4738 = vmatprep.subr.bf16.mxu0 0
        %4739 = vmatpush1.bf16.xpose.msra.mxu0 0
        %4740 = vmatprep.subr.bf16.mxu0 0
        %4741 = vmatpush1.bf16.xpose.msra.mxu0 0
        %4742 = vmatprep.subr.bf16.mxu0 0
        %4743 = vmatpush1.bf16.xpose.msra.mxu0 0
        %4744 = vmatprep.subr.bf16.mxu0 0
        %4745 = vmatpush1.bf16.xpose.msra.mxu0 0
        %4746 = vmatprep.subr.bf16.mxu0 0
        %4747 = vmatpush1.bf16.xpose.msra.mxu0 0
        %4748 = vmatprep.subr.bf16.mxu0 0
        %4749 = vmatpush1.bf16.xpose.msra.mxu0 0
        %4750 = vmatprep.subr.bf16.mxu0 0
        %4751 = vmatpush1.bf16.xpose.msra.mxu0 0
        %4752 = vmatprep.subr.bf16.mxu0 0
        %4753 = vmatpush1.bf16.xpose.msra.mxu0 0
        %4754 = vmatprep.mubr.bf16.mxu0 0
        %4755 = vmatmul.mubr.bf16.gmra.mrb[0].mxu0 %v4717
        %v4756 = vpop.f32.mrb[0].mxu0
        %v4757 = vadd.f32 0.0, %v4756
        %v4758 = vpop.f32.mrb[0].mxu0
        %v4759 = vpop.f32.mrb[0].mxu0
        %v4760 = vpop.f32.mrb[0].mxu0
        %4761 = vdwg.mxu0
        %v4762 = vmul.f32 %v4757, 0.35355338
        %v4763 = vsel %vm1600, %v4762, -inf
        %4764 = vmax.xlane.f32.xlu0 %v4763
        %v4765 = vpop.xlane.xlu0 %4764
        %v4766 = vsub.f32 %v4762, %v4765
        %v4767 = vmul.f32 %v4766, 1.442695
        %v4768 = vpow.pop %v4767
        %v4769 = vsel %vm1600, %v4768, 0.0
        %4770 = vadd.xlane.f32.xlu0 %v4769
        %v4771 = vpop.xlane.xlu0 %4770
        %v4772 = vrcp.pop %v4771
        %v4773 = vmul.f32 1.0, %v4772
        %v4774 = vmul.f32 %v4768, %v4773
        %v4775 = vpack.c.bf16 %v4774, %v4774
        %4776 = vrot.lane.b32.xlu0 %v4386, 80
        %v4777 = vpop.permute.xlu0 %4776
        %v4779 = vsel %vm1600, %v4775, 0
        %v4782 = vsel %vm1673, %v4777, 0
        %4784 = vmatprep.subr.bf16.mxu0 0
        %4785 = vmatpush1.bf16.msra.mxu0 %v4782
        %4786 = vmatprep.subr.bf16.mxu0 0
        %4787 = vmatpush1.bf16.msra.mxu0 0
        %4788 = vmatprep.subr.bf16.mxu0 0
        %4789 = vmatpush1.bf16.msra.mxu0 0
        %4790 = vmatprep.subr.bf16.mxu0 0
        %4791 = vmatpush1.bf16.msra.mxu0 0
        %4792 = vmatprep.subr.bf16.mxu0 0
        %4793 = vmatpush1.bf16.msra.mxu0 0
        %4794 = vmatprep.subr.bf16.mxu0 0
        %4795 = vmatpush1.bf16.msra.mxu0 0
        %4796 = vmatprep.subr.bf16.mxu0 0
        %4797 = vmatpush1.bf16.msra.mxu0 0
        %4798 = vmatprep.subr.bf16.mxu0 0
        %4799 = vmatpush1.bf16.msra.mxu0 0
        %4800 = vmatprep.subr.bf16.mxu0 0
        %4801 = vmatpush1.bf16.msra.mxu0 0
        %4802 = vmatprep.subr.bf16.mxu0 0
        %4803 = vmatpush1.bf16.msra.mxu0 0
        %4804 = vmatprep.subr.bf16.mxu0 0
        %4805 = vmatpush1.bf16.msra.mxu0 0
        %4806 = vmatprep.subr.bf16.mxu0 0
        %4807 = vmatpush1.bf16.msra.mxu0 0
        %4808 = vmatprep.subr.bf16.mxu0 0
        %4809 = vmatpush1.bf16.msra.mxu0 0
        %4810 = vmatprep.subr.bf16.mxu0 0
        %4811 = vmatpush1.bf16.msra.mxu0 0
        %4812 = vmatprep.subr.bf16.mxu0 0
        %4813 = vmatpush1.bf16.msra.mxu0 0
        %4814 = vmatprep.subr.bf16.mxu0 0
        %4815 = vmatpush1.bf16.msra.mxu0 0
        %4816 = vmatprep.mubr.bf16.mxu0 0
        %4817 = vmatmul.mubr.bf16.gmra.mrb[0].mxu0 %v4779
        %v4818 = vpop.f32.mrb[0].mxu0
        %v4819 = vadd.f32 0.0, %v4818
        %v4820 = vpop.f32.mrb[0].mxu0
        %v4821 = vpop.f32.mrb[0].mxu0
        %v4822 = vpop.f32.mrb[0].mxu0
        %4823 = vdwg.mxu0
        %v4824 = vpack.c.bf16 %v4819, %v4819
        %v4826 = vsel %vm1600, %v4824, 0
        %v4829 = vsel %vm1673, %v4382, 0
        %4831 = vmatprep.subr.bf16.mxu0 0
        %4832 = vmatpush1.bf16.msra.mxu0 %v4829
        %4833 = vmatprep.subr.bf16.mxu0 0
        %4834 = vmatpush1.bf16.msra.mxu0 0
        %4835 = vmatprep.subr.bf16.mxu0 0
        %4836 = vmatpush1.bf16.msra.mxu0 0
        %4837 = vmatprep.subr.bf16.mxu0 0
        %4838 = vmatpush1.bf16.msra.mxu0 0
        %4839 = vmatprep.subr.bf16.mxu0 0
        %4840 = vmatpush1.bf16.msra.mxu0 0
        %4841 = vmatprep.subr.bf16.mxu0 0
        %4842 = vmatpush1.bf16.msra.mxu0 0
        %4843 = vmatprep.subr.bf16.mxu0 0
        %4844 = vmatpush1.bf16.msra.mxu0 0
        %4845 = vmatprep.subr.bf16.mxu0 0
        %4846 = vmatpush1.bf16.msra.mxu0 0
        %4847 = vmatprep.subr.bf16.mxu0 0
        %4848 = vmatpush1.bf16.msra.mxu0 0
        %4849 = vmatprep.subr.bf16.mxu0 0
        %4850 = vmatpush1.bf16.msra.mxu0 0
        %4851 = vmatprep.subr.bf16.mxu0 0
        %4852 = vmatpush1.bf16.msra.mxu0 0
        %4853 = vmatprep.subr.bf16.mxu0 0
        %4854 = vmatpush1.bf16.msra.mxu0 0
        %4855 = vmatprep.subr.bf16.mxu0 0
        %4856 = vmatpush1.bf16.msra.mxu0 0
        %4857 = vmatprep.subr.bf16.mxu0 0
        %4858 = vmatpush1.bf16.msra.mxu0 0
        %4859 = vmatprep.subr.bf16.mxu0 0
        %4860 = vmatpush1.bf16.msra.mxu0 0
        %4861 = vmatprep.subr.bf16.mxu0 0
        %4862 = vmatpush1.bf16.msra.mxu0 0
        %4863 = vmatprep.mubr.bf16.mxu0 0
        %4864 = vmatmul.mubr.bf16.gmra.mrb[0].mxu0 %v4826
        %v4865 = vpop.f32.mrb[0].mxu0
        %v4866 = vadd.f32 0.0, %v4865
        %v4867 = vpop.f32.mrb[0].mxu0
        %v4868 = vpop.f32.mrb[0].mxu0
        %v4869 = vpop.f32.mrb[0].mxu0
        %4870 = vdwg.mxu0
        %v4871 = vadd.f32 %v4711, %v4866
        %4872 = vrot.lane.b32.xlu0 %v4385, 104
        %v4873 = vpop.permute.xlu0 %4872
        %4874 = vrot.lane.b32.xlu0 %v4386, 104
        %v4875 = vpop.permute.xlu0 %4874
        %v4877 = vsel %vm1600, %v4873, 0
        %v4880 = vsel %vm1600, %v4875, 0
        %4882 = vmatprep.subr.bf16.mxu0 0
        %4883 = vmatpush1.bf16.xpose.msra.mxu0 %v4880
        %4884 = vmatprep.subr.bf16.mxu0 0
        %4885 = vmatpush1.bf16.xpose.msra.mxu0 0
        %4886 = vmatprep.subr.bf16.mxu0 0
        %4887 = vmatpush1.bf16.xpose.msra.mxu0 0
        %4888 = vmatprep.subr.bf16.mxu0 0
        %4889 = vmatpush1.bf16.xpose.msra.mxu0 0
        %4890 = vmatprep.subr.bf16.mxu0 0
        %4891 = vmatpush1.bf16.xpose.msra.mxu0 0
        %4892 = vmatprep.subr.bf16.mxu0 0
        %4893 = vmatpush1.bf16.xpose.msra.mxu0 0
        %4894 = vmatprep.subr.bf16.mxu0 0
        %4895 = vmatpush1.bf16.xpose.msra.mxu0 0
        %4896 = vmatprep.subr.bf16.mxu0 0
        %4897 = vmatpush1.bf16.xpose.msra.mxu0 0
        %4898 = vmatprep.subr.bf16.mxu0 0
        %4899 = vmatpush1.bf16.xpose.msra.mxu0 0
        %4900 = vmatprep.subr.bf16.mxu0 0
        %4901 = vmatpush1.bf16.xpose.msra.mxu0 0
        %4902 = vmatprep.subr.bf16.mxu0 0
        %4903 = vmatpush1.bf16.xpose.msra.mxu0 0
        %4904 = vmatprep.subr.bf16.mxu0 0
        %4905 = vmatpush1.bf16.xpose.msra.mxu0 0
        %4906 = vmatprep.subr.bf16.mxu0 0
        %4907 = vmatpush1.bf16.xpose.msra.mxu0 0
        %4908 = vmatprep.subr.bf16.mxu0 0
        %4909 = vmatpush1.bf16.xpose.msra.mxu0 0
        %4910 = vmatprep.subr.bf16.mxu0 0
        %4911 = vmatpush1.bf16.xpose.msra.mxu0 0
        %4912 = vmatprep.subr.bf16.mxu0 0
        %4913 = vmatpush1.bf16.xpose.msra.mxu0 0
        %4914 = vmatprep.mubr.bf16.mxu0 0
        %4915 = vmatmul.mubr.bf16.gmra.mrb[0].mxu0 %v4877
        %v4916 = vpop.f32.mrb[0].mxu0
        %v4917 = vadd.f32 0.0, %v4916
        %v4918 = vpop.f32.mrb[0].mxu0
        %v4919 = vpop.f32.mrb[0].mxu0
        %v4920 = vpop.f32.mrb[0].mxu0
        %4921 = vdwg.mxu0
        %v4922 = vmul.f32 %v4917, 0.35355338
        %v4923 = vsel %vm1600, %v4922, -inf
        %4924 = vmax.xlane.f32.xlu0 %v4923
        %v4925 = vpop.xlane.xlu0 %4924
        %v4926 = vsub.f32 %v4922, %v4925
        %v4927 = vmul.f32 %v4926, 1.442695
        %v4928 = vpow.pop %v4927
        %v4929 = vsel %vm1600, %v4928, 0.0
        %4930 = vadd.xlane.f32.xlu0 %v4929
        %v4931 = vpop.xlane.xlu0 %4930
        %v4932 = vrcp.pop %v4931
        %v4933 = vmul.f32 1.0, %v4932
        %v4934 = vmul.f32 %v4928, %v4933
        %v4935 = vpack.c.bf16 %v4934, %v4934
        %4936 = vrot.lane.b32.xlu0 %v4386, 72
        %v4937 = vpop.permute.xlu0 %4936
        %v4939 = vsel %vm1600, %v4935, 0
        %v4942 = vsel %vm1673, %v4937, 0
        %4944 = vmatprep.subr.bf16.mxu0 0
        %4945 = vmatpush1.bf16.msra.mxu0 %v4942
        %4946 = vmatprep.subr.bf16.mxu0 0
        %4947 = vmatpush1.bf16.msra.mxu0 0
        %4948 = vmatprep.subr.bf16.mxu0 0
        %4949 = vmatpush1.bf16.msra.mxu0 0
        %4950 = vmatprep.subr.bf16.mxu0 0
        %4951 = vmatpush1.bf16.msra.mxu0 0
        %4952 = vmatprep.subr.bf16.mxu0 0
        %4953 = vmatpush1.bf16.msra.mxu0 0
        %4954 = vmatprep.subr.bf16.mxu0 0
        %4955 = vmatpush1.bf16.msra.mxu0 0
        %4956 = vmatprep.subr.bf16.mxu0 0
        %4957 = vmatpush1.bf16.msra.mxu0 0
        %4958 = vmatprep.subr.bf16.mxu0 0
        %4959 = vmatpush1.bf16.msra.mxu0 0
        %4960 = vmatprep.subr.bf16.mxu0 0
        %4961 = vmatpush1.bf16.msra.mxu0 0
        %4962 = vmatprep.subr.bf16.mxu0 0
        %4963 = vmatpush1.bf16.msra.mxu0 0
        %4964 = vmatprep.subr.bf16.mxu0 0
        %4965 = vmatpush1.bf16.msra.mxu0 0
        %4966 = vmatprep.subr.bf16.mxu0 0
        %4967 = vmatpush1.bf16.msra.mxu0 0
        %4968 = vmatprep.subr.bf16.mxu0 0
        %4969 = vmatpush1.bf16.msra.mxu0 0
        %4970 = vmatprep.subr.bf16.mxu0 0
        %4971 = vmatpush1.bf16.msra.mxu0 0
        %4972 = vmatprep.subr.bf16.mxu0 0
        %4973 = vmatpush1.bf16.msra.mxu0 0
        %4974 = vmatprep.subr.bf16.mxu0 0
        %4975 = vmatpush1.bf16.msra.mxu0 0
        %4976 = vmatprep.mubr.bf16.mxu0 0
        %4977 = vmatmul.mubr.bf16.gmra.mrb[0].mxu0 %v4939
        %v4978 = vpop.f32.mrb[0].mxu0
        %v4979 = vadd.f32 0.0, %v4978
        %v4980 = vpop.f32.mrb[0].mxu0
        %v4981 = vpop.f32.mrb[0].mxu0
        %v4982 = vpop.f32.mrb[0].mxu0
        %4983 = vdwg.mxu0
        %v4984 = vpack.c.bf16 %v4979, %v4979
        %v4986 = vsel %vm1600, %v4984, 0
        %v4989 = vsel %vm1673, %v4383, 0
        %4991 = vmatprep.subr.bf16.mxu0 0
        %4992 = vmatpush1.bf16.msra.mxu0 %v4989
        %4993 = vmatprep.subr.bf16.mxu0 0
        %4994 = vmatpush1.bf16.msra.mxu0 0
        %4995 = vmatprep.subr.bf16.mxu0 0
        %4996 = vmatpush1.bf16.msra.mxu0 0
        %4997 = vmatprep.subr.bf16.mxu0 0
        %4998 = vmatpush1.bf16.msra.mxu0 0
        %4999 = vmatprep.subr.bf16.mxu0 0
        %5000 = vmatpush1.bf16.msra.mxu0 0
        %5001 = vmatprep.subr.bf16.mxu0 0
        %5002 = vmatpush1.bf16.msra.mxu0 0
        %5003 = vmatprep.subr.bf16.mxu0 0
        %5004 = vmatpush1.bf16.msra.mxu0 0
        %5005 = vmatprep.subr.bf16.mxu0 0
        %5006 = vmatpush1.bf16.msra.mxu0 0
        %5007 = vmatprep.subr.bf16.mxu0 0
        %5008 = vmatpush1.bf16.msra.mxu0 0
        %5009 = vmatprep.subr.bf16.mxu0 0
        %5010 = vmatpush1.bf16.msra.mxu0 0
        %5011 = vmatprep.subr.bf16.mxu0 0
        %5012 = vmatpush1.bf16.msra.mxu0 0
        %5013 = vmatprep.subr.bf16.mxu0 0
        %5014 = vmatpush1.bf16.msra.mxu0 0
        %5015 = vmatprep.subr.bf16.mxu0 0
        %5016 = vmatpush1.bf16.msra.mxu0 0
        %5017 = vmatprep.subr.bf16.mxu0 0
        %5018 = vmatpush1.bf16.msra.mxu0 0
        %5019 = vmatprep.subr.bf16.mxu0 0
        %5020 = vmatpush1.bf16.msra.mxu0 0
        %5021 = vmatprep.subr.bf16.mxu0 0
        %5022 = vmatpush1.bf16.msra.mxu0 0
        %5023 = vmatprep.mubr.bf16.mxu0 0
        %5024 = vmatmul.mubr.bf16.gmra.mrb[0].mxu0 %v4986
        %v5025 = vpop.f32.mrb[0].mxu0
        %v5026 = vadd.f32 0.0, %v5025
        %v5027 = vpop.f32.mrb[0].mxu0
        %v5028 = vpop.f32.mrb[0].mxu0
        %v5029 = vpop.f32.mrb[0].mxu0
        %5030 = vdwg.mxu0
        %v5031 = vadd.f32 %v4871, %v5026
        %v5032 = vadd.f32 %v4245, %v5031
        %v5033 = vld [vmem:[%s65] sm:$0x1]
        %v5034 = vld [vmem:[%s67] sm:$0x1]
        %v5035 = vsel %vm1540, %v5032, 0.0
        %5036 = vadd.xlane.f32.xlu0 %v5035
        %v5037 = vpop.xlane.xlu0 %5036
        %v5038 = vmul.f32 %v5037, %v2254
        %v5039 = vsub.f32 %v5032, %v5038
        %v5040 = vmul.f32 %v5039, %v5039
        %v5041 = vsel %vm1540, %v5040, 0.0
        %5042 = vadd.xlane.f32.xlu0 %v5041
        %v5043 = vpop.xlane.xlu0 %5042
        %v5044 = vmul.f32 %v5043, %v2254
        %v5045 = vadd.f32 %v5044, 1e-05
        %v5046 = vrsqrt.pop %v5045
        %v5047 = vmul.f32 %v5039, %v5046
        %v5049 = vlaneseq
        %v5050 = vshrl.u32 %v5049, 7
        %v5051 = vsub.s32 0, %v5050
        %v5052 = vrot.slane %v5033, %v5051
        %v5054 = vmul.f32 %v5047, %v5052
        %v5056 = vlaneseq
        %v5057 = vshrl.u32 %v5056, 7
        %v5058 = vsub.s32 0, %v5057
        %v5059 = vrot.slane %v5034, %v5058
        %v5061 = vadd.f32 %v5054, %v5059
        %v5062 = vld [vmem:[%s69] sm:$0xf]
        %v5063 = vld [vmem:[%s69 + $0x4] sm:$0xf]
        %v5064 = vld [vmem:[%s69 + $0x8] sm:$0xf]
        %v5065 = vld [vmem:[%s69 + $0xc] sm:$0xf]
        %v5066 = vpack.c.bf16 %v5061, %v5061
        %v5067 = vld [vmem:[#allocation2] sm:$0x1]
        %v5069 = vlaneseq
        %v5070 = vshrl.u32 %v5069, 7
        %v5071 = vsub.s32 0, %v5070
        %v5072 = vrot.slane %v5067, %v5071
        %v5078 = vunpack.c.l.b16 %v5062
        %v5079 = vunpack.c.l.b16 %v5063
        %v5080 = vunpack.c.l.b16 %v5064
        %v5081 = vunpack.c.l.b16 %v5065
        %v5082 = vpack.c.b16 %v5079, %v5078
        %v5083 = vpack.c.b16 %v5081, %v5080
        %v5087 = vsel %vm1540, %v5066, 0
        %5089 = vmatprep.subr.bf16.mxu0 0
        %5090 = vmatpush1.bf16.msra.mxu0 %v5082
        %5091 = vmatprep.subr.bf16.mxu0 0
        %5092 = vmatpush1.bf16.msra.mxu0 %v5083
        %5093 = vmatprep.subr.bf16.mxu0 0
        %5094 = vmatpush1.bf16.msra.mxu0 0
        %5095 = vmatprep.subr.bf16.mxu0 0
        %5096 = vmatpush1.bf16.msra.mxu0 0
        %5097 = vmatprep.subr.bf16.mxu0 0
        %5098 = vmatpush1.bf16.msra.mxu0 0
        %5099 = vmatprep.subr.bf16.mxu0 0
        %5100 = vmatpush1.bf16.msra.mxu0 0
        %5101 = vmatprep.subr.bf16.mxu0 0
        %5102 = vmatpush1.bf16.msra.mxu0 0
        %5103 = vmatprep.subr.bf16.mxu0 0
        %5104 = vmatpush1.bf16.msra.mxu0 0
        %5105 = vmatprep.subr.bf16.mxu0 0
        %5106 = vmatpush1.bf16.msra.mxu0 0
        %5107 = vmatprep.subr.bf16.mxu0 0
        %5108 = vmatpush1.bf16.msra.mxu0 0
        %5109 = vmatprep.subr.bf16.mxu0 0
        %5110 = vmatpush1.bf16.msra.mxu0 0
        %5111 = vmatprep.subr.bf16.mxu0 0
        %5112 = vmatpush1.bf16.msra.mxu0 0
        %5113 = vmatprep.subr.bf16.mxu0 0
        %5114 = vmatpush1.bf16.msra.mxu0 0
        %5115 = vmatprep.subr.bf16.mxu0 0
        %5116 = vmatpush1.bf16.msra.mxu0 0
        %5117 = vmatprep.subr.bf16.mxu0 0
        %5118 = vmatpush1.bf16.msra.mxu0 0
        %5119 = vmatprep.subr.bf16.mxu0 0
        %5120 = vmatpush1.bf16.msra.mxu0 0
        %5121 = vmatprep.mubr.bf16.mxu0 0
        %5122 = vmatmul.mubr.bf16.gmra.mrb[0].mxu0 %v5087
        %v5123 = vpop.f32.mrb[0].mxu0
        %v5124 = vadd.f32 %v5072, %v5123
        %v5125 = vpop.f32.mrb[0].mxu0
        %v5126 = vpop.f32.mrb[0].mxu0
        %v5127 = vpop.f32.mrb[0].mxu0
        %5128 = vdwg.mxu0
        %v5129 = vmax.f32 %v5124, 0.0
        %v5130 = vld [vmem:[%s73] sm:$0xf]
        %v5131 = vld [vmem:[%s73 + $0x4] sm:$0xf]
        %v5132 = vld [vmem:[%s73 + $0x8] sm:$0xf]
        %v5133 = vld [vmem:[%s73 + $0xc] sm:$0xf]
        %v5134 = vld [vmem:[%s73 + $0x10] sm:$0xf]
        %v5135 = vld [vmem:[%s73 + $0x14] sm:$0xf]
        %v5136 = vld [vmem:[%s73 + $0x18] sm:$0xf]
        %v5137 = vld [vmem:[%s73 + $0x1c] sm:$0xf]
        %v5138 = vld [vmem:[%s73 + $0x20] sm:$0xf]
        %v5139 = vld [vmem:[%s73 + $0x24] sm:$0xf]
        %v5140 = vld [vmem:[%s73 + $0x28] sm:$0xf]
        %v5141 = vld [vmem:[%s73 + $0x2c] sm:$0xf]
        %v5142 = vld [vmem:[%s73 + $0x30] sm:$0xf]
        %v5143 = vld [vmem:[%s73 + $0x34] sm:$0xf]
        %v5144 = vld [vmem:[%s73 + $0x38] sm:$0xf]
        %v5145 = vld [vmem:[%s73 + $0x3c] sm:$0xf]
        %v5146 = vpack.c.bf16 %v5129, %v5129
        %v5147 = vld [vmem:[#allocation4] sm:$0x1]
        %v5149 = vlaneseq
        %v5150 = vshrl.u32 %v5149, 7
        %v5151 = vsub.s32 0, %v5150
        %v5152 = vrot.slane %v5147, %v5151
        %v5170 = vunpack.c.l.b16 %v5130
        %v5171 = vunpack.c.l.b16 %v5131
        %v5172 = vunpack.c.l.b16 %v5132
        %v5173 = vunpack.c.l.b16 %v5133
        %v5174 = vunpack.c.l.b16 %v5134
        %v5175 = vunpack.c.l.b16 %v5135
        %v5176 = vunpack.c.l.b16 %v5136
        %v5177 = vunpack.c.l.b16 %v5137
        %v5178 = vunpack.c.l.b16 %v5138
        %v5179 = vunpack.c.l.b16 %v5139
        %v5180 = vunpack.c.l.b16 %v5140
        %v5181 = vunpack.c.l.b16 %v5141
        %v5182 = vunpack.c.l.b16 %v5142
        %v5183 = vunpack.c.l.b16 %v5143
        %v5184 = vunpack.c.l.b16 %v5144
        %v5185 = vunpack.c.l.b16 %v5145
        %v5186 = vpack.c.b16 %v5171, %v5170
        %v5187 = vpack.c.b16 %v5173, %v5172
        %v5188 = vpack.c.b16 %v5175, %v5174
        %v5189 = vpack.c.b16 %v5177, %v5176
        %v5190 = vpack.c.b16 %v5179, %v5178
        %v5191 = vpack.c.b16 %v5181, %v5180
        %v5192 = vpack.c.b16 %v5183, %v5182
        %v5193 = vpack.c.b16 %v5185, %v5184
        %5202 = vmatprep.subr.bf16.mxu0 0
        %5203 = vmatpush1.bf16.msra.mxu0 %v5186
        %5204 = vmatprep.subr.bf16.mxu0 0
        %5205 = vmatpush1.bf16.msra.mxu0 %v5187
        %5206 = vmatprep.subr.bf16.mxu0 0
        %5207 = vmatpush1.bf16.msra.mxu0 %v5188
        %5208 = vmatprep.subr.bf16.mxu0 0
        %5209 = vmatpush1.bf16.msra.mxu0 %v5189
        %5210 = vmatprep.subr.bf16.mxu0 0
        %5211 = vmatpush1.bf16.msra.mxu0 %v5190
        %5212 = vmatprep.subr.bf16.mxu0 0
        %5213 = vmatpush1.bf16.msra.mxu0 %v5191
        %5214 = vmatprep.subr.bf16.mxu0 0
        %5215 = vmatpush1.bf16.msra.mxu0 %v5192
        %5216 = vmatprep.subr.bf16.mxu0 0
        %5217 = vmatpush1.bf16.msra.mxu0 %v5193
        %5218 = vmatprep.subr.bf16.mxu0 0
        %5219 = vmatpush1.bf16.msra.mxu0 0
        %5220 = vmatprep.subr.bf16.mxu0 0
        %5221 = vmatpush1.bf16.msra.mxu0 0
        %5222 = vmatprep.subr.bf16.mxu0 0
        %5223 = vmatpush1.bf16.msra.mxu0 0
        %5224 = vmatprep.subr.bf16.mxu0 0
        %5225 = vmatpush1.bf16.msra.mxu0 0
        %5226 = vmatprep.subr.bf16.mxu0 0
        %5227 = vmatpush1.bf16.msra.mxu0 0
        %5228 = vmatprep.subr.bf16.mxu0 0
        %5229 = vmatpush1.bf16.msra.mxu0 0
        %5230 = vmatprep.subr.bf16.mxu0 0
        %5231 = vmatpush1.bf16.msra.mxu0 0
        %5232 = vmatprep.subr.bf16.mxu0 0
        %5233 = vmatpush1.bf16.msra.mxu0 0
        %5234 = vmatprep.mubr.bf16.mxu0 0
        %5235 = vmatmul.mubr.bf16.gmra.mrb[0].mxu0 %v5146
        %v5236 = vpop.f32.mrb[0].mxu0
        %v5237 = vadd.f32 %v5152, %v5236
        %v5238 = vpop.f32.mrb[0].mxu0
        %v5239 = vpop.f32.mrb[0].mxu0
        %v5240 = vpop.f32.mrb[0].mxu0
        %5241 = vdwg.mxu0
        %v5242 = vadd.f32 %v5061, %v5237
        %v5243 = vld [vmem:[%s77] sm:$0x1]
        %v5244 = vld [vmem:[%s79] sm:$0x1]
        %v5245 = vsel %vm1540, %v5242, 0.0
        %5246 = vadd.xlane.f32.xlu0 %v5245
        %v5247 = vpop.xlane.xlu0 %5246
        %v5248 = vmul.f32 %v5247, %v2254
        %v5249 = vsub.f32 %v5242, %v5248
        %v5250 = vmul.f32 %v5249, %v5249
        %v5251 = vsel %vm1540, %v5250, 0.0
        %5252 = vadd.xlane.f32.xlu0 %v5251
        %v5253 = vpop.xlane.xlu0 %5252
        %v5254 = vmul.f32 %v5253, %v2254
        %v5255 = vadd.f32 %v5254, 1e-05
        %v5256 = vrsqrt.pop %v5255
        %v5257 = vmul.f32 %v5249, %v5256
        %v5259 = vlaneseq
        %v5260 = vshrl.u32 %v5259, 7
        %v5261 = vsub.s32 0, %v5260
        %v5262 = vrot.slane %v5243, %v5261
        %v5264 = vmul.f32 %v5257, %v5262
        %v5266 = vlaneseq
        %v5267 = vshrl.u32 %v5266, 7
        %v5268 = vsub.s32 0, %v5267
        %v5269 = vrot.slane %v5244, %v5268
        %v5271 = vadd.f32 %v5264, %v5269
        %s5272 = scalar_lea.vmem %s41, 16
        %v5273 = vld [vmem:[%s5272] sm:$0xf]
        %v5274 = vld [vmem:[%s5272 + $0x4] sm:$0xf]
        %v5275 = vld [vmem:[%s5272 + $0x8] sm:$0xf]
        %v5276 = vld [vmem:[%s5272 + $0xc] sm:$0xf]
        %v5277 = vpack.c.bf16 %v5271, %v5271
        %s5278 = scalar_lea.vmem %s43, 1
        %v5279 = vld [vmem:[%s5278] sm:$0x1]
        %v5281 = vlaneseq
        %v5282 = vshrl.u32 %v5281, 7
        %v5283 = vsub.s32 0, %v5282
        %v5284 = vrot.slane %v5279, %v5283
        %v5290 = vunpack.c.l.b16 %v5273
        %v5291 = vunpack.c.l.b16 %v5274
        %v5292 = vunpack.c.l.b16 %v5275
        %v5293 = vunpack.c.l.b16 %v5276
        %v5294 = vpack.c.b16 %v5291, %v5290
        %v5295 = vpack.c.b16 %v5293, %v5292
        %v5299 = vsel %vm1540, %v5277, 0
        %5301 = vmatprep.subr.bf16.mxu0 0
        %5302 = vmatpush1.bf16.msra.mxu0 %v5294
        %5303 = vmatprep.subr.bf16.mxu0 0
        %5304 = vmatpush1.bf16.msra.mxu0 %v5295
        %5305 = vmatprep.subr.bf16.mxu0 0
        %5306 = vmatpush1.bf16.msra.mxu0 0
        %5307 = vmatprep.subr.bf16.mxu0 0
        %5308 = vmatpush1.bf16.msra.mxu0 0
        %5309 = vmatprep.subr.bf16.mxu0 0
        %5310 = vmatpush1.bf16.msra.mxu0 0
        %5311 = vmatprep.subr.bf16.mxu0 0
        %5312 = vmatpush1.bf16.msra.mxu0 0
        %5313 = vmatprep.subr.bf16.mxu0 0
        %5314 = vmatpush1.bf16.msra.mxu0 0
        %5315 = vmatprep.subr.bf16.mxu0 0
        %5316 = vmatpush1.bf16.msra.mxu0 0
        %5317 = vmatprep.subr.bf16.mxu0 0
        %5318 = vmatpush1.bf16.msra.mxu0 0
        %5319 = vmatprep.subr.bf16.mxu0 0
        %5320 = vmatpush1.bf16.msra.mxu0 0
        %5321 = vmatprep.subr.bf16.mxu0 0
        %5322 = vmatpush1.bf16.msra.mxu0 0
        %5323 = vmatprep.subr.bf16.mxu0 0
        %5324 = vmatpush1.bf16.msra.mxu0 0
        %5325 = vmatprep.subr.bf16.mxu0 0
        %5326 = vmatpush1.bf16.msra.mxu0 0
        %5327 = vmatprep.subr.bf16.mxu0 0
        %5328 = vmatpush1.bf16.msra.mxu0 0
        %5329 = vmatprep.subr.bf16.mxu0 0
        %5330 = vmatpush1.bf16.msra.mxu0 0
        %5331 = vmatprep.subr.bf16.mxu0 0
        %5332 = vmatpush1.bf16.msra.mxu0 0
        %5333 = vmatprep.mubr.bf16.mxu0 0
        %5334 = vmatmul.mubr.bf16.gmra.mrb[0].mxu0 %v5299
        %v5335 = vpop.f32.mrb[0].mxu0
        %v5336 = vadd.f32 %v5284, %v5335
        %v5337 = vpop.f32.mrb[0].mxu0
        %v5338 = vpop.f32.mrb[0].mxu0
        %v5339 = vpop.f32.mrb[0].mxu0
        %5340 = vdwg.mxu0
        %s5341 = scalar_lea.vmem %s45, 16
        %v5342 = vld [vmem:[%s5341] sm:$0xf]
        %v5343 = vld [vmem:[%s5341 + $0x4] sm:$0xf]
        %v5344 = vld [vmem:[%s5341 + $0x8] sm:$0xf]
        %v5345 = vld [vmem:[%s5341 + $0xc] sm:$0xf]
        %s5346 = scalar_lea.vmem %s47, 1
        %v5347 = vld [vmem:[%s5346] sm:$0x1]
        %v5348 = vpack.c.bf16 %v5336, %v5336
        %v5350 = vlaneseq
        %v5351 = vshrl.u32 %v5350, 7
        %v5352 = vsub.s32 0, %v5351
        %v5353 = vrot.slane %v5347, %v5352
        %v5355 = vadd.f32 %v5353, 0.0
        %5357 = vrot.lane.b32.xlu0 %v5348, 96
        %v5358 = vpop.permute.xlu0 %5357
        %v5360 = vsel %vm1600, %v5348, 0
        %v5363 = vsel %vm1600, %v5358, 0
        %5365 = vmatprep.subr.bf16.mxu0 0
        %5366 = vmatpush1.bf16.xpose.msra.mxu0 %v5363
        %5367 = vmatprep.subr.bf16.mxu0 0
        %5368 = vmatpush1.bf16.xpose.msra.mxu0 0
        %5369 = vmatprep.subr.bf16.mxu0 0
        %5370 = vmatpush1.bf16.xpose.msra.mxu0 0
        %5371 = vmatprep.subr.bf16.mxu0 0
        %5372 = vmatpush1.bf16.xpose.msra.mxu0 0
        %5373 = vmatprep.subr.bf16.mxu0 0
        %5374 = vmatpush1.bf16.xpose.msra.mxu0 0
        %5375 = vmatprep.subr.bf16.mxu0 0
        %5376 = vmatpush1.bf16.xpose.msra.mxu0 0
        %5377 = vmatprep.subr.bf16.mxu0 0
        %5378 = vmatpush1.bf16.xpose.msra.mxu0 0
        %5379 = vmatprep.subr.bf16.mxu0 0
        %5380 = vmatpush1.bf16.xpose.msra.mxu0 0
        %5381 = vmatprep.subr.bf16.mxu0 0
        %5382 = vmatpush1.bf16.xpose.msra.mxu0 0
        %5383 = vmatprep.subr.bf16.mxu0 0
        %5384 = vmatpush1.bf16.xpose.msra.mxu0 0
        %5385 = vmatprep.subr.bf16.mxu0 0
        %5386 = vmatpush1.bf16.xpose.msra.mxu0 0
        %5387 = vmatprep.subr.bf16.mxu0 0
        %5388 = vmatpush1.bf16.xpose.msra.mxu0 0
        %5389 = vmatprep.subr.bf16.mxu0 0
        %5390 = vmatpush1.bf16.xpose.msra.mxu0 0
        %5391 = vmatprep.subr.bf16.mxu0 0
        %5392 = vmatpush1.bf16.xpose.msra.mxu0 0
        %5393 = vmatprep.subr.bf16.mxu0 0
        %5394 = vmatpush1.bf16.xpose.msra.mxu0 0
        %5395 = vmatprep.subr.bf16.mxu0 0
        %5396 = vmatpush1.bf16.xpose.msra.mxu0 0
        %5397 = vmatprep.mubr.bf16.mxu0 0
        %5398 = vmatmul.mubr.bf16.gmra.mrb[0].mxu0 %v5360
        %v5399 = vpop.f32.mrb[0].mxu0
        %v5400 = vadd.f32 0.0, %v5399
        %v5401 = vpop.f32.mrb[0].mxu0
        %v5402 = vpop.f32.mrb[0].mxu0
        %v5403 = vpop.f32.mrb[0].mxu0
        %5404 = vdwg.mxu0
        %v5405 = vmul.f32 %v5400, 0.35355338
        %v5406 = vadd.f32 %v5405, %v1515
        %v5407 = vsel %vm1600, %v5406, -inf
        %5408 = vmax.xlane.f32.xlu0 %v5407
        %v5409 = vpop.xlane.xlu0 %5408
        %v5410 = vsub.f32 %v5406, %v5409
        %v5411 = vmul.f32 %v5410, 1.442695
        %v5412 = vpow.pop %v5411
        %v5413 = vsel %vm1600, %v5412, 0.0
        %5414 = vadd.xlane.f32.xlu0 %v5413
        %v5415 = vpop.xlane.xlu0 %5414
        %v5416 = vrcp.pop %v5415
        %v5417 = vmul.f32 1.0, %v5416
        %v5418 = vmul.f32 %v5412, %v5417
        %v5419 = vpack.c.bf16 %v5418, %v5418
        %5420 = vrot.lane.b32.xlu0 %v5348, 64
        %v5421 = vpop.permute.xlu0 %5420
        %v5423 = vsel %vm1600, %v5419, 0
        %v5426 = vsel %vm1673, %v5421, 0
        %5428 = vmatprep.subr.bf16.mxu0 0
        %5429 = vmatpush1.bf16.msra.mxu0 %v5426
        %5430 = vmatprep.subr.bf16.mxu0 0
        %5431 = vmatpush1.bf16.msra.mxu0 0
        %5432 = vmatprep.subr.bf16.mxu0 0
        %5433 = vmatpush1.bf16.msra.mxu0 0
        %5434 = vmatprep.subr.bf16.mxu0 0
        %5435 = vmatpush1.bf16.msra.mxu0 0
        %5436 = vmatprep.subr.bf16.mxu0 0
        %5437 = vmatpush1.bf16.msra.mxu0 0
        %5438 = vmatprep.subr.bf16.mxu0 0
        %5439 = vmatpush1.bf16.msra.mxu0 0
        %5440 = vmatprep.subr.bf16.mxu0 0
        %5441 = vmatpush1.bf16.msra.mxu0 0
        %5442 = vmatprep.subr.bf16.mxu0 0
        %5443 = vmatpush1.bf16.msra.mxu0 0
        %5444 = vmatprep.subr.bf16.mxu0 0
        %5445 = vmatpush1.bf16.msra.mxu0 0
        %5446 = vmatprep.subr.bf16.mxu0 0
        %5447 = vmatpush1.bf16.msra.mxu0 0
        %5448 = vmatprep.subr.bf16.mxu0 0
        %5449 = vmatpush1.bf16.msra.mxu0 0
        %5450 = vmatprep.subr.bf16.mxu0 0
        %5451 = vmatpush1.bf16.msra.mxu0 0
        %5452 = vmatprep.subr.bf16.mxu0 0
        %5453 = vmatpush1.bf16.msra.mxu0 0
        %5454 = vmatprep.subr.bf16.mxu0 0
        %5455 = vmatpush1.bf16.msra.mxu0 0
        %5456 = vmatprep.subr.bf16.mxu0 0
        %5457 = vmatpush1.bf16.msra.mxu0 0
        %5458 = vmatprep.subr.bf16.mxu0 0
        %5459 = vmatpush1.bf16.msra.mxu0 0
        %5460 = vmatprep.mubr.bf16.mxu0 0
        %5461 = vmatmul.mubr.bf16.gmra.mrb[0].mxu0 %v5423
        %v5462 = vpop.f32.mrb[0].mxu0
        %v5463 = vadd.f32 0.0, %v5462
        %v5464 = vpop.f32.mrb[0].mxu0
        %v5465 = vpop.f32.mrb[0].mxu0
        %v5466 = vpop.f32.mrb[0].mxu0
        %5467 = vdwg.mxu0
        %v5468 = vpack.c.bf16 %v5463, %v5463
        %v5470 = vsel %vm1600, %v5468, 0
        %v5473 = vsel %vm1673, %v5342, 0
        %5475 = vmatprep.subr.bf16.mxu0 0
        %5476 = vmatpush1.bf16.msra.mxu0 %v5473
        %5477 = vmatprep.subr.bf16.mxu0 0
        %5478 = vmatpush1.bf16.msra.mxu0 0
        %5479 = vmatprep.subr.bf16.mxu0 0
        %5480 = vmatpush1.bf16.msra.mxu0 0
        %5481 = vmatprep.subr.bf16.mxu0 0
        %5482 = vmatpush1.bf16.msra.mxu0 0
        %5483 = vmatprep.subr.bf16.mxu0 0
        %5484 = vmatpush1.bf16.msra.mxu0 0
        %5485 = vmatprep.subr.bf16.mxu0 0
        %5486 = vmatpush1.bf16.msra.mxu0 0
        %5487 = vmatprep.subr.bf16.mxu0 0
        %5488 = vmatpush1.bf16.msra.mxu0 0
        %5489 = vmatprep.subr.bf16.mxu0 0
        %5490 = vmatpush1.bf16.msra.mxu0 0
        %5491 = vmatprep.subr.bf16.mxu0 0
        %5492 = vmatpush1.bf16.msra.mxu0 0
        %5493 = vmatprep.subr.bf16.mxu0 0
        %5494 = vmatpush1.bf16.msra.mxu0 0
        %5495 = vmatprep.subr.bf16.mxu0 0
        %5496 = vmatpush1.bf16.msra.mxu0 0
        %5497 = vmatprep.subr.bf16.mxu0 0
        %5498 = vmatpush1.bf16.msra.mxu0 0
        %5499 = vmatprep.subr.bf16.mxu0 0
        %5500 = vmatpush1.bf16.msra.mxu0 0
        %5501 = vmatprep.subr.bf16.mxu0 0
        %5502 = vmatpush1.bf16.msra.mxu0 0
        %5503 = vmatprep.subr.bf16.mxu0 0
        %5504 = vmatpush1.bf16.msra.mxu0 0
        %5505 = vmatprep.subr.bf16.mxu0 0
        %5506 = vmatpush1.bf16.msra.mxu0 0
        %5507 = vmatprep.mubr.bf16.mxu0 0
        %5508 = vmatmul.mubr.bf16.gmra.mrb[0].mxu0 %v5470
        %v5509 = vpop.f32.mrb[0].mxu0
        %v5510 = vadd.f32 0.0, %v5509
        %v5511 = vpop.f32.mrb[0].mxu0
        %v5512 = vpop.f32.mrb[0].mxu0
        %v5513 = vpop.f32.mrb[0].mxu0
        %5514 = vdwg.mxu0
        %v5515 = vadd.f32 %v5355, %v5510
        %5516 = vrot.lane.b32.xlu0 %v5348, 120
        %v5517 = vpop.permute.xlu0 %5516
        %5518 = vrot.lane.b32.xlu0 %v5348, 88
        %v5519 = vpop.permute.xlu0 %5518
        %v5521 = vsel %vm1600, %v5517, 0
        %v5524 = vsel %vm1600, %v5519, 0
        %5526 = vmatprep.subr.bf16.mxu0 0
        %5527 = vmatpush1.bf16.xpose.msra.mxu0 %v5524
        %5528 = vmatprep.subr.bf16.mxu0 0
        %5529 = vmatpush1.bf16.xpose.msra.mxu0 0
        %5530 = vmatprep.subr.bf16.mxu0 0
        %5531 = vmatpush1.bf16.xpose.msra.mxu0 0
        %5532 = vmatprep.subr.bf16.mxu0 0
        %5533 = vmatpush1.bf16.xpose.msra.mxu0 0
        %5534 = vmatprep.subr.bf16.mxu0 0
        %5535 = vmatpush1.bf16.xpose.msra.mxu0 0
        %5536 = vmatprep.subr.bf16.mxu0 0
        %5537 = vmatpush1.bf16.xpose.msra.mxu0 0
        %5538 = vmatprep.subr.bf16.mxu0 0
        %5539 = vmatpush1.bf16.xpose.msra.mxu0 0
        %5540 = vmatprep.subr.bf16.mxu0 0
        %5541 = vmatpush1.bf16.xpose.msra.mxu0 0
        %5542 = vmatprep.subr.bf16.mxu0 0
        %5543 = vmatpush1.bf16.xpose.msra.mxu0 0
        %5544 = vmatprep.subr.bf16.mxu0 0
        %5545 = vmatpush1.bf16.xpose.msra.mxu0 0
        %5546 = vmatprep.subr.bf16.mxu0 0
        %5547 = vmatpush1.bf16.xpose.msra.mxu0 0
        %5548 = vmatprep.subr.bf16.mxu0 0
        %5549 = vmatpush1.bf16.xpose.msra.mxu0 0
        %5550 = vmatprep.subr.bf16.mxu0 0
        %5551 = vmatpush1.bf16.xpose.msra.mxu0 0
        %5552 = vmatprep.subr.bf16.mxu0 0
        %5553 = vmatpush1.bf16.xpose.msra.mxu0 0
        %5554 = vmatprep.subr.bf16.mxu0 0
        %5555 = vmatpush1.bf16.xpose.msra.mxu0 0
        %5556 = vmatprep.subr.bf16.mxu0 0
        %5557 = vmatpush1.bf16.xpose.msra.mxu0 0
        %5558 = vmatprep.mubr.bf16.mxu0 0
        %5559 = vmatmul.mubr.bf16.gmra.mrb[0].mxu0 %v5521
        %v5560 = vpop.f32.mrb[0].mxu0
        %v5561 = vadd.f32 0.0, %v5560
        %v5562 = vpop.f32.mrb[0].mxu0
        %v5563 = vpop.f32.mrb[0].mxu0
        %v5564 = vpop.f32.mrb[0].mxu0
        %5565 = vdwg.mxu0
        %v5566 = vmul.f32 %v5561, 0.35355338
        %v5567 = vadd.f32 %v5566, %v1515
        %v5568 = vsel %vm1600, %v5567, -inf
        %5569 = vmax.xlane.f32.xlu0 %v5568
        %v5570 = vpop.xlane.xlu0 %5569
        %v5571 = vsub.f32 %v5567, %v5570
        %v5572 = vmul.f32 %v5571, 1.442695
        %v5573 = vpow.pop %v5572
        %v5574 = vsel %vm1600, %v5573, 0.0
        %5575 = vadd.xlane.f32.xlu0 %v5574
        %v5576 = vpop.xlane.xlu0 %5575
        %v5577 = vrcp.pop %v5576
        %v5578 = vmul.f32 1.0, %v5577
        %v5579 = vmul.f32 %v5573, %v5578
        %v5580 = vpack.c.bf16 %v5579, %v5579
        %5581 = vrot.lane.b32.xlu0 %v5348, 56
        %v5582 = vpop.permute.xlu0 %5581
        %v5584 = vsel %vm1600, %v5580, 0
        %v5587 = vsel %vm1673, %v5582, 0
        %5589 = vmatprep.subr.bf16.mxu0 0
        %5590 = vmatpush1.bf16.msra.mxu0 %v5587
        %5591 = vmatprep.subr.bf16.mxu0 0
        %5592 = vmatpush1.bf16.msra.mxu0 0
        %5593 = vmatprep.subr.bf16.mxu0 0
        %5594 = vmatpush1.bf16.msra.mxu0 0
        %5595 = vmatprep.subr.bf16.mxu0 0
        %5596 = vmatpush1.bf16.msra.mxu0 0
        %5597 = vmatprep.subr.bf16.mxu0 0
        %5598 = vmatpush1.bf16.msra.mxu0 0
        %5599 = vmatprep.subr.bf16.mxu0 0
        %5600 = vmatpush1.bf16.msra.mxu0 0
        %5601 = vmatprep.subr.bf16.mxu0 0
        %5602 = vmatpush1.bf16.msra.mxu0 0
        %5603 = vmatprep.subr.bf16.mxu0 0
        %5604 = vmatpush1.bf16.msra.mxu0 0
        %5605 = vmatprep.subr.bf16.mxu0 0
        %5606 = vmatpush1.bf16.msra.mxu0 0
        %5607 = vmatprep.subr.bf16.mxu0 0
        %5608 = vmatpush1.bf16.msra.mxu0 0
        %5609 = vmatprep.subr.bf16.mxu0 0
        %5610 = vmatpush1.bf16.msra.mxu0 0
        %5611 = vmatprep.subr.bf16.mxu0 0
        %5612 = vmatpush1.bf16.msra.mxu0 0
        %5613 = vmatprep.subr.bf16.mxu0 0
        %5614 = vmatpush1.bf16.msra.mxu0 0
        %5615 = vmatprep.subr.bf16.mxu0 0
        %5616 = vmatpush1.bf16.msra.mxu0 0
        %5617 = vmatprep.subr.bf16.mxu0 0
        %5618 = vmatpush1.bf16.msra.mxu0 0
        %5619 = vmatprep.subr.bf16.mxu0 0
        %5620 = vmatpush1.bf16.msra.mxu0 0
        %5621 = vmatprep.mubr.bf16.mxu0 0
        %5622 = vmatmul.mubr.bf16.gmra.mrb[0].mxu0 %v5584
        %v5623 = vpop.f32.mrb[0].mxu0
        %v5624 = vadd.f32 0.0, %v5623
        %v5625 = vpop.f32.mrb[0].mxu0
        %v5626 = vpop.f32.mrb[0].mxu0
        %v5627 = vpop.f32.mrb[0].mxu0
        %5628 = vdwg.mxu0
        %v5629 = vpack.c.bf16 %v5624, %v5624
        %v5631 = vsel %vm1600, %v5629, 0
        %v5634 = vsel %vm1673, %v5343, 0
        %5636 = vmatprep.subr.bf16.mxu0 0
        %5637 = vmatpush1.bf16.msra.mxu0 %v5634
        %5638 = vmatprep.subr.bf16.mxu0 0
        %5639 = vmatpush1.bf16.msra.mxu0 0
        %5640 = vmatprep.subr.bf16.mxu0 0
        %5641 = vmatpush1.bf16.msra.mxu0 0
        %5642 = vmatprep.subr.bf16.mxu0 0
        %5643 = vmatpush1.bf16.msra.mxu0 0
        %5644 = vmatprep.subr.bf16.mxu0 0
        %5645 = vmatpush1.bf16.msra.mxu0 0
        %5646 = vmatprep.subr.bf16.mxu0 0
        %5647 = vmatpush1.bf16.msra.mxu0 0
        %5648 = vmatprep.subr.bf16.mxu0 0
        %5649 = vmatpush1.bf16.msra.mxu0 0
        %5650 = vmatprep.subr.bf16.mxu0 0
        %5651 = vmatpush1.bf16.msra.mxu0 0
        %5652 = vmatprep.subr.bf16.mxu0 0
        %5653 = vmatpush1.bf16.msra.mxu0 0
        %5654 = vmatprep.subr.bf16.mxu0 0
        %5655 = vmatpush1.bf16.msra.mxu0 0
        %5656 = vmatprep.subr.bf16.mxu0 0
        %5657 = vmatpush1.bf16.msra.mxu0 0
        %5658 = vmatprep.subr.bf16.mxu0 0
        %5659 = vmatpush1.bf16.msra.mxu0 0
        %5660 = vmatprep.subr.bf16.mxu0 0
        %5661 = vmatpush1.bf16.msra.mxu0 0
        %5662 = vmatprep.subr.bf16.mxu0 0
        %5663 = vmatpush1.bf16.msra.mxu0 0
        %5664 = vmatprep.subr.bf16.mxu0 0
        %5665 = vmatpush1.bf16.msra.mxu0 0
        %5666 = vmatprep.subr.bf16.mxu0 0
        %5667 = vmatpush1.bf16.msra.mxu0 0
        %5668 = vmatprep.mubr.bf16.mxu0 0
        %5669 = vmatmul.mubr.bf16.gmra.mrb[0].mxu0 %v5631
        %v5670 = vpop.f32.mrb[0].mxu0
        %v5671 = vadd.f32 0.0, %v5670
        %v5672 = vpop.f32.mrb[0].mxu0
        %v5673 = vpop.f32.mrb[0].mxu0
        %v5674 = vpop.f32.mrb[0].mxu0
        %5675 = vdwg.mxu0
        %v5676 = vadd.f32 %v5515, %v5671
        %5677 = vrot.lane.b32.xlu0 %v5348, 112
        %v5678 = vpop.permute.xlu0 %5677
        %5679 = vrot.lane.b32.xlu0 %v5348, 80
        %v5680 = vpop.permute.xlu0 %5679
        %v5682 = vsel %vm1600, %v5678, 0
        %v5685 = vsel %vm1600, %v5680, 0
        %5687 = vmatprep.subr.bf16.mxu0 0
        %5688 = vmatpush1.bf16.xpose.msra.mxu0 %v5685
        %5689 = vmatprep.subr.bf16.mxu0 0
        %5690 = vmatpush1.bf16.xpose.msra.mxu0 0
        %5691 = vmatprep.subr.bf16.mxu0 0
        %5692 = vmatpush1.bf16.xpose.msra.mxu0 0
        %5693 = vmatprep.subr.bf16.mxu0 0
        %5694 = vmatpush1.bf16.xpose.msra.mxu0 0
        %5695 = vmatprep.subr.bf16.mxu0 0
        %5696 = vmatpush1.bf16.xpose.msra.mxu0 0
        %5697 = vmatprep.subr.bf16.mxu0 0
        %5698 = vmatpush1.bf16.xpose.msra.mxu0 0
        %5699 = vmatprep.subr.bf16.mxu0 0
        %5700 = vmatpush1.bf16.xpose.msra.mxu0 0
        %5701 = vmatprep.subr.bf16.mxu0 0
        %5702 = vmatpush1.bf16.xpose.msra.mxu0 0
        %5703 = vmatprep.subr.bf16.mxu0 0
        %5704 = vmatpush1.bf16.xpose.msra.mxu0 0
        %5705 = vmatprep.subr.bf16.mxu0 0
        %5706 = vmatpush1.bf16.xpose.msra.mxu0 0
        %5707 = vmatprep.subr.bf16.mxu0 0
        %5708 = vmatpush1.bf16.xpose.msra.mxu0 0
        %5709 = vmatprep.subr.bf16.mxu0 0
        %5710 = vmatpush1.bf16.xpose.msra.mxu0 0
        %5711 = vmatprep.subr.bf16.mxu0 0
        %5712 = vmatpush1.bf16.xpose.msra.mxu0 0
        %5713 = vmatprep.subr.bf16.mxu0 0
        %5714 = vmatpush1.bf16.xpose.msra.mxu0 0
        %5715 = vmatprep.subr.bf16.mxu0 0
        %5716 = vmatpush1.bf16.xpose.msra.mxu0 0
        %5717 = vmatprep.subr.bf16.mxu0 0
        %5718 = vmatpush1.bf16.xpose.msra.mxu0 0
        %5719 = vmatprep.mubr.bf16.mxu0 0
        %5720 = vmatmul.mubr.bf16.gmra.mrb[0].mxu0 %v5682
        %v5721 = vpop.f32.mrb[0].mxu0
        %v5722 = vadd.f32 0.0, %v5721
        %v5723 = vpop.f32.mrb[0].mxu0
        %v5724 = vpop.f32.mrb[0].mxu0
        %v5725 = vpop.f32.mrb[0].mxu0
        %5726 = vdwg.mxu0
        %v5727 = vmul.f32 %v5722, 0.35355338
        %v5728 = vadd.f32 %v5727, %v1515
        %v5729 = vsel %vm1600, %v5728, -inf
        %5730 = vmax.xlane.f32.xlu0 %v5729
        %v5731 = vpop.xlane.xlu0 %5730
        %v5732 = vsub.f32 %v5728, %v5731
        %v5733 = vmul.f32 %v5732, 1.442695
        %v5734 = vpow.pop %v5733
        %v5735 = vsel %vm1600, %v5734, 0.0
        %5736 = vadd.xlane.f32.xlu0 %v5735
        %v5737 = vpop.xlane.xlu0 %5736
        %v5738 = vrcp.pop %v5737
        %v5739 = vmul.f32 1.0, %v5738
        %v5740 = vmul.f32 %v5734, %v5739
        %v5741 = vpack.c.bf16 %v5740, %v5740
        %5742 = vrot.lane.b32.xlu0 %v5348, 48
        %v5743 = vpop.permute.xlu0 %5742
        %v5745 = vsel %vm1600, %v5741, 0
        %v5748 = vsel %vm1673, %v5743, 0
        %5750 = vmatprep.subr.bf16.mxu0 0
        %5751 = vmatpush1.bf16.msra.mxu0 %v5748
        %5752 = vmatprep.subr.bf16.mxu0 0
        %5753 = vmatpush1.bf16.msra.mxu0 0
        %5754 = vmatprep.subr.bf16.mxu0 0
        %5755 = vmatpush1.bf16.msra.mxu0 0
        %5756 = vmatprep.subr.bf16.mxu0 0
        %5757 = vmatpush1.bf16.msra.mxu0 0
        %5758 = vmatprep.subr.bf16.mxu0 0
        %5759 = vmatpush1.bf16.msra.mxu0 0
        %5760 = vmatprep.subr.bf16.mxu0 0
        %5761 = vmatpush1.bf16.msra.mxu0 0
        %5762 = vmatprep.subr.bf16.mxu0 0
        %5763 = vmatpush1.bf16.msra.mxu0 0
        %5764 = vmatprep.subr.bf16.mxu0 0
        %5765 = vmatpush1.bf16.msra.mxu0 0
        %5766 = vmatprep.subr.bf16.mxu0 0
        %5767 = vmatpush1.bf16.msra.mxu0 0
        %5768 = vmatprep.subr.bf16.mxu0 0
        %5769 = vmatpush1.bf16.msra.mxu0 0
        %5770 = vmatprep.subr.bf16.mxu0 0
        %5771 = vmatpush1.bf16.msra.mxu0 0
        %5772 = vmatprep.subr.bf16.mxu0 0
        %5773 = vmatpush1.bf16.msra.mxu0 0
        %5774 = vmatprep.subr.bf16.mxu0 0
        %5775 = vmatpush1.bf16.msra.mxu0 0
        %5776 = vmatprep.subr.bf16.mxu0 0
        %5777 = vmatpush1.bf16.msra.mxu0 0
        %5778 = vmatprep.subr.bf16.mxu0 0
        %5779 = vmatpush1.bf16.msra.mxu0 0
        %5780 = vmatprep.subr.bf16.mxu0 0
        %5781 = vmatpush1.bf16.msra.mxu0 0
        %5782 = vmatprep.mubr.bf16.mxu0 0
        %5783 = vmatmul.mubr.bf16.gmra.mrb[0].mxu0 %v5745
        %v5784 = vpop.f32.mrb[0].mxu0
        %v5785 = vadd.f32 0.0, %v5784
        %v5786 = vpop.f32.mrb[0].mxu0
        %v5787 = vpop.f32.mrb[0].mxu0
        %v5788 = vpop.f32.mrb[0].mxu0
        %5789 = vdwg.mxu0
        %v5790 = vpack.c.bf16 %v5785, %v5785
        %v5792 = vsel %vm1600, %v5790, 0
        %v5795 = vsel %vm1673, %v5344, 0
        %5797 = vmatprep.subr.bf16.mxu0 0
        %5798 = vmatpush1.bf16.msra.mxu0 %v5795
        %5799 = vmatprep.subr.bf16.mxu0 0
        %5800 = vmatpush1.bf16.msra.mxu0 0
        %5801 = vmatprep.subr.bf16.mxu0 0
        %5802 = vmatpush1.bf16.msra.mxu0 0
        %5803 = vmatprep.subr.bf16.mxu0 0
        %5804 = vmatpush1.bf16.msra.mxu0 0
        %5805 = vmatprep.subr.bf16.mxu0 0
        %5806 = vmatpush1.bf16.msra.mxu0 0
        %5807 = vmatprep.subr.bf16.mxu0 0
        %5808 = vmatpush1.bf16.msra.mxu0 0
        %5809 = vmatprep.subr.bf16.mxu0 0
        %5810 = vmatpush1.bf16.msra.mxu0 0
        %5811 = vmatprep.subr.bf16.mxu0 0
        %5812 = vmatpush1.bf16.msra.mxu0 0
        %5813 = vmatprep.subr.bf16.mxu0 0
        %5814 = vmatpush1.bf16.msra.mxu0 0
        %5815 = vmatprep.subr.bf16.mxu0 0
        %5816 = vmatpush1.bf16.msra.mxu0 0
        %5817 = vmatprep.subr.bf16.mxu0 0
        %5818 = vmatpush1.bf16.msra.mxu0 0
        %5819 = vmatprep.subr.bf16.mxu0 0
        %5820 = vmatpush1.bf16.msra.mxu0 0
        %5821 = vmatprep.subr.bf16.mxu0 0
        %5822 = vmatpush1.bf16.msra.mxu0 0
        %5823 = vmatprep.subr.bf16.mxu0 0
        %5824 = vmatpush1.bf16.msra.mxu0 0
        %5825 = vmatprep.subr.bf16.mxu0 0
        %5826 = vmatpush1.bf16.msra.mxu0 0
        %5827 = vmatprep.subr.bf16.mxu0 0
        %5828 = vmatpush1.bf16.msra.mxu0 0
        %5829 = vmatprep.mubr.bf16.mxu0 0
        %5830 = vmatmul.mubr.bf16.gmra.mrb[0].mxu0 %v5792
        %v5831 = vpop.f32.mrb[0].mxu0
        %v5832 = vadd.f32 0.0, %v5831
        %v5833 = vpop.f32.mrb[0].mxu0
        %v5834 = vpop.f32.mrb[0].mxu0
        %v5835 = vpop.f32.mrb[0].mxu0
        %5836 = vdwg.mxu0
        %v5837 = vadd.f32 %v5676, %v5832
        %5838 = vrot.lane.b32.xlu0 %v5348, 104
        %v5839 = vpop.permute.xlu0 %5838
        %5840 = vrot.lane.b32.xlu0 %v5348, 72
        %v5841 = vpop.permute.xlu0 %5840
        %v5843 = vsel %vm1600, %v5839, 0
        %v5846 = vsel %vm1600, %v5841, 0
        %5848 = vmatprep.subr.bf16.mxu0 0
        %5849 = vmatpush1.bf16.xpose.msra.mxu0 %v5846
        %5850 = vmatprep.subr.bf16.mxu0 0
        %5851 = vmatpush1.bf16.xpose.msra.mxu0 0
        %5852 = vmatprep.subr.bf16.mxu0 0
        %5853 = vmatpush1.bf16.xpose.msra.mxu0 0
        %5854 = vmatprep.subr.bf16.mxu0 0
        %5855 = vmatpush1.bf16.xpose.msra.mxu0 0
        %5856 = vmatprep.subr.bf16.mxu0 0
        %5857 = vmatpush1.bf16.xpose.msra.mxu0 0
        %5858 = vmatprep.subr.bf16.mxu0 0
        %5859 = vmatpush1.bf16.xpose.msra.mxu0 0
        %5860 = vmatprep.subr.bf16.mxu0 0
        %5861 = vmatpush1.bf16.xpose.msra.mxu0 0
        %5862 = vmatprep.subr.bf16.mxu0 0
        %5863 = vmatpush1.bf16.xpose.msra.mxu0 0
        %5864 = vmatprep.subr.bf16.mxu0 0
        %5865 = vmatpush1.bf16.xpose.msra.mxu0 0
        %5866 = vmatprep.subr.bf16.mxu0 0
        %5867 = vmatpush1.bf16.xpose.msra.mxu0 0
        %5868 = vmatprep.subr.bf16.mxu0 0
        %5869 = vmatpush1.bf16.xpose.msra.mxu0 0
        %5870 = vmatprep.subr.bf16.mxu0 0
        %5871 = vmatpush1.bf16.xpose.msra.mxu0 0
        %5872 = vmatprep.subr.bf16.mxu0 0
        %5873 = vmatpush1.bf16.xpose.msra.mxu0 0
        %5874 = vmatprep.subr.bf16.mxu0 0
        %5875 = vmatpush1.bf16.xpose.msra.mxu0 0
        %5876 = vmatprep.subr.bf16.mxu0 0
        %5877 = vmatpush1.bf16.xpose.msra.mxu0 0
        %5878 = vmatprep.subr.bf16.mxu0 0
        %5879 = vmatpush1.bf16.xpose.msra.mxu0 0
        %5880 = vmatprep.mubr.bf16.mxu0 0
        %5881 = vmatmul.mubr.bf16.gmra.mrb[0].mxu0 %v5843
        %v5882 = vpop.f32.mrb[0].mxu0
        %v5883 = vadd.f32 0.0, %v5882
        %v5884 = vpop.f32.mrb[0].mxu0
        %v5885 = vpop.f32.mrb[0].mxu0
        %v5886 = vpop.f32.mrb[0].mxu0
        %5887 = vdwg.mxu0
        %v5888 = vmul.f32 %v5883, 0.35355338
        %v5889 = vadd.f32 %v5888, %v1515
        %v5890 = vsel %vm1600, %v5889, -inf
        %5891 = vmax.xlane.f32.xlu0 %v5890
        %v5892 = vpop.xlane.xlu0 %5891
        %v5893 = vsub.f32 %v5889, %v5892
        %v5894 = vmul.f32 %v5893, 1.442695
        %v5895 = vpow.pop %v5894
        %v5896 = vsel %vm1600, %v5895, 0.0
        %5897 = vadd.xlane.f32.xlu0 %v5896
        %v5898 = vpop.xlane.xlu0 %5897
        %v5899 = vrcp.pop %v5898
        %v5900 = vmul.f32 1.0, %v5899
        %v5901 = vmul.f32 %v5895, %v5900
        %v5902 = vpack.c.bf16 %v5901, %v5901
        %5903 = vrot.lane.b32.xlu0 %v5348, 40
        %v5904 = vpop.permute.xlu0 %5903
        %v5906 = vsel %vm1600, %v5902, 0
        %v5909 = vsel %vm1673, %v5904, 0
        %5911 = vmatprep.subr.bf16.mxu0 0
        %5912 = vmatpush1.bf16.msra.mxu0 %v5909
        %5913 = vmatprep.subr.bf16.mxu0 0
        %5914 = vmatpush1.bf16.msra.mxu0 0
        %5915 = vmatprep.subr.bf16.mxu0 0
        %5916 = vmatpush1.bf16.msra.mxu0 0
        %5917 = vmatprep.subr.bf16.mxu0 0
        %5918 = vmatpush1.bf16.msra.mxu0 0
        %5919 = vmatprep.subr.bf16.mxu0 0
        %5920 = vmatpush1.bf16.msra.mxu0 0
        %5921 = vmatprep.subr.bf16.mxu0 0
        %5922 = vmatpush1.bf16.msra.mxu0 0
        %5923 = vmatprep.subr.bf16.mxu0 0
        %5924 = vmatpush1.bf16.msra.mxu0 0
        %5925 = vmatprep.subr.bf16.mxu0 0
        %5926 = vmatpush1.bf16.msra.mxu0 0
        %5927 = vmatprep.subr.bf16.mxu0 0
        %5928 = vmatpush1.bf16.msra.mxu0 0
        %5929 = vmatprep.subr.bf16.mxu0 0
        %5930 = vmatpush1.bf16.msra.mxu0 0
        %5931 = vmatprep.subr.bf16.mxu0 0
        %5932 = vmatpush1.bf16.msra.mxu0 0
        %5933 = vmatprep.subr.bf16.mxu0 0
        %5934 = vmatpush1.bf16.msra.mxu0 0
        %5935 = vmatprep.subr.bf16.mxu0 0
        %5936 = vmatpush1.bf16.msra.mxu0 0
        %5937 = vmatprep.subr.bf16.mxu0 0
        %5938 = vmatpush1.bf16.msra.mxu0 0
        %5939 = vmatprep.subr.bf16.mxu0 0
        %5940 = vmatpush1.bf16.msra.mxu0 0
        %5941 = vmatprep.subr.bf16.mxu0 0
        %5942 = vmatpush1.bf16.msra.mxu0 0
        %5943 = vmatprep.mubr.bf16.mxu0 0
        %5944 = vmatmul.mubr.bf16.gmra.mrb[0].mxu0 %v5906
        %v5945 = vpop.f32.mrb[0].mxu0
        %v5946 = vadd.f32 0.0, %v5945
        %v5947 = vpop.f32.mrb[0].mxu0
        %v5948 = vpop.f32.mrb[0].mxu0
        %v5949 = vpop.f32.mrb[0].mxu0
        %5950 = vdwg.mxu0
        %v5951 = vpack.c.bf16 %v5946, %v5946
        %v5953 = vsel %vm1600, %v5951, 0
        %v5956 = vsel %vm1673, %v5345, 0
        %5958 = vmatprep.subr.bf16.mxu0 0
        %5959 = vmatpush1.bf16.msra.mxu0 %v5956
        %5960 = vmatprep.subr.bf16.mxu0 0
        %5961 = vmatpush1.bf16.msra.mxu0 0
        %5962 = vmatprep.subr.bf16.mxu0 0
        %5963 = vmatpush1.bf16.msra.mxu0 0
        %5964 = vmatprep.subr.bf16.mxu0 0
        %5965 = vmatpush1.bf16.msra.mxu0 0
        %5966 = vmatprep.subr.bf16.mxu0 0
        %5967 = vmatpush1.bf16.msra.mxu0 0
        %5968 = vmatprep.subr.bf16.mxu0 0
        %5969 = vmatpush1.bf16.msra.mxu0 0
        %5970 = vmatprep.subr.bf16.mxu0 0
        %5971 = vmatpush1.bf16.msra.mxu0 0
        %5972 = vmatprep.subr.bf16.mxu0 0
        %5973 = vmatpush1.bf16.msra.mxu0 0
        %5974 = vmatprep.subr.bf16.mxu0 0
        %5975 = vmatpush1.bf16.msra.mxu0 0
        %5976 = vmatprep.subr.bf16.mxu0 0
        %5977 = vmatpush1.bf16.msra.mxu0 0
        %5978 = vmatprep.subr.bf16.mxu0 0
        %5979 = vmatpush1.bf16.msra.mxu0 0
        %5980 = vmatprep.subr.bf16.mxu0 0
        %5981 = vmatpush1.bf16.msra.mxu0 0
        %5982 = vmatprep.subr.bf16.mxu0 0
        %5983 = vmatpush1.bf16.msra.mxu0 0
        %5984 = vmatprep.subr.bf16.mxu0 0
        %5985 = vmatpush1.bf16.msra.mxu0 0
        %5986 = vmatprep.subr.bf16.mxu0 0
        %5987 = vmatpush1.bf16.msra.mxu0 0
        %5988 = vmatprep.subr.bf16.mxu0 0
        %5989 = vmatpush1.bf16.msra.mxu0 0
        %5990 = vmatprep.mubr.bf16.mxu0 0
        %5991 = vmatmul.mubr.bf16.gmra.mrb[0].mxu0 %v5953
        %v5992 = vpop.f32.mrb[0].mxu0
        %v5993 = vadd.f32 0.0, %v5992
        %v5994 = vpop.f32.mrb[0].mxu0
        %v5995 = vpop.f32.mrb[0].mxu0
        %v5996 = vpop.f32.mrb[0].mxu0
        %5997 = vdwg.mxu0
        %v5998 = vadd.f32 %v5837, %v5993
        %v5999 = vadd.f32 %v5271, %v5998
        %s6000 = scalar_lea.vmem %s49, 1
        %v6001 = vld [vmem:[%s6000] sm:$0x1]
        %s6002 = scalar_lea.vmem %s51, 1
        %v6003 = vld [vmem:[%s6002] sm:$0x1]
        %v6004 = vsel %vm1540, %v5999, 0.0
        %6005 = vadd.xlane.f32.xlu0 %v6004
        %v6006 = vpop.xlane.xlu0 %6005
        %v6007 = vmul.f32 %v6006, %v2254
        %v6008 = vsub.f32 %v5999, %v6007
        %v6009 = vmul.f32 %v6008, %v6008
        %v6010 = vsel %vm1540, %v6009, 0.0
        %6011 = vadd.xlane.f32.xlu0 %v6010
        %v6012 = vpop.xlane.xlu0 %6011
        %v6013 = vmul.f32 %v6012, %v2254
        %v6014 = vadd.f32 %v6013, 1e-05
        %v6015 = vrsqrt.pop %v6014
        %v6016 = vmul.f32 %v6008, %v6015
        %v6018 = vlaneseq
        %v6019 = vshrl.u32 %v6018, 7
        %v6020 = vsub.s32 0, %v6019
        %v6021 = vrot.slane %v6001, %v6020
        %v6023 = vmul.f32 %v6016, %v6021
        %v6025 = vlaneseq
        %v6026 = vshrl.u32 %v6025, 7
        %v6027 = vsub.s32 0, %v6026
        %v6028 = vrot.slane %v6003, %v6027
        %v6030 = vadd.f32 %v6023, %v6028
        %s6031 = scalar_lea.vmem %s53, 16
        %v6032 = vld [vmem:[%s6031] sm:$0xf]
        %v6033 = vld [vmem:[%s6031 + $0x4] sm:$0xf]
        %v6034 = vld [vmem:[%s6031 + $0x8] sm:$0xf]
        %v6035 = vld [vmem:[%s6031 + $0xc] sm:$0xf]
        %v6036 = vpack.c.bf16 %v6030, %v6030
        %s6037 = scalar_lea.vmem %s55, 1
        %v6038 = vld [vmem:[%s6037] sm:$0x1]
        %v6040 = vlaneseq
        %v6041 = vshrl.u32 %v6040, 7
        %v6042 = vsub.s32 0, %v6041
        %v6043 = vrot.slane %v6038, %v6042
        %v6049 = vunpack.c.l.b16 %v6032
        %v6050 = vunpack.c.l.b16 %v6033
        %v6051 = vunpack.c.l.b16 %v6034
        %v6052 = vunpack.c.l.b16 %v6035
        %v6053 = vpack.c.b16 %v6050, %v6049
        %v6054 = vpack.c.b16 %v6052, %v6051
        %v6058 = vsel %vm1540, %v6036, 0
        %6060 = vmatprep.subr.bf16.mxu0 0
        %6061 = vmatpush1.bf16.msra.mxu0 %v6053
        %6062 = vmatprep.subr.bf16.mxu0 0
        %6063 = vmatpush1.bf16.msra.mxu0 %v6054
        %6064 = vmatprep.subr.bf16.mxu0 0
        %6065 = vmatpush1.bf16.msra.mxu0 0
        %6066 = vmatprep.subr.bf16.mxu0 0
        %6067 = vmatpush1.bf16.msra.mxu0 0
        %6068 = vmatprep.subr.bf16.mxu0 0
        %6069 = vmatpush1.bf16.msra.mxu0 0
        %6070 = vmatprep.subr.bf16.mxu0 0
        %6071 = vmatpush1.bf16.msra.mxu0 0
        %6072 = vmatprep.subr.bf16.mxu0 0
        %6073 = vmatpush1.bf16.msra.mxu0 0
        %6074 = vmatprep.subr.bf16.mxu0 0
        %6075 = vmatpush1.bf16.msra.mxu0 0
        %6076 = vmatprep.subr.bf16.mxu0 0
        %6077 = vmatpush1.bf16.msra.mxu0 0
        %6078 = vmatprep.subr.bf16.mxu0 0
        %6079 = vmatpush1.bf16.msra.mxu0 0
        %6080 = vmatprep.subr.bf16.mxu0 0
        %6081 = vmatpush1.bf16.msra.mxu0 0
        %6082 = vmatprep.subr.bf16.mxu0 0
        %6083 = vmatpush1.bf16.msra.mxu0 0
        %6084 = vmatprep.subr.bf16.mxu0 0
        %6085 = vmatpush1.bf16.msra.mxu0 0
        %6086 = vmatprep.subr.bf16.mxu0 0
        %6087 = vmatpush1.bf16.msra.mxu0 0
        %6088 = vmatprep.subr.bf16.mxu0 0
        %6089 = vmatpush1.bf16.msra.mxu0 0
        %6090 = vmatprep.subr.bf16.mxu0 0
        %6091 = vmatpush1.bf16.msra.mxu0 0
        %6092 = vmatprep.mubr.bf16.mxu0 0
        %6093 = vmatmul.mubr.bf16.gmra.mrb[0].mxu0 %v6058
        %v6094 = vpop.f32.mrb[0].mxu0
        %v6095 = vadd.f32 %v6043, %v6094
        %v6096 = vpop.f32.mrb[0].mxu0
        %v6097 = vpop.f32.mrb[0].mxu0
        %v6098 = vpop.f32.mrb[0].mxu0
        %6099 = vdwg.mxu0
        %s6100 = scalar_lea.vmem %s57, 16
        %v6101 = vld [vmem:[%s6100] sm:$0xf]
        %v6102 = vld [vmem:[%s6100 + $0x4] sm:$0xf]
        %v6103 = vld [vmem:[%s6100 + $0x8] sm:$0xf]
        %v6104 = vld [vmem:[%s6100 + $0xc] sm:$0xf]
        %s6105 = scalar_lea.vmem %s59, 1
        %v6106 = vld [vmem:[%s6105] sm:$0x1]
        %v6108 = vlaneseq
        %v6109 = vshrl.u32 %v6108, 7
        %v6110 = vsub.s32 0, %v6109
        %v6111 = vrot.slane %v6106, %v6110
        %v6117 = vunpack.c.l.b16 %v6101
        %v6118 = vunpack.c.l.b16 %v6102
        %v6119 = vunpack.c.l.b16 %v6103
        %v6120 = vunpack.c.l.b16 %v6104
        %v6121 = vpack.c.b16 %v6118, %v6117
        %v6122 = vpack.c.b16 %v6120, %v6119
        %6125 = vmatprep.subr.bf16.mxu0 0
        %6126 = vmatpush1.bf16.msra.mxu0 %v6121
        %6127 = vmatprep.subr.bf16.mxu0 0
        %6128 = vmatpush1.bf16.msra.mxu0 %v6122
        %6129 = vmatprep.subr.bf16.mxu0 0
        %6130 = vmatpush1.bf16.msra.mxu0 0
        %6131 = vmatprep.subr.bf16.mxu0 0
        %6132 = vmatpush1.bf16.msra.mxu0 0
        %6133 = vmatprep.subr.bf16.mxu0 0
        %6134 = vmatpush1.bf16.msra.mxu0 0
        %6135 = vmatprep.subr.bf16.mxu0 0
        %6136 = vmatpush1.bf16.msra.mxu0 0
        %6137 = vmatprep.subr.bf16.mxu0 0
        %6138 = vmatpush1.bf16.msra.mxu0 0
        %6139 = vmatprep.subr.bf16.mxu0 0
        %6140 = vmatpush1.bf16.msra.mxu0 0
        %6141 = vmatprep.subr.bf16.mxu0 0
        %6142 = vmatpush1.bf16.msra.mxu0 0
        %6143 = vmatprep.subr.bf16.mxu0 0
        %6144 = vmatpush1.bf16.msra.mxu0 0
        %6145 = vmatprep.subr.bf16.mxu0 0
        %6146 = vmatpush1.bf16.msra.mxu0 0
        %6147 = vmatprep.subr.bf16.mxu0 0
        %6148 = vmatpush1.bf16.msra.mxu0 0
        %6149 = vmatprep.subr.bf16.mxu0 0
        %6150 = vmatpush1.bf16.msra.mxu0 0
        %6151 = vmatprep.subr.bf16.mxu0 0
        %6152 = vmatpush1.bf16.msra.mxu0 0
        %6153 = vmatprep.subr.bf16.mxu0 0
        %6154 = vmatpush1.bf16.msra.mxu0 0
        %6155 = vmatprep.subr.bf16.mxu0 0
        %6156 = vmatpush1.bf16.msra.mxu0 0
        %6157 = vmatprep.mubr.bf16.mxu0 0
        %6158 = vmatmul.mubr.bf16.gmra.mrb[0].mxu0 %v4338
        %v6159 = vpop.f32.mrb[0].mxu0
        %v6160 = vadd.f32 %v6111, %v6159
        %v6161 = vpop.f32.mrb[0].mxu0
        %v6162 = vpop.f32.mrb[0].mxu0
        %v6163 = vpop.f32.mrb[0].mxu0
        %6164 = vdwg.mxu0
        %s6165 = scalar_lea.vmem %s61, 16
        %v6166 = vld [vmem:[%s6165] sm:$0xf]
        %v6167 = vld [vmem:[%s6165 + $0x4] sm:$0xf]
        %v6168 = vld [vmem:[%s6165 + $0x8] sm:$0xf]
        %v6169 = vld [vmem:[%s6165 + $0xc] sm:$0xf]
        %s6170 = scalar_lea.vmem %s63, 1
        %v6171 = vld [vmem:[%s6170] sm:$0x1]
        %v6172 = vpack.c.bf16 %v6095, %v6095
        %v6173 = vpack.c.bf16 %v6160, %v6160
        %v6175 = vlaneseq
        %v6176 = vshrl.u32 %v6175, 7
        %v6177 = vsub.s32 0, %v6176
        %v6178 = vrot.slane %v6171, %v6177
        %v6180 = vadd.f32 %v6178, 0.0
        %v6182 = vsel %vm1600, %v6172, 0
        %v6185 = vsel %vm1600, %v6173, 0
        %6187 = vmatprep.subr.bf16.mxu0 0
        %6188 = vmatpush1.bf16.xpose.msra.mxu0 %v6185
        %6189 = vmatprep.subr.bf16.mxu0 0
        %6190 = vmatpush1.bf16.xpose.msra.mxu0 0
        %6191 = vmatprep.subr.bf16.mxu0 0
        %6192 = vmatpush1.bf16.xpose.msra.mxu0 0
        %6193 = vmatprep.subr.bf16.mxu0 0
        %6194 = vmatpush1.bf16.xpose.msra.mxu0 0
        %6195 = vmatprep.subr.bf16.mxu0 0
        %6196 = vmatpush1.bf16.xpose.msra.mxu0 0
        %6197 = vmatprep.subr.bf16.mxu0 0
        %6198 = vmatpush1.bf16.xpose.msra.mxu0 0
        %6199 = vmatprep.subr.bf16.mxu0 0
        %6200 = vmatpush1.bf16.xpose.msra.mxu0 0
        %6201 = vmatprep.subr.bf16.mxu0 0
        %6202 = vmatpush1.bf16.xpose.msra.mxu0 0
        %6203 = vmatprep.subr.bf16.mxu0 0
        %6204 = vmatpush1.bf16.xpose.msra.mxu0 0
        %6205 = vmatprep.subr.bf16.mxu0 0
        %6206 = vmatpush1.bf16.xpose.msra.mxu0 0
        %6207 = vmatprep.subr.bf16.mxu0 0
        %6208 = vmatpush1.bf16.xpose.msra.mxu0 0
        %6209 = vmatprep.subr.bf16.mxu0 0
        %6210 = vmatpush1.bf16.xpose.msra.mxu0 0
        %6211 = vmatprep.subr.bf16.mxu0 0
        %6212 = vmatpush1.bf16.xpose.msra.mxu0 0
        %6213 = vmatprep.subr.bf16.mxu0 0
        %6214 = vmatpush1.bf16.xpose.msra.mxu0 0
        %6215 = vmatprep.subr.bf16.mxu0 0
        %6216 = vmatpush1.bf16.xpose.msra.mxu0 0
        %6217 = vmatprep.subr.bf16.mxu0 0
        %6218 = vmatpush1.bf16.xpose.msra.mxu0 0
        %6219 = vmatprep.mubr.bf16.mxu0 0
        %6220 = vmatmul.mubr.bf16.gmra.mrb[0].mxu0 %v6182
        %v6221 = vpop.f32.mrb[0].mxu0
        %v6222 = vadd.f32 0.0, %v6221
        %v6223 = vpop.f32.mrb[0].mxu0
        %v6224 = vpop.f32.mrb[0].mxu0
        %v6225 = vpop.f32.mrb[0].mxu0
        %6226 = vdwg.mxu0
        %v6227 = vmul.f32 %v6222, 0.35355338
        %v6228 = vsel %vm1600, %v6227, -inf
        %6229 = vmax.xlane.f32.xlu0 %v6228
        %v6230 = vpop.xlane.xlu0 %6229
        %v6231 = vsub.f32 %v6227, %v6230
        %v6232 = vmul.f32 %v6231, 1.442695
        %v6233 = vpow.pop %v6232
        %v6234 = vsel %vm1600, %v6233, 0.0
        %6235 = vadd.xlane.f32.xlu0 %v6234
        %v6236 = vpop.xlane.xlu0 %6235
        %v6237 = vrcp.pop %v6236
        %v6238 = vmul.f32 1.0, %v6237
        %v6239 = vmul.f32 %v6233, %v6238
        %v6240 = vpack.c.bf16 %v6239, %v6239
        %6242 = vrot.lane.b32.xlu0 %v6173, 96
        %v6243 = vpop.permute.xlu0 %6242
        %v6245 = vsel %vm1600, %v6240, 0
        %v6248 = vsel %vm1673, %v6243, 0
        %6250 = vmatprep.subr.bf16.mxu0 0
        %6251 = vmatpush1.bf16.msra.mxu0 %v6248
        %6252 = vmatprep.subr.bf16.mxu0 0
        %6253 = vmatpush1.bf16.msra.mxu0 0
        %6254 = vmatprep.subr.bf16.mxu0 0
        %6255 = vmatpush1.bf16.msra.mxu0 0
        %6256 = vmatprep.subr.bf16.mxu0 0
        %6257 = vmatpush1.bf16.msra.mxu0 0
        %6258 = vmatprep.subr.bf16.mxu0 0
        %6259 = vmatpush1.bf16.msra.mxu0 0
        %6260 = vmatprep.subr.bf16.mxu0 0
        %6261 = vmatpush1.bf16.msra.mxu0 0
        %6262 = vmatprep.subr.bf16.mxu0 0
        %6263 = vmatpush1.bf16.msra.mxu0 0
        %6264 = vmatprep.subr.bf16.mxu0 0
        %6265 = vmatpush1.bf16.msra.mxu0 0
        %6266 = vmatprep.subr.bf16.mxu0 0
        %6267 = vmatpush1.bf16.msra.mxu0 0
        %6268 = vmatprep.subr.bf16.mxu0 0
        %6269 = vmatpush1.bf16.msra.mxu0 0
        %6270 = vmatprep.subr.bf16.mxu0 0
        %6271 = vmatpush1.bf16.msra.mxu0 0
        %6272 = vmatprep.subr.bf16.mxu0 0
        %6273 = vmatpush1.bf16.msra.mxu0 0
        %6274 = vmatprep.subr.bf16.mxu0 0
        %6275 = vmatpush1.bf16.msra.mxu0 0
        %6276 = vmatprep.subr.bf16.mxu0 0
        %6277 = vmatpush1.bf16.msra.mxu0 0
        %6278 = vmatprep.subr.bf16.mxu0 0
        %6279 = vmatpush1.bf16.msra.mxu0 0
        %6280 = vmatprep.subr.bf16.mxu0 0
        %6281 = vmatpush1.bf16.msra.mxu0 0
        %6282 = vmatprep.mubr.bf16.mxu0 0
        %6283 = vmatmul.mubr.bf16.gmra.mrb[0].mxu0 %v6245
        %v6284 = vpop.f32.mrb[0].mxu0
        %v6285 = vadd.f32 0.0, %v6284
        %v6286 = vpop.f32.mrb[0].mxu0
        %v6287 = vpop.f32.mrb[0].mxu0
        %v6288 = vpop.f32.mrb[0].mxu0
        %6289 = vdwg.mxu0
        %v6290 = vpack.c.bf16 %v6285, %v6285
        %v6292 = vsel %vm1600, %v6290, 0
        %v6295 = vsel %vm1673, %v6166, 0
        %6297 = vmatprep.subr.bf16.mxu0 0
        %6298 = vmatpush1.bf16.msra.mxu0 %v6295
        %6299 = vmatprep.subr.bf16.mxu0 0
        %6300 = vmatpush1.bf16.msra.mxu0 0
        %6301 = vmatprep.subr.bf16.mxu0 0
        %6302 = vmatpush1.bf16.msra.mxu0 0
        %6303 = vmatprep.subr.bf16.mxu0 0
        %6304 = vmatpush1.bf16.msra.mxu0 0
        %6305 = vmatprep.subr.bf16.mxu0 0
        %6306 = vmatpush1.bf16.msra.mxu0 0
        %6307 = vmatprep.subr.bf16.mxu0 0
        %6308 = vmatpush1.bf16.msra.mxu0 0
        %6309 = vmatprep.subr.bf16.mxu0 0
        %6310 = vmatpush1.bf16.msra.mxu0 0
        %6311 = vmatprep.subr.bf16.mxu0 0
        %6312 = vmatpush1.bf16.msra.mxu0 0
        %6313 = vmatprep.subr.bf16.mxu0 0
        %6314 = vmatpush1.bf16.msra.mxu0 0
        %6315 = vmatprep.subr.bf16.mxu0 0
        %6316 = vmatpush1.bf16.msra.mxu0 0
        %6317 = vmatprep.subr.bf16.mxu0 0
        %6318 = vmatpush1.bf16.msra.mxu0 0
        %6319 = vmatprep.subr.bf16.mxu0 0
        %6320 = vmatpush1.bf16.msra.mxu0 0
        %6321 = vmatprep.subr.bf16.mxu0 0
        %6322 = vmatpush1.bf16.msra.mxu0 0
        %6323 = vmatprep.subr.bf16.mxu0 0
        %6324 = vmatpush1.bf16.msra.mxu0 0
        %6325 = vmatprep.subr.bf16.mxu0 0
        %6326 = vmatpush1.bf16.msra.mxu0 0
        %6327 = vmatprep.subr.bf16.mxu0 0
        %6328 = vmatpush1.bf16.msra.mxu0 0
        %6329 = vmatprep.mubr.bf16.mxu0 0
        %6330 = vmatmul.mubr.bf16.gmra.mrb[0].mxu0 %v6292
        %v6331 = vpop.f32.mrb[0].mxu0
        %v6332 = vadd.f32 0.0, %v6331
        %v6333 = vpop.f32.mrb[0].mxu0
        %v6334 = vpop.f32.mrb[0].mxu0
        %v6335 = vpop.f32.mrb[0].mxu0
        %6336 = vdwg.mxu0
        %v6337 = vadd.f32 %v6180, %v6332
        %6339 = vrot.lane.b32.xlu0 %v6172, 120
        %v6340 = vpop.permute.xlu0 %6339
        %6341 = vrot.lane.b32.xlu0 %v6173, 120
        %v6342 = vpop.permute.xlu0 %6341
        %v6344 = vsel %vm1600, %v6340, 0
        %v6347 = vsel %vm1600, %v6342, 0
        %6349 = vmatprep.subr.bf16.mxu0 0
        %6350 = vmatpush1.bf16.xpose.msra.mxu0 %v6347
        %6351 = vmatprep.subr.bf16.mxu0 0
        %6352 = vmatpush1.bf16.xpose.msra.mxu0 0
        %6353 = vmatprep.subr.bf16.mxu0 0
        %6354 = vmatpush1.bf16.xpose.msra.mxu0 0
        %6355 = vmatprep.subr.bf16.mxu0 0
        %6356 = vmatpush1.bf16.xpose.msra.mxu0 0
        %6357 = vmatprep.subr.bf16.mxu0 0
        %6358 = vmatpush1.bf16.xpose.msra.mxu0 0
        %6359 = vmatprep.subr.bf16.mxu0 0
        %6360 = vmatpush1.bf16.xpose.msra.mxu0 0
        %6361 = vmatprep.subr.bf16.mxu0 0
        %6362 = vmatpush1.bf16.xpose.msra.mxu0 0
        %6363 = vmatprep.subr.bf16.mxu0 0
        %6364 = vmatpush1.bf16.xpose.msra.mxu0 0
        %6365 = vmatprep.subr.bf16.mxu0 0
        %6366 = vmatpush1.bf16.xpose.msra.mxu0 0
        %6367 = vmatprep.subr.bf16.mxu0 0
        %6368 = vmatpush1.bf16.xpose.msra.mxu0 0
        %6369 = vmatprep.subr.bf16.mxu0 0
        %6370 = vmatpush1.bf16.xpose.msra.mxu0 0
        %6371 = vmatprep.subr.bf16.mxu0 0
        %6372 = vmatpush1.bf16.xpose.msra.mxu0 0
        %6373 = vmatprep.subr.bf16.mxu0 0
        %6374 = vmatpush1.bf16.xpose.msra.mxu0 0
        %6375 = vmatprep.subr.bf16.mxu0 0
        %6376 = vmatpush1.bf16.xpose.msra.mxu0 0
        %6377 = vmatprep.subr.bf16.mxu0 0
        %6378 = vmatpush1.bf16.xpose.msra.mxu0 0
        %6379 = vmatprep.subr.bf16.mxu0 0
        %6380 = vmatpush1.bf16.xpose.msra.mxu0 0
        %6381 = vmatprep.mubr.bf16.mxu0 0
        %6382 = vmatmul.mubr.bf16.gmra.mrb[0].mxu0 %v6344
        %v6383 = vpop.f32.mrb[0].mxu0
        %v6384 = vadd.f32 0.0, %v6383
        %v6385 = vpop.f32.mrb[0].mxu0
        %v6386 = vpop.f32.mrb[0].mxu0
        %v6387 = vpop.f32.mrb[0].mxu0
        %6388 = vdwg.mxu0
        %v6389 = vmul.f32 %v6384, 0.35355338
        %v6390 = vsel %vm1600, %v6389, -inf
        %6391 = vmax.xlane.f32.xlu0 %v6390
        %v6392 = vpop.xlane.xlu0 %6391
        %v6393 = vsub.f32 %v6389, %v6392
        %v6394 = vmul.f32 %v6393, 1.442695
        %v6395 = vpow.pop %v6394
        %v6396 = vsel %vm1600, %v6395, 0.0
        %6397 = vadd.xlane.f32.xlu0 %v6396
        %v6398 = vpop.xlane.xlu0 %6397
        %v6399 = vrcp.pop %v6398
        %v6400 = vmul.f32 1.0, %v6399
        %v6401 = vmul.f32 %v6395, %v6400
        %v6402 = vpack.c.bf16 %v6401, %v6401
        %6403 = vrot.lane.b32.xlu0 %v6173, 88
        %v6404 = vpop.permute.xlu0 %6403
        %v6406 = vsel %vm1600, %v6402, 0
        %v6409 = vsel %vm1673, %v6404, 0
        %6411 = vmatprep.subr.bf16.mxu0 0
        %6412 = vmatpush1.bf16.msra.mxu0 %v6409
        %6413 = vmatprep.subr.bf16.mxu0 0
        %6414 = vmatpush1.bf16.msra.mxu0 0
        %6415 = vmatprep.subr.bf16.mxu0 0
        %6416 = vmatpush1.bf16.msra.mxu0 0
        %6417 = vmatprep.subr.bf16.mxu0 0
        %6418 = vmatpush1.bf16.msra.mxu0 0
        %6419 = vmatprep.subr.bf16.mxu0 0
        %6420 = vmatpush1.bf16.msra.mxu0 0
        %6421 = vmatprep.subr.bf16.mxu0 0
        %6422 = vmatpush1.bf16.msra.mxu0 0
        %6423 = vmatprep.subr.bf16.mxu0 0
        %6424 = vmatpush1.bf16.msra.mxu0 0
        %6425 = vmatprep.subr.bf16.mxu0 0
        %6426 = vmatpush1.bf16.msra.mxu0 0
        %6427 = vmatprep.subr.bf16.mxu0 0
        %6428 = vmatpush1.bf16.msra.mxu0 0
        %6429 = vmatprep.subr.bf16.mxu0 0
        %6430 = vmatpush1.bf16.msra.mxu0 0
        %6431 = vmatprep.subr.bf16.mxu0 0
        %6432 = vmatpush1.bf16.msra.mxu0 0
        %6433 = vmatprep.subr.bf16.mxu0 0
        %6434 = vmatpush1.bf16.msra.mxu0 0
        %6435 = vmatprep.subr.bf16.mxu0 0
        %6436 = vmatpush1.bf16.msra.mxu0 0
        %6437 = vmatprep.subr.bf16.mxu0 0
        %6438 = vmatpush1.bf16.msra.mxu0 0
        %6439 = vmatprep.subr.bf16.mxu0 0
        %6440 = vmatpush1.bf16.msra.mxu0 0
        %6441 = vmatprep.subr.bf16.mxu0 0
        %6442 = vmatpush1.bf16.msra.mxu0 0
        %6443 = vmatprep.mubr.bf16.mxu0 0
        %6444 = vmatmul.mubr.bf16.gmra.mrb[0].mxu0 %v6406
        %v6445 = vpop.f32.mrb[0].mxu0
        %v6446 = vadd.f32 0.0, %v6445
        %v6447 = vpop.f32.mrb[0].mxu0
        %v6448 = vpop.f32.mrb[0].mxu0
        %v6449 = vpop.f32.mrb[0].mxu0
        %6450 = vdwg.mxu0
        %v6451 = vpack.c.bf16 %v6446, %v6446
        %v6453 = vsel %vm1600, %v6451, 0
        %v6456 = vsel %vm1673, %v6167, 0
        %6458 = vmatprep.subr.bf16.mxu0 0
        %6459 = vmatpush1.bf16.msra.mxu0 %v6456
        %6460 = vmatprep.subr.bf16.mxu0 0
        %6461 = vmatpush1.bf16.msra.mxu0 0
        %6462 = vmatprep.subr.bf16.mxu0 0
        %6463 = vmatpush1.bf16.msra.mxu0 0
        %6464 = vmatprep.subr.bf16.mxu0 0
        %6465 = vmatpush1.bf16.msra.mxu0 0
        %6466 = vmatprep.subr.bf16.mxu0 0
        %6467 = vmatpush1.bf16.msra.mxu0 0
        %6468 = vmatprep.subr.bf16.mxu0 0
        %6469 = vmatpush1.bf16.msra.mxu0 0
        %6470 = vmatprep.subr.bf16.mxu0 0
        %6471 = vmatpush1.bf16.msra.mxu0 0
        %6472 = vmatprep.subr.bf16.mxu0 0
        %6473 = vmatpush1.bf16.msra.mxu0 0
        %6474 = vmatprep.subr.bf16.mxu0 0
        %6475 = vmatpush1.bf16.msra.mxu0 0
        %6476 = vmatprep.subr.bf16.mxu0 0
        %6477 = vmatpush1.bf16.msra.mxu0 0
        %6478 = vmatprep.subr.bf16.mxu0 0
        %6479 = vmatpush1.bf16.msra.mxu0 0
        %6480 = vmatprep.subr.bf16.mxu0 0
        %6481 = vmatpush1.bf16.msra.mxu0 0
        %6482 = vmatprep.subr.bf16.mxu0 0
        %6483 = vmatpush1.bf16.msra.mxu0 0
        %6484 = vmatprep.subr.bf16.mxu0 0
        %6485 = vmatpush1.bf16.msra.mxu0 0
        %6486 = vmatprep.subr.bf16.mxu0 0
        %6487 = vmatpush1.bf16.msra.mxu0 0
        %6488 = vmatprep.subr.bf16.mxu0 0
        %6489 = vmatpush1.bf16.msra.mxu0 0
        %6490 = vmatprep.mubr.bf16.mxu0 0
        %6491 = vmatmul.mubr.bf16.gmra.mrb[0].mxu0 %v6453
        %v6492 = vpop.f32.mrb[0].mxu0
        %v6493 = vadd.f32 0.0, %v6492
        %v6494 = vpop.f32.mrb[0].mxu0
        %v6495 = vpop.f32.mrb[0].mxu0
        %v6496 = vpop.f32.mrb[0].mxu0
        %6497 = vdwg.mxu0
        %v6498 = vadd.f32 %v6337, %v6493
        %6499 = vrot.lane.b32.xlu0 %v6172, 112
        %v6500 = vpop.permute.xlu0 %6499
        %6501 = vrot.lane.b32.xlu0 %v6173, 112
        %v6502 = vpop.permute.xlu0 %6501
        %v6504 = vsel %vm1600, %v6500, 0
        %v6507 = vsel %vm1600, %v6502, 0
        %6509 = vmatprep.subr.bf16.mxu0 0
        %6510 = vmatpush1.bf16.xpose.msra.mxu0 %v6507
        %6511 = vmatprep.subr.bf16.mxu0 0
        %6512 = vmatpush1.bf16.xpose.msra.mxu0 0
        %6513 = vmatprep.subr.bf16.mxu0 0
        %6514 = vmatpush1.bf16.xpose.msra.mxu0 0
        %6515 = vmatprep.subr.bf16.mxu0 0
        %6516 = vmatpush1.bf16.xpose.msra.mxu0 0
        %6517 = vmatprep.subr.bf16.mxu0 0
        %6518 = vmatpush1.bf16.xpose.msra.mxu0 0
        %6519 = vmatprep.subr.bf16.mxu0 0
        %6520 = vmatpush1.bf16.xpose.msra.mxu0 0
        %6521 = vmatprep.subr.bf16.mxu0 0
        %6522 = vmatpush1.bf16.xpose.msra.mxu0 0
        %6523 = vmatprep.subr.bf16.mxu0 0
        %6524 = vmatpush1.bf16.xpose.msra.mxu0 0
        %6525 = vmatprep.subr.bf16.mxu0 0
        %6526 = vmatpush1.bf16.xpose.msra.mxu0 0
        %6527 = vmatprep.subr.bf16.mxu0 0
        %6528 = vmatpush1.bf16.xpose.msra.mxu0 0
        %6529 = vmatprep.subr.bf16.mxu0 0
        %6530 = vmatpush1.bf16.xpose.msra.mxu0 0
        %6531 = vmatprep.subr.bf16.mxu0 0
        %6532 = vmatpush1.bf16.xpose.msra.mxu0 0
        %6533 = vmatprep.subr.bf16.mxu0 0
        %6534 = vmatpush1.bf16.xpose.msra.mxu0 0
        %6535 = vmatprep.subr.bf16.mxu0 0
        %6536 = vmatpush1.bf16.xpose.msra.mxu0 0
        %6537 = vmatprep.subr.bf16.mxu0 0
        %6538 = vmatpush1.bf16.xpose.msra.mxu0 0
        %6539 = vmatprep.subr.bf16.mxu0 0
        %6540 = vmatpush1.bf16.xpose.msra.mxu0 0
        %6541 = vmatprep.mubr.bf16.mxu0 0
        %6542 = vmatmul.mubr.bf16.gmra.mrb[0].mxu0 %v6504
        %v6543 = vpop.f32.mrb[0].mxu0
        %v6544 = vadd.f32 0.0, %v6543
        %v6545 = vpop.f32.mrb[0].mxu0
        %v6546 = vpop.f32.mrb[0].mxu0
        %v6547 = vpop.f32.mrb[0].mxu0
        %6548 = vdwg.mxu0
        %v6549 = vmul.f32 %v6544, 0.35355338
        %v6550 = vsel %vm1600, %v6549, -inf
        %6551 = vmax.xlane.f32.xlu0 %v6550
        %v6552 = vpop.xlane.xlu0 %6551
        %v6553 = vsub.f32 %v6549, %v6552
        %v6554 = vmul.f32 %v6553, 1.442695
        %v6555 = vpow.pop %v6554
        %v6556 = vsel %vm1600, %v6555, 0.0
        %6557 = vadd.xlane.f32.xlu0 %v6556
        %v6558 = vpop.xlane.xlu0 %6557
        %v6559 = vrcp.pop %v6558
        %v6560 = vmul.f32 1.0, %v6559
        %v6561 = vmul.f32 %v6555, %v6560
        %v6562 = vpack.c.bf16 %v6561, %v6561
        %6563 = vrot.lane.b32.xlu0 %v6173, 80
        %v6564 = vpop.permute.xlu0 %6563
        %v6566 = vsel %vm1600, %v6562, 0
        %v6569 = vsel %vm1673, %v6564, 0
        %6571 = vmatprep.subr.bf16.mxu0 0
        %6572 = vmatpush1.bf16.msra.mxu0 %v6569
        %6573 = vmatprep.subr.bf16.mxu0 0
        %6574 = vmatpush1.bf16.msra.mxu0 0
        %6575 = vmatprep.subr.bf16.mxu0 0
        %6576 = vmatpush1.bf16.msra.mxu0 0
        %6577 = vmatprep.subr.bf16.mxu0 0
        %6578 = vmatpush1.bf16.msra.mxu0 0
        %6579 = vmatprep.subr.bf16.mxu0 0
        %6580 = vmatpush1.bf16.msra.mxu0 0
        %6581 = vmatprep.subr.bf16.mxu0 0
        %6582 = vmatpush1.bf16.msra.mxu0 0
        %6583 = vmatprep.subr.bf16.mxu0 0
        %6584 = vmatpush1.bf16.msra.mxu0 0
        %6585 = vmatprep.subr.bf16.mxu0 0
        %6586 = vmatpush1.bf16.msra.mxu0 0
        %6587 = vmatprep.subr.bf16.mxu0 0
        %6588 = vmatpush1.bf16.msra.mxu0 0
        %6589 = vmatprep.subr.bf16.mxu0 0
        %6590 = vmatpush1.bf16.msra.mxu0 0
        %6591 = vmatprep.subr.bf16.mxu0 0
        %6592 = vmatpush1.bf16.msra.mxu0 0
        %6593 = vmatprep.subr.bf16.mxu0 0
        %6594 = vmatpush1.bf16.msra.mxu0 0
        %6595 = vmatprep.subr.bf16.mxu0 0
        %6596 = vmatpush1.bf16.msra.mxu0 0
        %6597 = vmatprep.subr.bf16.mxu0 0
        %6598 = vmatpush1.bf16.msra.mxu0 0
        %6599 = vmatprep.subr.bf16.mxu0 0
        %6600 = vmatpush1.bf16.msra.mxu0 0
        %6601 = vmatprep.subr.bf16.mxu0 0
        %6602 = vmatpush1.bf16.msra.mxu0 0
        %6603 = vmatprep.mubr.bf16.mxu0 0
        %6604 = vmatmul.mubr.bf16.gmra.mrb[0].mxu0 %v6566
        %v6605 = vpop.f32.mrb[0].mxu0
        %v6606 = vadd.f32 0.0, %v6605
        %v6607 = vpop.f32.mrb[0].mxu0
        %v6608 = vpop.f32.mrb[0].mxu0
        %v6609 = vpop.f32.mrb[0].mxu0
        %6610 = vdwg.mxu0
        %v6611 = vpack.c.bf16 %v6606, %v6606
        %v6613 = vsel %vm1600, %v6611, 0
        %v6616 = vsel %vm1673, %v6168, 0
        %6618 = vmatprep.subr.bf16.mxu0 0
        %6619 = vmatpush1.bf16.msra.mxu0 %v6616
        %6620 = vmatprep.subr.bf16.mxu0 0
        %6621 = vmatpush1.bf16.msra.mxu0 0
        %6622 = vmatprep.subr.bf16.mxu0 0
        %6623 = vmatpush1.bf16.msra.mxu0 0
        %6624 = vmatprep.subr.bf16.mxu0 0
        %6625 = vmatpush1.bf16.msra.mxu0 0
        %6626 = vmatprep.subr.bf16.mxu0 0
        %6627 = vmatpush1.bf16.msra.mxu0 0
        %6628 = vmatprep.subr.bf16.mxu0 0
        %6629 = vmatpush1.bf16.msra.mxu0 0
        %6630 = vmatprep.subr.bf16.mxu0 0
        %6631 = vmatpush1.bf16.msra.mxu0 0
        %6632 = vmatprep.subr.bf16.mxu0 0
        %6633 = vmatpush1.bf16.msra.mxu0 0
        %6634 = vmatprep.subr.bf16.mxu0 0
        %6635 = vmatpush1.bf16.msra.mxu0 0
        %6636 = vmatprep.subr.bf16.mxu0 0
        %6637 = vmatpush1.bf16.msra.mxu0 0
        %6638 = vmatprep.subr.bf16.mxu0 0
        %6639 = vmatpush1.bf16.msra.mxu0 0
        %6640 = vmatprep.subr.bf16.mxu0 0
        %6641 = vmatpush1.bf16.msra.mxu0 0
        %6642 = vmatprep.subr.bf16.mxu0 0
        %6643 = vmatpush1.bf16.msra.mxu0 0
        %6644 = vmatprep.subr.bf16.mxu0 0
        %6645 = vmatpush1.bf16.msra.mxu0 0
        %6646 = vmatprep.subr.bf16.mxu0 0
        %6647 = vmatpush1.bf16.msra.mxu0 0
        %6648 = vmatprep.subr.bf16.mxu0 0
        %6649 = vmatpush1.bf16.msra.mxu0 0
        %6650 = vmatprep.mubr.bf16.mxu0 0
        %6651 = vmatmul.mubr.bf16.gmra.mrb[0].mxu0 %v6613
        %v6652 = vpop.f32.mrb[0].mxu0
        %v6653 = vadd.f32 0.0, %v6652
        %v6654 = vpop.f32.mrb[0].mxu0
        %v6655 = vpop.f32.mrb[0].mxu0
        %v6656 = vpop.f32.mrb[0].mxu0
        %6657 = vdwg.mxu0
        %v6658 = vadd.f32 %v6498, %v6653
        %6659 = vrot.lane.b32.xlu0 %v6172, 104
        %v6660 = vpop.permute.xlu0 %6659
        %6661 = vrot.lane.b32.xlu0 %v6173, 104
        %v6662 = vpop.permute.xlu0 %6661
        %v6664 = vsel %vm1600, %v6660, 0
        %v6667 = vsel %vm1600, %v6662, 0
        %6669 = vmatprep.subr.bf16.mxu0 0
        %6670 = vmatpush1.bf16.xpose.msra.mxu0 %v6667
        %6671 = vmatprep.subr.bf16.mxu0 0
        %6672 = vmatpush1.bf16.xpose.msra.mxu0 0
        %6673 = vmatprep.subr.bf16.mxu0 0
        %6674 = vmatpush1.bf16.xpose.msra.mxu0 0
        %6675 = vmatprep.subr.bf16.mxu0 0
        %6676 = vmatpush1.bf16.xpose.msra.mxu0 0
        %6677 = vmatprep.subr.bf16.mxu0 0
        %6678 = vmatpush1.bf16.xpose.msra.mxu0 0
        %6679 = vmatprep.subr.bf16.mxu0 0
        %6680 = vmatpush1.bf16.xpose.msra.mxu0 0
        %6681 = vmatprep.subr.bf16.mxu0 0
        %6682 = vmatpush1.bf16.xpose.msra.mxu0 0
        %6683 = vmatprep.subr.bf16.mxu0 0
        %6684 = vmatpush1.bf16.xpose.msra.mxu0 0
        %6685 = vmatprep.subr.bf16.mxu0 0
        %6686 = vmatpush1.bf16.xpose.msra.mxu0 0
        %6687 = vmatprep.subr.bf16.mxu0 0
        %6688 = vmatpush1.bf16.xpose.msra.mxu0 0
        %6689 = vmatprep.subr.bf16.mxu0 0
        %6690 = vmatpush1.bf16.xpose.msra.mxu0 0
        %6691 = vmatprep.subr.bf16.mxu0 0
        %6692 = vmatpush1.bf16.xpose.msra.mxu0 0
        %6693 = vmatprep.subr.bf16.mxu0 0
        %6694 = vmatpush1.bf16.xpose.msra.mxu0 0
        %6695 = vmatprep.subr.bf16.mxu0 0
        %6696 = vmatpush1.bf16.xpose.msra.mxu0 0
        %6697 = vmatprep.subr.bf16.mxu0 0
        %6698 = vmatpush1.bf16.xpose.msra.mxu0 0
        %6699 = vmatprep.subr.bf16.mxu0 0
        %6700 = vmatpush1.bf16.xpose.msra.mxu0 0
        %6701 = vmatprep.mubr.bf16.mxu0 0
        %6702 = vmatmul.mubr.bf16.gmra.mrb[0].mxu0 %v6664
        %v6703 = vpop.f32.mrb[0].mxu0
        %v6704 = vadd.f32 0.0, %v6703
        %v6705 = vpop.f32.mrb[0].mxu0
        %v6706 = vpop.f32.mrb[0].mxu0
        %v6707 = vpop.f32.mrb[0].mxu0
        %6708 = vdwg.mxu0
        %v6709 = vmul.f32 %v6704, 0.35355338
        %v6710 = vsel %vm1600, %v6709, -inf
        %6711 = vmax.xlane.f32.xlu0 %v6710
        %v6712 = vpop.xlane.xlu0 %6711
        %v6713 = vsub.f32 %v6709, %v6712
        %v6714 = vmul.f32 %v6713, 1.442695
        %v6715 = vpow.pop %v6714
        %v6716 = vsel %vm1600, %v6715, 0.0
        %6717 = vadd.xlane.f32.xlu0 %v6716
        %v6718 = vpop.xlane.xlu0 %6717
        %v6719 = vrcp.pop %v6718
        %v6720 = vmul.f32 1.0, %v6719
        %v6721 = vmul.f32 %v6715, %v6720
        %v6722 = vpack.c.bf16 %v6721, %v6721
        %6723 = vrot.lane.b32.xlu0 %v6173, 72
        %v6724 = vpop.permute.xlu0 %6723
        %v6726 = vsel %vm1600, %v6722, 0
        %v6729 = vsel %vm1673, %v6724, 0
        %6731 = vmatprep.subr.bf16.mxu0 0
        %6732 = vmatpush1.bf16.msra.mxu0 %v6729
        %6733 = vmatprep.subr.bf16.mxu0 0
        %6734 = vmatpush1.bf16.msra.mxu0 0
        %6735 = vmatprep.subr.bf16.mxu0 0
        %6736 = vmatpush1.bf16.msra.mxu0 0
        %6737 = vmatprep.subr.bf16.mxu0 0
        %6738 = vmatpush1.bf16.msra.mxu0 0
        %6739 = vmatprep.subr.bf16.mxu0 0
        %6740 = vmatpush1.bf16.msra.mxu0 0
        %6741 = vmatprep.subr.bf16.mxu0 0
        %6742 = vmatpush1.bf16.msra.mxu0 0
        %6743 = vmatprep.subr.bf16.mxu0 0
        %6744 = vmatpush1.bf16.msra.mxu0 0
        %6745 = vmatprep.subr.bf16.mxu0 0
        %6746 = vmatpush1.bf16.msra.mxu0 0
        %6747 = vmatprep.subr.bf16.mxu0 0
        %6748 = vmatpush1.bf16.msra.mxu0 0
        %6749 = vmatprep.subr.bf16.mxu0 0
        %6750 = vmatpush1.bf16.msra.mxu0 0
        %6751 = vmatprep.subr.bf16.mxu0 0
        %6752 = vmatpush1.bf16.msra.mxu0 0
        %6753 = vmatprep.subr.bf16.mxu0 0
        %6754 = vmatpush1.bf16.msra.mxu0 0
        %6755 = vmatprep.subr.bf16.mxu0 0
        %6756 = vmatpush1.bf16.msra.mxu0 0
        %6757 = vmatprep.subr.bf16.mxu0 0
        %6758 = vmatpush1.bf16.msra.mxu0 0
        %6759 = vmatprep.subr.bf16.mxu0 0
        %6760 = vmatpush1.bf16.msra.mxu0 0
        %6761 = vmatprep.subr.bf16.mxu0 0
        %6762 = vmatpush1.bf16.msra.mxu0 0
        %6763 = vmatprep.mubr.bf16.mxu0 0
        %6764 = vmatmul.mubr.bf16.gmra.mrb[0].mxu0 %v6726
        %v6765 = vpop.f32.mrb[0].mxu0
        %v6766 = vadd.f32 0.0, %v6765
        %v6767 = vpop.f32.mrb[0].mxu0
        %v6768 = vpop.f32.mrb[0].mxu0
        %v6769 = vpop.f32.mrb[0].mxu0
        %6770 = vdwg.mxu0
        %v6771 = vpack.c.bf16 %v6766, %v6766
        %v6773 = vsel %vm1600, %v6771, 0
        %v6776 = vsel %vm1673, %v6169, 0
        %6778 = vmatprep.subr.bf16.mxu0 0
        %6779 = vmatpush1.bf16.msra.mxu0 %v6776
        %6780 = vmatprep.subr.bf16.mxu0 0
        %6781 = vmatpush1.bf16.msra.mxu0 0
        %6782 = vmatprep.subr.bf16.mxu0 0
        %6783 = vmatpush1.bf16.msra.mxu0 0
        %6784 = vmatprep.subr.bf16.mxu0 0
        %6785 = vmatpush1.bf16.msra.mxu0 0
        %6786 = vmatprep.subr.bf16.mxu0 0
        %6787 = vmatpush1.bf16.msra.mxu0 0
        %6788 = vmatprep.subr.bf16.mxu0 0
        %6789 = vmatpush1.bf16.msra.mxu0 0
        %6790 = vmatprep.subr.bf16.mxu0 0
        %6791 = vmatpush1.bf16.msra.mxu0 0
        %6792 = vmatprep.subr.bf16.mxu0 0
        %6793 = vmatpush1.bf16.msra.mxu0 0
        %6794 = vmatprep.subr.bf16.mxu0 0
        %6795 = vmatpush1.bf16.msra.mxu0 0
        %6796 = vmatprep.subr.bf16.mxu0 0
        %6797 = vmatpush1.bf16.msra.mxu0 0
        %6798 = vmatprep.subr.bf16.mxu0 0
        %6799 = vmatpush1.bf16.msra.mxu0 0
        %6800 = vmatprep.subr.bf16.mxu0 0
        %6801 = vmatpush1.bf16.msra.mxu0 0
        %6802 = vmatprep.subr.bf16.mxu0 0
        %6803 = vmatpush1.bf16.msra.mxu0 0
        %6804 = vmatprep.subr.bf16.mxu0 0
        %6805 = vmatpush1.bf16.msra.mxu0 0
        %6806 = vmatprep.subr.bf16.mxu0 0
        %6807 = vmatpush1.bf16.msra.mxu0 0
        %6808 = vmatprep.subr.bf16.mxu0 0
        %6809 = vmatpush1.bf16.msra.mxu0 0
        %6810 = vmatprep.mubr.bf16.mxu0 0
        %6811 = vmatmul.mubr.bf16.gmra.mrb[0].mxu0 %v6773
        %v6812 = vpop.f32.mrb[0].mxu0
        %v6813 = vadd.f32 0.0, %v6812
        %v6814 = vpop.f32.mrb[0].mxu0
        %v6815 = vpop.f32.mrb[0].mxu0
        %v6816 = vpop.f32.mrb[0].mxu0
        %6817 = vdwg.mxu0
        %v6818 = vadd.f32 %v6658, %v6813
        %v6819 = vadd.f32 %v6030, %v6818
        %s6820 = scalar_lea.vmem %s65, 1
        %v6821 = vld [vmem:[%s6820] sm:$0x1]
        %s6822 = scalar_lea.vmem %s67, 1
        %v6823 = vld [vmem:[%s6822] sm:$0x1]
        %v6824 = vsel %vm1540, %v6819, 0.0
        %6825 = vadd.xlane.f32.xlu0 %v6824
        %v6826 = vpop.xlane.xlu0 %6825
        %v6827 = vmul.f32 %v6826, %v2254
        %v6828 = vsub.f32 %v6819, %v6827
        %v6829 = vmul.f32 %v6828, %v6828
        %v6830 = vsel %vm1540, %v6829, 0.0
        %6831 = vadd.xlane.f32.xlu0 %v6830
        %v6832 = vpop.xlane.xlu0 %6831
        %v6833 = vmul.f32 %v6832, %v2254
        %v6834 = vadd.f32 %v6833, 1e-05
        %v6835 = vrsqrt.pop %v6834
        %v6836 = vmul.f32 %v6828, %v6835
        %v6838 = vlaneseq
        %v6839 = vshrl.u32 %v6838, 7
        %v6840 = vsub.s32 0, %v6839
        %v6841 = vrot.slane %v6821, %v6840
        %v6843 = vmul.f32 %v6836, %v6841
        %v6845 = vlaneseq
        %v6846 = vshrl.u32 %v6845, 7
        %v6847 = vsub.s32 0, %v6846
        %v6848 = vrot.slane %v6823, %v6847
        %v6850 = vadd.f32 %v6843, %v6848
        %s6851 = scalar_lea.vmem %s69, 16
        %v6852 = vld [vmem:[%s6851] sm:$0xf]
        %v6853 = vld [vmem:[%s6851 + $0x4] sm:$0xf]
        %v6854 = vld [vmem:[%s6851 + $0x8] sm:$0xf]
        %v6855 = vld [vmem:[%s6851 + $0xc] sm:$0xf]
        %v6856 = vpack.c.bf16 %v6850, %v6850
        %s6857 = scalar_lea.vmem [#allocation2], 1
        %v6858 = vld [vmem:[%s6857] sm:$0x1]
        %v6860 = vlaneseq
        %v6861 = vshrl.u32 %v6860, 7
        %v6862 = vsub.s32 0, %v6861
        %v6863 = vrot.slane %v6858, %v6862
        %v6869 = vunpack.c.l.b16 %v6852
        %v6870 = vunpack.c.l.b16 %v6853
        %v6871 = vunpack.c.l.b16 %v6854
        %v6872 = vunpack.c.l.b16 %v6855
        %v6873 = vpack.c.b16 %v6870, %v6869
        %v6874 = vpack.c.b16 %v6872, %v6871
        %v6878 = vsel %vm1540, %v6856, 0
        %6880 = vmatprep.subr.bf16.mxu0 0
        %6881 = vmatpush1.bf16.msra.mxu0 %v6873
        %6882 = vmatprep.subr.bf16.mxu0 0
        %6883 = vmatpush1.bf16.msra.mxu0 %v6874
        %6884 = vmatprep.subr.bf16.mxu0 0
        %6885 = vmatpush1.bf16.msra.mxu0 0
        %6886 = vmatprep.subr.bf16.mxu0 0
        %6887 = vmatpush1.bf16.msra.mxu0 0
        %6888 = vmatprep.subr.bf16.mxu0 0
        %6889 = vmatpush1.bf16.msra.mxu0 0
        %6890 = vmatprep.subr.bf16.mxu0 0
        %6891 = vmatpush1.bf16.msra.mxu0 0
        %6892 = vmatprep.subr.bf16.mxu0 0
        %6893 = vmatpush1.bf16.msra.mxu0 0
        %6894 = vmatprep.subr.bf16.mxu0 0
        %6895 = vmatpush1.bf16.msra.mxu0 0
        %6896 = vmatprep.subr.bf16.mxu0 0
        %6897 = vmatpush1.bf16.msra.mxu0 0
        %6898 = vmatprep.subr.bf16.mxu0 0
        %6899 = vmatpush1.bf16.msra.mxu0 0
        %6900 = vmatprep.subr.bf16.mxu0 0
        %6901 = vmatpush1.bf16.msra.mxu0 0
        %6902 = vmatprep.subr.bf16.mxu0 0
        %6903 = vmatpush1.bf16.msra.mxu0 0
        %6904 = vmatprep.subr.bf16.mxu0 0
        %6905 = vmatpush1.bf16.msra.mxu0 0
        %6906 = vmatprep.subr.bf16.mxu0 0
        %6907 = vmatpush1.bf16.msra.mxu0 0
        %6908 = vmatprep.subr.bf16.mxu0 0
        %6909 = vmatpush1.bf16.msra.mxu0 0
        %6910 = vmatprep.subr.bf16.mxu0 0
        %6911 = vmatpush1.bf16.msra.mxu0 0
        %6912 = vmatprep.mubr.bf16.mxu0 0
        %6913 = vmatmul.mubr.bf16.gmra.mrb[0].mxu0 %v6878
        %v6914 = vpop.f32.mrb[0].mxu0
        %v6915 = vadd.f32 %v6863, %v6914
        %v6916 = vpop.f32.mrb[0].mxu0
        %v6917 = vpop.f32.mrb[0].mxu0
        %v6918 = vpop.f32.mrb[0].mxu0
        %6919 = vdwg.mxu0
        %v6920 = vmax.f32 %v6915, 0.0
        %s6921 = scalar_lea.vmem %s73, 64
        %v6922 = vld [vmem:[%s6921] sm:$0xf]
        %v6923 = vld [vmem:[%s6921 + $0x4] sm:$0xf]
        %v6924 = vld [vmem:[%s6921 + $0x8] sm:$0xf]
        %v6925 = vld [vmem:[%s6921 + $0xc] sm:$0xf]
        %v6926 = vld [vmem:[%s6921 + $0x10] sm:$0xf]
        %v6927 = vld [vmem:[%s6921 + $0x14] sm:$0xf]
        %v6928 = vld [vmem:[%s6921 + $0x18] sm:$0xf]
        %v6929 = vld [vmem:[%s6921 + $0x1c] sm:$0xf]
        %v6930 = vld [vmem:[%s6921 + $0x20] sm:$0xf]
        %v6931 = vld [vmem:[%s6921 + $0x24] sm:$0xf]
        %v6932 = vld [vmem:[%s6921 + $0x28] sm:$0xf]
        %v6933 = vld [vmem:[%s6921 + $0x2c] sm:$0xf]
        %v6934 = vld [vmem:[%s6921 + $0x30] sm:$0xf]
        %v6935 = vld [vmem:[%s6921 + $0x34] sm:$0xf]
        %v6936 = vld [vmem:[%s6921 + $0x38] sm:$0xf]
        %v6937 = vld [vmem:[%s6921 + $0x3c] sm:$0xf]
        %v6938 = vpack.c.bf16 %v6920, %v6920
        %s6939 = scalar_lea.vmem [#allocation4], 1
        %v6940 = vld [vmem:[%s6939] sm:$0x1]
        %v6942 = vlaneseq
        %v6943 = vshrl.u32 %v6942, 7
        %v6944 = vsub.s32 0, %v6943
        %v6945 = vrot.slane %v6940, %v6944
        %v6963 = vunpack.c.l.b16 %v6922
        %v6964 = vunpack.c.l.b16 %v6923
        %v6965 = vunpack.c.l.b16 %v6924
        %v6966 = vunpack.c.l.b16 %v6925
        %v6967 = vunpack.c.l.b16 %v6926
        %v6968 = vunpack.c.l.b16 %v6927
        %v6969 = vunpack.c.l.b16 %v6928
        %v6970 = vunpack.c.l.b16 %v6929
        %v6971 = vunpack.c.l.b16 %v6930
        %v6972 = vunpack.c.l.b16 %v6931
        %v6973 = vunpack.c.l.b16 %v6932
        %v6974 = vunpack.c.l.b16 %v6933
        %v6975 = vunpack.c.l.b16 %v6934
        %v6976 = vunpack.c.l.b16 %v6935
        %v6977 = vunpack.c.l.b16 %v6936
        %v6978 = vunpack.c.l.b16 %v6937
        %v6979 = vpack.c.b16 %v6964, %v6963
        %v6980 = vpack.c.b16 %v6966, %v6965
        %v6981 = vpack.c.b16 %v6968, %v6967
        %v6982 = vpack.c.b16 %v6970, %v6969
        %v6983 = vpack.c.b16 %v6972, %v6971
        %v6984 = vpack.c.b16 %v6974, %v6973
        %v6985 = vpack.c.b16 %v6976, %v6975
        %v6986 = vpack.c.b16 %v6978, %v6977
        %6995 = vmatprep.subr.bf16.mxu0 0
        %6996 = vmatpush1.bf16.msra.mxu0 %v6979
        %6997 = vmatprep.subr.bf16.mxu0 0
        %6998 = vmatpush1.bf16.msra.mxu0 %v6980
        %6999 = vmatprep.subr.bf16.mxu0 0
        %7000 = vmatpush1.bf16.msra.mxu0 %v6981
        %7001 = vmatprep.subr.bf16.mxu0 0
        %7002 = vmatpush1.bf16.msra.mxu0 %v6982
        %7003 = vmatprep.subr.bf16.mxu0 0
        %7004 = vmatpush1.bf16.msra.mxu0 %v6983
        %7005 = vmatprep.subr.bf16.mxu0 0
        %7006 = vmatpush1.bf16.msra.mxu0 %v6984
        %7007 = vmatprep.subr.bf16.mxu0 0
        %7008 = vmatpush1.bf16.msra.mxu0 %v6985
        %7009 = vmatprep.subr.bf16.mxu0 0
        %7010 = vmatpush1.bf16.msra.mxu0 %v6986
        %7011 = vmatprep.subr.bf16.mxu0 0
        %7012 = vmatpush1.bf16.msra.mxu0 0
        %7013 = vmatprep.subr.bf16.mxu0 0
        %7014 = vmatpush1.bf16.msra.mxu0 0
        %7015 = vmatprep.subr.bf16.mxu0 0
        %7016 = vmatpush1.bf16.msra.mxu0 0
        %7017 = vmatprep.subr.bf16.mxu0 0
        %7018 = vmatpush1.bf16.msra.mxu0 0
        %7019 = vmatprep.subr.bf16.mxu0 0
        %7020 = vmatpush1.bf16.msra.mxu0 0
        %7021 = vmatprep.subr.bf16.mxu0 0
        %7022 = vmatpush1.bf16.msra.mxu0 0
        %7023 = vmatprep.subr.bf16.mxu0 0
        %7024 = vmatpush1.bf16.msra.mxu0 0
        %7025 = vmatprep.subr.bf16.mxu0 0
        %7026 = vmatpush1.bf16.msra.mxu0 0
        %7027 = vmatprep.mubr.bf16.mxu0 0
        %7028 = vmatmul.mubr.bf16.gmra.mrb[0].mxu0 %v6938
        %v7029 = vpop.f32.mrb[0].mxu0
        %v7030 = vadd.f32 %v6945, %v7029
        %v7031 = vpop.f32.mrb[0].mxu0
        %v7032 = vpop.f32.mrb[0].mxu0
        %v7033 = vpop.f32.mrb[0].mxu0
        %7034 = vdwg.mxu0
        %v7035 = vadd.f32 %v6850, %v7030
        %s7036 = scalar_lea.vmem %s77, 1
        %v7037 = vld [vmem:[%s7036] sm:$0x1]
        %s7038 = scalar_lea.vmem %s79, 1
        %v7039 = vld [vmem:[%s7038] sm:$0x1]
        %v7040 = vsel %vm1540, %v7035, 0.0
        %7041 = vadd.xlane.f32.xlu0 %v7040
        %v7042 = vpop.xlane.xlu0 %7041
        %v7043 = vmul.f32 %v7042, %v2254
        %v7044 = vsub.f32 %v7035, %v7043
        %v7045 = vmul.f32 %v7044, %v7044
        %v7046 = vsel %vm1540, %v7045, 0.0
        %7047 = vadd.xlane.f32.xlu0 %v7046
        %v7048 = vpop.xlane.xlu0 %7047
        %v7049 = vmul.f32 %v7048, %v2254
        %v7050 = vadd.f32 %v7049, 1e-05
        %v7051 = vrsqrt.pop %v7050
        %v7052 = vmul.f32 %v7044, %v7051
        %v7054 = vlaneseq
        %v7055 = vshrl.u32 %v7054, 7
        %v7056 = vsub.s32 0, %v7055
        %v7057 = vrot.slane %v7037, %v7056
        %v7059 = vmul.f32 %v7052, %v7057
        %v7061 = vlaneseq
        %v7062 = vshrl.u32 %v7061, 7
        %v7063 = vsub.s32 0, %v7062
        %v7064 = vrot.slane %v7039, %v7063
        %v7066 = vadd.f32 %v7059, %v7064
        %v7067 = vld [vmem:[%s81] sm:$0x1]
        %v7068 = vld [vmem:[%s83] sm:$0x1]
        %v7069 = vsel %vm1540, %v7066, 0.0
        %7070 = vadd.xlane.f32.xlu0 %v7069
        %v7071 = vpop.xlane.xlu0 %7070
        %v7072 = vmul.f32 %v7071, %v2254
        %v7073 = vsub.f32 %v7066, %v7072
        %v7074 = vmul.f32 %v7073, %v7073
        %v7075 = vsel %vm1540, %v7074, 0.0
        %7076 = vadd.xlane.f32.xlu0 %v7075
        %v7077 = vpop.xlane.xlu0 %7076
        %v7078 = vmul.f32 %v7077, %v2254
        %v7079 = vadd.f32 %v7078, 1e-05
        %v7080 = vrsqrt.pop %v7079
        %v7081 = vmul.f32 %v7073, %v7080
        %v7083 = vlaneseq
        %v7084 = vshrl.u32 %v7083, 7
        %v7085 = vsub.s32 0, %v7084
        %v7086 = vrot.slane %v7067, %v7085
        %v7088 = vmul.f32 %v7081, %v7086
        %v7090 = vlaneseq
        %v7091 = vshrl.u32 %v7090, 7
        %v7092 = vsub.s32 0, %v7091
        %v7093 = vrot.slane %v7068, %v7092
        %v7095 = vadd.f32 %v7088, %v7093
        %v7096 = vld [vmem:[%s85] sm:$0xf]
        %v7097 = vld [vmem:[%s85 + $0x4] sm:$0xf]
        %v7098 = vld [vmem:[%s85 + $0x8] sm:$0xf]
        %v7099 = vld [vmem:[%s85 + $0xc] sm:$0xf]
        %v7100 = vpack.c.bf16 %v7095, %v7095
        %v7101 = vld [vmem:[%s87] sm:$0x1]
        %v7103 = vlaneseq
        %v7104 = vshrl.u32 %v7103, 7
        %v7105 = vsub.s32 0, %v7104
        %v7106 = vrot.slane %v7101, %v7105
        %v7112 = vunpack.c.l.b16 %v7096
        %v7113 = vunpack.c.l.b16 %v7097
        %v7114 = vunpack.c.l.b16 %v7098
        %v7115 = vunpack.c.l.b16 %v7099
        %v7116 = vpack.c.b16 %v7113, %v7112
        %v7117 = vpack.c.b16 %v7115, %v7114
        %v7121 = vsel %vm1540, %v7100, 0
        %7123 = vmatprep.subr.bf16.mxu0 0
        %7124 = vmatpush1.bf16.msra.mxu0 %v7116
        %7125 = vmatprep.subr.bf16.mxu0 0
        %7126 = vmatpush1.bf16.msra.mxu0 %v7117
        %7127 = vmatprep.subr.bf16.mxu0 0
        %7128 = vmatpush1.bf16.msra.mxu0 0
        %7129 = vmatprep.subr.bf16.mxu0 0
        %7130 = vmatpush1.bf16.msra.mxu0 0
        %7131 = vmatprep.subr.bf16.mxu0 0
        %7132 = vmatpush1.bf16.msra.mxu0 0
        %7133 = vmatprep.subr.bf16.mxu0 0
        %7134 = vmatpush1.bf16.msra.mxu0 0
        %7135 = vmatprep.subr.bf16.mxu0 0
        %7136 = vmatpush1.bf16.msra.mxu0 0
        %7137 = vmatprep.subr.bf16.mxu0 0
        %7138 = vmatpush1.bf16.msra.mxu0 0
        %7139 = vmatprep.subr.bf16.mxu0 0
        %7140 = vmatpush1.bf16.msra.mxu0 0
        %7141 = vmatprep.subr.bf16.mxu0 0
        %7142 = vmatpush1.bf16.msra.mxu0 0
        %7143 = vmatprep.subr.bf16.mxu0 0
        %7144 = vmatpush1.bf16.msra.mxu0 0
        %7145 = vmatprep.subr.bf16.mxu0 0
        %7146 = vmatpush1.bf16.msra.mxu0 0
        %7147 = vmatprep.subr.bf16.mxu0 0
        %7148 = vmatpush1.bf16.msra.mxu0 0
        %7149 = vmatprep.subr.bf16.mxu0 0
        %7150 = vmatpush1.bf16.msra.mxu0 0
        %7151 = vmatprep.subr.bf16.mxu0 0
        %7152 = vmatpush1.bf16.msra.mxu0 0
        %7153 = vmatprep.subr.bf16.mxu0 0
        %7154 = vmatpush1.bf16.msra.mxu0 0
        %7155 = vmatprep.mubr.bf16.mxu0 0
        %7156 = vmatmul.mubr.bf16.gmra.mrb[0].mxu0 %v7121
        %v7157 = vpop.f32.mrb[0].mxu0
        %v7158 = vadd.f32 %v7106, %v7157
        %v7159 = vpop.f32.mrb[0].mxu0
        %v7160 = vpop.f32.mrb[0].mxu0
        %v7161 = vpop.f32.mrb[0].mxu0
        %7162 = vdwg.mxu0
        %7163 = vst.msk [vmem:[%s1392] sm:$0xff] %vm1404, %v7158
        %p7164 = scmp.lt.s32.totalorder %s102, 1
        %s7165 = scalar_select %p7164, %s102, 1
        %s7166 = smul.addr %s7165, 8
        %s7167 = scalar_lea.vmem %s89, %s7166
        // Predicated region
        $region205: #{particle_transformer_forward.1} parent=195 // pred_check
          %p7168 = pneg %p1064
        $region206: #{particle_transformer_forward.1} parent=195 // pred_check_branch
          %7170 = sbr.rel (%p7168) target = $region208
        $region207: #{particle_transformer_forward.1} parent=195 // pred_region
          _
        $region208: #{particle_transformer_forward.1} parent=195 // pred_fallthru
          _
      $region196: #{particle_transformer_forward.1} parent=5 // pred_fallthru
        _
      %p7171 = scmp.le.s32.totalorder 2, %s97
      // Predicated region
      $region209: #{particle_transformer_forward.1} parent=5 // pred_check
        %p7172 = pneg %p7171
      $region210: #{particle_transformer_forward.1} parent=5 // pred_check_branch
        %7174 = sbr.rel (%p7172) target = $region212
      $region211: #{particle_transformer_forward.1} parent=5 // pred_region
        %s7175 = ssub.s32 %s97, 2
        // Predicated region
        $region213: #{particle_transformer_forward.1} parent=211 // pred_check
          %p7176 = pneg %p1070
        $region214: #{particle_transformer_forward.1} parent=211 // pred_check_branch
          %7178 = sbr.rel (%p7176) target = $region216
        $region215: #{particle_transformer_forward.1} parent=211 // pred_region
          %p7179 = scmp.lt.s32.totalorder %s103, 1
          %s7180 = scalar_select %p7179, %s103, 1
          %s7181 = smul.addr %s7180, 8
          %s7182 = scalar_lea.vmem %s89, %s7181
        $region216: #{particle_transformer_forward.1} parent=211 // pred_fallthru
          _
      $region212: #{particle_transformer_forward.1} parent=5 // pred_fallthru
        _
    $region6: #{particle_transformer_forward.1} parent=1 // loop_footer
      %s101 = sadd.s32 1, %s97
    $region7: #{particle_transformer_forward.1} parent=1 // loop_footer_branch
      %96 = sbr.rel target = $region3
    $region8: #{particle_transformer_forward.1} parent=1 // loop_exit
      _
    %7183 = vsyncpa [#allocation3], 1
    %s7184 = scalar_lea.sflag [#allocation3], 1
    %7185 = vsyncpa %s7184, 1
    %7186 = vsyncpa [#allocation5], 1

</llo_original>
